<compile_context>
chip_gen: v5e
topology: v5e:2x2
jax: 0.10.0
libtpu: 0.0.40
codegen_flags: <defaults>
</compile_context>

<pallas_src>
import functools

import jax
import jax.numpy as jnp
import numpy as np
from jax.experimental import pallas as pl
from jax.experimental.pallas import tpu as pltpu

BN_EPS = 1e-5
VMEM_LIMIT_BYTES = 64 * 1024 * 1024


# --------------------------------------------------------------------------
# Shared conv body: 9 shifted matmuls over the row-flattened, spatially
# padded image (one batch element), f32 accumulation on the MXU.
# --------------------------------------------------------------------------
def _conv_taps(xf_ref, w_ref, *, kh, kw, wpad, lo):
    # xf_ref : (Lp, Cin)        row-flattened padded image, native dtype
    # w_ref  : (KH*KW, Cin, CP) conv weights, Cout zero-padded to CP lanes
    acc = None
    for t in range(kh * kw):
        i, j = divmod(t, kw)
        off = i * wpad + j                              # static sublane offset
        xt = xf_ref[off:off + lo, :]                    # (Lo, Cin), no widen
        p = jnp.dot(xt, w_ref[t], preferred_element_type=jnp.float32)
        acc = p if acc is None else acc + p
    return acc                                          # (Lo, CP) f32


# --------------------------------------------------------------------------
# Pass 1: per-image per-channel sum / sum-of-squares of the conv output.
# (No conv output is written to HBM.)
# --------------------------------------------------------------------------
def _conv_stats_kernel(xf_ref, w_ref, sum_ref, ssq_ref, *,
                       kh, kw, wpad, w_out, lo):
    acc = _conv_taps(xf_ref, w_ref, kh=kh, kw=kw, wpad=wpad, lo=lo)
    # Exclude the wrap-around columns (ow >= W) from the BN statistics.
    col = jax.lax.broadcasted_iota(jnp.int32, (lo, 1), 0) % wpad
    yv = jnp.where(col < w_out, acc, 0.0)
    # TODO(synk): E[y^2]-E[y]^2 in f32 can cancel when |mean| >> std; switch
    # to shifted (per-tile mean-subtracted) sums if that regime matters.
    sum_ref[...] = jnp.sum(yv, axis=0, keepdims=True)
    ssq_ref[...] = jnp.sum(yv * yv, axis=0, keepdims=True)


# --------------------------------------------------------------------------
# Pass 2: recompute conv, apply y*scale + shift, write unpadded channels.
# --------------------------------------------------------------------------
def _conv_bn_apply_kernel(xf_ref, w_ref, scale_ref, shift_ref, o_ref, *,
                          kh, kw, wpad, lo, cout):
    acc = _conv_taps(xf_ref, w_ref, kh=kh, kw=kw, wpad=wpad, lo=lo)
    y = acc * scale_ref[...] + shift_ref[...]           # fused per-channel FMA
    o_ref[...] = y[:, :cout].astype(o_ref.dtype)        # drop lane padding


# --------------------------------------------------------------------------
# Wrapper.
# --------------------------------------------------------------------------
@functools.partial(jax.jit, static_argnames=("kh", "kw", "pad", "compute_dtype"))
def convbn_forward(x_nchw, weight_oihw, bias, gamma, beta, *,
                   kh=3, kw=3, pad=1, compute_dtype=jnp.float32):
    # Conv bias is cancelled exactly by training-mode BN mean subtraction.
    # TODO(synk): re-add the bias if this is ever reused with eval-mode
    # running statistics.
    del bias
    n, cin, h, w = x_nchw.shape
    cout = weight_oihw.shape[0]
    cp = ((cout + 127) // 128) * 128          # lane-dense matmul width (VMEM only)
    wpad = w + 2 * pad                        # padded width
    lo = h * wpad                             # conv-output rows per image
    hpad = h + 2 * pad + 1                    # extra bottom row keeps shifted
    lp = hpad * wpad                          #   windows in bounds

    # NHWC, pad spatially once (top=pad, bottom=pad+1, left/right=pad), flatten.
    x_nhwc = jnp.transpose(x_nchw, (0, 2, 3, 1))
    xp = jnp.pad(x_nhwc, ((0, 0), (pad, pad + 1), (pad, pad), (0, 0)))
    xf = xp.reshape(n, lp, cin).astype(compute_dtype)

    # (Cout, Cin, KH, KW) -> (KH*KW, Cin, CP), zero-padded output channels.
    w_taps = jnp.transpose(weight_oihw, (2, 3, 1, 0)).reshape(kh * kw, cin, cout)
    w_taps = jnp.pad(w_taps, ((0, 0), (0, 0), (0, cp - cout))).astype(compute_dtype)

    in_bytes = jnp.dtype(compute_dtype).itemsize
    conv_flops = 2 * n * lo * cin * cp * kh * kw
    x_bytes = n * lp * cin * in_bytes
    w_bytes = kh * kw * cin * cp * in_bytes

    # ---- Pass 1: conv statistics only (per-image partials, parallel) ------
    sums, ssqs = pl.pallas_call(
        functools.partial(_conv_stats_kernel, kh=kh, kw=kw, wpad=wpad,
                          w_out=w, lo=lo),
        out_shape=(jax.ShapeDtypeStruct((n, 1, cp), jnp.float32),
                   jax.ShapeDtypeStruct((n, 1, cp), jnp.float32)),
        grid=(n,),
        in_specs=[
            pl.BlockSpec((None, lp, cin), lambda b: (b, 0, 0)),
            pl.BlockSpec((kh * kw, cin, cp), lambda b: (0, 0, 0)),
        ],
        out_specs=(
            pl.BlockSpec((None, 1, cp), lambda b: (b, 0, 0)),
            pl.BlockSpec((None, 1, cp), lambda b: (b, 0, 0)),
        ),
        compiler_params=pltpu.CompilerParams(
            dimension_semantics=("parallel",),           # v7x: both TCs usable
            vmem_limit_bytes=VMEM_LIMIT_BYTES),
        cost_estimate=pl.CostEstimate(
            flops=conv_flops + 3 * n * lo * cp,
            transcendentals=0,
            bytes_accessed=x_bytes + w_bytes + 2 * n * cp * 4),
    )(xf, w_taps)

    # ---- Tiny XLA glue: reduce partials, compute scale/shift once ---------
    count = float(n * h * w)
    mean = jnp.sum(sums, axis=0) * (1.0 / count)                       # (1, cp)
    var = jnp.maximum(jnp.sum(ssqs, axis=0) * (1.0 / count) - mean * mean, 0.0)
    gamma_p = jnp.pad(gamma, (0, cp - cout)).reshape(1, cp).astype(jnp.float32)
    beta_p = jnp.pad(beta, (0, cp - cout)).reshape(1, cp).astype(jnp.float32)
    scale = gamma_p * jax.lax.rsqrt(var + BN_EPS)
    shift = beta_p - mean * scale

    # ---- Pass 2: conv recompute + normalize + affine, write output once ---
    out_dtype = x_nchw.dtype
    out_bytes = jnp.dtype(out_dtype).itemsize
    y_flat = pl.pallas_call(
        functools.partial(_conv_bn_apply_kernel, kh=kh, kw=kw, wpad=wpad,
                          lo=lo, cout=cout),
        out_shape=jax.ShapeDtypeStruct((n, lo, cout), out_dtype),
        grid=(n,),
        in_specs=[
            pl.BlockSpec((None, lp, cin), lambda b: (b, 0, 0)),
            pl.BlockSpec((kh * kw, cin, cp), lambda b: (0, 0, 0)),
            pl.BlockSpec((1, cp), lambda b: (0, 0)),
            pl.BlockSpec((1, cp), lambda b: (0, 0)),
        ],
        out_specs=pl.BlockSpec((None, lo, cout), lambda b: (b, 0, 0)),
        compiler_params=pltpu.CompilerParams(
            dimension_semantics=("parallel",),
            vmem_limit_bytes=VMEM_LIMIT_BYTES),
        cost_estimate=pl.CostEstimate(
            flops=conv_flops + 2 * n * lo * cp,
            transcendentals=0,
            bytes_accessed=x_bytes + w_bytes + n * lo * cout * out_bytes),
    )(xf, w_taps, scale, shift)

    # Drop the (small) width overhang, return NCHW like PyTorch.
    out = y_flat.reshape(n, h, wpad, cout)[:, :, :w, :]
    return jnp.transpose(out, (0, 3, 1, 2))


def reference_forward(x_nchw, weight_oihw, bias, gamma, beta, pad=1):
    y = jax.lax.conv_general_dilated(
        x_nchw, weight_oihw, window_strides=(1, 1),
        padding=[(pad, pad), (pad, pad)],
        dimension_numbers=("NCHW", "OIHW", "NCHW"))
    y = y + bias.reshape(1, -1, 1, 1)
    mean = jnp.mean(y, axis=(0, 2, 3), keepdims=True)
    var = jnp.mean((y - mean) ** 2, axis=(0, 2, 3), keepdims=True)
    yn = (y - mean) * jax.lax.rsqrt(var + BN_EPS)
    return gamma.reshape(1, -1, 1, 1) * yn + beta.reshape(1, -1, 1, 1)


if __name__ == "__main__":
    N, Cin, H, W = 2, 4, 16, 16
    Cout, KH, KW = 8, 3, 3
    activation_gain = float(np.sqrt(2.0))  # kaiming_normal_, nonlinearity='relu'

    key = jax.random.PRNGKey(0)
    kx, kw_ = jax.random.split(key)
    x = jax.random.normal(kx, (N, Cin, H, W), dtype=jnp.float32)

    fan_in = Cin * KH * KW
    std = activation_gain / np.sqrt(fan_in)
    weight = std * jax.random.normal(kw_, (Cout, Cin, KH, KW), dtype=jnp.float32)
    bias = jnp.zeros((Cout,), dtype=jnp.float32)     # constant_(conv.bias, 0)
    gamma = jnp.ones((Cout,), dtype=jnp.float32)     # BN weight init
    beta = jnp.zeros((Cout,), dtype=jnp.float32)     # BN bias init
    # TODO(synk): BN running_mean/running_var tracking (training-time side
    # effect) is not modeled; forward uses batch statistics (train mode).
    # TODO(synk): only stride=1 convs are supported (Conv2d *args/**kwargs such
    # as stride/dilation/groups are not implemented).

    ref = jax.block_until_ready(reference_forward(x, weight, bias, gamma, beta))

    # f32 path: tight check.
    out = jax.block_until_ready(
        convbn_forward(x, weight, bias, gamma, beta,
                       kh=KH, kw=KW, pad=1, compute_dtype=jnp.float32))
    np.testing.assert_allclose(np.asarray(out), np.asarray(ref),
                               rtol=2e-4, atol=2e-4)

    # bf16 matmul-input path (recommended on v5e/v6e/v7x for bandwidth and
    # MXU throughput): looser check.  NOTE: this quantizes the activations
    # themselves to bf16, not just the matmul operands.
    out_bf16 = jax.block_until_ready(
        convbn_forward(x, weight, bias, gamma, beta,
                       kh=KH, kw=KW, pad=1, compute_dtype=jnp.bfloat16))
    np.testing.assert_allclose(np.asarray(out_bf16), np.asarray(ref),
                               rtol=5e-2, atol=1e-1)

    print("KERNEL_OK")
</pallas_src>

<mosaic_0001>
module attributes {stable_mosaic.version = 11 : i64} {
  func.func @_conv_bn_apply_kernel(%arg0: i32, %arg1: memref<1x342x4xf32, #tpu.memory_space<vmem>>, %arg2: memref<9x4x128xf32, #tpu.memory_space<vmem>>, %arg3: memref<1x128xf32, #tpu.memory_space<vmem>>, %arg4: memref<1x128xf32, #tpu.memory_space<vmem>>, %arg5: memref<1x288x8xf32, #tpu.memory_space<vmem>>) attributes {dimension_semantics = [#tpu.dimension_semantics<parallel>], iteration_bounds = array<i64: 2>, scalar_prefetch = 0 : i64, scratch_operands = 0 : i64, tpu.core_type = #tpu.core_type<tc>, window_params = [{transform_indices = @transform_0, window_bounds = array<i64: 1, 342, 4>}, {pipeline_mode = #tpu.pipeline_mode<synchronous>, transform_indices = @transform_1, window_bounds = array<i64: 9, 4, 128>}, {pipeline_mode = #tpu.pipeline_mode<synchronous>, transform_indices = @transform_2, window_bounds = array<i64: 1, 128>}, {pipeline_mode = #tpu.pipeline_mode<synchronous>, transform_indices = @transform_3, window_bounds = array<i64: 1, 128>}, {transform_indices = @transform_4, window_bounds = array<i64: 1, 288, 8>}]} {
    %c0 = arith.constant 0 : index
    %c0_0 = arith.constant 0 : index
    %c0_1 = arith.constant 0 : index
    %0 = vector.load %arg1[%c0, %c0_0, %c0_1] : memref<1x342x4xf32, #tpu.memory_space<vmem>>, vector<1x288x4xf32>
    %1 = vector.shape_cast %0 : vector<1x288x4xf32> to vector<288x4xf32>
    %c0_2 = arith.constant 0 : index
    %c0_3 = arith.constant 0 : index
    %c0_4 = arith.constant 0 : index
    %2 = vector.load %arg2[%c0_2, %c0_3, %c0_4] : memref<9x4x128xf32, #tpu.memory_space<vmem>>, vector<1x4x128xf32>
    %3 = vector.shape_cast %2 : vector<1x4x128xf32> to vector<4x128xf32>
    %cst = arith.constant dense<0.000000e+00> : vector<288x128xf32>
    %4 = tpu.matmul %1, %3, %cst {dimension_numbers = #tpu.dot_dimension_numbers<[1], [0], [0], [1], [0, 0, 1, 1], [], []>} : vector<288x4xf32>, vector<4x128xf32>, vector<288x128xf32> -> vector<288x128xf32>
    %c0_5 = arith.constant 0 : index
    %c1 = arith.constant 1 : index
    %c0_6 = arith.constant 0 : index
    %5 = vector.load %arg1[%c0_5, %c1, %c0_6] : memref<1x342x4xf32, #tpu.memory_space<vmem>>, vector<1x288x4xf32>
    %6 = vector.shape_cast %5 : vector<1x288x4xf32> to vector<288x4xf32>
    %c1_7 = arith.constant 1 : index
    %c0_8 = arith.constant 0 : index
    %c0_9 = arith.constant 0 : index
    %7 = vector.load %arg2[%c1_7, %c0_8, %c0_9] : memref<9x4x128xf32, #tpu.memory_space<vmem>>, vector<1x4x128xf32>
    %8 = vector.shape_cast %7 : vector<1x4x128xf32> to vector<4x128xf32>
    %cst_10 = arith.constant dense<0.000000e+00> : vector<288x128xf32>
    %9 = tpu.matmul %6, %8, %cst_10 {dimension_numbers = #tpu.dot_dimension_numbers<[1], [0], [0], [1], [0, 0, 1, 1], [], []>} : vector<288x4xf32>, vector<4x128xf32>, vector<288x128xf32> -> vector<288x128xf32>
    %10 = arith.addf %4, %9 : vector<288x128xf32>
    %c0_11 = arith.constant 0 : index
    %c2 = arith.constant 2 : index
    %c0_12 = arith.constant 0 : index
    %11 = vector.load %arg1[%c0_11, %c2, %c0_12] : memref<1x342x4xf32, #tpu.memory_space<vmem>>, vector<1x288x4xf32>
    %12 = vector.shape_cast %11 : vector<1x288x4xf32> to vector<288x4xf32>
    %c2_13 = arith.constant 2 : index
    %c0_14 = arith.constant 0 : index
    %c0_15 = arith.constant 0 : index
    %13 = vector.load %arg2[%c2_13, %c0_14, %c0_15] : memref<9x4x128xf32, #tpu.memory_space<vmem>>, vector<1x4x128xf32>
    %14 = vector.shape_cast %13 : vector<1x4x128xf32> to vector<4x128xf32>
    %cst_16 = arith.constant dense<0.000000e+00> : vector<288x128xf32>
    %15 = tpu.matmul %12, %14, %cst_16 {dimension_numbers = #tpu.dot_dimension_numbers<[1], [0], [0], [1], [0, 0, 1, 1], [], []>} : vector<288x4xf32>, vector<4x128xf32>, vector<288x128xf32> -> vector<288x128xf32>
    %16 = arith.addf %10, %15 : vector<288x128xf32>
    %c0_17 = arith.constant 0 : index
    %c18 = arith.constant 18 : index
    %c0_18 = arith.constant 0 : index
    %17 = vector.load %arg1[%c0_17, %c18, %c0_18] : memref<1x342x4xf32, #tpu.memory_space<vmem>>, vector<1x288x4xf32>
    %18 = vector.shape_cast %17 : vector<1x288x4xf32> to vector<288x4xf32>
    %c3 = arith.constant 3 : index
    %c0_19 = arith.constant 0 : index
    %c0_20 = arith.constant 0 : index
    %19 = vector.load %arg2[%c3, %c0_19, %c0_20] : memref<9x4x128xf32, #tpu.memory_space<vmem>>, vector<1x4x128xf32>
    %20 = vector.shape_cast %19 : vector<1x4x128xf32> to vector<4x128xf32>
    %cst_21 = arith.constant dense<0.000000e+00> : vector<288x128xf32>
    %21 = tpu.matmul %18, %20, %cst_21 {dimension_numbers = #tpu.dot_dimension_numbers<[1], [0], [0], [1], [0, 0, 1, 1], [], []>} : vector<288x4xf32>, vector<4x128xf32>, vector<288x128xf32> -> vector<288x128xf32>
    %22 = arith.addf %16, %21 : vector<288x128xf32>
    %c0_22 = arith.constant 0 : index
    %c19 = arith.constant 19 : index
    %c0_23 = arith.constant 0 : index
    %23 = vector.load %arg1[%c0_22, %c19, %c0_23] : memref<1x342x4xf32, #tpu.memory_space<vmem>>, vector<1x288x4xf32>
    %24 = vector.shape_cast %23 : vector<1x288x4xf32> to vector<288x4xf32>
    %c4 = arith.constant 4 : index
    %c0_24 = arith.constant 0 : index
    %c0_25 = arith.constant 0 : index
    %25 = vector.load %arg2[%c4, %c0_24, %c0_25] : memref<9x4x128xf32, #tpu.memory_space<vmem>>, vector<1x4x128xf32>
    %26 = vector.shape_cast %25 : vector<1x4x128xf32> to vector<4x128xf32>
    %cst_26 = arith.constant dense<0.000000e+00> : vector<288x128xf32>
    %27 = tpu.matmul %24, %26, %cst_26 {dimension_numbers = #tpu.dot_dimension_numbers<[1], [0], [0], [1], [0, 0, 1, 1], [], []>} : vector<288x4xf32>, vector<4x128xf32>, vector<288x128xf32> -> vector<288x128xf32>
    %28 = arith.addf %22, %27 : vector<288x128xf32>
    %c0_27 = arith.constant 0 : index
    %c20 = arith.constant 20 : index
    %c0_28 = arith.constant 0 : index
    %29 = vector.load %arg1[%c0_27, %c20, %c0_28] : memref<1x342x4xf32, #tpu.memory_space<vmem>>, vector<1x288x4xf32>
    %30 = vector.shape_cast %29 : vector<1x288x4xf32> to vector<288x4xf32>
    %c5 = arith.constant 5 : index
    %c0_29 = arith.constant 0 : index
    %c0_30 = arith.constant 0 : index
    %31 = vector.load %arg2[%c5, %c0_29, %c0_30] : memref<9x4x128xf32, #tpu.memory_space<vmem>>, vector<1x4x128xf32>
    %32 = vector.shape_cast %31 : vector<1x4x128xf32> to vector<4x128xf32>
    %cst_31 = arith.constant dense<0.000000e+00> : vector<288x128xf32>
    %33 = tpu.matmul %30, %32, %cst_31 {dimension_numbers = #tpu.dot_dimension_numbers<[1], [0], [0], [1], [0, 0, 1, 1], [], []>} : vector<288x4xf32>, vector<4x128xf32>, vector<288x128xf32> -> vector<288x128xf32>
    %34 = arith.addf %28, %33 : vector<288x128xf32>
    %c0_32 = arith.constant 0 : index
    %c36 = arith.constant 36 : index
    %c0_33 = arith.constant 0 : index
    %35 = vector.load %arg1[%c0_32, %c36, %c0_33] : memref<1x342x4xf32, #tpu.memory_space<vmem>>, vector<1x288x4xf32>
    %36 = vector.shape_cast %35 : vector<1x288x4xf32> to vector<288x4xf32>
    %c6 = arith.constant 6 : index
    %c0_34 = arith.constant 0 : index
    %c0_35 = arith.constant 0 : index
    %37 = vector.load %arg2[%c6, %c0_34, %c0_35] : memref<9x4x128xf32, #tpu.memory_space<vmem>>, vector<1x4x128xf32>
    %38 = vector.shape_cast %37 : vector<1x4x128xf32> to vector<4x128xf32>
    %cst_36 = arith.constant dense<0.000000e+00> : vector<288x128xf32>
    %39 = tpu.matmul %36, %38, %cst_36 {dimension_numbers = #tpu.dot_dimension_numbers<[1], [0], [0], [1], [0, 0, 1, 1], [], []>} : vector<288x4xf32>, vector<4x128xf32>, vector<288x128xf32> -> vector<288x128xf32>
    %40 = arith.addf %34, %39 : vector<288x128xf32>
    %c0_37 = arith.constant 0 : index
    %c37 = arith.constant 37 : index
    %c0_38 = arith.constant 0 : index
    %41 = vector.load %arg1[%c0_37, %c37, %c0_38] : memref<1x342x4xf32, #tpu.memory_space<vmem>>, vector<1x288x4xf32>
    %42 = vector.shape_cast %41 : vector<1x288x4xf32> to vector<288x4xf32>
    %c7 = arith.constant 7 : index
    %c0_39 = arith.constant 0 : index
    %c0_40 = arith.constant 0 : index
    %43 = vector.load %arg2[%c7, %c0_39, %c0_40] : memref<9x4x128xf32, #tpu.memory_space<vmem>>, vector<1x4x128xf32>
    %44 = vector.shape_cast %43 : vector<1x4x128xf32> to vector<4x128xf32>
    %cst_41 = arith.constant dense<0.000000e+00> : vector<288x128xf32>
    %45 = tpu.matmul %42, %44, %cst_41 {dimension_numbers = #tpu.dot_dimension_numbers<[1], [0], [0], [1], [0, 0, 1, 1], [], []>} : vector<288x4xf32>, vector<4x128xf32>, vector<288x128xf32> -> vector<288x128xf32>
    %46 = arith.addf %40, %45 : vector<288x128xf32>
    %c0_42 = arith.constant 0 : index
    %c38 = arith.constant 38 : index
    %c0_43 = arith.constant 0 : index
    %47 = vector.load %arg1[%c0_42, %c38, %c0_43] : memref<1x342x4xf32, #tpu.memory_space<vmem>>, vector<1x288x4xf32>
    %48 = vector.shape_cast %47 : vector<1x288x4xf32> to vector<288x4xf32>
    %c8 = arith.constant 8 : index
    %c0_44 = arith.constant 0 : index
    %c0_45 = arith.constant 0 : index
    %49 = vector.load %arg2[%c8, %c0_44, %c0_45] : memref<9x4x128xf32, #tpu.memory_space<vmem>>, vector<1x4x128xf32>
    %50 = vector.shape_cast %49 : vector<1x4x128xf32> to vector<4x128xf32>
    %cst_46 = arith.constant dense<0.000000e+00> : vector<288x128xf32>
    %51 = tpu.matmul %48, %50, %cst_46 {dimension_numbers = #tpu.dot_dimension_numbers<[1], [0], [0], [1], [0, 0, 1, 1], [], []>} : vector<288x4xf32>, vector<4x128xf32>, vector<288x128xf32> -> vector<288x128xf32>
    %52 = arith.addf %46, %51 : vector<288x128xf32>
    %c0_47 = arith.constant 0 : index
    %c0_48 = arith.constant 0 : index
    %53 = vector.load %arg3[%c0_47, %c0_48] : memref<1x128xf32, #tpu.memory_space<vmem>>, vector<1x128xf32>
    %54 = vector.broadcast %53 : vector<1x128xf32> to vector<288x128xf32>
    %55 = arith.mulf %52, %54 : vector<288x128xf32>
    %c0_49 = arith.constant 0 : index
    %c0_50 = arith.constant 0 : index
    %56 = vector.load %arg4[%c0_49, %c0_50] : memref<1x128xf32, #tpu.memory_space<vmem>>, vector<1x128xf32>
    %57 = vector.broadcast %56 : vector<1x128xf32> to vector<288x128xf32>
    %58 = arith.addf %55, %57 : vector<288x128xf32>
    %59 = vector.extract_strided_slice %58 {offsets = [0, 0], sizes = [288, 8], strides = [1, 1]} : vector<288x128xf32> to vector<288x8xf32>
    %c0_51 = arith.constant 0 : index
    %c0_52 = arith.constant 0 : index
    %c0_53 = arith.constant 0 : index
    %60 = vector.load %arg5[%c0_51, %c0_52, %c0_53] : memref<1x288x8xf32, #tpu.memory_space<vmem>>, vector<1x288x8xf32>
    %61 = vector.shape_cast %60 : vector<1x288x8xf32> to vector<288x8xf32>
    %62 = vector.shape_cast %59 : vector<288x8xf32> to vector<1x288x8xf32>
    tpu.vector_store %arg5[%c0_51, %c0_52, %c0_53], %62 {strides = array<i32>} : memref<1x288x8xf32, #tpu.memory_space<vmem>>, vector<1x288x8xf32>,
    return
  }
  func.func @transform_0(%arg0: i32) -> (i32, i32, i32) {
    %c0_i32 = arith.constant 0 : i32
    %c0_i32_0 = arith.constant 0 : i32
    %c0_i32_1 = arith.constant 0 : i32
    return %arg0, %c0_i32, %c0_i32_0 : i32, i32, i32
  }
  func.func @transform_1(%arg0: i32) -> (i32, i32, i32) {
    %c0_i32 = arith.constant 0 : i32
    %c0_i32_0 = arith.constant 0 : i32
    %c0_i32_1 = arith.constant 0 : i32
    %c0_i32_2 = arith.constant 0 : i32
    return %c0_i32, %c0_i32_0, %c0_i32_1 : i32, i32, i32
  }
  func.func @transform_2(%arg0: i32) -> (i32, i32) {
    %c0_i32 = arith.constant 0 : i32
    %c0_i32_0 = arith.constant 0 : i32
    %c0_i32_1 = arith.constant 0 : i32
    return %c0_i32, %c0_i32_0 : i32, i32
  }
  func.func @transform_3(%arg0: i32) -> (i32, i32) {
    %c0_i32 = arith.constant 0 : i32
    %c0_i32_0 = arith.constant 0 : i32
    %c0_i32_1 = arith.constant 0 : i32
    return %c0_i32, %c0_i32_0 : i32, i32
  }
  func.func @transform_4(%arg0: i32) -> (i32, i32, i32) {
    %c0_i32 = arith.constant 0 : i32
    %c0_i32_0 = arith.constant 0 : i32
    %c0_i32_1 = arith.constant 0 : i32
    return %arg0, %c0_i32, %c0_i32_0 : i32, i32, i32
  }
}

module attributes {stable_mosaic.version = 11 : i64} {
  func.func @_conv_stats_kernel(%arg0: i32, %arg1: memref<1x342x4xf32, #tpu.memory_space<vmem>>, %arg2: memref<9x4x128xf32, #tpu.memory_space<vmem>>, %arg3: memref<1x1x128xf32, #tpu.memory_space<vmem>>, %arg4: memref<1x1x128xf32, #tpu.memory_space<vmem>>) attributes {dimension_semantics = [#tpu.dimension_semantics<parallel>], iteration_bounds = array<i64: 2>, scalar_prefetch = 0 : i64, scratch_operands = 0 : i64, tpu.core_type = #tpu.core_type<tc>, window_params = [{transform_indices = @transform_0, window_bounds = array<i64: 1, 342, 4>}, {pipeline_mode = #tpu.pipeline_mode<synchronous>, transform_indices = @transform_1, window_bounds = array<i64: 9, 4, 128>}, {transform_indices = @transform_2, window_bounds = array<i64: 1, 1, 128>}, {transform_indices = @transform_3, window_bounds = array<i64: 1, 1, 128>}]} {
    %c0 = arith.constant 0 : index
    %c0_0 = arith.constant 0 : index
    %c0_1 = arith.constant 0 : index
    %0 = vector.load %arg1[%c0, %c0_0, %c0_1] : memref<1x342x4xf32, #tpu.memory_space<vmem>>, vector<1x288x4xf32>
    %1 = vector.shape_cast %0 : vector<1x288x4xf32> to vector<288x4xf32>
    %c0_2 = arith.constant 0 : index
    %c0_3 = arith.constant 0 : index
    %c0_4 = arith.constant 0 : index
    %2 = vector.load %arg2[%c0_2, %c0_3, %c0_4] : memref<9x4x128xf32, #tpu.memory_space<vmem>>, vector<1x4x128xf32>
    %3 = vector.shape_cast %2 : vector<1x4x128xf32> to vector<4x128xf32>
    %cst = arith.constant dense<0.000000e+00> : vector<288x128xf32>
    %4 = tpu.matmul %1, %3, %cst {dimension_numbers = #tpu.dot_dimension_numbers<[1], [0], [0], [1], [0, 0, 1, 1], [], []>} : vector<288x4xf32>, vector<4x128xf32>, vector<288x128xf32> -> vector<288x128xf32>
    %c0_5 = arith.constant 0 : index
    %c1 = arith.constant 1 : index
    %c0_6 = arith.constant 0 : index
    %5 = vector.load %arg1[%c0_5, %c1, %c0_6] : memref<1x342x4xf32, #tpu.memory_space<vmem>>, vector<1x288x4xf32>
    %6 = vector.shape_cast %5 : vector<1x288x4xf32> to vector<288x4xf32>
    %c1_7 = arith.constant 1 : index
    %c0_8 = arith.constant 0 : index
    %c0_9 = arith.constant 0 : index
    %7 = vector.load %arg2[%c1_7, %c0_8, %c0_9] : memref<9x4x128xf32, #tpu.memory_space<vmem>>, vector<1x4x128xf32>
    %8 = vector.shape_cast %7 : vector<1x4x128xf32> to vector<4x128xf32>
    %cst_10 = arith.constant dense<0.000000e+00> : vector<288x128xf32>
    %9 = tpu.matmul %6, %8, %cst_10 {dimension_numbers = #tpu.dot_dimension_numbers<[1], [0], [0], [1], [0, 0, 1, 1], [], []>} : vector<288x4xf32>, vector<4x128xf32>, vector<288x128xf32> -> vector<288x128xf32>
    %10 = arith.addf %4, %9 : vector<288x128xf32>
    %c0_11 = arith.constant 0 : index
    %c2 = arith.constant 2 : index
    %c0_12 = arith.constant 0 : index
    %11 = vector.load %arg1[%c0_11, %c2, %c0_12] : memref<1x342x4xf32, #tpu.memory_space<vmem>>, vector<1x288x4xf32>
    %12 = vector.shape_cast %11 : vector<1x288x4xf32> to vector<288x4xf32>
    %c2_13 = arith.constant 2 : index
    %c0_14 = arith.constant 0 : index
    %c0_15 = arith.constant 0 : index
    %13 = vector.load %arg2[%c2_13, %c0_14, %c0_15] : memref<9x4x128xf32, #tpu.memory_space<vmem>>, vector<1x4x128xf32>
    %14 = vector.shape_cast %13 : vector<1x4x128xf32> to vector<4x128xf32>
    %cst_16 = arith.constant dense<0.000000e+00> : vector<288x128xf32>
    %15 = tpu.matmul %12, %14, %cst_16 {dimension_numbers = #tpu.dot_dimension_numbers<[1], [0], [0], [1], [0, 0, 1, 1], [], []>} : vector<288x4xf32>, vector<4x128xf32>, vector<288x128xf32> -> vector<288x128xf32>
    %16 = arith.addf %10, %15 : vector<288x128xf32>
    %c0_17 = arith.constant 0 : index
    %c18 = arith.constant 18 : index
    %c0_18 = arith.constant 0 : index
    %17 = vector.load %arg1[%c0_17, %c18, %c0_18] : memref<1x342x4xf32, #tpu.memory_space<vmem>>, vector<1x288x4xf32>
    %18 = vector.shape_cast %17 : vector<1x288x4xf32> to vector<288x4xf32>
    %c3 = arith.constant 3 : index
    %c0_19 = arith.constant 0 : index
    %c0_20 = arith.constant 0 : index
    %19 = vector.load %arg2[%c3, %c0_19, %c0_20] : memref<9x4x128xf32, #tpu.memory_space<vmem>>, vector<1x4x128xf32>
    %20 = vector.shape_cast %19 : vector<1x4x128xf32> to vector<4x128xf32>
    %cst_21 = arith.constant dense<0.000000e+00> : vector<288x128xf32>
    %21 = tpu.matmul %18, %20, %cst_21 {dimension_numbers = #tpu.dot_dimension_numbers<[1], [0], [0], [1], [0, 0, 1, 1], [], []>} : vector<288x4xf32>, vector<4x128xf32>, vector<288x128xf32> -> vector<288x128xf32>
    %22 = arith.addf %16, %21 : vector<288x128xf32>
    %c0_22 = arith.constant 0 : index
    %c19 = arith.constant 19 : index
    %c0_23 = arith.constant 0 : index
    %23 = vector.load %arg1[%c0_22, %c19, %c0_23] : memref<1x342x4xf32, #tpu.memory_space<vmem>>, vector<1x288x4xf32>
    %24 = vector.shape_cast %23 : vector<1x288x4xf32> to vector<288x4xf32>
    %c4 = arith.constant 4 : index
    %c0_24 = arith.constant 0 : index
    %c0_25 = arith.constant 0 : index
    %25 = vector.load %arg2[%c4, %c0_24, %c0_25] : memref<9x4x128xf32, #tpu.memory_space<vmem>>, vector<1x4x128xf32>
    %26 = vector.shape_cast %25 : vector<1x4x128xf32> to vector<4x128xf32>
    %cst_26 = arith.constant dense<0.000000e+00> : vector<288x128xf32>
    %27 = tpu.matmul %24, %26, %cst_26 {dimension_numbers = #tpu.dot_dimension_numbers<[1], [0], [0], [1], [0, 0, 1, 1], [], []>} : vector<288x4xf32>, vector<4x128xf32>, vector<288x128xf32> -> vector<288x128xf32>
    %28 = arith.addf %22, %27 : vector<288x128xf32>
    %c0_27 = arith.constant 0 : index
    %c20 = arith.constant 20 : index
    %c0_28 = arith.constant 0 : index
    %29 = vector.load %arg1[%c0_27, %c20, %c0_28] : memref<1x342x4xf32, #tpu.memory_space<vmem>>, vector<1x288x4xf32>
    %30 = vector.shape_cast %29 : vector<1x288x4xf32> to vector<288x4xf32>
    %c5 = arith.constant 5 : index
    %c0_29 = arith.constant 0 : index
    %c0_30 = arith.constant 0 : index
    %31 = vector.load %arg2[%c5, %c0_29, %c0_30] : memref<9x4x128xf32, #tpu.memory_space<vmem>>, vector<1x4x128xf32>
    %32 = vector.shape_cast %31 : vector<1x4x128xf32> to vector<4x128xf32>
    %cst_31 = arith.constant dense<0.000000e+00> : vector<288x128xf32>
    %33 = tpu.matmul %30, %32, %cst_31 {dimension_numbers = #tpu.dot_dimension_numbers<[1], [0], [0], [1], [0, 0, 1, 1], [], []>} : vector<288x4xf32>, vector<4x128xf32>, vector<288x128xf32> -> vector<288x128xf32>
    %34 = arith.addf %28, %33 : vector<288x128xf32>
    %c0_32 = arith.constant 0 : index
    %c36 = arith.constant 36 : index
    %c0_33 = arith.constant 0 : index
    %35 = vector.load %arg1[%c0_32, %c36, %c0_33] : memref<1x342x4xf32, #tpu.memory_space<vmem>>, vector<1x288x4xf32>
    %36 = vector.shape_cast %35 : vector<1x288x4xf32> to vector<288x4xf32>
    %c6 = arith.constant 6 : index
    %c0_34 = arith.constant 0 : index
    %c0_35 = arith.constant 0 : index
    %37 = vector.load %arg2[%c6, %c0_34, %c0_35] : memref<9x4x128xf32, #tpu.memory_space<vmem>>, vector<1x4x128xf32>
    %38 = vector.shape_cast %37 : vector<1x4x128xf32> to vector<4x128xf32>
    %cst_36 = arith.constant dense<0.000000e+00> : vector<288x128xf32>
    %39 = tpu.matmul %36, %38, %cst_36 {dimension_numbers = #tpu.dot_dimension_numbers<[1], [0], [0], [1], [0, 0, 1, 1], [], []>} : vector<288x4xf32>, vector<4x128xf32>, vector<288x128xf32> -> vector<288x128xf32>
    %40 = arith.addf %34, %39 : vector<288x128xf32>
    %c0_37 = arith.constant 0 : index
    %c37 = arith.constant 37 : index
    %c0_38 = arith.constant 0 : index
    %41 = vector.load %arg1[%c0_37, %c37, %c0_38] : memref<1x342x4xf32, #tpu.memory_space<vmem>>, vector<1x288x4xf32>
    %42 = vector.shape_cast %41 : vector<1x288x4xf32> to vector<288x4xf32>
    %c7 = arith.constant 7 : index
    %c0_39 = arith.constant 0 : index
    %c0_40 = arith.constant 0 : index
    %43 = vector.load %arg2[%c7, %c0_39, %c0_40] : memref<9x4x128xf32, #tpu.memory_space<vmem>>, vector<1x4x128xf32>
    %44 = vector.shape_cast %43 : vector<1x4x128xf32> to vector<4x128xf32>
    %cst_41 = arith.constant dense<0.000000e+00> : vector<288x128xf32>
    %45 = tpu.matmul %42, %44, %cst_41 {dimension_numbers = #tpu.dot_dimension_numbers<[1], [0], [0], [1], [0, 0, 1, 1], [], []>} : vector<288x4xf32>, vector<4x128xf32>, vector<288x128xf32> -> vector<288x128xf32>
    %46 = arith.addf %40, %45 : vector<288x128xf32>
    %c0_42 = arith.constant 0 : index
    %c38 = arith.constant 38 : index
    %c0_43 = arith.constant 0 : index
    %47 = vector.load %arg1[%c0_42, %c38, %c0_43] : memref<1x342x4xf32, #tpu.memory_space<vmem>>, vector<1x288x4xf32>
    %48 = vector.shape_cast %47 : vector<1x288x4xf32> to vector<288x4xf32>
    %c8 = arith.constant 8 : index
    %c0_44 = arith.constant 0 : index
    %c0_45 = arith.constant 0 : index
    %49 = vector.load %arg2[%c8, %c0_44, %c0_45] : memref<9x4x128xf32, #tpu.memory_space<vmem>>, vector<1x4x128xf32>
    %50 = vector.shape_cast %49 : vector<1x4x128xf32> to vector<4x128xf32>
    %cst_46 = arith.constant dense<0.000000e+00> : vector<288x128xf32>
    %51 = tpu.matmul %48, %50, %cst_46 {dimension_numbers = #tpu.dot_dimension_numbers<[1], [0], [0], [1], [0, 0, 1, 1], [], []>} : vector<288x4xf32>, vector<4x128xf32>, vector<288x128xf32> -> vector<288x128xf32>
    %52 = arith.addf %46, %51 : vector<288x128xf32>
    %53 = tpu.iota {dimensions = array<i32: 0>} : vector<288x1xi32>
    %c18_i32 = arith.constant 18 : i32
    %c0_i32 = arith.constant 0 : i32
    %54 = arith.cmpi eq, %c18_i32, %c0_i32 : i32
    %c1_i32 = arith.constant 1 : i32
    %55 = arith.select %54, %c1_i32, %c18_i32 : i32
    %56 = vector.broadcast %55 : i32 to vector<288x1xi32>
    %57 = arith.remsi %53, %56 : vector<288x1xi32>
    %c0_i32_47 = arith.constant 0 : i32
    %58 = vector.broadcast %c0_i32_47 : i32 to vector<288x1xi32>
    %59 = arith.cmpi ne, %57, %58 : vector<288x1xi32>
    %c0_i32_48 = arith.constant 0 : i32
    %60 = vector.broadcast %c0_i32_48 : i32 to vector<288x1xi32>
    %61 = arith.cmpi slt, %57, %60 : vector<288x1xi32>
    %c0_i32_49 = arith.constant 0 : i32
    %62 = arith.cmpi slt, %55, %c0_i32_49 : i32
    %63 = vector.broadcast %62 : i1 to vector<288x1xi1>
    %64 = vector.broadcast %63 : vector<288x1xi1> to vector<288x1xi1>
    %65 = arith.xori %61, %64 : vector<288x1xi1>
    %66 = arith.andi %65, %59 : vector<288x1xi1>
    %67 = vector.broadcast %55 : i32 to vector<288x1xi32>
    %68 = arith.addi %57, %67 : vector<288x1xi32>
    %69 = arith.select %66, %68, %57 : vector<288x1xi1>, vector<288x1xi32>
    %c16_i32 = arith.constant 16 : i32
    %70 = vector.broadcast %c16_i32 : i32 to vector<288x1xi32>
    %71 = arith.cmpi slt, %69, %70 : vector<288x1xi32>
    %cst_50 = arith.constant 0.000000e+00 : f32
    %72 = vector.shape_cast %71 : vector<288x1xi1> to vector<288x1xi1>
    %73 = vector.broadcast %72 : vector<288x1xi1> to vector<288x128xi1>
    %74 = vector.broadcast %cst_50 : f32 to vector<288x128xf32>
    %75 = arith.select %73, %52, %74 : vector<288x128xi1>, vector<288x128xf32>
    %cst_51 = arith.constant dense<0.000000e+00> : vector<128xf32>
    %76 = vector.multi_reduction <add>, %75, %cst_51 [0] : vector<288x128xf32> to vector<128xf32>
    %77 = vector.shape_cast %76 : vector<128xf32> to vector<1x128xf32>
    %c0_52 = arith.constant 0 : index
    %c0_53 = arith.constant 0 : index
    %c0_54 = arith.constant 0 : index
    %78 = vector.load %arg3[%c0_52, %c0_53, %c0_54] : memref<1x1x128xf32, #tpu.memory_space<vmem>>, vector<1x1x128xf32>
    %79 = vector.shape_cast %78 : vector<1x1x128xf32> to vector<1x128xf32>
    %80 = vector.shape_cast %77 : vector<1x128xf32> to vector<1x1x128xf32>
    tpu.vector_store %arg3[%c0_52, %c0_53, %c0_54], %80 {strides = array<i32>} : memref<1x1x128xf32, #tpu.memory_space<vmem>>, vector<1x1x128xf32>,
    %81 = arith.mulf %75, %75 : vector<288x128xf32>
    %cst_55 = arith.constant dense<0.000000e+00> : vector<128xf32>
    %82 = vector.multi_reduction <add>, %81, %cst_55 [0] : vector<288x128xf32> to vector<128xf32>
    %83 = vector.shape_cast %82 : vector<128xf32> to vector<1x128xf32>
    %c0_56 = arith.constant 0 : index
    %c0_57 = arith.constant 0 : index
    %c0_58 = arith.constant 0 : index
    %84 = vector.load %arg4[%c0_56, %c0_57, %c0_58] : memref<1x1x128xf32, #tpu.memory_space<vmem>>, vector<1x1x128xf32>
    %85 = vector.shape_cast %84 : vector<1x1x128xf32> to vector<1x128xf32>
    %86 = vector.shape_cast %83 : vector<1x128xf32> to vector<1x1x128xf32>
    tpu.vector_store %arg4[%c0_56, %c0_57, %c0_58], %86 {strides = array<i32>} : memref<1x1x128xf32, #tpu.memory_space<vmem>>, vector<1x1x128xf32>,
    return
  }
  func.func @transform_0(%arg0: i32) -> (i32, i32, i32) {
    %c0_i32 = arith.constant 0 : i32
    %c0_i32_0 = arith.constant 0 : i32
    %c0_i32_1 = arith.constant 0 : i32
    return %arg0, %c0_i32, %c0_i32_0 : i32, i32, i32
  }
  func.func @transform_1(%arg0: i32) -> (i32, i32, i32) {
    %c0_i32 = arith.constant 0 : i32
    %c0_i32_0 = arith.constant 0 : i32
    %c0_i32_1 = arith.constant 0 : i32
    %c0_i32_2 = arith.constant 0 : i32
    return %c0_i32, %c0_i32_0, %c0_i32_1 : i32, i32, i32
  }
  func.func @transform_2(%arg0: i32) -> (i32, i32, i32) {
    %c0_i32 = arith.constant 0 : i32
    %c0_i32_0 = arith.constant 0 : i32
    %c0_i32_1 = arith.constant 0 : i32
    return %arg0, %c0_i32, %c0_i32_0 : i32, i32, i32
  }
  func.func @transform_3(%arg0: i32) -> (i32, i32, i32) {
    %c0_i32 = arith.constant 0 : i32
    %c0_i32_0 = arith.constant 0 : i32
    %c0_i32_1 = arith.constant 0 : i32
    return %arg0, %c0_i32, %c0_i32_0 : i32, i32, i32
  }
}

</mosaic_0001>

<llo_original>
// kernel: convbn_forward.3
$region0: #{convbn_forward.3}
  #allocation0 [shape = 'u32[]', space=smem, size = 0x4, offset = 0x4, fixed_abs, tag = 'smem constant byte address 0x4 - core index']
  #allocation1 [shape = 'u32[72,128]{1,0:T(1,128)}', space=vmem, size = 0x9000, scoped, tag = 'internal scratch']
  %s0 = inlined_call_operand.vmem [shape: f32[2,342,4], index: 0, kind: input, shape index: {}]
  %s1 = inlined_call_operand.vmem [shape: f32[9,4,128], index: 1, kind: input, shape index: {}]
  %s2 = inlined_call_operand.vmem [shape: f32[1,128], index: 2, kind: input, shape index: {}]
  %s3 = inlined_call_operand.vmem [shape: f32[1,128], index: 3, kind: input, shape index: {}]
  %s4 = inlined_call_operand.vmem [shape: f32[2,288,8], index: 4, kind: output, shape index: {}]
  %s5 = sld [smem:[#allocation0]]
  $region49: #{convbn_forward.3} parent=0
    _
  %s7 = ssub.s32 1, %s5
  %s8 = scalar_select 0, %s7, %s5
  loop: start=0, step=1, limit=4
  $region2: #{convbn_forward.3} parent=0 // loop_pre_header
    _
  $region3: #{convbn_forward.3} parent=0 // loop_header
    %s10 = sphi 0, %s14
    %p11 = scmp.ge.s32.totalorder %s10, 4
    %s20 = sphi 0, %s22
    %s23 = sphi 0, %s20
    %s24 = sphi 0, %s23
    %s40 = sphi 0, %s24
    %s44 = sphi 0, %s44
    %s46 = sphi 0, %s44
    %s47 = sphi 0, %s46
    %s61 = sphi 0, %s47
    %s65 = sphi 0, %s65
    %s67 = sphi 0, %s65
    %s68 = sphi 0, %s67
    %s82 = sphi 0, %s68
    %s86 = sphi 0, %s86
    %s88 = sphi 0, %s86
    %s89 = sphi 0, %s88
    %s103 = sphi 0, %s89
    %s109 = sphi 0, %s111
    %s112 = sphi 0, %s109
    %s113 = sphi 0, %s112
    %s129 = sphi 0, %s113
  $region4: #{convbn_forward.3} parent=0 // loop_header_branch
    %13 = sbr.rel (%p11) target = $region8
  $region5: #{convbn_forward.3} parent=0 // loop_body
    %s15 = ssub.s32 %s10, 1
    %s16 = ssub.s32 %s10, 2
    %s17 = sadd.s32 %s10, 1
    %s18 = ssub.s32 %s10, %s17
    %p19 = scmp.eq.s32.totalorder %s18, 0
    %s21 = sadd.s32 %s20, 1
    %s22 = scalar_select %p19, %s20, %s21
    %p25 = pneg %p19
    %p26 = scmp.eq.s32.totalorder %s10, 1
    %p27 = por %p25, %p26
    %p28 = scmp.ne.s32.totalorder %s20, %s23
    %p29 = scmp.eq.s32.totalorder %s10, 0
    %p30 = por %p28, %p29
    %p31 = scmp.ne.s32.totalorder %s20, %s23
    %p32 = scmp.eq.s32.totalorder %s15, 1
    %p33 = por %p31, %p32
    %p34 = scmp.ne.s32.totalorder %s23, %s24
    %p35 = scmp.eq.s32.totalorder %s15, 0
    %p36 = por %p34, %p35
    %p37 = scmp.ne.s32.totalorder %s23, %s24
    %p38 = scmp.eq.s32.totalorder %s16, 1
    %p39 = por %p37, %p38
    %p41 = scmp.ne.s32.totalorder %s24, %s40
    %p42 = scmp.eq.s32.totalorder %s16, 0
    %p43 = por %p41, %p42
    %s45 = sadd.s32 %s44, 1
    %p48 = scmp.eq.s32.totalorder %s10, 1
    %p49 = scmp.ne.s32.totalorder %s44, %s46
    %p50 = scmp.eq.s32.totalorder %s10, 0
    %p51 = por %p49, %p50
    %p52 = scmp.ne.s32.totalorder %s44, %s46
    %p53 = scmp.eq.s32.totalorder %s15, 1
    %p54 = por %p52, %p53
    %p55 = scmp.ne.s32.totalorder %s46, %s47
    %p56 = scmp.eq.s32.totalorder %s15, 0
    %p57 = por %p55, %p56
    %p58 = scmp.ne.s32.totalorder %s46, %s47
    %p59 = scmp.eq.s32.totalorder %s16, 1
    %p60 = por %p58, %p59
    %p62 = scmp.ne.s32.totalorder %s47, %s61
    %p63 = scmp.eq.s32.totalorder %s16, 0
    %p64 = por %p62, %p63
    %s66 = sadd.s32 %s65, 1
    %p69 = scmp.eq.s32.totalorder %s10, 1
    %p70 = scmp.ne.s32.totalorder %s65, %s67
    %p71 = scmp.eq.s32.totalorder %s10, 0
    %p72 = por %p70, %p71
    %p73 = scmp.ne.s32.totalorder %s65, %s67
    %p74 = scmp.eq.s32.totalorder %s15, 1
    %p75 = por %p73, %p74
    %p76 = scmp.ne.s32.totalorder %s67, %s68
    %p77 = scmp.eq.s32.totalorder %s15, 0
    %p78 = por %p76, %p77
    %p79 = scmp.ne.s32.totalorder %s67, %s68
    %p80 = scmp.eq.s32.totalorder %s16, 1
    %p81 = por %p79, %p80
    %p83 = scmp.ne.s32.totalorder %s68, %s82
    %p84 = scmp.eq.s32.totalorder %s16, 0
    %p85 = por %p83, %p84
    %s87 = sadd.s32 %s86, 1
    %p90 = scmp.eq.s32.totalorder %s10, 1
    %p91 = scmp.ne.s32.totalorder %s86, %s88
    %p92 = scmp.eq.s32.totalorder %s10, 0
    %p93 = por %p91, %p92
    %p94 = scmp.ne.s32.totalorder %s86, %s88
    %p95 = scmp.eq.s32.totalorder %s15, 1
    %p96 = por %p94, %p95
    %p97 = scmp.ne.s32.totalorder %s88, %s89
    %p98 = scmp.eq.s32.totalorder %s15, 0
    %p99 = por %p97, %p98
    %p100 = scmp.ne.s32.totalorder %s88, %s89
    %p101 = scmp.eq.s32.totalorder %s16, 1
    %p102 = por %p100, %p101
    %p104 = scmp.ne.s32.totalorder %s89, %s103
    %p105 = scmp.eq.s32.totalorder %s16, 0
    %p106 = por %p104, %p105
    %s107 = ssub.s32 %s10, %s17
    %p108 = scmp.eq.s32.totalorder %s107, 0
    %s110 = sadd.s32 %s109, 1
    %s111 = scalar_select %p108, %s109, %s110
    %p114 = pneg %p108
    %p115 = scmp.eq.s32.totalorder %s10, 1
    %p116 = por %p114, %p115
    %p117 = scmp.ne.s32.totalorder %s109, %s112
    %p118 = scmp.eq.s32.totalorder %s10, 0
    %p119 = por %p117, %p118
    %p120 = scmp.ne.s32.totalorder %s109, %s112
    %p121 = scmp.eq.s32.totalorder %s15, 1
    %p122 = por %p120, %p121
    %p123 = scmp.ne.s32.totalorder %s112, %s113
    %p124 = scmp.eq.s32.totalorder %s15, 0
    %p125 = por %p123, %p124
    %p126 = scmp.ne.s32.totalorder %s112, %s113
    %p127 = scmp.eq.s32.totalorder %s16, 1
    %p128 = por %p126, %p127
    %p130 = scmp.ne.s32.totalorder %s113, %s129
    %p131 = scmp.eq.s32.totalorder %s16, 0
    %p132 = por %p130, %p131
    %p133 = scmp.le.s32.totalorder 1, %s10
    %p134 = scmp.lt.s32.totalorder %s10, 3
    %p135 = pnand %p133, %p134
    %p136 = pneg %p135
    // Predicated region
    $region9: #{convbn_forward.3} parent=5 // pred_check
      _
    $region10: #{convbn_forward.3} parent=5 // pred_check_branch
      %138 = sbr.rel (%p135) target = $region12
    $region11: #{convbn_forward.3} parent=5 // pred_region
      %s139 = ssub.s32 %s10, 1
      // Predicated region
      $region13: #{convbn_forward.3} parent=11 // pred_check
        %p140 = pneg %p57
      $region14: #{convbn_forward.3} parent=11 // pred_check_branch
        %142 = sbr.rel (%p140) target = $region16
      $region15: #{convbn_forward.3} parent=11 // pred_region
        _
      $region16: #{convbn_forward.3} parent=11 // pred_fallthru
        _
      // Predicated region
      $region17: #{convbn_forward.3} parent=11 // pred_check
        %p143 = pneg %p78
      $region18: #{convbn_forward.3} parent=11 // pred_check_branch
        %145 = sbr.rel (%p143) target = $region20
      $region19: #{convbn_forward.3} parent=11 // pred_region
        _
      $region20: #{convbn_forward.3} parent=11 // pred_fallthru
        _
      // Predicated region
      $region21: #{convbn_forward.3} parent=11 // pred_check
        %p146 = pneg %p99
      $region22: #{convbn_forward.3} parent=11 // pred_check_branch
        %148 = sbr.rel (%p146) target = $region24
      $region23: #{convbn_forward.3} parent=11 // pred_region
        _
      $region24: #{convbn_forward.3} parent=11 // pred_fallthru
        _
    $region12: #{convbn_forward.3} parent=5 // pred_fallthru
      _
    %p149 = scmp.lt.s32.totalorder %s10, 2
    // Predicated region
    $region25: #{convbn_forward.3} parent=5 // pred_check
      %p150 = pneg %p149
    $region26: #{convbn_forward.3} parent=5 // pred_check_branch
      %152 = sbr.rel (%p150) target = $region28
    $region27: #{convbn_forward.3} parent=5 // pred_region
      // Predicated region
      $region29: #{convbn_forward.3} parent=27 // pred_check
        %p153 = pneg %p30
      $region30: #{convbn_forward.3} parent=27 // pred_check_branch
        %155 = sbr.rel (%p153) target = $region32
      $region31: #{convbn_forward.3} parent=27 // pred_region
        %p156 = scmp.lt.s32.totalorder %s10, 1
        %s157 = scalar_select %p156, %s10, 1
        %s158 = smul.addr %s157, 43
        %s159 = smul.addr %s158, 8
        %s160 = scalar_lea.vmem %s0, %s159
      $region32: #{convbn_forward.3} parent=27 // pred_fallthru
        _
    $region28: #{convbn_forward.3} parent=5 // pred_fallthru
      _
    %p161 = scmp.le.s32.totalorder 1, %s10
    %p162 = scmp.lt.s32.totalorder %s10, 3
    %p163 = pnand %p161, %p162
    %p164 = pneg %p163
    // Predicated region
    $region33: #{convbn_forward.3} parent=5 // pred_check
      _
    $region34: #{convbn_forward.3} parent=5 // pred_check_branch
      %166 = sbr.rel (%p163) target = $region36
    $region35: #{convbn_forward.3} parent=5 // pred_region
      %s167 = ssub.s32 %s10, 1
      %p168 = scmp.lt.s32.totalorder %s15, 1
      %s169 = scalar_select %p168, %s15, 1
      %s170 = smul.addr %s169, 43
      %s171 = smul.addr %s170, 8
      %s172 = scalar_lea.vmem %s0, %s171
      %p173 = pneg %p36
      %p174 = pneg %p33
      %p175 = pneg %p57
      %p176 = pneg %p54
      %p177 = pneg %p78
      %p178 = pneg %p75
      %p179 = pneg %p99
      %p180 = pneg %p96
      %p181 = pneg %p125
      %p182 = pneg %p122
      %p183 = scmp.lt.s32.totalorder %s15, 1
      %s184 = scalar_select %p183, %s15, 1
      %s185 = smul.addr %s184, 36
      %s186 = smul.addr %s185, 8
      %s187 = scalar_lea.vmem %s4, %s186
      %p188 = scmp.lt.s32.totalorder %s15, 1
      %s189 = scalar_select %p188, %s15, 1
      %s190 = smul.addr %s189, 43
      %s191 = smul.addr %s190, 8
      %s192 = scalar_lea.vmem %s0, %s191
      %p193 = scmp.lt.s32.totalorder %s15, 1
      %s194 = scalar_select %p193, %s15, 1
      %s195 = smul.addr %s194, 36
      %s196 = smul.addr %s195, 8
      %s197 = scalar_lea.vmem %s4, %s196
      %v198 = vld [vmem:[%s192] sm:$0xff]
      %v199 = vld [vmem:[%s192 + $0x8] sm:$0xff]
      %v200 = vld [vmem:[%s192 + $0x10] sm:$0xff]
      %v201 = vld [vmem:[%s192 + $0x18] sm:$0xff]
      %v202 = vld [vmem:[%s192 + $0x20] sm:$0xff]
      %v203 = vld [vmem:[%s192 + $0x28] sm:$0xff]
      %v204 = vld [vmem:[%s192 + $0x30] sm:$0xff]
      %v205 = vld [vmem:[%s192 + $0x38] sm:$0xff]
      %v206 = vld [vmem:[%s192 + $0x40] sm:$0xff]
      %v207 = vld [vmem:[%s192 + $0x48] sm:$0xff]
      %v208 = vld [vmem:[%s192 + $0x50] sm:$0xff]
      %v209 = vld [vmem:[%s192 + $0x58] sm:$0xff]
      %v210 = vld [vmem:[%s192 + $0x60] sm:$0xff]
      %v211 = vld [vmem:[%s192 + $0x68] sm:$0xff]
      %v212 = vld [vmem:[%s192 + $0x70] sm:$0xff]
      %v213 = vld [vmem:[%s192 + $0x78] sm:$0xff]
      %v214 = vld [vmem:[%s192 + $0x80] sm:$0xff]
      %v215 = vld [vmem:[%s192 + $0x88] sm:$0xff]
      %v216 = vld [vmem:[%s192 + $0x90] sm:$0xff]
      %v217 = vld [vmem:[%s192 + $0x98] sm:$0xff]
      %v218 = vld [vmem:[%s192 + $0xa0] sm:$0xff]
      %v219 = vld [vmem:[%s192 + $0xa8] sm:$0xff]
      %v220 = vld [vmem:[%s192 + $0xb0] sm:$0xff]
      %v221 = vld [vmem:[%s192 + $0xb8] sm:$0xff]
      %v222 = vld [vmem:[%s192 + $0xc0] sm:$0xff]
      %v223 = vld [vmem:[%s192 + $0xc8] sm:$0xff]
      %v224 = vld [vmem:[%s192 + $0xd0] sm:$0xff]
      %v225 = vld [vmem:[%s192 + $0xd8] sm:$0xff]
      %v226 = vld [vmem:[%s192 + $0xe0] sm:$0xff]
      %v227 = vld [vmem:[%s192 + $0xe8] sm:$0xff]
      %v228 = vld [vmem:[%s192 + $0xf0] sm:$0xff]
      %v229 = vld [vmem:[%s192 + $0xf8] sm:$0xff]
      %v230 = vld [vmem:[%s192 + $0x100] sm:$0xff]
      %v231 = vld [vmem:[%s192 + $0x108] sm:$0xff]
      %v232 = vld [vmem:[%s192 + $0x110] sm:$0xff]
      %v233 = vld [vmem:[%s192 + $0x118] sm:$0xff]
      %v234 = vld [vmem:[%s1] sm:$0xf]
      %v235 = vld [vmem:[%s192 + $0x1] sm:$0xff]
      %v236 = vld [vmem:[%s192 + $0x9] sm:$0xff]
      %v237 = vld [vmem:[%s192 + $0x11] sm:$0xff]
      %v238 = vld [vmem:[%s192 + $0x19] sm:$0xff]
      %v239 = vld [vmem:[%s192 + $0x21] sm:$0xff]
      %v240 = vld [vmem:[%s192 + $0x29] sm:$0xff]
      %v241 = vld [vmem:[%s192 + $0x31] sm:$0xff]
      %v242 = vld [vmem:[%s192 + $0x39] sm:$0xff]
      %v243 = vld [vmem:[%s192 + $0x41] sm:$0xff]
      %v244 = vld [vmem:[%s192 + $0x49] sm:$0xff]
      %v245 = vld [vmem:[%s192 + $0x51] sm:$0xff]
      %v246 = vld [vmem:[%s192 + $0x59] sm:$0xff]
      %v247 = vld [vmem:[%s192 + $0x61] sm:$0xff]
      %v248 = vld [vmem:[%s192 + $0x69] sm:$0xff]
      %v249 = vld [vmem:[%s192 + $0x71] sm:$0xff]
      %v250 = vld [vmem:[%s192 + $0x79] sm:$0xff]
      %v251 = vld [vmem:[%s192 + $0x81] sm:$0xff]
      %v252 = vld [vmem:[%s192 + $0x89] sm:$0xff]
      %v253 = vld [vmem:[%s192 + $0x91] sm:$0xff]
      %v254 = vld [vmem:[%s192 + $0x99] sm:$0xff]
      %v255 = vld [vmem:[%s192 + $0xa1] sm:$0xff]
      %v256 = vld [vmem:[%s192 + $0xa9] sm:$0xff]
      %v257 = vld [vmem:[%s192 + $0xb1] sm:$0xff]
      %v258 = vld [vmem:[%s192 + $0xb9] sm:$0xff]
      %v259 = vld [vmem:[%s192 + $0xc1] sm:$0xff]
      %v260 = vld [vmem:[%s192 + $0xc9] sm:$0xff]
      %v261 = vld [vmem:[%s192 + $0xd1] sm:$0xff]
      %v262 = vld [vmem:[%s192 + $0xd9] sm:$0xff]
      %v263 = vld [vmem:[%s192 + $0xe1] sm:$0xff]
      %v264 = vld [vmem:[%s192 + $0xe9] sm:$0xff]
      %v265 = vld [vmem:[%s192 + $0xf1] sm:$0xff]
      %v266 = vld [vmem:[%s192 + $0xf9] sm:$0xff]
      %v267 = vld [vmem:[%s192 + $0x101] sm:$0xff]
      %v268 = vld [vmem:[%s192 + $0x109] sm:$0xff]
      %v269 = vld [vmem:[%s192 + $0x111] sm:$0xff]
      %v270 = vld [vmem:[%s192 + $0x119] sm:$0xff]
      %s271 = scalar_lea.vmem %s1, 4
      %v272 = vld [vmem:[%s271] sm:$0xf]
      %vm273 = vcmask 31744
      %v275 = vsel %vm273, %v235, 0
      %v278 = vsel %vm273, %v236, 0
      %v281 = vsel %vm273, %v237, 0
      %v284 = vsel %vm273, %v238, 0
      %v287 = vsel %vm273, %v239, 0
      %v290 = vsel %vm273, %v240, 0
      %v293 = vsel %vm273, %v241, 0
      %v296 = vsel %vm273, %v242, 0
      %v299 = vsel %vm273, %v243, 0
      %v302 = vsel %vm273, %v244, 0
      %v305 = vsel %vm273, %v245, 0
      %v308 = vsel %vm273, %v246, 0
      %v311 = vsel %vm273, %v247, 0
      %v314 = vsel %vm273, %v248, 0
      %v317 = vsel %vm273, %v249, 0
      %v320 = vsel %vm273, %v250, 0
      %v323 = vsel %vm273, %v251, 0
      %v326 = vsel %vm273, %v252, 0
      %v329 = vsel %vm273, %v253, 0
      %v332 = vsel %vm273, %v254, 0
      %v335 = vsel %vm273, %v255, 0
      %v338 = vsel %vm273, %v256, 0
      %v341 = vsel %vm273, %v257, 0
      %v344 = vsel %vm273, %v258, 0
      %v347 = vsel %vm273, %v259, 0
      %v350 = vsel %vm273, %v260, 0
      %v353 = vsel %vm273, %v261, 0
      %v356 = vsel %vm273, %v262, 0
      %v359 = vsel %vm273, %v263, 0
      %v362 = vsel %vm273, %v264, 0
      %v365 = vsel %vm273, %v265, 0
      %v368 = vsel %vm273, %v266, 0
      %v371 = vsel %vm273, %v267, 0
      %v374 = vsel %vm273, %v268, 0
      %v377 = vsel %vm273, %v269, 0
      %v380 = vsel %vm273, %v270, 0
      %vm382 = vcmask 1043456
      %v384 = vsel %vm382, %v272, 0
      %386 = vmatpush.msra.mxu0 0.0
      %387 = vmatpush.msra.mxu0 0.0
      %388 = vmatpush.msra.mxu0 0.0
      %389 = vmatpush.msra.mxu0 0.0
      %390 = vmatpush.msra.mxu0 0.0
      %391 = vmatpush.msra.mxu0 0.0
      %392 = vmatpush.msra.mxu0 0.0
      %393 = vmatpush.msra.mxu0 0.0
      %394 = vmatpush.msra.mxu0 0.0
      %395 = vmatpush.msra.mxu0 0.0
      %396 = vmatpush.msra.mxu0 0.0
      %397 = vmatpush.msra.mxu0 0.0
      %398 = vmatpush.msra.mxu0 0.0
      %399 = vmatpush.msra.mxu0 0.0
      %400 = vmatpush.msra.mxu0 0.0
      %401 = vmatpush.msra.mxu0 %v384
      %402 = vmatmul.f32.gmra.mxu0 %v275
      %v403 = vpop.f32.mrf.mxu0
      %v404 = vadd.f32 0.0, %v403
      %405 = vmatmul.f32.gmra.mxu0 %v278
      %v406 = vpop.f32.mrf.mxu0
      %v407 = vadd.f32 0.0, %v406
      %408 = vmatmul.f32.gmra.mxu0 %v281
      %v409 = vpop.f32.mrf.mxu0
      %v410 = vadd.f32 0.0, %v409
      %411 = vmatmul.f32.gmra.mxu0 %v284
      %v412 = vpop.f32.mrf.mxu0
      %v413 = vadd.f32 0.0, %v412
      %414 = vmatmul.f32.gmra.mxu0 %v287
      %v415 = vpop.f32.mrf.mxu0
      %v416 = vadd.f32 0.0, %v415
      %417 = vmatmul.f32.gmra.mxu0 %v290
      %v418 = vpop.f32.mrf.mxu0
      %v419 = vadd.f32 0.0, %v418
      %420 = vmatmul.f32.gmra.mxu0 %v293
      %v421 = vpop.f32.mrf.mxu0
      %v422 = vadd.f32 0.0, %v421
      %423 = vmatmul.f32.gmra.mxu0 %v296
      %v424 = vpop.f32.mrf.mxu0
      %v425 = vadd.f32 0.0, %v424
      %426 = vmatmul.f32.gmra.mxu0 %v299
      %v427 = vpop.f32.mrf.mxu0
      %v428 = vadd.f32 0.0, %v427
      %429 = vmatmul.f32.gmra.mxu0 %v302
      %v430 = vpop.f32.mrf.mxu0
      %v431 = vadd.f32 0.0, %v430
      %432 = vmatmul.f32.gmra.mxu0 %v305
      %v433 = vpop.f32.mrf.mxu0
      %v434 = vadd.f32 0.0, %v433
      %435 = vmatmul.f32.gmra.mxu0 %v308
      %v436 = vpop.f32.mrf.mxu0
      %v437 = vadd.f32 0.0, %v436
      %438 = vmatmul.f32.gmra.mxu0 %v311
      %v439 = vpop.f32.mrf.mxu0
      %v440 = vadd.f32 0.0, %v439
      %441 = vmatmul.f32.gmra.mxu0 %v314
      %v442 = vpop.f32.mrf.mxu0
      %v443 = vadd.f32 0.0, %v442
      %444 = vmatmul.f32.gmra.mxu0 %v317
      %v445 = vpop.f32.mrf.mxu0
      %v446 = vadd.f32 0.0, %v445
      %447 = vmatmul.f32.gmra.mxu0 %v320
      %v448 = vpop.f32.mrf.mxu0
      %v449 = vadd.f32 0.0, %v448
      %450 = vmatmul.f32.gmra.mxu0 %v323
      %v451 = vpop.f32.mrf.mxu0
      %v452 = vadd.f32 0.0, %v451
      %453 = vmatmul.f32.gmra.mxu0 %v326
      %v454 = vpop.f32.mrf.mxu0
      %v455 = vadd.f32 0.0, %v454
      %456 = vmatmul.f32.gmra.mxu0 %v329
      %v457 = vpop.f32.mrf.mxu0
      %v458 = vadd.f32 0.0, %v457
      %459 = vmatmul.f32.gmra.mxu0 %v332
      %v460 = vpop.f32.mrf.mxu0
      %v461 = vadd.f32 0.0, %v460
      %462 = vmatmul.f32.gmra.mxu0 %v335
      %v463 = vpop.f32.mrf.mxu0
      %v464 = vadd.f32 0.0, %v463
      %465 = vmatmul.f32.gmra.mxu0 %v338
      %v466 = vpop.f32.mrf.mxu0
      %v467 = vadd.f32 0.0, %v466
      %468 = vmatmul.f32.gmra.mxu0 %v341
      %v469 = vpop.f32.mrf.mxu0
      %v470 = vadd.f32 0.0, %v469
      %471 = vmatmul.f32.gmra.mxu0 %v344
      %v472 = vpop.f32.mrf.mxu0
      %v473 = vadd.f32 0.0, %v472
      %474 = vmatmul.f32.gmra.mxu0 %v347
      %v475 = vpop.f32.mrf.mxu0
      %v476 = vadd.f32 0.0, %v475
      %477 = vmatmul.f32.gmra.mxu0 %v350
      %v478 = vpop.f32.mrf.mxu0
      %v479 = vadd.f32 0.0, %v478
      %480 = vmatmul.f32.gmra.mxu0 %v353
      %v481 = vpop.f32.mrf.mxu0
      %v482 = vadd.f32 0.0, %v481
      %483 = vmatmul.f32.gmra.mxu0 %v356
      %v484 = vpop.f32.mrf.mxu0
      %v485 = vadd.f32 0.0, %v484
      %486 = vmatmul.f32.gmra.mxu0 %v359
      %v487 = vpop.f32.mrf.mxu0
      %v488 = vadd.f32 0.0, %v487
      %489 = vmatmul.f32.gmra.mxu0 %v362
      %v490 = vpop.f32.mrf.mxu0
      %v491 = vadd.f32 0.0, %v490
      %492 = vmatmul.f32.gmra.mxu0 %v365
      %v493 = vpop.f32.mrf.mxu0
      %v494 = vadd.f32 0.0, %v493
      %495 = vmatmul.f32.gmra.mxu0 %v368
      %v496 = vpop.f32.mrf.mxu0
      %v497 = vadd.f32 0.0, %v496
      %498 = vmatmul.f32.gmra.mxu0 %v371
      %v499 = vpop.f32.mrf.mxu0
      %v500 = vadd.f32 0.0, %v499
      %501 = vmatmul.f32.gmra.mxu0 %v374
      %v502 = vpop.f32.mrf.mxu0
      %v503 = vadd.f32 0.0, %v502
      %504 = vmatmul.f32.gmra.mxu0 %v377
      %v505 = vpop.f32.mrf.mxu0
      %v506 = vadd.f32 0.0, %v505
      %507 = vmatmul.f32.gmra.mxu0 %v380
      %v508 = vpop.f32.mrf.mxu0
      %v509 = vadd.f32 0.0, %v508
      %510 = vdwg.mxu0
      %v512 = vsel %vm273, %v198, 0
      %v515 = vsel %vm273, %v199, 0
      %v518 = vsel %vm273, %v200, 0
      %v521 = vsel %vm273, %v201, 0
      %v524 = vsel %vm273, %v202, 0
      %v527 = vsel %vm273, %v203, 0
      %v530 = vsel %vm273, %v204, 0
      %v533 = vsel %vm273, %v205, 0
      %v536 = vsel %vm273, %v206, 0
      %v539 = vsel %vm273, %v207, 0
      %v542 = vsel %vm273, %v208, 0
      %v545 = vsel %vm273, %v209, 0
      %v548 = vsel %vm273, %v210, 0
      %v551 = vsel %vm273, %v211, 0
      %v554 = vsel %vm273, %v212, 0
      %v557 = vsel %vm273, %v213, 0
      %v560 = vsel %vm273, %v214, 0
      %v563 = vsel %vm273, %v215, 0
      %v566 = vsel %vm273, %v216, 0
      %v569 = vsel %vm273, %v217, 0
      %v572 = vsel %vm273, %v218, 0
      %v575 = vsel %vm273, %v219, 0
      %v578 = vsel %vm273, %v220, 0
      %v581 = vsel %vm273, %v221, 0
      %v584 = vsel %vm273, %v222, 0
      %v587 = vsel %vm273, %v223, 0
      %v590 = vsel %vm273, %v224, 0
      %v593 = vsel %vm273, %v225, 0
      %v596 = vsel %vm273, %v226, 0
      %v599 = vsel %vm273, %v227, 0
      %v602 = vsel %vm273, %v228, 0
      %v605 = vsel %vm273, %v229, 0
      %v608 = vsel %vm273, %v230, 0
      %v611 = vsel %vm273, %v231, 0
      %v614 = vsel %vm273, %v232, 0
      %v617 = vsel %vm273, %v233, 0
      %v620 = vsel %vm382, %v234, 0
      %622 = vmatpush.msra.mxu0 0.0
      %623 = vmatpush.msra.mxu0 0.0
      %624 = vmatpush.msra.mxu0 0.0
      %625 = vmatpush.msra.mxu0 0.0
      %626 = vmatpush.msra.mxu0 0.0
      %627 = vmatpush.msra.mxu0 0.0
      %628 = vmatpush.msra.mxu0 0.0
      %629 = vmatpush.msra.mxu0 0.0
      %630 = vmatpush.msra.mxu0 0.0
      %631 = vmatpush.msra.mxu0 0.0
      %632 = vmatpush.msra.mxu0 0.0
      %633 = vmatpush.msra.mxu0 0.0
      %634 = vmatpush.msra.mxu0 0.0
      %635 = vmatpush.msra.mxu0 0.0
      %636 = vmatpush.msra.mxu0 0.0
      %637 = vmatpush.msra.mxu0 %v620
      %638 = vmatmul.f32.gmra.mxu0 %v512
      %v639 = vpop.f32.mrf.mxu0
      %v640 = vadd.f32 %v404, %v639
      %641 = vmatmul.f32.gmra.mxu0 %v515
      %v642 = vpop.f32.mrf.mxu0
      %v643 = vadd.f32 %v407, %v642
      %644 = vmatmul.f32.gmra.mxu0 %v518
      %v645 = vpop.f32.mrf.mxu0
      %v646 = vadd.f32 %v410, %v645
      %647 = vmatmul.f32.gmra.mxu0 %v521
      %v648 = vpop.f32.mrf.mxu0
      %v649 = vadd.f32 %v413, %v648
      %650 = vmatmul.f32.gmra.mxu0 %v524
      %v651 = vpop.f32.mrf.mxu0
      %v652 = vadd.f32 %v416, %v651
      %653 = vmatmul.f32.gmra.mxu0 %v527
      %v654 = vpop.f32.mrf.mxu0
      %v655 = vadd.f32 %v419, %v654
      %656 = vmatmul.f32.gmra.mxu0 %v530
      %v657 = vpop.f32.mrf.mxu0
      %v658 = vadd.f32 %v422, %v657
      %659 = vmatmul.f32.gmra.mxu0 %v533
      %v660 = vpop.f32.mrf.mxu0
      %v661 = vadd.f32 %v425, %v660
      %662 = vmatmul.f32.gmra.mxu0 %v536
      %v663 = vpop.f32.mrf.mxu0
      %v664 = vadd.f32 %v428, %v663
      %665 = vmatmul.f32.gmra.mxu0 %v539
      %v666 = vpop.f32.mrf.mxu0
      %v667 = vadd.f32 %v431, %v666
      %668 = vmatmul.f32.gmra.mxu0 %v542
      %v669 = vpop.f32.mrf.mxu0
      %v670 = vadd.f32 %v434, %v669
      %671 = vmatmul.f32.gmra.mxu0 %v545
      %v672 = vpop.f32.mrf.mxu0
      %v673 = vadd.f32 %v437, %v672
      %674 = vmatmul.f32.gmra.mxu0 %v548
      %v675 = vpop.f32.mrf.mxu0
      %v676 = vadd.f32 %v440, %v675
      %677 = vmatmul.f32.gmra.mxu0 %v551
      %v678 = vpop.f32.mrf.mxu0
      %v679 = vadd.f32 %v443, %v678
      %680 = vmatmul.f32.gmra.mxu0 %v554
      %v681 = vpop.f32.mrf.mxu0
      %v682 = vadd.f32 %v446, %v681
      %683 = vmatmul.f32.gmra.mxu0 %v557
      %v684 = vpop.f32.mrf.mxu0
      %v685 = vadd.f32 %v449, %v684
      %686 = vmatmul.f32.gmra.mxu0 %v560
      %v687 = vpop.f32.mrf.mxu0
      %v688 = vadd.f32 %v452, %v687
      %689 = vmatmul.f32.gmra.mxu0 %v563
      %v690 = vpop.f32.mrf.mxu0
      %v691 = vadd.f32 %v455, %v690
      %692 = vmatmul.f32.gmra.mxu0 %v566
      %v693 = vpop.f32.mrf.mxu0
      %v694 = vadd.f32 %v458, %v693
      %695 = vmatmul.f32.gmra.mxu0 %v569
      %v696 = vpop.f32.mrf.mxu0
      %v697 = vadd.f32 %v461, %v696
      %698 = vmatmul.f32.gmra.mxu0 %v572
      %v699 = vpop.f32.mrf.mxu0
      %v700 = vadd.f32 %v464, %v699
      %701 = vmatmul.f32.gmra.mxu0 %v575
      %v702 = vpop.f32.mrf.mxu0
      %v703 = vadd.f32 %v467, %v702
      %704 = vmatmul.f32.gmra.mxu0 %v578
      %v705 = vpop.f32.mrf.mxu0
      %v706 = vadd.f32 %v470, %v705
      %707 = vmatmul.f32.gmra.mxu0 %v581
      %v708 = vpop.f32.mrf.mxu0
      %v709 = vadd.f32 %v473, %v708
      %710 = vmatmul.f32.gmra.mxu0 %v584
      %v711 = vpop.f32.mrf.mxu0
      %v712 = vadd.f32 %v476, %v711
      %713 = vmatmul.f32.gmra.mxu0 %v587
      %v714 = vpop.f32.mrf.mxu0
      %v715 = vadd.f32 %v479, %v714
      %716 = vmatmul.f32.gmra.mxu0 %v590
      %v717 = vpop.f32.mrf.mxu0
      %v718 = vadd.f32 %v482, %v717
      %719 = vmatmul.f32.gmra.mxu0 %v593
      %v720 = vpop.f32.mrf.mxu0
      %v721 = vadd.f32 %v485, %v720
      %722 = vmatmul.f32.gmra.mxu0 %v596
      %v723 = vpop.f32.mrf.mxu0
      %v724 = vadd.f32 %v488, %v723
      %725 = vmatmul.f32.gmra.mxu0 %v599
      %v726 = vpop.f32.mrf.mxu0
      %v727 = vadd.f32 %v491, %v726
      %728 = vmatmul.f32.gmra.mxu0 %v602
      %v729 = vpop.f32.mrf.mxu0
      %v730 = vadd.f32 %v494, %v729
      %731 = vmatmul.f32.gmra.mxu0 %v605
      %v732 = vpop.f32.mrf.mxu0
      %v733 = vadd.f32 %v497, %v732
      %734 = vmatmul.f32.gmra.mxu0 %v608
      %v735 = vpop.f32.mrf.mxu0
      %v736 = vadd.f32 %v500, %v735
      %737 = vmatmul.f32.gmra.mxu0 %v611
      %v738 = vpop.f32.mrf.mxu0
      %v739 = vadd.f32 %v503, %v738
      %740 = vmatmul.f32.gmra.mxu0 %v614
      %v741 = vpop.f32.mrf.mxu0
      %v742 = vadd.f32 %v506, %v741
      %743 = vmatmul.f32.gmra.mxu0 %v617
      %v744 = vpop.f32.mrf.mxu0
      %v745 = vadd.f32 %v509, %v744
      %746 = vdwg.mxu0
      %v747 = vld [vmem:[%s192 + $0x2] sm:$0xff]
      %v748 = vld [vmem:[%s192 + $0xa] sm:$0xff]
      %v749 = vld [vmem:[%s192 + $0x12] sm:$0xff]
      %v750 = vld [vmem:[%s192 + $0x1a] sm:$0xff]
      %v751 = vld [vmem:[%s192 + $0x22] sm:$0xff]
      %v752 = vld [vmem:[%s192 + $0x2a] sm:$0xff]
      %v753 = vld [vmem:[%s192 + $0x32] sm:$0xff]
      %v754 = vld [vmem:[%s192 + $0x3a] sm:$0xff]
      %v755 = vld [vmem:[%s192 + $0x42] sm:$0xff]
      %v756 = vld [vmem:[%s192 + $0x4a] sm:$0xff]
      %v757 = vld [vmem:[%s192 + $0x52] sm:$0xff]
      %v758 = vld [vmem:[%s192 + $0x5a] sm:$0xff]
      %v759 = vld [vmem:[%s192 + $0x62] sm:$0xff]
      %v760 = vld [vmem:[%s192 + $0x6a] sm:$0xff]
      %v761 = vld [vmem:[%s192 + $0x72] sm:$0xff]
      %v762 = vld [vmem:[%s192 + $0x7a] sm:$0xff]
      %v763 = vld [vmem:[%s192 + $0x82] sm:$0xff]
      %v764 = vld [vmem:[%s192 + $0x8a] sm:$0xff]
      %v765 = vld [vmem:[%s192 + $0x92] sm:$0xff]
      %v766 = vld [vmem:[%s192 + $0x9a] sm:$0xff]
      %v767 = vld [vmem:[%s192 + $0xa2] sm:$0xff]
      %v768 = vld [vmem:[%s192 + $0xaa] sm:$0xff]
      %v769 = vld [vmem:[%s192 + $0xb2] sm:$0xff]
      %v770 = vld [vmem:[%s192 + $0xba] sm:$0xff]
      %v771 = vld [vmem:[%s192 + $0xc2] sm:$0xff]
      %v772 = vld [vmem:[%s192 + $0xca] sm:$0xff]
      %v773 = vld [vmem:[%s192 + $0xd2] sm:$0xff]
      %v774 = vld [vmem:[%s192 + $0xda] sm:$0xff]
      %v775 = vld [vmem:[%s192 + $0xe2] sm:$0xff]
      %v776 = vld [vmem:[%s192 + $0xea] sm:$0xff]
      %v777 = vld [vmem:[%s192 + $0xf2] sm:$0xff]
      %v778 = vld [vmem:[%s192 + $0xfa] sm:$0xff]
      %v779 = vld [vmem:[%s192 + $0x102] sm:$0xff]
      %v780 = vld [vmem:[%s192 + $0x10a] sm:$0xff]
      %v781 = vld [vmem:[%s192 + $0x112] sm:$0xff]
      %v782 = vld [vmem:[%s192 + $0x11a] sm:$0xff]
      %s783 = scalar_lea.vmem %s1, 8
      %v784 = vld [vmem:[%s783] sm:$0xf]
      %v786 = vsel %vm273, %v747, 0
      %v789 = vsel %vm273, %v748, 0
      %v792 = vsel %vm273, %v749, 0
      %v795 = vsel %vm273, %v750, 0
      %v798 = vsel %vm273, %v751, 0
      %v801 = vsel %vm273, %v752, 0
      %v804 = vsel %vm273, %v753, 0
      %v807 = vsel %vm273, %v754, 0
      %v810 = vsel %vm273, %v755, 0
      %v813 = vsel %vm273, %v756, 0
      %v816 = vsel %vm273, %v757, 0
      %v819 = vsel %vm273, %v758, 0
      %v822 = vsel %vm273, %v759, 0
      %v825 = vsel %vm273, %v760, 0
      %v828 = vsel %vm273, %v761, 0
      %v831 = vsel %vm273, %v762, 0
      %v834 = vsel %vm273, %v763, 0
      %v837 = vsel %vm273, %v764, 0
      %v840 = vsel %vm273, %v765, 0
      %v843 = vsel %vm273, %v766, 0
      %v846 = vsel %vm273, %v767, 0
      %v849 = vsel %vm273, %v768, 0
      %v852 = vsel %vm273, %v769, 0
      %v855 = vsel %vm273, %v770, 0
      %v858 = vsel %vm273, %v771, 0
      %v861 = vsel %vm273, %v772, 0
      %v864 = vsel %vm273, %v773, 0
      %v867 = vsel %vm273, %v774, 0
      %v870 = vsel %vm273, %v775, 0
      %v873 = vsel %vm273, %v776, 0
      %v876 = vsel %vm273, %v777, 0
      %v879 = vsel %vm273, %v778, 0
      %v882 = vsel %vm273, %v779, 0
      %v885 = vsel %vm273, %v780, 0
      %v888 = vsel %vm273, %v781, 0
      %v891 = vsel %vm273, %v782, 0
      %v894 = vsel %vm382, %v784, 0
      %896 = vmatpush.msra.mxu0 0.0
      %897 = vmatpush.msra.mxu0 0.0
      %898 = vmatpush.msra.mxu0 0.0
      %899 = vmatpush.msra.mxu0 0.0
      %900 = vmatpush.msra.mxu0 0.0
      %901 = vmatpush.msra.mxu0 0.0
      %902 = vmatpush.msra.mxu0 0.0
      %903 = vmatpush.msra.mxu0 0.0
      %904 = vmatpush.msra.mxu0 0.0
      %905 = vmatpush.msra.mxu0 0.0
      %906 = vmatpush.msra.mxu0 0.0
      %907 = vmatpush.msra.mxu0 0.0
      %908 = vmatpush.msra.mxu0 0.0
      %909 = vmatpush.msra.mxu0 0.0
      %910 = vmatpush.msra.mxu0 0.0
      %911 = vmatpush.msra.mxu0 %v894
      %912 = vmatmul.f32.gmra.mxu0 %v786
      %v913 = vpop.f32.mrf.mxu0
      %v914 = vadd.f32 0.0, %v913
      %915 = vmatmul.f32.gmra.mxu0 %v789
      %v916 = vpop.f32.mrf.mxu0
      %v917 = vadd.f32 0.0, %v916
      %918 = vmatmul.f32.gmra.mxu0 %v792
      %v919 = vpop.f32.mrf.mxu0
      %v920 = vadd.f32 0.0, %v919
      %921 = vmatmul.f32.gmra.mxu0 %v795
      %v922 = vpop.f32.mrf.mxu0
      %v923 = vadd.f32 0.0, %v922
      %924 = vmatmul.f32.gmra.mxu0 %v798
      %v925 = vpop.f32.mrf.mxu0
      %v926 = vadd.f32 0.0, %v925
      %927 = vmatmul.f32.gmra.mxu0 %v801
      %v928 = vpop.f32.mrf.mxu0
      %v929 = vadd.f32 0.0, %v928
      %930 = vmatmul.f32.gmra.mxu0 %v804
      %v931 = vpop.f32.mrf.mxu0
      %v932 = vadd.f32 0.0, %v931
      %933 = vmatmul.f32.gmra.mxu0 %v807
      %v934 = vpop.f32.mrf.mxu0
      %v935 = vadd.f32 0.0, %v934
      %936 = vmatmul.f32.gmra.mxu0 %v810
      %v937 = vpop.f32.mrf.mxu0
      %v938 = vadd.f32 0.0, %v937
      %939 = vmatmul.f32.gmra.mxu0 %v813
      %v940 = vpop.f32.mrf.mxu0
      %v941 = vadd.f32 0.0, %v940
      %942 = vmatmul.f32.gmra.mxu0 %v816
      %v943 = vpop.f32.mrf.mxu0
      %v944 = vadd.f32 0.0, %v943
      %945 = vmatmul.f32.gmra.mxu0 %v819
      %v946 = vpop.f32.mrf.mxu0
      %v947 = vadd.f32 0.0, %v946
      %948 = vmatmul.f32.gmra.mxu0 %v822
      %v949 = vpop.f32.mrf.mxu0
      %v950 = vadd.f32 0.0, %v949
      %951 = vmatmul.f32.gmra.mxu0 %v825
      %v952 = vpop.f32.mrf.mxu0
      %v953 = vadd.f32 0.0, %v952
      %954 = vmatmul.f32.gmra.mxu0 %v828
      %v955 = vpop.f32.mrf.mxu0
      %v956 = vadd.f32 0.0, %v955
      %957 = vmatmul.f32.gmra.mxu0 %v831
      %v958 = vpop.f32.mrf.mxu0
      %v959 = vadd.f32 0.0, %v958
      %960 = vmatmul.f32.gmra.mxu0 %v834
      %v961 = vpop.f32.mrf.mxu0
      %v962 = vadd.f32 0.0, %v961
      %963 = vmatmul.f32.gmra.mxu0 %v837
      %v964 = vpop.f32.mrf.mxu0
      %v965 = vadd.f32 0.0, %v964
      %966 = vmatmul.f32.gmra.mxu0 %v840
      %v967 = vpop.f32.mrf.mxu0
      %v968 = vadd.f32 0.0, %v967
      %969 = vmatmul.f32.gmra.mxu0 %v843
      %v970 = vpop.f32.mrf.mxu0
      %v971 = vadd.f32 0.0, %v970
      %972 = vmatmul.f32.gmra.mxu0 %v846
      %v973 = vpop.f32.mrf.mxu0
      %v974 = vadd.f32 0.0, %v973
      %975 = vmatmul.f32.gmra.mxu0 %v849
      %v976 = vpop.f32.mrf.mxu0
      %v977 = vadd.f32 0.0, %v976
      %978 = vmatmul.f32.gmra.mxu0 %v852
      %v979 = vpop.f32.mrf.mxu0
      %v980 = vadd.f32 0.0, %v979
      %981 = vmatmul.f32.gmra.mxu0 %v855
      %v982 = vpop.f32.mrf.mxu0
      %v983 = vadd.f32 0.0, %v982
      %984 = vmatmul.f32.gmra.mxu0 %v858
      %v985 = vpop.f32.mrf.mxu0
      %v986 = vadd.f32 0.0, %v985
      %987 = vmatmul.f32.gmra.mxu0 %v861
      %v988 = vpop.f32.mrf.mxu0
      %v989 = vadd.f32 0.0, %v988
      %990 = vmatmul.f32.gmra.mxu0 %v864
      %v991 = vpop.f32.mrf.mxu0
      %v992 = vadd.f32 0.0, %v991
      %993 = vmatmul.f32.gmra.mxu0 %v867
      %v994 = vpop.f32.mrf.mxu0
      %v995 = vadd.f32 0.0, %v994
      %996 = vmatmul.f32.gmra.mxu0 %v870
      %v997 = vpop.f32.mrf.mxu0
      %v998 = vadd.f32 0.0, %v997
      %999 = vmatmul.f32.gmra.mxu0 %v873
      %v1000 = vpop.f32.mrf.mxu0
      %v1001 = vadd.f32 0.0, %v1000
      %1002 = vmatmul.f32.gmra.mxu0 %v876
      %v1003 = vpop.f32.mrf.mxu0
      %v1004 = vadd.f32 0.0, %v1003
      %1005 = vmatmul.f32.gmra.mxu0 %v879
      %v1006 = vpop.f32.mrf.mxu0
      %v1007 = vadd.f32 0.0, %v1006
      %1008 = vmatmul.f32.gmra.mxu0 %v882
      %v1009 = vpop.f32.mrf.mxu0
      %v1010 = vadd.f32 0.0, %v1009
      %1011 = vmatmul.f32.gmra.mxu0 %v885
      %v1012 = vpop.f32.mrf.mxu0
      %v1013 = vadd.f32 0.0, %v1012
      %1014 = vmatmul.f32.gmra.mxu0 %v888
      %v1015 = vpop.f32.mrf.mxu0
      %v1016 = vadd.f32 0.0, %v1015
      %1017 = vmatmul.f32.gmra.mxu0 %v891
      %v1018 = vpop.f32.mrf.mxu0
      %v1019 = vadd.f32 0.0, %v1018
      %1020 = vdwg.mxu0
      %v1021 = vadd.f32 %v640, %v914
      %v1022 = vadd.f32 %v643, %v917
      %v1023 = vadd.f32 %v646, %v920
      %v1024 = vadd.f32 %v649, %v923
      %v1025 = vadd.f32 %v652, %v926
      %v1026 = vadd.f32 %v655, %v929
      %v1027 = vadd.f32 %v658, %v932
      %v1028 = vadd.f32 %v661, %v935
      %v1029 = vadd.f32 %v664, %v938
      %v1030 = vadd.f32 %v667, %v941
      %v1031 = vadd.f32 %v670, %v944
      %v1032 = vadd.f32 %v673, %v947
      %v1033 = vadd.f32 %v676, %v950
      %v1034 = vadd.f32 %v679, %v953
      %v1035 = vadd.f32 %v682, %v956
      %v1036 = vadd.f32 %v685, %v959
      %v1037 = vadd.f32 %v688, %v962
      %v1038 = vadd.f32 %v691, %v965
      %v1039 = vadd.f32 %v694, %v968
      %v1040 = vadd.f32 %v697, %v971
      %v1041 = vadd.f32 %v700, %v974
      %v1042 = vadd.f32 %v703, %v977
      %v1043 = vadd.f32 %v706, %v980
      %v1044 = vadd.f32 %v709, %v983
      %v1045 = vadd.f32 %v712, %v986
      %v1046 = vadd.f32 %v715, %v989
      %v1047 = vadd.f32 %v718, %v992
      %v1048 = vadd.f32 %v721, %v995
      %v1049 = vadd.f32 %v724, %v998
      %v1050 = vadd.f32 %v727, %v1001
      %v1051 = vadd.f32 %v730, %v1004
      %v1052 = vadd.f32 %v733, %v1007
      %v1053 = vadd.f32 %v736, %v1010
      %v1054 = vadd.f32 %v739, %v1013
      %v1055 = vadd.f32 %v742, %v1016
      %v1056 = vadd.f32 %v745, %v1019
      %v1057 = vld [vmem:[%s192 + $0x12] sm:$0xff]
      %v1058 = vld [vmem:[%s192 + $0x1a] sm:$0xff]
      %v1059 = vld [vmem:[%s192 + $0x22] sm:$0xff]
      %v1060 = vld [vmem:[%s192 + $0x2a] sm:$0xff]
      %v1061 = vld [vmem:[%s192 + $0x32] sm:$0xff]
      %v1062 = vld [vmem:[%s192 + $0x3a] sm:$0xff]
      %v1063 = vld [vmem:[%s192 + $0x42] sm:$0xff]
      %v1064 = vld [vmem:[%s192 + $0x4a] sm:$0xff]
      %v1065 = vld [vmem:[%s192 + $0x52] sm:$0xff]
      %v1066 = vld [vmem:[%s192 + $0x5a] sm:$0xff]
      %v1067 = vld [vmem:[%s192 + $0x62] sm:$0xff]
      %v1068 = vld [vmem:[%s192 + $0x6a] sm:$0xff]
      %v1069 = vld [vmem:[%s192 + $0x72] sm:$0xff]
      %v1070 = vld [vmem:[%s192 + $0x7a] sm:$0xff]
      %v1071 = vld [vmem:[%s192 + $0x82] sm:$0xff]
      %v1072 = vld [vmem:[%s192 + $0x8a] sm:$0xff]
      %v1073 = vld [vmem:[%s192 + $0x92] sm:$0xff]
      %v1074 = vld [vmem:[%s192 + $0x9a] sm:$0xff]
      %v1075 = vld [vmem:[%s192 + $0xa2] sm:$0xff]
      %v1076 = vld [vmem:[%s192 + $0xaa] sm:$0xff]
      %v1077 = vld [vmem:[%s192 + $0xb2] sm:$0xff]
      %v1078 = vld [vmem:[%s192 + $0xba] sm:$0xff]
      %v1079 = vld [vmem:[%s192 + $0xc2] sm:$0xff]
      %v1080 = vld [vmem:[%s192 + $0xca] sm:$0xff]
      %v1081 = vld [vmem:[%s192 + $0xd2] sm:$0xff]
      %v1082 = vld [vmem:[%s192 + $0xda] sm:$0xff]
      %v1083 = vld [vmem:[%s192 + $0xe2] sm:$0xff]
      %v1084 = vld [vmem:[%s192 + $0xea] sm:$0xff]
      %v1085 = vld [vmem:[%s192 + $0xf2] sm:$0xff]
      %v1086 = vld [vmem:[%s192 + $0xfa] sm:$0xff]
      %v1087 = vld [vmem:[%s192 + $0x102] sm:$0xff]
      %v1088 = vld [vmem:[%s192 + $0x10a] sm:$0xff]
      %v1089 = vld [vmem:[%s192 + $0x112] sm:$0xff]
      %v1090 = vld [vmem:[%s192 + $0x11a] sm:$0xff]
      %v1091 = vld [vmem:[%s192 + $0x122] sm:$0xff]
      %v1092 = vld [vmem:[%s192 + $0x12a] sm:$0xff]
      %s1093 = scalar_lea.vmem %s1, 12
      %v1094 = vld [vmem:[%s1093] sm:$0xf]
      %v1096 = vsel %vm273, %v1057, 0
      %v1099 = vsel %vm273, %v1058, 0
      %v1102 = vsel %vm273, %v1059, 0
      %v1105 = vsel %vm273, %v1060, 0
      %v1108 = vsel %vm273, %v1061, 0
      %v1111 = vsel %vm273, %v1062, 0
      %v1114 = vsel %vm273, %v1063, 0
      %v1117 = vsel %vm273, %v1064, 0
      %v1120 = vsel %vm273, %v1065, 0
      %v1123 = vsel %vm273, %v1066, 0
      %v1126 = vsel %vm273, %v1067, 0
      %v1129 = vsel %vm273, %v1068, 0
      %v1132 = vsel %vm273, %v1069, 0
      %v1135 = vsel %vm273, %v1070, 0
      %v1138 = vsel %vm273, %v1071, 0
      %v1141 = vsel %vm273, %v1072, 0
      %v1144 = vsel %vm273, %v1073, 0
      %v1147 = vsel %vm273, %v1074, 0
      %v1150 = vsel %vm273, %v1075, 0
      %v1153 = vsel %vm273, %v1076, 0
      %v1156 = vsel %vm273, %v1077, 0
      %v1159 = vsel %vm273, %v1078, 0
      %v1162 = vsel %vm273, %v1079, 0
      %v1165 = vsel %vm273, %v1080, 0
      %v1168 = vsel %vm273, %v1081, 0
      %v1171 = vsel %vm273, %v1082, 0
      %v1174 = vsel %vm273, %v1083, 0
      %v1177 = vsel %vm273, %v1084, 0
      %v1180 = vsel %vm273, %v1085, 0
      %v1183 = vsel %vm273, %v1086, 0
      %v1186 = vsel %vm273, %v1087, 0
      %v1189 = vsel %vm273, %v1088, 0
      %v1192 = vsel %vm273, %v1089, 0
      %v1195 = vsel %vm273, %v1090, 0
      %v1198 = vsel %vm273, %v1091, 0
      %v1201 = vsel %vm273, %v1092, 0
      %v1204 = vsel %vm382, %v1094, 0
      %1206 = vmatpush.msra.mxu0 0.0
      %1207 = vmatpush.msra.mxu0 0.0
      %1208 = vmatpush.msra.mxu0 0.0
      %1209 = vmatpush.msra.mxu0 0.0
      %1210 = vmatpush.msra.mxu0 0.0
      %1211 = vmatpush.msra.mxu0 0.0
      %1212 = vmatpush.msra.mxu0 0.0
      %1213 = vmatpush.msra.mxu0 0.0
      %1214 = vmatpush.msra.mxu0 0.0
      %1215 = vmatpush.msra.mxu0 0.0
      %1216 = vmatpush.msra.mxu0 0.0
      %1217 = vmatpush.msra.mxu0 0.0
      %1218 = vmatpush.msra.mxu0 0.0
      %1219 = vmatpush.msra.mxu0 0.0
      %1220 = vmatpush.msra.mxu0 0.0
      %1221 = vmatpush.msra.mxu0 %v1204
      %1222 = vmatmul.f32.gmra.mxu0 %v1096
      %v1223 = vpop.f32.mrf.mxu0
      %v1224 = vadd.f32 0.0, %v1223
      %1225 = vmatmul.f32.gmra.mxu0 %v1099
      %v1226 = vpop.f32.mrf.mxu0
      %v1227 = vadd.f32 0.0, %v1226
      %1228 = vmatmul.f32.gmra.mxu0 %v1102
      %v1229 = vpop.f32.mrf.mxu0
      %v1230 = vadd.f32 0.0, %v1229
      %1231 = vmatmul.f32.gmra.mxu0 %v1105
      %v1232 = vpop.f32.mrf.mxu0
      %v1233 = vadd.f32 0.0, %v1232
      %1234 = vmatmul.f32.gmra.mxu0 %v1108
      %v1235 = vpop.f32.mrf.mxu0
      %v1236 = vadd.f32 0.0, %v1235
      %1237 = vmatmul.f32.gmra.mxu0 %v1111
      %v1238 = vpop.f32.mrf.mxu0
      %v1239 = vadd.f32 0.0, %v1238
      %1240 = vmatmul.f32.gmra.mxu0 %v1114
      %v1241 = vpop.f32.mrf.mxu0
      %v1242 = vadd.f32 0.0, %v1241
      %1243 = vmatmul.f32.gmra.mxu0 %v1117
      %v1244 = vpop.f32.mrf.mxu0
      %v1245 = vadd.f32 0.0, %v1244
      %1246 = vmatmul.f32.gmra.mxu0 %v1120
      %v1247 = vpop.f32.mrf.mxu0
      %v1248 = vadd.f32 0.0, %v1247
      %1249 = vmatmul.f32.gmra.mxu0 %v1123
      %v1250 = vpop.f32.mrf.mxu0
      %v1251 = vadd.f32 0.0, %v1250
      %1252 = vmatmul.f32.gmra.mxu0 %v1126
      %v1253 = vpop.f32.mrf.mxu0
      %v1254 = vadd.f32 0.0, %v1253
      %1255 = vmatmul.f32.gmra.mxu0 %v1129
      %v1256 = vpop.f32.mrf.mxu0
      %v1257 = vadd.f32 0.0, %v1256
      %1258 = vmatmul.f32.gmra.mxu0 %v1132
      %v1259 = vpop.f32.mrf.mxu0
      %v1260 = vadd.f32 0.0, %v1259
      %1261 = vmatmul.f32.gmra.mxu0 %v1135
      %v1262 = vpop.f32.mrf.mxu0
      %v1263 = vadd.f32 0.0, %v1262
      %1264 = vmatmul.f32.gmra.mxu0 %v1138
      %v1265 = vpop.f32.mrf.mxu0
      %v1266 = vadd.f32 0.0, %v1265
      %1267 = vmatmul.f32.gmra.mxu0 %v1141
      %v1268 = vpop.f32.mrf.mxu0
      %v1269 = vadd.f32 0.0, %v1268
      %1270 = vmatmul.f32.gmra.mxu0 %v1144
      %v1271 = vpop.f32.mrf.mxu0
      %v1272 = vadd.f32 0.0, %v1271
      %1273 = vmatmul.f32.gmra.mxu0 %v1147
      %v1274 = vpop.f32.mrf.mxu0
      %v1275 = vadd.f32 0.0, %v1274
      %1276 = vmatmul.f32.gmra.mxu0 %v1150
      %v1277 = vpop.f32.mrf.mxu0
      %v1278 = vadd.f32 0.0, %v1277
      %1279 = vmatmul.f32.gmra.mxu0 %v1153
      %v1280 = vpop.f32.mrf.mxu0
      %v1281 = vadd.f32 0.0, %v1280
      %1282 = vmatmul.f32.gmra.mxu0 %v1156
      %v1283 = vpop.f32.mrf.mxu0
      %v1284 = vadd.f32 0.0, %v1283
      %1285 = vmatmul.f32.gmra.mxu0 %v1159
      %v1286 = vpop.f32.mrf.mxu0
      %v1287 = vadd.f32 0.0, %v1286
      %1288 = vmatmul.f32.gmra.mxu0 %v1162
      %v1289 = vpop.f32.mrf.mxu0
      %v1290 = vadd.f32 0.0, %v1289
      %1291 = vmatmul.f32.gmra.mxu0 %v1165
      %v1292 = vpop.f32.mrf.mxu0
      %v1293 = vadd.f32 0.0, %v1292
      %1294 = vmatmul.f32.gmra.mxu0 %v1168
      %v1295 = vpop.f32.mrf.mxu0
      %v1296 = vadd.f32 0.0, %v1295
      %1297 = vmatmul.f32.gmra.mxu0 %v1171
      %v1298 = vpop.f32.mrf.mxu0
      %v1299 = vadd.f32 0.0, %v1298
      %1300 = vmatmul.f32.gmra.mxu0 %v1174
      %v1301 = vpop.f32.mrf.mxu0
      %v1302 = vadd.f32 0.0, %v1301
      %1303 = vmatmul.f32.gmra.mxu0 %v1177
      %v1304 = vpop.f32.mrf.mxu0
      %v1305 = vadd.f32 0.0, %v1304
      %1306 = vmatmul.f32.gmra.mxu0 %v1180
      %v1307 = vpop.f32.mrf.mxu0
      %v1308 = vadd.f32 0.0, %v1307
      %1309 = vmatmul.f32.gmra.mxu0 %v1183
      %v1310 = vpop.f32.mrf.mxu0
      %v1311 = vadd.f32 0.0, %v1310
      %1312 = vmatmul.f32.gmra.mxu0 %v1186
      %v1313 = vpop.f32.mrf.mxu0
      %v1314 = vadd.f32 0.0, %v1313
      %1315 = vmatmul.f32.gmra.mxu0 %v1189
      %v1316 = vpop.f32.mrf.mxu0
      %v1317 = vadd.f32 0.0, %v1316
      %1318 = vmatmul.f32.gmra.mxu0 %v1192
      %v1319 = vpop.f32.mrf.mxu0
      %v1320 = vadd.f32 0.0, %v1319
      %1321 = vmatmul.f32.gmra.mxu0 %v1195
      %v1322 = vpop.f32.mrf.mxu0
      %v1323 = vadd.f32 0.0, %v1322
      %1324 = vmatmul.f32.gmra.mxu0 %v1198
      %v1325 = vpop.f32.mrf.mxu0
      %v1326 = vadd.f32 0.0, %v1325
      %1327 = vmatmul.f32.gmra.mxu0 %v1201
      %v1328 = vpop.f32.mrf.mxu0
      %v1329 = vadd.f32 0.0, %v1328
      %1330 = vdwg.mxu0
      %v1331 = vadd.f32 %v1021, %v1224
      %v1332 = vadd.f32 %v1022, %v1227
      %v1333 = vadd.f32 %v1023, %v1230
      %v1334 = vadd.f32 %v1024, %v1233
      %v1335 = vadd.f32 %v1025, %v1236
      %v1336 = vadd.f32 %v1026, %v1239
      %v1337 = vadd.f32 %v1027, %v1242
      %v1338 = vadd.f32 %v1028, %v1245
      %v1339 = vadd.f32 %v1029, %v1248
      %v1340 = vadd.f32 %v1030, %v1251
      %v1341 = vadd.f32 %v1031, %v1254
      %v1342 = vadd.f32 %v1032, %v1257
      %v1343 = vadd.f32 %v1033, %v1260
      %v1344 = vadd.f32 %v1034, %v1263
      %v1345 = vadd.f32 %v1035, %v1266
      %v1346 = vadd.f32 %v1036, %v1269
      %v1347 = vadd.f32 %v1037, %v1272
      %v1348 = vadd.f32 %v1038, %v1275
      %v1349 = vadd.f32 %v1039, %v1278
      %v1350 = vadd.f32 %v1040, %v1281
      %v1351 = vadd.f32 %v1041, %v1284
      %v1352 = vadd.f32 %v1042, %v1287
      %v1353 = vadd.f32 %v1043, %v1290
      %v1354 = vadd.f32 %v1044, %v1293
      %v1355 = vadd.f32 %v1045, %v1296
      %v1356 = vadd.f32 %v1046, %v1299
      %v1357 = vadd.f32 %v1047, %v1302
      %v1358 = vadd.f32 %v1048, %v1305
      %v1359 = vadd.f32 %v1049, %v1308
      %v1360 = vadd.f32 %v1050, %v1311
      %v1361 = vadd.f32 %v1051, %v1314
      %v1362 = vadd.f32 %v1052, %v1317
      %v1363 = vadd.f32 %v1053, %v1320
      %v1364 = vadd.f32 %v1054, %v1323
      %v1365 = vadd.f32 %v1055, %v1326
      %v1366 = vadd.f32 %v1056, %v1329
      %v1367 = vld [vmem:[%s192 + $0x13] sm:$0xff]
      %v1368 = vld [vmem:[%s192 + $0x1b] sm:$0xff]
      %v1369 = vld [vmem:[%s192 + $0x23] sm:$0xff]
      %v1370 = vld [vmem:[%s192 + $0x2b] sm:$0xff]
      %v1371 = vld [vmem:[%s192 + $0x33] sm:$0xff]
      %v1372 = vld [vmem:[%s192 + $0x3b] sm:$0xff]
      %v1373 = vld [vmem:[%s192 + $0x43] sm:$0xff]
      %v1374 = vld [vmem:[%s192 + $0x4b] sm:$0xff]
      %v1375 = vld [vmem:[%s192 + $0x53] sm:$0xff]
      %v1376 = vld [vmem:[%s192 + $0x5b] sm:$0xff]
      %v1377 = vld [vmem:[%s192 + $0x63] sm:$0xff]
      %v1378 = vld [vmem:[%s192 + $0x6b] sm:$0xff]
      %v1379 = vld [vmem:[%s192 + $0x73] sm:$0xff]
      %v1380 = vld [vmem:[%s192 + $0x7b] sm:$0xff]
      %v1381 = vld [vmem:[%s192 + $0x83] sm:$0xff]
      %v1382 = vld [vmem:[%s192 + $0x8b] sm:$0xff]
      %v1383 = vld [vmem:[%s192 + $0x93] sm:$0xff]
      %v1384 = vld [vmem:[%s192 + $0x9b] sm:$0xff]
      %v1385 = vld [vmem:[%s192 + $0xa3] sm:$0xff]
      %v1386 = vld [vmem:[%s192 + $0xab] sm:$0xff]
      %v1387 = vld [vmem:[%s192 + $0xb3] sm:$0xff]
      %v1388 = vld [vmem:[%s192 + $0xbb] sm:$0xff]
      %v1389 = vld [vmem:[%s192 + $0xc3] sm:$0xff]
      %v1390 = vld [vmem:[%s192 + $0xcb] sm:$0xff]
      %v1391 = vld [vmem:[%s192 + $0xd3] sm:$0xff]
      %v1392 = vld [vmem:[%s192 + $0xdb] sm:$0xff]
      %v1393 = vld [vmem:[%s192 + $0xe3] sm:$0xff]
      %v1394 = vld [vmem:[%s192 + $0xeb] sm:$0xff]
      %v1395 = vld [vmem:[%s192 + $0xf3] sm:$0xff]
      %v1396 = vld [vmem:[%s192 + $0xfb] sm:$0xff]
      %v1397 = vld [vmem:[%s192 + $0x103] sm:$0xff]
      %v1398 = vld [vmem:[%s192 + $0x10b] sm:$0xff]
      %v1399 = vld [vmem:[%s192 + $0x113] sm:$0xff]
      %v1400 = vld [vmem:[%s192 + $0x11b] sm:$0xff]
      %v1401 = vld [vmem:[%s192 + $0x123] sm:$0xff]
      %v1402 = vld [vmem:[%s192 + $0x12b] sm:$0xff]
      %s1403 = scalar_lea.vmem %s1, 16
      %v1404 = vld [vmem:[%s1403] sm:$0xf]
      %v1406 = vsel %vm273, %v1367, 0
      %v1409 = vsel %vm273, %v1368, 0
      %v1412 = vsel %vm273, %v1369, 0
      %v1415 = vsel %vm273, %v1370, 0
      %v1418 = vsel %vm273, %v1371, 0
      %v1421 = vsel %vm273, %v1372, 0
      %v1424 = vsel %vm273, %v1373, 0
      %v1427 = vsel %vm273, %v1374, 0
      %v1430 = vsel %vm273, %v1375, 0
      %v1433 = vsel %vm273, %v1376, 0
      %v1436 = vsel %vm273, %v1377, 0
      %v1439 = vsel %vm273, %v1378, 0
      %v1442 = vsel %vm273, %v1379, 0
      %v1445 = vsel %vm273, %v1380, 0
      %v1448 = vsel %vm273, %v1381, 0
      %v1451 = vsel %vm273, %v1382, 0
      %v1454 = vsel %vm273, %v1383, 0
      %v1457 = vsel %vm273, %v1384, 0
      %v1460 = vsel %vm273, %v1385, 0
      %v1463 = vsel %vm273, %v1386, 0
      %v1466 = vsel %vm273, %v1387, 0
      %v1469 = vsel %vm273, %v1388, 0
      %v1472 = vsel %vm273, %v1389, 0
      %v1475 = vsel %vm273, %v1390, 0
      %v1478 = vsel %vm273, %v1391, 0
      %v1481 = vsel %vm273, %v1392, 0
      %v1484 = vsel %vm273, %v1393, 0
      %v1487 = vsel %vm273, %v1394, 0
      %v1490 = vsel %vm273, %v1395, 0
      %v1493 = vsel %vm273, %v1396, 0
      %v1496 = vsel %vm273, %v1397, 0
      %v1499 = vsel %vm273, %v1398, 0
      %v1502 = vsel %vm273, %v1399, 0
      %v1505 = vsel %vm273, %v1400, 0
      %v1508 = vsel %vm273, %v1401, 0
      %v1511 = vsel %vm273, %v1402, 0
      %v1514 = vsel %vm382, %v1404, 0
      %1516 = vmatpush.msra.mxu0 0.0
      %1517 = vmatpush.msra.mxu0 0.0
      %1518 = vmatpush.msra.mxu0 0.0
      %1519 = vmatpush.msra.mxu0 0.0
      %1520 = vmatpush.msra.mxu0 0.0
      %1521 = vmatpush.msra.mxu0 0.0
      %1522 = vmatpush.msra.mxu0 0.0
      %1523 = vmatpush.msra.mxu0 0.0
      %1524 = vmatpush.msra.mxu0 0.0
      %1525 = vmatpush.msra.mxu0 0.0
      %1526 = vmatpush.msra.mxu0 0.0
      %1527 = vmatpush.msra.mxu0 0.0
      %1528 = vmatpush.msra.mxu0 0.0
      %1529 = vmatpush.msra.mxu0 0.0
      %1530 = vmatpush.msra.mxu0 0.0
      %1531 = vmatpush.msra.mxu0 %v1514
      %1532 = vmatmul.f32.gmra.mxu0 %v1406
      %v1533 = vpop.f32.mrf.mxu0
      %v1534 = vadd.f32 0.0, %v1533
      %1535 = vmatmul.f32.gmra.mxu0 %v1409
      %v1536 = vpop.f32.mrf.mxu0
      %v1537 = vadd.f32 0.0, %v1536
      %1538 = vmatmul.f32.gmra.mxu0 %v1412
      %v1539 = vpop.f32.mrf.mxu0
      %v1540 = vadd.f32 0.0, %v1539
      %1541 = vmatmul.f32.gmra.mxu0 %v1415
      %v1542 = vpop.f32.mrf.mxu0
      %v1543 = vadd.f32 0.0, %v1542
      %1544 = vmatmul.f32.gmra.mxu0 %v1418
      %v1545 = vpop.f32.mrf.mxu0
      %v1546 = vadd.f32 0.0, %v1545
      %1547 = vmatmul.f32.gmra.mxu0 %v1421
      %v1548 = vpop.f32.mrf.mxu0
      %v1549 = vadd.f32 0.0, %v1548
      %1550 = vmatmul.f32.gmra.mxu0 %v1424
      %v1551 = vpop.f32.mrf.mxu0
      %v1552 = vadd.f32 0.0, %v1551
      %1553 = vmatmul.f32.gmra.mxu0 %v1427
      %v1554 = vpop.f32.mrf.mxu0
      %v1555 = vadd.f32 0.0, %v1554
      %1556 = vmatmul.f32.gmra.mxu0 %v1430
      %v1557 = vpop.f32.mrf.mxu0
      %v1558 = vadd.f32 0.0, %v1557
      %1559 = vmatmul.f32.gmra.mxu0 %v1433
      %v1560 = vpop.f32.mrf.mxu0
      %v1561 = vadd.f32 0.0, %v1560
      %1562 = vmatmul.f32.gmra.mxu0 %v1436
      %v1563 = vpop.f32.mrf.mxu0
      %v1564 = vadd.f32 0.0, %v1563
      %1565 = vmatmul.f32.gmra.mxu0 %v1439
      %v1566 = vpop.f32.mrf.mxu0
      %v1567 = vadd.f32 0.0, %v1566
      %1568 = vmatmul.f32.gmra.mxu0 %v1442
      %v1569 = vpop.f32.mrf.mxu0
      %v1570 = vadd.f32 0.0, %v1569
      %1571 = vmatmul.f32.gmra.mxu0 %v1445
      %v1572 = vpop.f32.mrf.mxu0
      %v1573 = vadd.f32 0.0, %v1572
      %1574 = vmatmul.f32.gmra.mxu0 %v1448
      %v1575 = vpop.f32.mrf.mxu0
      %v1576 = vadd.f32 0.0, %v1575
      %1577 = vmatmul.f32.gmra.mxu0 %v1451
      %v1578 = vpop.f32.mrf.mxu0
      %v1579 = vadd.f32 0.0, %v1578
      %1580 = vmatmul.f32.gmra.mxu0 %v1454
      %v1581 = vpop.f32.mrf.mxu0
      %v1582 = vadd.f32 0.0, %v1581
      %1583 = vmatmul.f32.gmra.mxu0 %v1457
      %v1584 = vpop.f32.mrf.mxu0
      %v1585 = vadd.f32 0.0, %v1584
      %1586 = vmatmul.f32.gmra.mxu0 %v1460
      %v1587 = vpop.f32.mrf.mxu0
      %v1588 = vadd.f32 0.0, %v1587
      %1589 = vmatmul.f32.gmra.mxu0 %v1463
      %v1590 = vpop.f32.mrf.mxu0
      %v1591 = vadd.f32 0.0, %v1590
      %1592 = vmatmul.f32.gmra.mxu0 %v1466
      %v1593 = vpop.f32.mrf.mxu0
      %v1594 = vadd.f32 0.0, %v1593
      %1595 = vmatmul.f32.gmra.mxu0 %v1469
      %v1596 = vpop.f32.mrf.mxu0
      %v1597 = vadd.f32 0.0, %v1596
      %1598 = vmatmul.f32.gmra.mxu0 %v1472
      %v1599 = vpop.f32.mrf.mxu0
      %v1600 = vadd.f32 0.0, %v1599
      %1601 = vmatmul.f32.gmra.mxu0 %v1475
      %v1602 = vpop.f32.mrf.mxu0
      %v1603 = vadd.f32 0.0, %v1602
      %1604 = vmatmul.f32.gmra.mxu0 %v1478
      %v1605 = vpop.f32.mrf.mxu0
      %v1606 = vadd.f32 0.0, %v1605
      %1607 = vmatmul.f32.gmra.mxu0 %v1481
      %v1608 = vpop.f32.mrf.mxu0
      %v1609 = vadd.f32 0.0, %v1608
      %1610 = vmatmul.f32.gmra.mxu0 %v1484
      %v1611 = vpop.f32.mrf.mxu0
      %v1612 = vadd.f32 0.0, %v1611
      %1613 = vmatmul.f32.gmra.mxu0 %v1487
      %v1614 = vpop.f32.mrf.mxu0
      %v1615 = vadd.f32 0.0, %v1614
      %1616 = vmatmul.f32.gmra.mxu0 %v1490
      %v1617 = vpop.f32.mrf.mxu0
      %v1618 = vadd.f32 0.0, %v1617
      %1619 = vmatmul.f32.gmra.mxu0 %v1493
      %v1620 = vpop.f32.mrf.mxu0
      %v1621 = vadd.f32 0.0, %v1620
      %1622 = vmatmul.f32.gmra.mxu0 %v1496
      %v1623 = vpop.f32.mrf.mxu0
      %v1624 = vadd.f32 0.0, %v1623
      %1625 = vmatmul.f32.gmra.mxu0 %v1499
      %v1626 = vpop.f32.mrf.mxu0
      %v1627 = vadd.f32 0.0, %v1626
      %1628 = vmatmul.f32.gmra.mxu0 %v1502
      %v1629 = vpop.f32.mrf.mxu0
      %v1630 = vadd.f32 0.0, %v1629
      %1631 = vmatmul.f32.gmra.mxu0 %v1505
      %v1632 = vpop.f32.mrf.mxu0
      %v1633 = vadd.f32 0.0, %v1632
      %1634 = vmatmul.f32.gmra.mxu0 %v1508
      %v1635 = vpop.f32.mrf.mxu0
      %v1636 = vadd.f32 0.0, %v1635
      %1637 = vmatmul.f32.gmra.mxu0 %v1511
      %v1638 = vpop.f32.mrf.mxu0
      %v1639 = vadd.f32 0.0, %v1638
      %1640 = vdwg.mxu0
      %v1641 = vadd.f32 %v1331, %v1534
      %v1642 = vadd.f32 %v1332, %v1537
      %v1643 = vadd.f32 %v1333, %v1540
      %v1644 = vadd.f32 %v1334, %v1543
      %v1645 = vadd.f32 %v1335, %v1546
      %v1646 = vadd.f32 %v1336, %v1549
      %v1647 = vadd.f32 %v1337, %v1552
      %v1648 = vadd.f32 %v1338, %v1555
      %v1649 = vadd.f32 %v1339, %v1558
      %v1650 = vadd.f32 %v1340, %v1561
      %v1651 = vadd.f32 %v1341, %v1564
      %v1652 = vadd.f32 %v1342, %v1567
      %v1653 = vadd.f32 %v1343, %v1570
      %v1654 = vadd.f32 %v1344, %v1573
      %v1655 = vadd.f32 %v1345, %v1576
      %v1656 = vadd.f32 %v1346, %v1579
      %v1657 = vadd.f32 %v1347, %v1582
      %v1658 = vadd.f32 %v1348, %v1585
      %v1659 = vadd.f32 %v1349, %v1588
      %v1660 = vadd.f32 %v1350, %v1591
      %v1661 = vadd.f32 %v1351, %v1594
      %v1662 = vadd.f32 %v1352, %v1597
      %v1663 = vadd.f32 %v1353, %v1600
      %v1664 = vadd.f32 %v1354, %v1603
      %v1665 = vadd.f32 %v1355, %v1606
      %v1666 = vadd.f32 %v1356, %v1609
      %v1667 = vadd.f32 %v1357, %v1612
      %v1668 = vadd.f32 %v1358, %v1615
      %v1669 = vadd.f32 %v1359, %v1618
      %v1670 = vadd.f32 %v1360, %v1621
      %v1671 = vadd.f32 %v1361, %v1624
      %v1672 = vadd.f32 %v1362, %v1627
      %v1673 = vadd.f32 %v1363, %v1630
      %v1674 = vadd.f32 %v1364, %v1633
      %v1675 = vadd.f32 %v1365, %v1636
      %v1676 = vadd.f32 %v1366, %v1639
      %v1677 = vld [vmem:[%s192 + $0x14] sm:$0xff]
      %v1678 = vld [vmem:[%s192 + $0x1c] sm:$0xff]
      %v1679 = vld [vmem:[%s192 + $0x24] sm:$0xff]
      %v1680 = vld [vmem:[%s192 + $0x2c] sm:$0xff]
      %v1681 = vld [vmem:[%s192 + $0x34] sm:$0xff]
      %v1682 = vld [vmem:[%s192 + $0x3c] sm:$0xff]
      %v1683 = vld [vmem:[%s192 + $0x44] sm:$0xff]
      %v1684 = vld [vmem:[%s192 + $0x4c] sm:$0xff]
      %v1685 = vld [vmem:[%s192 + $0x54] sm:$0xff]
      %v1686 = vld [vmem:[%s192 + $0x5c] sm:$0xff]
      %v1687 = vld [vmem:[%s192 + $0x64] sm:$0xff]
      %v1688 = vld [vmem:[%s192 + $0x6c] sm:$0xff]
      %v1689 = vld [vmem:[%s192 + $0x74] sm:$0xff]
      %v1690 = vld [vmem:[%s192 + $0x7c] sm:$0xff]
      %v1691 = vld [vmem:[%s192 + $0x84] sm:$0xff]
      %v1692 = vld [vmem:[%s192 + $0x8c] sm:$0xff]
      %v1693 = vld [vmem:[%s192 + $0x94] sm:$0xff]
      %v1694 = vld [vmem:[%s192 + $0x9c] sm:$0xff]
      %v1695 = vld [vmem:[%s192 + $0xa4] sm:$0xff]
      %v1696 = vld [vmem:[%s192 + $0xac] sm:$0xff]
      %v1697 = vld [vmem:[%s192 + $0xb4] sm:$0xff]
      %v1698 = vld [vmem:[%s192 + $0xbc] sm:$0xff]
      %v1699 = vld [vmem:[%s192 + $0xc4] sm:$0xff]
      %v1700 = vld [vmem:[%s192 + $0xcc] sm:$0xff]
      %v1701 = vld [vmem:[%s192 + $0xd4] sm:$0xff]
      %v1702 = vld [vmem:[%s192 + $0xdc] sm:$0xff]
      %v1703 = vld [vmem:[%s192 + $0xe4] sm:$0xff]
      %v1704 = vld [vmem:[%s192 + $0xec] sm:$0xff]
      %v1705 = vld [vmem:[%s192 + $0xf4] sm:$0xff]
      %v1706 = vld [vmem:[%s192 + $0xfc] sm:$0xff]
      %v1707 = vld [vmem:[%s192 + $0x104] sm:$0xff]
      %v1708 = vld [vmem:[%s192 + $0x10c] sm:$0xff]
      %v1709 = vld [vmem:[%s192 + $0x114] sm:$0xff]
      %v1710 = vld [vmem:[%s192 + $0x11c] sm:$0xff]
      %v1711 = vld [vmem:[%s192 + $0x124] sm:$0xff]
      %v1712 = vld [vmem:[%s192 + $0x12c] sm:$0xff]
      %s1713 = scalar_lea.vmem %s1, 20
      %v1714 = vld [vmem:[%s1713] sm:$0xf]
      %v1716 = vsel %vm273, %v1677, 0
      %v1719 = vsel %vm273, %v1678, 0
      %v1722 = vsel %vm273, %v1679, 0
      %v1725 = vsel %vm273, %v1680, 0
      %v1728 = vsel %vm273, %v1681, 0
      %v1731 = vsel %vm273, %v1682, 0
      %v1734 = vsel %vm273, %v1683, 0
      %v1737 = vsel %vm273, %v1684, 0
      %v1740 = vsel %vm273, %v1685, 0
      %v1743 = vsel %vm273, %v1686, 0
      %v1746 = vsel %vm273, %v1687, 0
      %v1749 = vsel %vm273, %v1688, 0
      %v1752 = vsel %vm273, %v1689, 0
      %v1755 = vsel %vm273, %v1690, 0
      %v1758 = vsel %vm273, %v1691, 0
      %v1761 = vsel %vm273, %v1692, 0
      %v1764 = vsel %vm273, %v1693, 0
      %v1767 = vsel %vm273, %v1694, 0
      %v1770 = vsel %vm273, %v1695, 0
      %v1773 = vsel %vm273, %v1696, 0
      %v1776 = vsel %vm273, %v1697, 0
      %v1779 = vsel %vm273, %v1698, 0
      %v1782 = vsel %vm273, %v1699, 0
      %v1785 = vsel %vm273, %v1700, 0
      %v1788 = vsel %vm273, %v1701, 0
      %v1791 = vsel %vm273, %v1702, 0
      %v1794 = vsel %vm273, %v1703, 0
      %v1797 = vsel %vm273, %v1704, 0
      %v1800 = vsel %vm273, %v1705, 0
      %v1803 = vsel %vm273, %v1706, 0
      %v1806 = vsel %vm273, %v1707, 0
      %v1809 = vsel %vm273, %v1708, 0
      %v1812 = vsel %vm273, %v1709, 0
      %v1815 = vsel %vm273, %v1710, 0
      %v1818 = vsel %vm273, %v1711, 0
      %v1821 = vsel %vm273, %v1712, 0
      %v1824 = vsel %vm382, %v1714, 0
      %1826 = vmatpush.msra.mxu0 0.0
      %1827 = vmatpush.msra.mxu0 0.0
      %1828 = vmatpush.msra.mxu0 0.0
      %1829 = vmatpush.msra.mxu0 0.0
      %1830 = vmatpush.msra.mxu0 0.0
      %1831 = vmatpush.msra.mxu0 0.0
      %1832 = vmatpush.msra.mxu0 0.0
      %1833 = vmatpush.msra.mxu0 0.0
      %1834 = vmatpush.msra.mxu0 0.0
      %1835 = vmatpush.msra.mxu0 0.0
      %1836 = vmatpush.msra.mxu0 0.0
      %1837 = vmatpush.msra.mxu0 0.0
      %1838 = vmatpush.msra.mxu0 0.0
      %1839 = vmatpush.msra.mxu0 0.0
      %1840 = vmatpush.msra.mxu0 0.0
      %1841 = vmatpush.msra.mxu0 %v1824
      %1842 = vmatmul.f32.gmra.mxu0 %v1716
      %v1843 = vpop.f32.mrf.mxu0
      %v1844 = vadd.f32 0.0, %v1843
      %1845 = vmatmul.f32.gmra.mxu0 %v1719
      %v1846 = vpop.f32.mrf.mxu0
      %v1847 = vadd.f32 0.0, %v1846
      %1848 = vmatmul.f32.gmra.mxu0 %v1722
      %v1849 = vpop.f32.mrf.mxu0
      %v1850 = vadd.f32 0.0, %v1849
      %1851 = vmatmul.f32.gmra.mxu0 %v1725
      %v1852 = vpop.f32.mrf.mxu0
      %v1853 = vadd.f32 0.0, %v1852
      %1854 = vmatmul.f32.gmra.mxu0 %v1728
      %v1855 = vpop.f32.mrf.mxu0
      %v1856 = vadd.f32 0.0, %v1855
      %1857 = vmatmul.f32.gmra.mxu0 %v1731
      %v1858 = vpop.f32.mrf.mxu0
      %v1859 = vadd.f32 0.0, %v1858
      %1860 = vmatmul.f32.gmra.mxu0 %v1734
      %v1861 = vpop.f32.mrf.mxu0
      %v1862 = vadd.f32 0.0, %v1861
      %1863 = vmatmul.f32.gmra.mxu0 %v1737
      %v1864 = vpop.f32.mrf.mxu0
      %v1865 = vadd.f32 0.0, %v1864
      %1866 = vmatmul.f32.gmra.mxu0 %v1740
      %v1867 = vpop.f32.mrf.mxu0
      %v1868 = vadd.f32 0.0, %v1867
      %1869 = vmatmul.f32.gmra.mxu0 %v1743
      %v1870 = vpop.f32.mrf.mxu0
      %v1871 = vadd.f32 0.0, %v1870
      %1872 = vmatmul.f32.gmra.mxu0 %v1746
      %v1873 = vpop.f32.mrf.mxu0
      %v1874 = vadd.f32 0.0, %v1873
      %1875 = vmatmul.f32.gmra.mxu0 %v1749
      %v1876 = vpop.f32.mrf.mxu0
      %v1877 = vadd.f32 0.0, %v1876
      %1878 = vmatmul.f32.gmra.mxu0 %v1752
      %v1879 = vpop.f32.mrf.mxu0
      %v1880 = vadd.f32 0.0, %v1879
      %1881 = vmatmul.f32.gmra.mxu0 %v1755
      %v1882 = vpop.f32.mrf.mxu0
      %v1883 = vadd.f32 0.0, %v1882
      %1884 = vmatmul.f32.gmra.mxu0 %v1758
      %v1885 = vpop.f32.mrf.mxu0
      %v1886 = vadd.f32 0.0, %v1885
      %1887 = vmatmul.f32.gmra.mxu0 %v1761
      %v1888 = vpop.f32.mrf.mxu0
      %v1889 = vadd.f32 0.0, %v1888
      %1890 = vmatmul.f32.gmra.mxu0 %v1764
      %v1891 = vpop.f32.mrf.mxu0
      %v1892 = vadd.f32 0.0, %v1891
      %1893 = vmatmul.f32.gmra.mxu0 %v1767
      %v1894 = vpop.f32.mrf.mxu0
      %v1895 = vadd.f32 0.0, %v1894
      %1896 = vmatmul.f32.gmra.mxu0 %v1770
      %v1897 = vpop.f32.mrf.mxu0
      %v1898 = vadd.f32 0.0, %v1897
      %1899 = vmatmul.f32.gmra.mxu0 %v1773
      %v1900 = vpop.f32.mrf.mxu0
      %v1901 = vadd.f32 0.0, %v1900
      %1902 = vmatmul.f32.gmra.mxu0 %v1776
      %v1903 = vpop.f32.mrf.mxu0
      %v1904 = vadd.f32 0.0, %v1903
      %1905 = vmatmul.f32.gmra.mxu0 %v1779
      %v1906 = vpop.f32.mrf.mxu0
      %v1907 = vadd.f32 0.0, %v1906
      %1908 = vmatmul.f32.gmra.mxu0 %v1782
      %v1909 = vpop.f32.mrf.mxu0
      %v1910 = vadd.f32 0.0, %v1909
      %1911 = vmatmul.f32.gmra.mxu0 %v1785
      %v1912 = vpop.f32.mrf.mxu0
      %v1913 = vadd.f32 0.0, %v1912
      %1914 = vmatmul.f32.gmra.mxu0 %v1788
      %v1915 = vpop.f32.mrf.mxu0
      %v1916 = vadd.f32 0.0, %v1915
      %1917 = vmatmul.f32.gmra.mxu0 %v1791
      %v1918 = vpop.f32.mrf.mxu0
      %v1919 = vadd.f32 0.0, %v1918
      %1920 = vmatmul.f32.gmra.mxu0 %v1794
      %v1921 = vpop.f32.mrf.mxu0
      %v1922 = vadd.f32 0.0, %v1921
      %1923 = vmatmul.f32.gmra.mxu0 %v1797
      %v1924 = vpop.f32.mrf.mxu0
      %v1925 = vadd.f32 0.0, %v1924
      %1926 = vmatmul.f32.gmra.mxu0 %v1800
      %v1927 = vpop.f32.mrf.mxu0
      %v1928 = vadd.f32 0.0, %v1927
      %1929 = vmatmul.f32.gmra.mxu0 %v1803
      %v1930 = vpop.f32.mrf.mxu0
      %v1931 = vadd.f32 0.0, %v1930
      %1932 = vmatmul.f32.gmra.mxu0 %v1806
      %v1933 = vpop.f32.mrf.mxu0
      %v1934 = vadd.f32 0.0, %v1933
      %1935 = vmatmul.f32.gmra.mxu0 %v1809
      %v1936 = vpop.f32.mrf.mxu0
      %v1937 = vadd.f32 0.0, %v1936
      %1938 = vmatmul.f32.gmra.mxu0 %v1812
      %v1939 = vpop.f32.mrf.mxu0
      %v1940 = vadd.f32 0.0, %v1939
      %1941 = vmatmul.f32.gmra.mxu0 %v1815
      %v1942 = vpop.f32.mrf.mxu0
      %v1943 = vadd.f32 0.0, %v1942
      %1944 = vmatmul.f32.gmra.mxu0 %v1818
      %v1945 = vpop.f32.mrf.mxu0
      %v1946 = vadd.f32 0.0, %v1945
      %1947 = vmatmul.f32.gmra.mxu0 %v1821
      %v1948 = vpop.f32.mrf.mxu0
      %v1949 = vadd.f32 0.0, %v1948
      %1950 = vdwg.mxu0
      %v1951 = vadd.f32 %v1641, %v1844
      %v1952 = vadd.f32 %v1642, %v1847
      %v1953 = vadd.f32 %v1643, %v1850
      %v1954 = vadd.f32 %v1644, %v1853
      %v1955 = vadd.f32 %v1645, %v1856
      %v1956 = vadd.f32 %v1646, %v1859
      %v1957 = vadd.f32 %v1647, %v1862
      %v1958 = vadd.f32 %v1648, %v1865
      %v1959 = vadd.f32 %v1649, %v1868
      %v1960 = vadd.f32 %v1650, %v1871
      %v1961 = vadd.f32 %v1651, %v1874
      %v1962 = vadd.f32 %v1652, %v1877
      %v1963 = vadd.f32 %v1653, %v1880
      %v1964 = vadd.f32 %v1654, %v1883
      %v1965 = vadd.f32 %v1655, %v1886
      %v1966 = vadd.f32 %v1656, %v1889
      %v1967 = vadd.f32 %v1657, %v1892
      %v1968 = vadd.f32 %v1658, %v1895
      %v1969 = vadd.f32 %v1659, %v1898
      %v1970 = vadd.f32 %v1660, %v1901
      %v1971 = vadd.f32 %v1661, %v1904
      %v1972 = vadd.f32 %v1662, %v1907
      %v1973 = vadd.f32 %v1663, %v1910
      %v1974 = vadd.f32 %v1664, %v1913
      %v1975 = vadd.f32 %v1665, %v1916
      %v1976 = vadd.f32 %v1666, %v1919
      %v1977 = vadd.f32 %v1667, %v1922
      %v1978 = vadd.f32 %v1668, %v1925
      %v1979 = vadd.f32 %v1669, %v1928
      %v1980 = vadd.f32 %v1670, %v1931
      %v1981 = vadd.f32 %v1671, %v1934
      %v1982 = vadd.f32 %v1672, %v1937
      %v1983 = vadd.f32 %v1673, %v1940
      %v1984 = vadd.f32 %v1674, %v1943
      %v1985 = vadd.f32 %v1675, %v1946
      %v1986 = vadd.f32 %v1676, %v1949
      %v1987 = vld [vmem:[%s192 + $0x24] sm:$0xff]
      %v1988 = vld [vmem:[%s192 + $0x2c] sm:$0xff]
      %v1989 = vld [vmem:[%s192 + $0x34] sm:$0xff]
      %v1990 = vld [vmem:[%s192 + $0x3c] sm:$0xff]
      %v1991 = vld [vmem:[%s192 + $0x44] sm:$0xff]
      %v1992 = vld [vmem:[%s192 + $0x4c] sm:$0xff]
      %v1993 = vld [vmem:[%s192 + $0x54] sm:$0xff]
      %v1994 = vld [vmem:[%s192 + $0x5c] sm:$0xff]
      %v1995 = vld [vmem:[%s192 + $0x64] sm:$0xff]
      %v1996 = vld [vmem:[%s192 + $0x6c] sm:$0xff]
      %v1997 = vld [vmem:[%s192 + $0x74] sm:$0xff]
      %v1998 = vld [vmem:[%s192 + $0x7c] sm:$0xff]
      %v1999 = vld [vmem:[%s192 + $0x84] sm:$0xff]
      %v2000 = vld [vmem:[%s192 + $0x8c] sm:$0xff]
      %v2001 = vld [vmem:[%s192 + $0x94] sm:$0xff]
      %v2002 = vld [vmem:[%s192 + $0x9c] sm:$0xff]
      %v2003 = vld [vmem:[%s192 + $0xa4] sm:$0xff]
      %v2004 = vld [vmem:[%s192 + $0xac] sm:$0xff]
      %v2005 = vld [vmem:[%s192 + $0xb4] sm:$0xff]
      %v2006 = vld [vmem:[%s192 + $0xbc] sm:$0xff]
      %v2007 = vld [vmem:[%s192 + $0xc4] sm:$0xff]
      %v2008 = vld [vmem:[%s192 + $0xcc] sm:$0xff]
      %v2009 = vld [vmem:[%s192 + $0xd4] sm:$0xff]
      %v2010 = vld [vmem:[%s192 + $0xdc] sm:$0xff]
      %v2011 = vld [vmem:[%s192 + $0xe4] sm:$0xff]
      %v2012 = vld [vmem:[%s192 + $0xec] sm:$0xff]
      %v2013 = vld [vmem:[%s192 + $0xf4] sm:$0xff]
      %v2014 = vld [vmem:[%s192 + $0xfc] sm:$0xff]
      %v2015 = vld [vmem:[%s192 + $0x104] sm:$0xff]
      %v2016 = vld [vmem:[%s192 + $0x10c] sm:$0xff]
      %v2017 = vld [vmem:[%s192 + $0x114] sm:$0xff]
      %v2018 = vld [vmem:[%s192 + $0x11c] sm:$0xff]
      %v2019 = vld [vmem:[%s192 + $0x124] sm:$0xff]
      %v2020 = vld [vmem:[%s192 + $0x12c] sm:$0xff]
      %v2021 = vld [vmem:[%s192 + $0x134] sm:$0xff]
      %v2022 = vld [vmem:[%s192 + $0x13c] sm:$0xff]
      %s2023 = scalar_lea.vmem %s1, 24
      %v2024 = vld [vmem:[%s2023] sm:$0xf]
      %v2026 = vsel %vm273, %v1987, 0
      %v2029 = vsel %vm273, %v1988, 0
      %v2032 = vsel %vm273, %v1989, 0
      %v2035 = vsel %vm273, %v1990, 0
      %v2038 = vsel %vm273, %v1991, 0
      %v2041 = vsel %vm273, %v1992, 0
      %v2044 = vsel %vm273, %v1993, 0
      %v2047 = vsel %vm273, %v1994, 0
      %v2050 = vsel %vm273, %v1995, 0
      %v2053 = vsel %vm273, %v1996, 0
      %v2056 = vsel %vm273, %v1997, 0
      %v2059 = vsel %vm273, %v1998, 0
      %v2062 = vsel %vm273, %v1999, 0
      %v2065 = vsel %vm273, %v2000, 0
      %v2068 = vsel %vm273, %v2001, 0
      %v2071 = vsel %vm273, %v2002, 0
      %v2074 = vsel %vm273, %v2003, 0
      %v2077 = vsel %vm273, %v2004, 0
      %v2080 = vsel %vm273, %v2005, 0
      %v2083 = vsel %vm273, %v2006, 0
      %v2086 = vsel %vm273, %v2007, 0
      %v2089 = vsel %vm273, %v2008, 0
      %v2092 = vsel %vm273, %v2009, 0
      %v2095 = vsel %vm273, %v2010, 0
      %v2098 = vsel %vm273, %v2011, 0
      %v2101 = vsel %vm273, %v2012, 0
      %v2104 = vsel %vm273, %v2013, 0
      %v2107 = vsel %vm273, %v2014, 0
      %v2110 = vsel %vm273, %v2015, 0
      %v2113 = vsel %vm273, %v2016, 0
      %v2116 = vsel %vm273, %v2017, 0
      %v2119 = vsel %vm273, %v2018, 0
      %v2122 = vsel %vm273, %v2019, 0
      %v2125 = vsel %vm273, %v2020, 0
      %v2128 = vsel %vm273, %v2021, 0
      %v2131 = vsel %vm273, %v2022, 0
      %v2134 = vsel %vm382, %v2024, 0
      %2136 = vmatpush.msra.mxu0 0.0
      %2137 = vmatpush.msra.mxu0 0.0
      %2138 = vmatpush.msra.mxu0 0.0
      %2139 = vmatpush.msra.mxu0 0.0
      %2140 = vmatpush.msra.mxu0 0.0
      %2141 = vmatpush.msra.mxu0 0.0
      %2142 = vmatpush.msra.mxu0 0.0
      %2143 = vmatpush.msra.mxu0 0.0
      %2144 = vmatpush.msra.mxu0 0.0
      %2145 = vmatpush.msra.mxu0 0.0
      %2146 = vmatpush.msra.mxu0 0.0
      %2147 = vmatpush.msra.mxu0 0.0
      %2148 = vmatpush.msra.mxu0 0.0
      %2149 = vmatpush.msra.mxu0 0.0
      %2150 = vmatpush.msra.mxu0 0.0
      %2151 = vmatpush.msra.mxu0 %v2134
      %2152 = vmatmul.f32.gmra.mxu0 %v2026
      %v2153 = vpop.f32.mrf.mxu0
      %v2154 = vadd.f32 0.0, %v2153
      %2155 = vmatmul.f32.gmra.mxu0 %v2029
      %v2156 = vpop.f32.mrf.mxu0
      %v2157 = vadd.f32 0.0, %v2156
      %2158 = vmatmul.f32.gmra.mxu0 %v2032
      %v2159 = vpop.f32.mrf.mxu0
      %v2160 = vadd.f32 0.0, %v2159
      %2161 = vmatmul.f32.gmra.mxu0 %v2035
      %v2162 = vpop.f32.mrf.mxu0
      %v2163 = vadd.f32 0.0, %v2162
      %2164 = vmatmul.f32.gmra.mxu0 %v2038
      %v2165 = vpop.f32.mrf.mxu0
      %v2166 = vadd.f32 0.0, %v2165
      %2167 = vmatmul.f32.gmra.mxu0 %v2041
      %v2168 = vpop.f32.mrf.mxu0
      %v2169 = vadd.f32 0.0, %v2168
      %2170 = vmatmul.f32.gmra.mxu0 %v2044
      %v2171 = vpop.f32.mrf.mxu0
      %v2172 = vadd.f32 0.0, %v2171
      %2173 = vmatmul.f32.gmra.mxu0 %v2047
      %v2174 = vpop.f32.mrf.mxu0
      %v2175 = vadd.f32 0.0, %v2174
      %2176 = vmatmul.f32.gmra.mxu0 %v2050
      %v2177 = vpop.f32.mrf.mxu0
      %v2178 = vadd.f32 0.0, %v2177
      %2179 = vmatmul.f32.gmra.mxu0 %v2053
      %v2180 = vpop.f32.mrf.mxu0
      %v2181 = vadd.f32 0.0, %v2180
      %2182 = vmatmul.f32.gmra.mxu0 %v2056
      %v2183 = vpop.f32.mrf.mxu0
      %v2184 = vadd.f32 0.0, %v2183
      %2185 = vmatmul.f32.gmra.mxu0 %v2059
      %v2186 = vpop.f32.mrf.mxu0
      %v2187 = vadd.f32 0.0, %v2186
      %2188 = vmatmul.f32.gmra.mxu0 %v2062
      %v2189 = vpop.f32.mrf.mxu0
      %v2190 = vadd.f32 0.0, %v2189
      %2191 = vmatmul.f32.gmra.mxu0 %v2065
      %v2192 = vpop.f32.mrf.mxu0
      %v2193 = vadd.f32 0.0, %v2192
      %2194 = vmatmul.f32.gmra.mxu0 %v2068
      %v2195 = vpop.f32.mrf.mxu0
      %v2196 = vadd.f32 0.0, %v2195
      %2197 = vmatmul.f32.gmra.mxu0 %v2071
      %v2198 = vpop.f32.mrf.mxu0
      %v2199 = vadd.f32 0.0, %v2198
      %2200 = vmatmul.f32.gmra.mxu0 %v2074
      %v2201 = vpop.f32.mrf.mxu0
      %v2202 = vadd.f32 0.0, %v2201
      %2203 = vmatmul.f32.gmra.mxu0 %v2077
      %v2204 = vpop.f32.mrf.mxu0
      %v2205 = vadd.f32 0.0, %v2204
      %2206 = vmatmul.f32.gmra.mxu0 %v2080
      %v2207 = vpop.f32.mrf.mxu0
      %v2208 = vadd.f32 0.0, %v2207
      %2209 = vmatmul.f32.gmra.mxu0 %v2083
      %v2210 = vpop.f32.mrf.mxu0
      %v2211 = vadd.f32 0.0, %v2210
      %2212 = vmatmul.f32.gmra.mxu0 %v2086
      %v2213 = vpop.f32.mrf.mxu0
      %v2214 = vadd.f32 0.0, %v2213
      %2215 = vmatmul.f32.gmra.mxu0 %v2089
      %v2216 = vpop.f32.mrf.mxu0
      %v2217 = vadd.f32 0.0, %v2216
      %2218 = vmatmul.f32.gmra.mxu0 %v2092
      %v2219 = vpop.f32.mrf.mxu0
      %v2220 = vadd.f32 0.0, %v2219
      %2221 = vmatmul.f32.gmra.mxu0 %v2095
      %v2222 = vpop.f32.mrf.mxu0
      %v2223 = vadd.f32 0.0, %v2222
      %2224 = vmatmul.f32.gmra.mxu0 %v2098
      %v2225 = vpop.f32.mrf.mxu0
      %v2226 = vadd.f32 0.0, %v2225
      %2227 = vmatmul.f32.gmra.mxu0 %v2101
      %v2228 = vpop.f32.mrf.mxu0
      %v2229 = vadd.f32 0.0, %v2228
      %2230 = vmatmul.f32.gmra.mxu0 %v2104
      %v2231 = vpop.f32.mrf.mxu0
      %v2232 = vadd.f32 0.0, %v2231
      %2233 = vmatmul.f32.gmra.mxu0 %v2107
      %v2234 = vpop.f32.mrf.mxu0
      %v2235 = vadd.f32 0.0, %v2234
      %2236 = vmatmul.f32.gmra.mxu0 %v2110
      %v2237 = vpop.f32.mrf.mxu0
      %v2238 = vadd.f32 0.0, %v2237
      %2239 = vmatmul.f32.gmra.mxu0 %v2113
      %v2240 = vpop.f32.mrf.mxu0
      %v2241 = vadd.f32 0.0, %v2240
      %2242 = vmatmul.f32.gmra.mxu0 %v2116
      %v2243 = vpop.f32.mrf.mxu0
      %v2244 = vadd.f32 0.0, %v2243
      %2245 = vmatmul.f32.gmra.mxu0 %v2119
      %v2246 = vpop.f32.mrf.mxu0
      %v2247 = vadd.f32 0.0, %v2246
      %2248 = vmatmul.f32.gmra.mxu0 %v2122
      %v2249 = vpop.f32.mrf.mxu0
      %v2250 = vadd.f32 0.0, %v2249
      %2251 = vmatmul.f32.gmra.mxu0 %v2125
      %v2252 = vpop.f32.mrf.mxu0
      %v2253 = vadd.f32 0.0, %v2252
      %2254 = vmatmul.f32.gmra.mxu0 %v2128
      %v2255 = vpop.f32.mrf.mxu0
      %v2256 = vadd.f32 0.0, %v2255
      %2257 = vmatmul.f32.gmra.mxu0 %v2131
      %v2258 = vpop.f32.mrf.mxu0
      %v2259 = vadd.f32 0.0, %v2258
      %2260 = vdwg.mxu0
      %v2261 = vadd.f32 %v1951, %v2154
      %v2262 = vadd.f32 %v1952, %v2157
      %v2263 = vadd.f32 %v1953, %v2160
      %v2264 = vadd.f32 %v1954, %v2163
      %v2265 = vadd.f32 %v1955, %v2166
      %v2266 = vadd.f32 %v1956, %v2169
      %v2267 = vadd.f32 %v1957, %v2172
      %v2268 = vadd.f32 %v1958, %v2175
      %v2269 = vadd.f32 %v1959, %v2178
      %v2270 = vadd.f32 %v1960, %v2181
      %v2271 = vadd.f32 %v1961, %v2184
      %v2272 = vadd.f32 %v1962, %v2187
      %v2273 = vadd.f32 %v1963, %v2190
      %v2274 = vadd.f32 %v1964, %v2193
      %v2275 = vadd.f32 %v1965, %v2196
      %v2276 = vadd.f32 %v1966, %v2199
      %v2277 = vadd.f32 %v1967, %v2202
      %v2278 = vadd.f32 %v1968, %v2205
      %v2279 = vadd.f32 %v1969, %v2208
      %v2280 = vadd.f32 %v1970, %v2211
      %v2281 = vadd.f32 %v1971, %v2214
      %v2282 = vadd.f32 %v1972, %v2217
      %v2283 = vadd.f32 %v1973, %v2220
      %v2284 = vadd.f32 %v1974, %v2223
      %v2285 = vadd.f32 %v1975, %v2226
      %v2286 = vadd.f32 %v1976, %v2229
      %v2287 = vadd.f32 %v1977, %v2232
      %v2288 = vadd.f32 %v1978, %v2235
      %v2289 = vadd.f32 %v1979, %v2238
      %v2290 = vadd.f32 %v1980, %v2241
      %v2291 = vadd.f32 %v1981, %v2244
      %v2292 = vadd.f32 %v1982, %v2247
      %v2293 = vadd.f32 %v1983, %v2250
      %v2294 = vadd.f32 %v1984, %v2253
      %v2295 = vadd.f32 %v1985, %v2256
      %v2296 = vadd.f32 %v1986, %v2259
      %v2297 = vld [vmem:[%s192 + $0x25] sm:$0xff]
      %v2298 = vld [vmem:[%s192 + $0x2d] sm:$0xff]
      %v2299 = vld [vmem:[%s192 + $0x35] sm:$0xff]
      %v2300 = vld [vmem:[%s192 + $0x3d] sm:$0xff]
      %v2301 = vld [vmem:[%s192 + $0x45] sm:$0xff]
      %v2302 = vld [vmem:[%s192 + $0x4d] sm:$0xff]
      %v2303 = vld [vmem:[%s192 + $0x55] sm:$0xff]
      %v2304 = vld [vmem:[%s192 + $0x5d] sm:$0xff]
      %v2305 = vld [vmem:[%s192 + $0x65] sm:$0xff]
      %v2306 = vld [vmem:[%s192 + $0x6d] sm:$0xff]
      %v2307 = vld [vmem:[%s192 + $0x75] sm:$0xff]
      %v2308 = vld [vmem:[%s192 + $0x7d] sm:$0xff]
      %v2309 = vld [vmem:[%s192 + $0x85] sm:$0xff]
      %v2310 = vld [vmem:[%s192 + $0x8d] sm:$0xff]
      %v2311 = vld [vmem:[%s192 + $0x95] sm:$0xff]
      %v2312 = vld [vmem:[%s192 + $0x9d] sm:$0xff]
      %v2313 = vld [vmem:[%s192 + $0xa5] sm:$0xff]
      %v2314 = vld [vmem:[%s192 + $0xad] sm:$0xff]
      %v2315 = vld [vmem:[%s192 + $0xb5] sm:$0xff]
      %v2316 = vld [vmem:[%s192 + $0xbd] sm:$0xff]
      %v2317 = vld [vmem:[%s192 + $0xc5] sm:$0xff]
      %v2318 = vld [vmem:[%s192 + $0xcd] sm:$0xff]
      %v2319 = vld [vmem:[%s192 + $0xd5] sm:$0xff]
      %v2320 = vld [vmem:[%s192 + $0xdd] sm:$0xff]
      %v2321 = vld [vmem:[%s192 + $0xe5] sm:$0xff]
      %v2322 = vld [vmem:[%s192 + $0xed] sm:$0xff]
      %v2323 = vld [vmem:[%s192 + $0xf5] sm:$0xff]
      %v2324 = vld [vmem:[%s192 + $0xfd] sm:$0xff]
      %v2325 = vld [vmem:[%s192 + $0x105] sm:$0xff]
      %v2326 = vld [vmem:[%s192 + $0x10d] sm:$0xff]
      %v2327 = vld [vmem:[%s192 + $0x115] sm:$0xff]
      %v2328 = vld [vmem:[%s192 + $0x11d] sm:$0xff]
      %v2329 = vld [vmem:[%s192 + $0x125] sm:$0xff]
      %v2330 = vld [vmem:[%s192 + $0x12d] sm:$0xff]
      %v2331 = vld [vmem:[%s192 + $0x135] sm:$0xff]
      %v2332 = vld [vmem:[%s192 + $0x13d] sm:$0xff]
      %s2333 = scalar_lea.vmem %s1, 28
      %v2334 = vld [vmem:[%s2333] sm:$0xf]
      %v2336 = vsel %vm273, %v2297, 0
      %v2339 = vsel %vm273, %v2298, 0
      %v2342 = vsel %vm273, %v2299, 0
      %v2345 = vsel %vm273, %v2300, 0
      %v2348 = vsel %vm273, %v2301, 0
      %v2351 = vsel %vm273, %v2302, 0
      %v2354 = vsel %vm273, %v2303, 0
      %v2357 = vsel %vm273, %v2304, 0
      %v2360 = vsel %vm273, %v2305, 0
      %v2363 = vsel %vm273, %v2306, 0
      %v2366 = vsel %vm273, %v2307, 0
      %v2369 = vsel %vm273, %v2308, 0
      %v2372 = vsel %vm273, %v2309, 0
      %v2375 = vsel %vm273, %v2310, 0
      %v2378 = vsel %vm273, %v2311, 0
      %v2381 = vsel %vm273, %v2312, 0
      %v2384 = vsel %vm273, %v2313, 0
      %v2387 = vsel %vm273, %v2314, 0
      %v2390 = vsel %vm273, %v2315, 0
      %v2393 = vsel %vm273, %v2316, 0
      %v2396 = vsel %vm273, %v2317, 0
      %v2399 = vsel %vm273, %v2318, 0
      %v2402 = vsel %vm273, %v2319, 0
      %v2405 = vsel %vm273, %v2320, 0
      %v2408 = vsel %vm273, %v2321, 0
      %v2411 = vsel %vm273, %v2322, 0
      %v2414 = vsel %vm273, %v2323, 0
      %v2417 = vsel %vm273, %v2324, 0
      %v2420 = vsel %vm273, %v2325, 0
      %v2423 = vsel %vm273, %v2326, 0
      %v2426 = vsel %vm273, %v2327, 0
      %v2429 = vsel %vm273, %v2328, 0
      %v2432 = vsel %vm273, %v2329, 0
      %v2435 = vsel %vm273, %v2330, 0
      %v2438 = vsel %vm273, %v2331, 0
      %v2441 = vsel %vm273, %v2332, 0
      %v2444 = vsel %vm382, %v2334, 0
      %2446 = vmatpush.msra.mxu0 0.0
      %2447 = vmatpush.msra.mxu0 0.0
      %2448 = vmatpush.msra.mxu0 0.0
      %2449 = vmatpush.msra.mxu0 0.0
      %2450 = vmatpush.msra.mxu0 0.0
      %2451 = vmatpush.msra.mxu0 0.0
      %2452 = vmatpush.msra.mxu0 0.0
      %2453 = vmatpush.msra.mxu0 0.0
      %2454 = vmatpush.msra.mxu0 0.0
      %2455 = vmatpush.msra.mxu0 0.0
      %2456 = vmatpush.msra.mxu0 0.0
      %2457 = vmatpush.msra.mxu0 0.0
      %2458 = vmatpush.msra.mxu0 0.0
      %2459 = vmatpush.msra.mxu0 0.0
      %2460 = vmatpush.msra.mxu0 0.0
      %2461 = vmatpush.msra.mxu0 %v2444
      %2462 = vmatmul.f32.gmra.mxu0 %v2336
      %v2463 = vpop.f32.mrf.mxu0
      %v2464 = vadd.f32 0.0, %v2463
      %2465 = vmatmul.f32.gmra.mxu0 %v2339
      %v2466 = vpop.f32.mrf.mxu0
      %v2467 = vadd.f32 0.0, %v2466
      %2468 = vmatmul.f32.gmra.mxu0 %v2342
      %v2469 = vpop.f32.mrf.mxu0
      %v2470 = vadd.f32 0.0, %v2469
      %2471 = vmatmul.f32.gmra.mxu0 %v2345
      %v2472 = vpop.f32.mrf.mxu0
      %v2473 = vadd.f32 0.0, %v2472
      %2474 = vmatmul.f32.gmra.mxu0 %v2348
      %v2475 = vpop.f32.mrf.mxu0
      %v2476 = vadd.f32 0.0, %v2475
      %2477 = vmatmul.f32.gmra.mxu0 %v2351
      %v2478 = vpop.f32.mrf.mxu0
      %v2479 = vadd.f32 0.0, %v2478
      %2480 = vmatmul.f32.gmra.mxu0 %v2354
      %v2481 = vpop.f32.mrf.mxu0
      %v2482 = vadd.f32 0.0, %v2481
      %2483 = vmatmul.f32.gmra.mxu0 %v2357
      %v2484 = vpop.f32.mrf.mxu0
      %v2485 = vadd.f32 0.0, %v2484
      %2486 = vmatmul.f32.gmra.mxu0 %v2360
      %v2487 = vpop.f32.mrf.mxu0
      %v2488 = vadd.f32 0.0, %v2487
      %2489 = vmatmul.f32.gmra.mxu0 %v2363
      %v2490 = vpop.f32.mrf.mxu0
      %v2491 = vadd.f32 0.0, %v2490
      %2492 = vmatmul.f32.gmra.mxu0 %v2366
      %v2493 = vpop.f32.mrf.mxu0
      %v2494 = vadd.f32 0.0, %v2493
      %2495 = vmatmul.f32.gmra.mxu0 %v2369
      %v2496 = vpop.f32.mrf.mxu0
      %v2497 = vadd.f32 0.0, %v2496
      %2498 = vmatmul.f32.gmra.mxu0 %v2372
      %v2499 = vpop.f32.mrf.mxu0
      %v2500 = vadd.f32 0.0, %v2499
      %2501 = vmatmul.f32.gmra.mxu0 %v2375
      %v2502 = vpop.f32.mrf.mxu0
      %v2503 = vadd.f32 0.0, %v2502
      %2504 = vmatmul.f32.gmra.mxu0 %v2378
      %v2505 = vpop.f32.mrf.mxu0
      %v2506 = vadd.f32 0.0, %v2505
      %2507 = vmatmul.f32.gmra.mxu0 %v2381
      %v2508 = vpop.f32.mrf.mxu0
      %v2509 = vadd.f32 0.0, %v2508
      %2510 = vmatmul.f32.gmra.mxu0 %v2384
      %v2511 = vpop.f32.mrf.mxu0
      %v2512 = vadd.f32 0.0, %v2511
      %2513 = vmatmul.f32.gmra.mxu0 %v2387
      %v2514 = vpop.f32.mrf.mxu0
      %v2515 = vadd.f32 0.0, %v2514
      %2516 = vmatmul.f32.gmra.mxu0 %v2390
      %v2517 = vpop.f32.mrf.mxu0
      %v2518 = vadd.f32 0.0, %v2517
      %2519 = vmatmul.f32.gmra.mxu0 %v2393
      %v2520 = vpop.f32.mrf.mxu0
      %v2521 = vadd.f32 0.0, %v2520
      %2522 = vmatmul.f32.gmra.mxu0 %v2396
      %v2523 = vpop.f32.mrf.mxu0
      %v2524 = vadd.f32 0.0, %v2523
      %2525 = vmatmul.f32.gmra.mxu0 %v2399
      %v2526 = vpop.f32.mrf.mxu0
      %v2527 = vadd.f32 0.0, %v2526
      %2528 = vmatmul.f32.gmra.mxu0 %v2402
      %v2529 = vpop.f32.mrf.mxu0
      %v2530 = vadd.f32 0.0, %v2529
      %2531 = vmatmul.f32.gmra.mxu0 %v2405
      %v2532 = vpop.f32.mrf.mxu0
      %v2533 = vadd.f32 0.0, %v2532
      %2534 = vmatmul.f32.gmra.mxu0 %v2408
      %v2535 = vpop.f32.mrf.mxu0
      %v2536 = vadd.f32 0.0, %v2535
      %2537 = vmatmul.f32.gmra.mxu0 %v2411
      %v2538 = vpop.f32.mrf.mxu0
      %v2539 = vadd.f32 0.0, %v2538
      %2540 = vmatmul.f32.gmra.mxu0 %v2414
      %v2541 = vpop.f32.mrf.mxu0
      %v2542 = vadd.f32 0.0, %v2541
      %2543 = vmatmul.f32.gmra.mxu0 %v2417
      %v2544 = vpop.f32.mrf.mxu0
      %v2545 = vadd.f32 0.0, %v2544
      %2546 = vmatmul.f32.gmra.mxu0 %v2420
      %v2547 = vpop.f32.mrf.mxu0
      %v2548 = vadd.f32 0.0, %v2547
      %2549 = vmatmul.f32.gmra.mxu0 %v2423
      %v2550 = vpop.f32.mrf.mxu0
      %v2551 = vadd.f32 0.0, %v2550
      %2552 = vmatmul.f32.gmra.mxu0 %v2426
      %v2553 = vpop.f32.mrf.mxu0
      %v2554 = vadd.f32 0.0, %v2553
      %2555 = vmatmul.f32.gmra.mxu0 %v2429
      %v2556 = vpop.f32.mrf.mxu0
      %v2557 = vadd.f32 0.0, %v2556
      %2558 = vmatmul.f32.gmra.mxu0 %v2432
      %v2559 = vpop.f32.mrf.mxu0
      %v2560 = vadd.f32 0.0, %v2559
      %2561 = vmatmul.f32.gmra.mxu0 %v2435
      %v2562 = vpop.f32.mrf.mxu0
      %v2563 = vadd.f32 0.0, %v2562
      %2564 = vmatmul.f32.gmra.mxu0 %v2438
      %v2565 = vpop.f32.mrf.mxu0
      %v2566 = vadd.f32 0.0, %v2565
      %2567 = vmatmul.f32.gmra.mxu0 %v2441
      %v2568 = vpop.f32.mrf.mxu0
      %v2569 = vadd.f32 0.0, %v2568
      %2570 = vdwg.mxu0
      %v2571 = vadd.f32 %v2261, %v2464
      %v2572 = vadd.f32 %v2262, %v2467
      %v2573 = vadd.f32 %v2263, %v2470
      %v2574 = vadd.f32 %v2264, %v2473
      %v2575 = vadd.f32 %v2265, %v2476
      %v2576 = vadd.f32 %v2266, %v2479
      %v2577 = vadd.f32 %v2267, %v2482
      %v2578 = vadd.f32 %v2268, %v2485
      %v2579 = vadd.f32 %v2269, %v2488
      %v2580 = vadd.f32 %v2270, %v2491
      %v2581 = vadd.f32 %v2271, %v2494
      %v2582 = vadd.f32 %v2272, %v2497
      %v2583 = vadd.f32 %v2273, %v2500
      %v2584 = vadd.f32 %v2274, %v2503
      %v2585 = vadd.f32 %v2275, %v2506
      %v2586 = vadd.f32 %v2276, %v2509
      %v2587 = vadd.f32 %v2277, %v2512
      %v2588 = vadd.f32 %v2278, %v2515
      %v2589 = vadd.f32 %v2279, %v2518
      %v2590 = vadd.f32 %v2280, %v2521
      %v2591 = vadd.f32 %v2281, %v2524
      %v2592 = vadd.f32 %v2282, %v2527
      %v2593 = vadd.f32 %v2283, %v2530
      %v2594 = vadd.f32 %v2284, %v2533
      %v2595 = vadd.f32 %v2285, %v2536
      %v2596 = vadd.f32 %v2286, %v2539
      %v2597 = vadd.f32 %v2287, %v2542
      %v2598 = vadd.f32 %v2288, %v2545
      %v2599 = vadd.f32 %v2289, %v2548
      %v2600 = vadd.f32 %v2290, %v2551
      %v2601 = vadd.f32 %v2291, %v2554
      %v2602 = vadd.f32 %v2292, %v2557
      %v2603 = vadd.f32 %v2293, %v2560
      %v2604 = vadd.f32 %v2294, %v2563
      %v2605 = vadd.f32 %v2295, %v2566
      %v2606 = vadd.f32 %v2296, %v2569
      %v2607 = vld [vmem:[%s192 + $0x26] sm:$0xff]
      %v2608 = vld [vmem:[%s192 + $0x2e] sm:$0xff]
      %v2609 = vld [vmem:[%s192 + $0x36] sm:$0xff]
      %v2610 = vld [vmem:[%s192 + $0x3e] sm:$0xff]
      %v2611 = vld [vmem:[%s192 + $0x46] sm:$0xff]
      %v2612 = vld [vmem:[%s192 + $0x4e] sm:$0xff]
      %v2613 = vld [vmem:[%s192 + $0x56] sm:$0xff]
      %v2614 = vld [vmem:[%s192 + $0x5e] sm:$0xff]
      %v2615 = vld [vmem:[%s192 + $0x66] sm:$0xff]
      %v2616 = vld [vmem:[%s192 + $0x6e] sm:$0xff]
      %v2617 = vld [vmem:[%s192 + $0x76] sm:$0xff]
      %v2618 = vld [vmem:[%s192 + $0x7e] sm:$0xff]
      %v2619 = vld [vmem:[%s192 + $0x86] sm:$0xff]
      %v2620 = vld [vmem:[%s192 + $0x8e] sm:$0xff]
      %v2621 = vld [vmem:[%s192 + $0x96] sm:$0xff]
      %v2622 = vld [vmem:[%s192 + $0x9e] sm:$0xff]
      %v2623 = vld [vmem:[%s192 + $0xa6] sm:$0xff]
      %v2624 = vld [vmem:[%s192 + $0xae] sm:$0xff]
      %v2625 = vld [vmem:[%s192 + $0xb6] sm:$0xff]
      %v2626 = vld [vmem:[%s192 + $0xbe] sm:$0xff]
      %v2627 = vld [vmem:[%s192 + $0xc6] sm:$0xff]
      %v2628 = vld [vmem:[%s192 + $0xce] sm:$0xff]
      %v2629 = vld [vmem:[%s192 + $0xd6] sm:$0xff]
      %v2630 = vld [vmem:[%s192 + $0xde] sm:$0xff]
      %v2631 = vld [vmem:[%s192 + $0xe6] sm:$0xff]
      %v2632 = vld [vmem:[%s192 + $0xee] sm:$0xff]
      %v2633 = vld [vmem:[%s192 + $0xf6] sm:$0xff]
      %v2634 = vld [vmem:[%s192 + $0xfe] sm:$0xff]
      %v2635 = vld [vmem:[%s192 + $0x106] sm:$0xff]
      %v2636 = vld [vmem:[%s192 + $0x10e] sm:$0xff]
      %v2637 = vld [vmem:[%s192 + $0x116] sm:$0xff]
      %v2638 = vld [vmem:[%s192 + $0x11e] sm:$0xff]
      %v2639 = vld [vmem:[%s192 + $0x126] sm:$0xff]
      %v2640 = vld [vmem:[%s192 + $0x12e] sm:$0xff]
      %v2641 = vld [vmem:[%s192 + $0x136] sm:$0xff]
      %v2642 = vld [vmem:[%s192 + $0x13e] sm:$0xff]
      %s2643 = scalar_lea.vmem %s1, 32
      %v2644 = vld [vmem:[%s2643] sm:$0xf]
      %v2646 = vsel %vm273, %v2607, 0
      %v2649 = vsel %vm273, %v2608, 0
      %v2652 = vsel %vm273, %v2609, 0
      %v2655 = vsel %vm273, %v2610, 0
      %v2658 = vsel %vm273, %v2611, 0
      %v2661 = vsel %vm273, %v2612, 0
      %v2664 = vsel %vm273, %v2613, 0
      %v2667 = vsel %vm273, %v2614, 0
      %v2670 = vsel %vm273, %v2615, 0
      %v2673 = vsel %vm273, %v2616, 0
      %v2676 = vsel %vm273, %v2617, 0
      %v2679 = vsel %vm273, %v2618, 0
      %v2682 = vsel %vm273, %v2619, 0
      %v2685 = vsel %vm273, %v2620, 0
      %v2688 = vsel %vm273, %v2621, 0
      %v2691 = vsel %vm273, %v2622, 0
      %v2694 = vsel %vm273, %v2623, 0
      %v2697 = vsel %vm273, %v2624, 0
      %v2700 = vsel %vm273, %v2625, 0
      %v2703 = vsel %vm273, %v2626, 0
      %v2706 = vsel %vm273, %v2627, 0
      %v2709 = vsel %vm273, %v2628, 0
      %v2712 = vsel %vm273, %v2629, 0
      %v2715 = vsel %vm273, %v2630, 0
      %v2718 = vsel %vm273, %v2631, 0
      %v2721 = vsel %vm273, %v2632, 0
      %v2724 = vsel %vm273, %v2633, 0
      %v2727 = vsel %vm273, %v2634, 0
      %v2730 = vsel %vm273, %v2635, 0
      %v2733 = vsel %vm273, %v2636, 0
      %v2736 = vsel %vm273, %v2637, 0
      %v2739 = vsel %vm273, %v2638, 0
      %v2742 = vsel %vm273, %v2639, 0
      %v2745 = vsel %vm273, %v2640, 0
      %v2748 = vsel %vm273, %v2641, 0
      %v2751 = vsel %vm273, %v2642, 0
      %v2754 = vsel %vm382, %v2644, 0
      %2756 = vmatpush.msra.mxu0 0.0
      %2757 = vmatpush.msra.mxu0 0.0
      %2758 = vmatpush.msra.mxu0 0.0
      %2759 = vmatpush.msra.mxu0 0.0
      %2760 = vmatpush.msra.mxu0 0.0
      %2761 = vmatpush.msra.mxu0 0.0
      %2762 = vmatpush.msra.mxu0 0.0
      %2763 = vmatpush.msra.mxu0 0.0
      %2764 = vmatpush.msra.mxu0 0.0
      %2765 = vmatpush.msra.mxu0 0.0
      %2766 = vmatpush.msra.mxu0 0.0
      %2767 = vmatpush.msra.mxu0 0.0
      %2768 = vmatpush.msra.mxu0 0.0
      %2769 = vmatpush.msra.mxu0 0.0
      %2770 = vmatpush.msra.mxu0 0.0
      %2771 = vmatpush.msra.mxu0 %v2754
      %2772 = vmatmul.f32.gmra.mxu0 %v2646
      %v2773 = vpop.f32.mrf.mxu0
      %v2774 = vadd.f32 0.0, %v2773
      %2775 = vmatmul.f32.gmra.mxu0 %v2649
      %v2776 = vpop.f32.mrf.mxu0
      %v2777 = vadd.f32 0.0, %v2776
      %2778 = vmatmul.f32.gmra.mxu0 %v2652
      %v2779 = vpop.f32.mrf.mxu0
      %v2780 = vadd.f32 0.0, %v2779
      %2781 = vmatmul.f32.gmra.mxu0 %v2655
      %v2782 = vpop.f32.mrf.mxu0
      %v2783 = vadd.f32 0.0, %v2782
      %2784 = vmatmul.f32.gmra.mxu0 %v2658
      %v2785 = vpop.f32.mrf.mxu0
      %v2786 = vadd.f32 0.0, %v2785
      %2787 = vmatmul.f32.gmra.mxu0 %v2661
      %v2788 = vpop.f32.mrf.mxu0
      %v2789 = vadd.f32 0.0, %v2788
      %2790 = vmatmul.f32.gmra.mxu0 %v2664
      %v2791 = vpop.f32.mrf.mxu0
      %v2792 = vadd.f32 0.0, %v2791
      %2793 = vmatmul.f32.gmra.mxu0 %v2667
      %v2794 = vpop.f32.mrf.mxu0
      %v2795 = vadd.f32 0.0, %v2794
      %2796 = vmatmul.f32.gmra.mxu0 %v2670
      %v2797 = vpop.f32.mrf.mxu0
      %v2798 = vadd.f32 0.0, %v2797
      %2799 = vmatmul.f32.gmra.mxu0 %v2673
      %v2800 = vpop.f32.mrf.mxu0
      %v2801 = vadd.f32 0.0, %v2800
      %2802 = vmatmul.f32.gmra.mxu0 %v2676
      %v2803 = vpop.f32.mrf.mxu0
      %v2804 = vadd.f32 0.0, %v2803
      %2805 = vmatmul.f32.gmra.mxu0 %v2679
      %v2806 = vpop.f32.mrf.mxu0
      %v2807 = vadd.f32 0.0, %v2806
      %2808 = vmatmul.f32.gmra.mxu0 %v2682
      %v2809 = vpop.f32.mrf.mxu0
      %v2810 = vadd.f32 0.0, %v2809
      %2811 = vmatmul.f32.gmra.mxu0 %v2685
      %v2812 = vpop.f32.mrf.mxu0
      %v2813 = vadd.f32 0.0, %v2812
      %2814 = vmatmul.f32.gmra.mxu0 %v2688
      %v2815 = vpop.f32.mrf.mxu0
      %v2816 = vadd.f32 0.0, %v2815
      %2817 = vmatmul.f32.gmra.mxu0 %v2691
      %v2818 = vpop.f32.mrf.mxu0
      %v2819 = vadd.f32 0.0, %v2818
      %2820 = vmatmul.f32.gmra.mxu0 %v2694
      %v2821 = vpop.f32.mrf.mxu0
      %v2822 = vadd.f32 0.0, %v2821
      %2823 = vmatmul.f32.gmra.mxu0 %v2697
      %v2824 = vpop.f32.mrf.mxu0
      %v2825 = vadd.f32 0.0, %v2824
      %2826 = vmatmul.f32.gmra.mxu0 %v2700
      %v2827 = vpop.f32.mrf.mxu0
      %v2828 = vadd.f32 0.0, %v2827
      %2829 = vmatmul.f32.gmra.mxu0 %v2703
      %v2830 = vpop.f32.mrf.mxu0
      %v2831 = vadd.f32 0.0, %v2830
      %2832 = vmatmul.f32.gmra.mxu0 %v2706
      %v2833 = vpop.f32.mrf.mxu0
      %v2834 = vadd.f32 0.0, %v2833
      %2835 = vmatmul.f32.gmra.mxu0 %v2709
      %v2836 = vpop.f32.mrf.mxu0
      %v2837 = vadd.f32 0.0, %v2836
      %2838 = vmatmul.f32.gmra.mxu0 %v2712
      %v2839 = vpop.f32.mrf.mxu0
      %v2840 = vadd.f32 0.0, %v2839
      %2841 = vmatmul.f32.gmra.mxu0 %v2715
      %v2842 = vpop.f32.mrf.mxu0
      %v2843 = vadd.f32 0.0, %v2842
      %2844 = vmatmul.f32.gmra.mxu0 %v2718
      %v2845 = vpop.f32.mrf.mxu0
      %v2846 = vadd.f32 0.0, %v2845
      %2847 = vmatmul.f32.gmra.mxu0 %v2721
      %v2848 = vpop.f32.mrf.mxu0
      %v2849 = vadd.f32 0.0, %v2848
      %2850 = vmatmul.f32.gmra.mxu0 %v2724
      %v2851 = vpop.f32.mrf.mxu0
      %v2852 = vadd.f32 0.0, %v2851
      %2853 = vmatmul.f32.gmra.mxu0 %v2727
      %v2854 = vpop.f32.mrf.mxu0
      %v2855 = vadd.f32 0.0, %v2854
      %2856 = vmatmul.f32.gmra.mxu0 %v2730
      %v2857 = vpop.f32.mrf.mxu0
      %v2858 = vadd.f32 0.0, %v2857
      %2859 = vmatmul.f32.gmra.mxu0 %v2733
      %v2860 = vpop.f32.mrf.mxu0
      %v2861 = vadd.f32 0.0, %v2860
      %2862 = vmatmul.f32.gmra.mxu0 %v2736
      %v2863 = vpop.f32.mrf.mxu0
      %v2864 = vadd.f32 0.0, %v2863
      %2865 = vmatmul.f32.gmra.mxu0 %v2739
      %v2866 = vpop.f32.mrf.mxu0
      %v2867 = vadd.f32 0.0, %v2866
      %2868 = vmatmul.f32.gmra.mxu0 %v2742
      %v2869 = vpop.f32.mrf.mxu0
      %v2870 = vadd.f32 0.0, %v2869
      %2871 = vmatmul.f32.gmra.mxu0 %v2745
      %v2872 = vpop.f32.mrf.mxu0
      %v2873 = vadd.f32 0.0, %v2872
      %2874 = vmatmul.f32.gmra.mxu0 %v2748
      %v2875 = vpop.f32.mrf.mxu0
      %v2876 = vadd.f32 0.0, %v2875
      %2877 = vmatmul.f32.gmra.mxu0 %v2751
      %v2878 = vpop.f32.mrf.mxu0
      %v2879 = vadd.f32 0.0, %v2878
      %2880 = vdwg.mxu0
      %v2881 = vadd.f32 %v2571, %v2774
      %v2882 = vadd.f32 %v2572, %v2777
      %v2883 = vadd.f32 %v2573, %v2780
      %v2884 = vadd.f32 %v2574, %v2783
      %v2885 = vadd.f32 %v2575, %v2786
      %v2886 = vadd.f32 %v2576, %v2789
      %v2887 = vadd.f32 %v2577, %v2792
      %v2888 = vadd.f32 %v2578, %v2795
      %v2889 = vadd.f32 %v2579, %v2798
      %v2890 = vadd.f32 %v2580, %v2801
      %v2891 = vadd.f32 %v2581, %v2804
      %v2892 = vadd.f32 %v2582, %v2807
      %v2893 = vadd.f32 %v2583, %v2810
      %v2894 = vadd.f32 %v2584, %v2813
      %v2895 = vadd.f32 %v2585, %v2816
      %v2896 = vadd.f32 %v2586, %v2819
      %v2897 = vadd.f32 %v2587, %v2822
      %v2898 = vadd.f32 %v2588, %v2825
      %v2899 = vadd.f32 %v2589, %v2828
      %v2900 = vadd.f32 %v2590, %v2831
      %v2901 = vadd.f32 %v2591, %v2834
      %v2902 = vadd.f32 %v2592, %v2837
      %v2903 = vadd.f32 %v2593, %v2840
      %v2904 = vadd.f32 %v2594, %v2843
      %v2905 = vadd.f32 %v2595, %v2846
      %v2906 = vadd.f32 %v2596, %v2849
      %v2907 = vadd.f32 %v2597, %v2852
      %v2908 = vadd.f32 %v2598, %v2855
      %v2909 = vadd.f32 %v2599, %v2858
      %v2910 = vadd.f32 %v2600, %v2861
      %v2911 = vadd.f32 %v2601, %v2864
      %v2912 = vadd.f32 %v2602, %v2867
      %v2913 = vadd.f32 %v2603, %v2870
      %v2914 = vadd.f32 %v2604, %v2873
      %v2915 = vadd.f32 %v2605, %v2876
      %v2916 = vadd.f32 %v2606, %v2879
      %v2917 = vld [vmem:[%s2] sm:$0x1]
      %v2919 = vperm.slane %v2917, 0
      %v2921 = vmul.f32 %v2881, %v2919
      %v2922 = vmul.f32 %v2882, %v2919
      %v2923 = vmul.f32 %v2883, %v2919
      %v2924 = vmul.f32 %v2884, %v2919
      %v2925 = vmul.f32 %v2885, %v2919
      %v2926 = vmul.f32 %v2886, %v2919
      %v2927 = vmul.f32 %v2887, %v2919
      %v2928 = vmul.f32 %v2888, %v2919
      %v2929 = vmul.f32 %v2889, %v2919
      %v2930 = vmul.f32 %v2890, %v2919
      %v2931 = vmul.f32 %v2891, %v2919
      %v2932 = vmul.f32 %v2892, %v2919
      %v2933 = vmul.f32 %v2893, %v2919
      %v2934 = vmul.f32 %v2894, %v2919
      %v2935 = vmul.f32 %v2895, %v2919
      %v2936 = vmul.f32 %v2896, %v2919
      %v2937 = vmul.f32 %v2897, %v2919
      %v2938 = vmul.f32 %v2898, %v2919
      %v2939 = vmul.f32 %v2899, %v2919
      %v2940 = vmul.f32 %v2900, %v2919
      %v2941 = vmul.f32 %v2901, %v2919
      %v2942 = vmul.f32 %v2902, %v2919
      %v2943 = vmul.f32 %v2903, %v2919
      %v2944 = vmul.f32 %v2904, %v2919
      %v2945 = vmul.f32 %v2905, %v2919
      %v2946 = vmul.f32 %v2906, %v2919
      %v2947 = vmul.f32 %v2907, %v2919
      %v2948 = vmul.f32 %v2908, %v2919
      %v2949 = vmul.f32 %v2909, %v2919
      %v2950 = vmul.f32 %v2910, %v2919
      %v2951 = vmul.f32 %v2911, %v2919
      %v2952 = vmul.f32 %v2912, %v2919
      %v2953 = vmul.f32 %v2913, %v2919
      %v2954 = vmul.f32 %v2914, %v2919
      %v2955 = vmul.f32 %v2915, %v2919
      %v2956 = vmul.f32 %v2916, %v2919
      %v2957 = vld [vmem:[%s3] sm:$0x1]
      %v2959 = vperm.slane %v2957, 0
      %v2961 = vadd.f32 %v2921, %v2959
      %v2962 = vadd.f32 %v2922, %v2959
      %v2963 = vadd.f32 %v2923, %v2959
      %v2964 = vadd.f32 %v2924, %v2959
      %v2965 = vadd.f32 %v2925, %v2959
      %v2966 = vadd.f32 %v2926, %v2959
      %v2967 = vadd.f32 %v2927, %v2959
      %v2968 = vadd.f32 %v2928, %v2959
      %v2969 = vadd.f32 %v2929, %v2959
      %v2970 = vadd.f32 %v2930, %v2959
      %v2971 = vadd.f32 %v2931, %v2959
      %v2972 = vadd.f32 %v2932, %v2959
      %v2973 = vadd.f32 %v2933, %v2959
      %v2974 = vadd.f32 %v2934, %v2959
      %v2975 = vadd.f32 %v2935, %v2959
      %v2976 = vadd.f32 %v2936, %v2959
      %v2977 = vadd.f32 %v2937, %v2959
      %v2978 = vadd.f32 %v2938, %v2959
      %v2979 = vadd.f32 %v2939, %v2959
      %v2980 = vadd.f32 %v2940, %v2959
      %v2981 = vadd.f32 %v2941, %v2959
      %v2982 = vadd.f32 %v2942, %v2959
      %v2983 = vadd.f32 %v2943, %v2959
      %v2984 = vadd.f32 %v2944, %v2959
      %v2985 = vadd.f32 %v2945, %v2959
      %v2986 = vadd.f32 %v2946, %v2959
      %v2987 = vadd.f32 %v2947, %v2959
      %v2988 = vadd.f32 %v2948, %v2959
      %v2989 = vadd.f32 %v2949, %v2959
      %v2990 = vadd.f32 %v2950, %v2959
      %v2991 = vadd.f32 %v2951, %v2959
      %v2992 = vadd.f32 %v2952, %v2959
      %v2993 = vadd.f32 %v2953, %v2959
      %v2994 = vadd.f32 %v2954, %v2959
      %v2995 = vadd.f32 %v2955, %v2959
      %v2996 = vadd.f32 %v2956, %v2959
      %vm2997 = vcmask 64512
      %2998 = vst.msk [vmem:[%s197] sm:$0xff] %vm2997, %v2961
      %2999 = vst.msk [vmem:[%s197 + $0x8] sm:$0xff] %vm2997, %v2962
      %3000 = vst.msk [vmem:[%s197 + $0x10] sm:$0xff] %vm2997, %v2963
      %3001 = vst.msk [vmem:[%s197 + $0x18] sm:$0xff] %vm2997, %v2964
      %3002 = vst.msk [vmem:[%s197 + $0x20] sm:$0xff] %vm2997, %v2965
      %3003 = vst.msk [vmem:[%s197 + $0x28] sm:$0xff] %vm2997, %v2966
      %3004 = vst.msk [vmem:[%s197 + $0x30] sm:$0xff] %vm2997, %v2967
      %3005 = vst.msk [vmem:[%s197 + $0x38] sm:$0xff] %vm2997, %v2968
      %3006 = vst.msk [vmem:[%s197 + $0x40] sm:$0xff] %vm2997, %v2969
      %3007 = vst.msk [vmem:[%s197 + $0x48] sm:$0xff] %vm2997, %v2970
      %3008 = vst.msk [vmem:[%s197 + $0x50] sm:$0xff] %vm2997, %v2971
      %3009 = vst.msk [vmem:[%s197 + $0x58] sm:$0xff] %vm2997, %v2972
      %3010 = vst.msk [vmem:[%s197 + $0x60] sm:$0xff] %vm2997, %v2973
      %3011 = vst.msk [vmem:[%s197 + $0x68] sm:$0xff] %vm2997, %v2974
      %3012 = vst.msk [vmem:[%s197 + $0x70] sm:$0xff] %vm2997, %v2975
      %3013 = vst.msk [vmem:[%s197 + $0x78] sm:$0xff] %vm2997, %v2976
      %3014 = vst.msk [vmem:[%s197 + $0x80] sm:$0xff] %vm2997, %v2977
      %3015 = vst.msk [vmem:[%s197 + $0x88] sm:$0xff] %vm2997, %v2978
      %3016 = vst.msk [vmem:[%s197 + $0x90] sm:$0xff] %vm2997, %v2979
      %3017 = vst.msk [vmem:[%s197 + $0x98] sm:$0xff] %vm2997, %v2980
      %3018 = vst.msk [vmem:[%s197 + $0xa0] sm:$0xff] %vm2997, %v2981
      %3019 = vst.msk [vmem:[%s197 + $0xa8] sm:$0xff] %vm2997, %v2982
      %3020 = vst.msk [vmem:[%s197 + $0xb0] sm:$0xff] %vm2997, %v2983
      %3021 = vst.msk [vmem:[%s197 + $0xb8] sm:$0xff] %vm2997, %v2984
      %3022 = vst.msk [vmem:[%s197 + $0xc0] sm:$0xff] %vm2997, %v2985
      %3023 = vst.msk [vmem:[%s197 + $0xc8] sm:$0xff] %vm2997, %v2986
      %3024 = vst.msk [vmem:[%s197 + $0xd0] sm:$0xff] %vm2997, %v2987
      %3025 = vst.msk [vmem:[%s197 + $0xd8] sm:$0xff] %vm2997, %v2988
      %3026 = vst.msk [vmem:[%s197 + $0xe0] sm:$0xff] %vm2997, %v2989
      %3027 = vst.msk [vmem:[%s197 + $0xe8] sm:$0xff] %vm2997, %v2990
      %3028 = vst.msk [vmem:[%s197 + $0xf0] sm:$0xff] %vm2997, %v2991
      %3029 = vst.msk [vmem:[%s197 + $0xf8] sm:$0xff] %vm2997, %v2992
      %3030 = vst.msk [vmem:[%s197 + $0x100] sm:$0xff] %vm2997, %v2993
      %3031 = vst.msk [vmem:[%s197 + $0x108] sm:$0xff] %vm2997, %v2994
      %3032 = vst.msk [vmem:[%s197 + $0x110] sm:$0xff] %vm2997, %v2995
      %3033 = vst.msk [vmem:[%s197 + $0x118] sm:$0xff] %vm2997, %v2996
      %p3034 = scmp.lt.s32.totalorder %s15, 1
      %s3035 = scalar_select %p3034, %s15, 1
      %s3036 = smul.addr %s3035, 36
      %s3037 = smul.addr %s3036, 8
      %s3038 = scalar_lea.vmem %s4, %s3037
      // Predicated region
      $region37: #{convbn_forward.3} parent=35 // pred_check
        %p3039 = pneg %p122
      $region38: #{convbn_forward.3} parent=35 // pred_check_branch
        %3041 = sbr.rel (%p3039) target = $region40
      $region39: #{convbn_forward.3} parent=35 // pred_region
        _
      $region40: #{convbn_forward.3} parent=35 // pred_fallthru
        _
    $region36: #{convbn_forward.3} parent=5 // pred_fallthru
      _
    %p3042 = scmp.le.s32.totalorder 2, %s10
    // Predicated region
    $region41: #{convbn_forward.3} parent=5 // pred_check
      %p3043 = pneg %p3042
    $region42: #{convbn_forward.3} parent=5 // pred_check_branch
      %3045 = sbr.rel (%p3043) target = $region44
    $region43: #{convbn_forward.3} parent=5 // pred_region
      %s3046 = ssub.s32 %s10, 2
      // Predicated region
      $region45: #{convbn_forward.3} parent=43 // pred_check
        %p3047 = pneg %p128
      $region46: #{convbn_forward.3} parent=43 // pred_check_branch
        %3049 = sbr.rel (%p3047) target = $region48
      $region47: #{convbn_forward.3} parent=43 // pred_region
        %p3050 = scmp.lt.s32.totalorder %s16, 1
        %s3051 = scalar_select %p3050, %s16, 1
        %s3052 = smul.addr %s3051, 36
        %s3053 = smul.addr %s3052, 8
        %s3054 = scalar_lea.vmem %s4, %s3053
      $region48: #{convbn_forward.3} parent=43 // pred_fallthru
        _
    $region44: #{convbn_forward.3} parent=5 // pred_fallthru
      _
  $region6: #{convbn_forward.3} parent=0 // loop_footer
    %s14 = sadd.s32 1, %s10
  $region7: #{convbn_forward.3} parent=0 // loop_footer_branch
    %9 = sbr.rel target = $region3
  $region8: #{convbn_forward.3} parent=0 // loop_exit
    _

// kernel: convbn_forward.2
$region0: #{convbn_forward.2}
  #allocation0 [shape = 'u32[]', space=smem, size = 0x4, offset = 0x4, fixed_abs, tag = 'smem constant byte address 0x4 - core index']
  #allocation1 [shape = 'u32[72,128]{1,0:T(1,128)}', space=vmem, size = 0x9000, scoped, tag = 'internal scratch']
  %s0 = inlined_call_operand.vmem [shape: f32[2,342,4], index: 0, kind: input, shape index: {}]
  %s1 = inlined_call_operand.vmem [shape: f32[9,4,128], index: 1, kind: input, shape index: {}]
  %s2 = inlined_call_operand.vmem [shape: f32[2,1,128], index: 2, kind: output, shape index: {0}]
  %s3 = inlined_call_operand.vmem [shape: f32[2,1,128], index: 3, kind: output, shape index: {1}]
  %4 = xla_tuple %s2, %s3
  %s5 = sld [smem:[#allocation0]]
  $region49: #{convbn_forward.2} parent=0
    _
  %s7 = ssub.s32 1, %s5
  %s8 = scalar_select 0, %s7, %s5
  loop: start=0, step=1, limit=4
  $region2: #{convbn_forward.2} parent=0 // loop_pre_header
    _
  $region3: #{convbn_forward.2} parent=0 // loop_header
    %s10 = sphi 0, %s14
    %p11 = scmp.ge.s32.totalorder %s10, 4
    %s20 = sphi 0, %s22
    %s23 = sphi 0, %s20
    %s24 = sphi 0, %s23
    %s40 = sphi 0, %s24
    %s44 = sphi 0, %s44
    %s46 = sphi 0, %s44
    %s47 = sphi 0, %s46
    %s61 = sphi 0, %s47
    %s67 = sphi 0, %s69
    %s70 = sphi 0, %s67
    %s71 = sphi 0, %s70
    %s87 = sphi 0, %s71
    %s93 = sphi 0, %s95
    %s96 = sphi 0, %s93
    %s97 = sphi 0, %s96
    %s113 = sphi 0, %s97
  $region4: #{convbn_forward.2} parent=0 // loop_header_branch
    %13 = sbr.rel (%p11) target = $region8
  $region5: #{convbn_forward.2} parent=0 // loop_body
    %s15 = ssub.s32 %s10, 1
    %s16 = ssub.s32 %s10, 2
    %s17 = sadd.s32 %s10, 1
    %s18 = ssub.s32 %s10, %s17
    %p19 = scmp.eq.s32.totalorder %s18, 0
    %s21 = sadd.s32 %s20, 1
    %s22 = scalar_select %p19, %s20, %s21
    %p25 = pneg %p19
    %p26 = scmp.eq.s32.totalorder %s10, 1
    %p27 = por %p25, %p26
    %p28 = scmp.ne.s32.totalorder %s20, %s23
    %p29 = scmp.eq.s32.totalorder %s10, 0
    %p30 = por %p28, %p29
    %p31 = scmp.ne.s32.totalorder %s20, %s23
    %p32 = scmp.eq.s32.totalorder %s15, 1
    %p33 = por %p31, %p32
    %p34 = scmp.ne.s32.totalorder %s23, %s24
    %p35 = scmp.eq.s32.totalorder %s15, 0
    %p36 = por %p34, %p35
    %p37 = scmp.ne.s32.totalorder %s23, %s24
    %p38 = scmp.eq.s32.totalorder %s16, 1
    %p39 = por %p37, %p38
    %p41 = scmp.ne.s32.totalorder %s24, %s40
    %p42 = scmp.eq.s32.totalorder %s16, 0
    %p43 = por %p41, %p42
    %s45 = sadd.s32 %s44, 1
    %p48 = scmp.eq.s32.totalorder %s10, 1
    %p49 = scmp.ne.s32.totalorder %s44, %s46
    %p50 = scmp.eq.s32.totalorder %s10, 0
    %p51 = por %p49, %p50
    %p52 = scmp.ne.s32.totalorder %s44, %s46
    %p53 = scmp.eq.s32.totalorder %s15, 1
    %p54 = por %p52, %p53
    %p55 = scmp.ne.s32.totalorder %s46, %s47
    %p56 = scmp.eq.s32.totalorder %s15, 0
    %p57 = por %p55, %p56
    %p58 = scmp.ne.s32.totalorder %s46, %s47
    %p59 = scmp.eq.s32.totalorder %s16, 1
    %p60 = por %p58, %p59
    %p62 = scmp.ne.s32.totalorder %s47, %s61
    %p63 = scmp.eq.s32.totalorder %s16, 0
    %p64 = por %p62, %p63
    %s65 = ssub.s32 %s10, %s17
    %p66 = scmp.eq.s32.totalorder %s65, 0
    %s68 = sadd.s32 %s67, 1
    %s69 = scalar_select %p66, %s67, %s68
    %p72 = pneg %p66
    %p73 = scmp.eq.s32.totalorder %s10, 1
    %p74 = por %p72, %p73
    %p75 = scmp.ne.s32.totalorder %s67, %s70
    %p76 = scmp.eq.s32.totalorder %s10, 0
    %p77 = por %p75, %p76
    %p78 = scmp.ne.s32.totalorder %s67, %s70
    %p79 = scmp.eq.s32.totalorder %s15, 1
    %p80 = por %p78, %p79
    %p81 = scmp.ne.s32.totalorder %s70, %s71
    %p82 = scmp.eq.s32.totalorder %s15, 0
    %p83 = por %p81, %p82
    %p84 = scmp.ne.s32.totalorder %s70, %s71
    %p85 = scmp.eq.s32.totalorder %s16, 1
    %p86 = por %p84, %p85
    %p88 = scmp.ne.s32.totalorder %s71, %s87
    %p89 = scmp.eq.s32.totalorder %s16, 0
    %p90 = por %p88, %p89
    %s91 = ssub.s32 %s10, %s17
    %p92 = scmp.eq.s32.totalorder %s91, 0
    %s94 = sadd.s32 %s93, 1
    %s95 = scalar_select %p92, %s93, %s94
    %p98 = pneg %p92
    %p99 = scmp.eq.s32.totalorder %s10, 1
    %p100 = por %p98, %p99
    %p101 = scmp.ne.s32.totalorder %s93, %s96
    %p102 = scmp.eq.s32.totalorder %s10, 0
    %p103 = por %p101, %p102
    %p104 = scmp.ne.s32.totalorder %s93, %s96
    %p105 = scmp.eq.s32.totalorder %s15, 1
    %p106 = por %p104, %p105
    %p107 = scmp.ne.s32.totalorder %s96, %s97
    %p108 = scmp.eq.s32.totalorder %s15, 0
    %p109 = por %p107, %p108
    %p110 = scmp.ne.s32.totalorder %s96, %s97
    %p111 = scmp.eq.s32.totalorder %s16, 1
    %p112 = por %p110, %p111
    %p114 = scmp.ne.s32.totalorder %s97, %s113
    %p115 = scmp.eq.s32.totalorder %s16, 0
    %p116 = por %p114, %p115
    %p117 = scmp.le.s32.totalorder 1, %s10
    %p118 = scmp.lt.s32.totalorder %s10, 3
    %p119 = pnand %p117, %p118
    %p120 = pneg %p119
    // Predicated region
    $region9: #{convbn_forward.2} parent=5 // pred_check
      _
    $region10: #{convbn_forward.2} parent=5 // pred_check_branch
      %122 = sbr.rel (%p119) target = $region12
    $region11: #{convbn_forward.2} parent=5 // pred_region
      %s123 = ssub.s32 %s10, 1
      // Predicated region
      $region13: #{convbn_forward.2} parent=11 // pred_check
        %p124 = pneg %p57
      $region14: #{convbn_forward.2} parent=11 // pred_check_branch
        %126 = sbr.rel (%p124) target = $region16
      $region15: #{convbn_forward.2} parent=11 // pred_region
        _
      $region16: #{convbn_forward.2} parent=11 // pred_fallthru
        _
    $region12: #{convbn_forward.2} parent=5 // pred_fallthru
      _
    %p127 = scmp.lt.s32.totalorder %s10, 2
    // Predicated region
    $region17: #{convbn_forward.2} parent=5 // pred_check
      %p128 = pneg %p127
    $region18: #{convbn_forward.2} parent=5 // pred_check_branch
      %130 = sbr.rel (%p128) target = $region20
    $region19: #{convbn_forward.2} parent=5 // pred_region
      // Predicated region
      $region21: #{convbn_forward.2} parent=19 // pred_check
        %p131 = pneg %p30
      $region22: #{convbn_forward.2} parent=19 // pred_check_branch
        %133 = sbr.rel (%p131) target = $region24
      $region23: #{convbn_forward.2} parent=19 // pred_region
        %p134 = scmp.lt.s32.totalorder %s10, 1
        %s135 = scalar_select %p134, %s10, 1
        %s136 = smul.addr %s135, 43
        %s137 = smul.addr %s136, 8
        %s138 = scalar_lea.vmem %s0, %s137
      $region24: #{convbn_forward.2} parent=19 // pred_fallthru
        _
    $region20: #{convbn_forward.2} parent=5 // pred_fallthru
      _
    %p139 = scmp.le.s32.totalorder 1, %s10
    %p140 = scmp.lt.s32.totalorder %s10, 3
    %p141 = pnand %p139, %p140
    %p142 = pneg %p141
    // Predicated region
    $region25: #{convbn_forward.2} parent=5 // pred_check
      _
    $region26: #{convbn_forward.2} parent=5 // pred_check_branch
      %144 = sbr.rel (%p141) target = $region28
    $region27: #{convbn_forward.2} parent=5 // pred_region
      %s145 = ssub.s32 %s10, 1
      %p146 = scmp.lt.s32.totalorder %s15, 1
      %s147 = scalar_select %p146, %s15, 1
      %s148 = smul.addr %s147, 43
      %s149 = smul.addr %s148, 8
      %s150 = scalar_lea.vmem %s0, %s149
      %p151 = pneg %p36
      %p152 = pneg %p33
      %p153 = pneg %p57
      %p154 = pneg %p54
      %p155 = pneg %p83
      %p156 = pneg %p80
      %p157 = scmp.lt.s32.totalorder %s15, 1
      %s158 = scalar_select %p157, %s15, 1
      %s159 = scalar_lea.vmem %s2, %s158
      %p160 = pneg %p109
      %p161 = pneg %p106
      %p162 = scmp.lt.s32.totalorder %s15, 1
      %s163 = scalar_select %p162, %s15, 1
      %s164 = scalar_lea.vmem %s3, %s163
      %p165 = scmp.lt.s32.totalorder %s15, 1
      %s166 = scalar_select %p165, %s15, 1
      %s167 = smul.addr %s166, 43
      %s168 = smul.addr %s167, 8
      %s169 = scalar_lea.vmem %s0, %s168
      %p170 = scmp.lt.s32.totalorder %s15, 1
      %s171 = scalar_select %p170, %s15, 1
      %s172 = scalar_lea.vmem %s2, %s171
      %p173 = scmp.lt.s32.totalorder %s15, 1
      %s174 = scalar_select %p173, %s15, 1
      %s175 = scalar_lea.vmem %s3, %s174
      %v176 = vld [vmem:[%s169] sm:$0xff]
      %v177 = vld [vmem:[%s169 + $0x8] sm:$0xff]
      %v178 = vld [vmem:[%s169 + $0x10] sm:$0xff]
      %v179 = vld [vmem:[%s169 + $0x18] sm:$0xff]
      %v180 = vld [vmem:[%s169 + $0x20] sm:$0xff]
      %v181 = vld [vmem:[%s169 + $0x28] sm:$0xff]
      %v182 = vld [vmem:[%s169 + $0x30] sm:$0xff]
      %v183 = vld [vmem:[%s169 + $0x38] sm:$0xff]
      %v184 = vld [vmem:[%s169 + $0x40] sm:$0xff]
      %v185 = vld [vmem:[%s169 + $0x48] sm:$0xff]
      %v186 = vld [vmem:[%s169 + $0x50] sm:$0xff]
      %v187 = vld [vmem:[%s169 + $0x58] sm:$0xff]
      %v188 = vld [vmem:[%s169 + $0x60] sm:$0xff]
      %v189 = vld [vmem:[%s169 + $0x68] sm:$0xff]
      %v190 = vld [vmem:[%s169 + $0x70] sm:$0xff]
      %v191 = vld [vmem:[%s169 + $0x78] sm:$0xff]
      %v192 = vld [vmem:[%s169 + $0x80] sm:$0xff]
      %v193 = vld [vmem:[%s169 + $0x88] sm:$0xff]
      %v194 = vld [vmem:[%s169 + $0x90] sm:$0xff]
      %v195 = vld [vmem:[%s169 + $0x98] sm:$0xff]
      %v196 = vld [vmem:[%s169 + $0xa0] sm:$0xff]
      %v197 = vld [vmem:[%s169 + $0xa8] sm:$0xff]
      %v198 = vld [vmem:[%s169 + $0xb0] sm:$0xff]
      %v199 = vld [vmem:[%s169 + $0xb8] sm:$0xff]
      %v200 = vld [vmem:[%s169 + $0xc0] sm:$0xff]
      %v201 = vld [vmem:[%s169 + $0xc8] sm:$0xff]
      %v202 = vld [vmem:[%s169 + $0xd0] sm:$0xff]
      %v203 = vld [vmem:[%s169 + $0xd8] sm:$0xff]
      %v204 = vld [vmem:[%s169 + $0xe0] sm:$0xff]
      %v205 = vld [vmem:[%s169 + $0xe8] sm:$0xff]
      %v206 = vld [vmem:[%s169 + $0xf0] sm:$0xff]
      %v207 = vld [vmem:[%s169 + $0xf8] sm:$0xff]
      %v208 = vld [vmem:[%s169 + $0x100] sm:$0xff]
      %v209 = vld [vmem:[%s169 + $0x108] sm:$0xff]
      %v210 = vld [vmem:[%s169 + $0x110] sm:$0xff]
      %v211 = vld [vmem:[%s169 + $0x118] sm:$0xff]
      %v212 = vld [vmem:[%s1] sm:$0xf]
      %v213 = vld [vmem:[%s169 + $0x1] sm:$0xff]
      %v214 = vld [vmem:[%s169 + $0x9] sm:$0xff]
      %v215 = vld [vmem:[%s169 + $0x11] sm:$0xff]
      %v216 = vld [vmem:[%s169 + $0x19] sm:$0xff]
      %v217 = vld [vmem:[%s169 + $0x21] sm:$0xff]
      %v218 = vld [vmem:[%s169 + $0x29] sm:$0xff]
      %v219 = vld [vmem:[%s169 + $0x31] sm:$0xff]
      %v220 = vld [vmem:[%s169 + $0x39] sm:$0xff]
      %v221 = vld [vmem:[%s169 + $0x41] sm:$0xff]
      %v222 = vld [vmem:[%s169 + $0x49] sm:$0xff]
      %v223 = vld [vmem:[%s169 + $0x51] sm:$0xff]
      %v224 = vld [vmem:[%s169 + $0x59] sm:$0xff]
      %v225 = vld [vmem:[%s169 + $0x61] sm:$0xff]
      %v226 = vld [vmem:[%s169 + $0x69] sm:$0xff]
      %v227 = vld [vmem:[%s169 + $0x71] sm:$0xff]
      %v228 = vld [vmem:[%s169 + $0x79] sm:$0xff]
      %v229 = vld [vmem:[%s169 + $0x81] sm:$0xff]
      %v230 = vld [vmem:[%s169 + $0x89] sm:$0xff]
      %v231 = vld [vmem:[%s169 + $0x91] sm:$0xff]
      %v232 = vld [vmem:[%s169 + $0x99] sm:$0xff]
      %v233 = vld [vmem:[%s169 + $0xa1] sm:$0xff]
      %v234 = vld [vmem:[%s169 + $0xa9] sm:$0xff]
      %v235 = vld [vmem:[%s169 + $0xb1] sm:$0xff]
      %v236 = vld [vmem:[%s169 + $0xb9] sm:$0xff]
      %v237 = vld [vmem:[%s169 + $0xc1] sm:$0xff]
      %v238 = vld [vmem:[%s169 + $0xc9] sm:$0xff]
      %v239 = vld [vmem:[%s169 + $0xd1] sm:$0xff]
      %v240 = vld [vmem:[%s169 + $0xd9] sm:$0xff]
      %v241 = vld [vmem:[%s169 + $0xe1] sm:$0xff]
      %v242 = vld [vmem:[%s169 + $0xe9] sm:$0xff]
      %v243 = vld [vmem:[%s169 + $0xf1] sm:$0xff]
      %v244 = vld [vmem:[%s169 + $0xf9] sm:$0xff]
      %v245 = vld [vmem:[%s169 + $0x101] sm:$0xff]
      %v246 = vld [vmem:[%s169 + $0x109] sm:$0xff]
      %v247 = vld [vmem:[%s169 + $0x111] sm:$0xff]
      %v248 = vld [vmem:[%s169 + $0x119] sm:$0xff]
      %s249 = scalar_lea.vmem %s1, 4
      %v250 = vld [vmem:[%s249] sm:$0xf]
      %vm251 = vcmask 31744
      %v253 = vsel %vm251, %v213, 0
      %v256 = vsel %vm251, %v214, 0
      %v259 = vsel %vm251, %v215, 0
      %v262 = vsel %vm251, %v216, 0
      %v265 = vsel %vm251, %v217, 0
      %v268 = vsel %vm251, %v218, 0
      %v271 = vsel %vm251, %v219, 0
      %v274 = vsel %vm251, %v220, 0
      %v277 = vsel %vm251, %v221, 0
      %v280 = vsel %vm251, %v222, 0
      %v283 = vsel %vm251, %v223, 0
      %v286 = vsel %vm251, %v224, 0
      %v289 = vsel %vm251, %v225, 0
      %v292 = vsel %vm251, %v226, 0
      %v295 = vsel %vm251, %v227, 0
      %v298 = vsel %vm251, %v228, 0
      %v301 = vsel %vm251, %v229, 0
      %v304 = vsel %vm251, %v230, 0
      %v307 = vsel %vm251, %v231, 0
      %v310 = vsel %vm251, %v232, 0
      %v313 = vsel %vm251, %v233, 0
      %v316 = vsel %vm251, %v234, 0
      %v319 = vsel %vm251, %v235, 0
      %v322 = vsel %vm251, %v236, 0
      %v325 = vsel %vm251, %v237, 0
      %v328 = vsel %vm251, %v238, 0
      %v331 = vsel %vm251, %v239, 0
      %v334 = vsel %vm251, %v240, 0
      %v337 = vsel %vm251, %v241, 0
      %v340 = vsel %vm251, %v242, 0
      %v343 = vsel %vm251, %v243, 0
      %v346 = vsel %vm251, %v244, 0
      %v349 = vsel %vm251, %v245, 0
      %v352 = vsel %vm251, %v246, 0
      %v355 = vsel %vm251, %v247, 0
      %v358 = vsel %vm251, %v248, 0
      %vm360 = vcmask 1043456
      %v362 = vsel %vm360, %v250, 0
      %364 = vmatpush.msra.mxu0 0.0
      %365 = vmatpush.msra.mxu0 0.0
      %366 = vmatpush.msra.mxu0 0.0
      %367 = vmatpush.msra.mxu0 0.0
      %368 = vmatpush.msra.mxu0 0.0
      %369 = vmatpush.msra.mxu0 0.0
      %370 = vmatpush.msra.mxu0 0.0
      %371 = vmatpush.msra.mxu0 0.0
      %372 = vmatpush.msra.mxu0 0.0
      %373 = vmatpush.msra.mxu0 0.0
      %374 = vmatpush.msra.mxu0 0.0
      %375 = vmatpush.msra.mxu0 0.0
      %376 = vmatpush.msra.mxu0 0.0
      %377 = vmatpush.msra.mxu0 0.0
      %378 = vmatpush.msra.mxu0 0.0
      %379 = vmatpush.msra.mxu0 %v362
      %380 = vmatmul.f32.gmra.mxu0 %v253
      %v381 = vpop.f32.mrf.mxu0
      %v382 = vadd.f32 0.0, %v381
      %383 = vmatmul.f32.gmra.mxu0 %v256
      %v384 = vpop.f32.mrf.mxu0
      %v385 = vadd.f32 0.0, %v384
      %386 = vmatmul.f32.gmra.mxu0 %v259
      %v387 = vpop.f32.mrf.mxu0
      %v388 = vadd.f32 0.0, %v387
      %389 = vmatmul.f32.gmra.mxu0 %v262
      %v390 = vpop.f32.mrf.mxu0
      %v391 = vadd.f32 0.0, %v390
      %392 = vmatmul.f32.gmra.mxu0 %v265
      %v393 = vpop.f32.mrf.mxu0
      %v394 = vadd.f32 0.0, %v393
      %395 = vmatmul.f32.gmra.mxu0 %v268
      %v396 = vpop.f32.mrf.mxu0
      %v397 = vadd.f32 0.0, %v396
      %398 = vmatmul.f32.gmra.mxu0 %v271
      %v399 = vpop.f32.mrf.mxu0
      %v400 = vadd.f32 0.0, %v399
      %401 = vmatmul.f32.gmra.mxu0 %v274
      %v402 = vpop.f32.mrf.mxu0
      %v403 = vadd.f32 0.0, %v402
      %404 = vmatmul.f32.gmra.mxu0 %v277
      %v405 = vpop.f32.mrf.mxu0
      %v406 = vadd.f32 0.0, %v405
      %407 = vmatmul.f32.gmra.mxu0 %v280
      %v408 = vpop.f32.mrf.mxu0
      %v409 = vadd.f32 0.0, %v408
      %410 = vmatmul.f32.gmra.mxu0 %v283
      %v411 = vpop.f32.mrf.mxu0
      %v412 = vadd.f32 0.0, %v411
      %413 = vmatmul.f32.gmra.mxu0 %v286
      %v414 = vpop.f32.mrf.mxu0
      %v415 = vadd.f32 0.0, %v414
      %416 = vmatmul.f32.gmra.mxu0 %v289
      %v417 = vpop.f32.mrf.mxu0
      %v418 = vadd.f32 0.0, %v417
      %419 = vmatmul.f32.gmra.mxu0 %v292
      %v420 = vpop.f32.mrf.mxu0
      %v421 = vadd.f32 0.0, %v420
      %422 = vmatmul.f32.gmra.mxu0 %v295
      %v423 = vpop.f32.mrf.mxu0
      %v424 = vadd.f32 0.0, %v423
      %425 = vmatmul.f32.gmra.mxu0 %v298
      %v426 = vpop.f32.mrf.mxu0
      %v427 = vadd.f32 0.0, %v426
      %428 = vmatmul.f32.gmra.mxu0 %v301
      %v429 = vpop.f32.mrf.mxu0
      %v430 = vadd.f32 0.0, %v429
      %431 = vmatmul.f32.gmra.mxu0 %v304
      %v432 = vpop.f32.mrf.mxu0
      %v433 = vadd.f32 0.0, %v432
      %434 = vmatmul.f32.gmra.mxu0 %v307
      %v435 = vpop.f32.mrf.mxu0
      %v436 = vadd.f32 0.0, %v435
      %437 = vmatmul.f32.gmra.mxu0 %v310
      %v438 = vpop.f32.mrf.mxu0
      %v439 = vadd.f32 0.0, %v438
      %440 = vmatmul.f32.gmra.mxu0 %v313
      %v441 = vpop.f32.mrf.mxu0
      %v442 = vadd.f32 0.0, %v441
      %443 = vmatmul.f32.gmra.mxu0 %v316
      %v444 = vpop.f32.mrf.mxu0
      %v445 = vadd.f32 0.0, %v444
      %446 = vmatmul.f32.gmra.mxu0 %v319
      %v447 = vpop.f32.mrf.mxu0
      %v448 = vadd.f32 0.0, %v447
      %449 = vmatmul.f32.gmra.mxu0 %v322
      %v450 = vpop.f32.mrf.mxu0
      %v451 = vadd.f32 0.0, %v450
      %452 = vmatmul.f32.gmra.mxu0 %v325
      %v453 = vpop.f32.mrf.mxu0
      %v454 = vadd.f32 0.0, %v453
      %455 = vmatmul.f32.gmra.mxu0 %v328
      %v456 = vpop.f32.mrf.mxu0
      %v457 = vadd.f32 0.0, %v456
      %458 = vmatmul.f32.gmra.mxu0 %v331
      %v459 = vpop.f32.mrf.mxu0
      %v460 = vadd.f32 0.0, %v459
      %461 = vmatmul.f32.gmra.mxu0 %v334
      %v462 = vpop.f32.mrf.mxu0
      %v463 = vadd.f32 0.0, %v462
      %464 = vmatmul.f32.gmra.mxu0 %v337
      %v465 = vpop.f32.mrf.mxu0
      %v466 = vadd.f32 0.0, %v465
      %467 = vmatmul.f32.gmra.mxu0 %v340
      %v468 = vpop.f32.mrf.mxu0
      %v469 = vadd.f32 0.0, %v468
      %470 = vmatmul.f32.gmra.mxu0 %v343
      %v471 = vpop.f32.mrf.mxu0
      %v472 = vadd.f32 0.0, %v471
      %473 = vmatmul.f32.gmra.mxu0 %v346
      %v474 = vpop.f32.mrf.mxu0
      %v475 = vadd.f32 0.0, %v474
      %476 = vmatmul.f32.gmra.mxu0 %v349
      %v477 = vpop.f32.mrf.mxu0
      %v478 = vadd.f32 0.0, %v477
      %479 = vmatmul.f32.gmra.mxu0 %v352
      %v480 = vpop.f32.mrf.mxu0
      %v481 = vadd.f32 0.0, %v480
      %482 = vmatmul.f32.gmra.mxu0 %v355
      %v483 = vpop.f32.mrf.mxu0
      %v484 = vadd.f32 0.0, %v483
      %485 = vmatmul.f32.gmra.mxu0 %v358
      %v486 = vpop.f32.mrf.mxu0
      %v487 = vadd.f32 0.0, %v486
      %488 = vdwg.mxu0
      %v490 = vsel %vm251, %v176, 0
      %v493 = vsel %vm251, %v177, 0
      %v496 = vsel %vm251, %v178, 0
      %v499 = vsel %vm251, %v179, 0
      %v502 = vsel %vm251, %v180, 0
      %v505 = vsel %vm251, %v181, 0
      %v508 = vsel %vm251, %v182, 0
      %v511 = vsel %vm251, %v183, 0
      %v514 = vsel %vm251, %v184, 0
      %v517 = vsel %vm251, %v185, 0
      %v520 = vsel %vm251, %v186, 0
      %v523 = vsel %vm251, %v187, 0
      %v526 = vsel %vm251, %v188, 0
      %v529 = vsel %vm251, %v189, 0
      %v532 = vsel %vm251, %v190, 0
      %v535 = vsel %vm251, %v191, 0
      %v538 = vsel %vm251, %v192, 0
      %v541 = vsel %vm251, %v193, 0
      %v544 = vsel %vm251, %v194, 0
      %v547 = vsel %vm251, %v195, 0
      %v550 = vsel %vm251, %v196, 0
      %v553 = vsel %vm251, %v197, 0
      %v556 = vsel %vm251, %v198, 0
      %v559 = vsel %vm251, %v199, 0
      %v562 = vsel %vm251, %v200, 0
      %v565 = vsel %vm251, %v201, 0
      %v568 = vsel %vm251, %v202, 0
      %v571 = vsel %vm251, %v203, 0
      %v574 = vsel %vm251, %v204, 0
      %v577 = vsel %vm251, %v205, 0
      %v580 = vsel %vm251, %v206, 0
      %v583 = vsel %vm251, %v207, 0
      %v586 = vsel %vm251, %v208, 0
      %v589 = vsel %vm251, %v209, 0
      %v592 = vsel %vm251, %v210, 0
      %v595 = vsel %vm251, %v211, 0
      %v598 = vsel %vm360, %v212, 0
      %600 = vmatpush.msra.mxu0 0.0
      %601 = vmatpush.msra.mxu0 0.0
      %602 = vmatpush.msra.mxu0 0.0
      %603 = vmatpush.msra.mxu0 0.0
      %604 = vmatpush.msra.mxu0 0.0
      %605 = vmatpush.msra.mxu0 0.0
      %606 = vmatpush.msra.mxu0 0.0
      %607 = vmatpush.msra.mxu0 0.0
      %608 = vmatpush.msra.mxu0 0.0
      %609 = vmatpush.msra.mxu0 0.0
      %610 = vmatpush.msra.mxu0 0.0
      %611 = vmatpush.msra.mxu0 0.0
      %612 = vmatpush.msra.mxu0 0.0
      %613 = vmatpush.msra.mxu0 0.0
      %614 = vmatpush.msra.mxu0 0.0
      %615 = vmatpush.msra.mxu0 %v598
      %616 = vmatmul.f32.gmra.mxu0 %v490
      %v617 = vpop.f32.mrf.mxu0
      %v618 = vadd.f32 %v382, %v617
      %619 = vmatmul.f32.gmra.mxu0 %v493
      %v620 = vpop.f32.mrf.mxu0
      %v621 = vadd.f32 %v385, %v620
      %622 = vmatmul.f32.gmra.mxu0 %v496
      %v623 = vpop.f32.mrf.mxu0
      %v624 = vadd.f32 %v388, %v623
      %625 = vmatmul.f32.gmra.mxu0 %v499
      %v626 = vpop.f32.mrf.mxu0
      %v627 = vadd.f32 %v391, %v626
      %628 = vmatmul.f32.gmra.mxu0 %v502
      %v629 = vpop.f32.mrf.mxu0
      %v630 = vadd.f32 %v394, %v629
      %631 = vmatmul.f32.gmra.mxu0 %v505
      %v632 = vpop.f32.mrf.mxu0
      %v633 = vadd.f32 %v397, %v632
      %634 = vmatmul.f32.gmra.mxu0 %v508
      %v635 = vpop.f32.mrf.mxu0
      %v636 = vadd.f32 %v400, %v635
      %637 = vmatmul.f32.gmra.mxu0 %v511
      %v638 = vpop.f32.mrf.mxu0
      %v639 = vadd.f32 %v403, %v638
      %640 = vmatmul.f32.gmra.mxu0 %v514
      %v641 = vpop.f32.mrf.mxu0
      %v642 = vadd.f32 %v406, %v641
      %643 = vmatmul.f32.gmra.mxu0 %v517
      %v644 = vpop.f32.mrf.mxu0
      %v645 = vadd.f32 %v409, %v644
      %646 = vmatmul.f32.gmra.mxu0 %v520
      %v647 = vpop.f32.mrf.mxu0
      %v648 = vadd.f32 %v412, %v647
      %649 = vmatmul.f32.gmra.mxu0 %v523
      %v650 = vpop.f32.mrf.mxu0
      %v651 = vadd.f32 %v415, %v650
      %652 = vmatmul.f32.gmra.mxu0 %v526
      %v653 = vpop.f32.mrf.mxu0
      %v654 = vadd.f32 %v418, %v653
      %655 = vmatmul.f32.gmra.mxu0 %v529
      %v656 = vpop.f32.mrf.mxu0
      %v657 = vadd.f32 %v421, %v656
      %658 = vmatmul.f32.gmra.mxu0 %v532
      %v659 = vpop.f32.mrf.mxu0
      %v660 = vadd.f32 %v424, %v659
      %661 = vmatmul.f32.gmra.mxu0 %v535
      %v662 = vpop.f32.mrf.mxu0
      %v663 = vadd.f32 %v427, %v662
      %664 = vmatmul.f32.gmra.mxu0 %v538
      %v665 = vpop.f32.mrf.mxu0
      %v666 = vadd.f32 %v430, %v665
      %667 = vmatmul.f32.gmra.mxu0 %v541
      %v668 = vpop.f32.mrf.mxu0
      %v669 = vadd.f32 %v433, %v668
      %670 = vmatmul.f32.gmra.mxu0 %v544
      %v671 = vpop.f32.mrf.mxu0
      %v672 = vadd.f32 %v436, %v671
      %673 = vmatmul.f32.gmra.mxu0 %v547
      %v674 = vpop.f32.mrf.mxu0
      %v675 = vadd.f32 %v439, %v674
      %676 = vmatmul.f32.gmra.mxu0 %v550
      %v677 = vpop.f32.mrf.mxu0
      %v678 = vadd.f32 %v442, %v677
      %679 = vmatmul.f32.gmra.mxu0 %v553
      %v680 = vpop.f32.mrf.mxu0
      %v681 = vadd.f32 %v445, %v680
      %682 = vmatmul.f32.gmra.mxu0 %v556
      %v683 = vpop.f32.mrf.mxu0
      %v684 = vadd.f32 %v448, %v683
      %685 = vmatmul.f32.gmra.mxu0 %v559
      %v686 = vpop.f32.mrf.mxu0
      %v687 = vadd.f32 %v451, %v686
      %688 = vmatmul.f32.gmra.mxu0 %v562
      %v689 = vpop.f32.mrf.mxu0
      %v690 = vadd.f32 %v454, %v689
      %691 = vmatmul.f32.gmra.mxu0 %v565
      %v692 = vpop.f32.mrf.mxu0
      %v693 = vadd.f32 %v457, %v692
      %694 = vmatmul.f32.gmra.mxu0 %v568
      %v695 = vpop.f32.mrf.mxu0
      %v696 = vadd.f32 %v460, %v695
      %697 = vmatmul.f32.gmra.mxu0 %v571
      %v698 = vpop.f32.mrf.mxu0
      %v699 = vadd.f32 %v463, %v698
      %700 = vmatmul.f32.gmra.mxu0 %v574
      %v701 = vpop.f32.mrf.mxu0
      %v702 = vadd.f32 %v466, %v701
      %703 = vmatmul.f32.gmra.mxu0 %v577
      %v704 = vpop.f32.mrf.mxu0
      %v705 = vadd.f32 %v469, %v704
      %706 = vmatmul.f32.gmra.mxu0 %v580
      %v707 = vpop.f32.mrf.mxu0
      %v708 = vadd.f32 %v472, %v707
      %709 = vmatmul.f32.gmra.mxu0 %v583
      %v710 = vpop.f32.mrf.mxu0
      %v711 = vadd.f32 %v475, %v710
      %712 = vmatmul.f32.gmra.mxu0 %v586
      %v713 = vpop.f32.mrf.mxu0
      %v714 = vadd.f32 %v478, %v713
      %715 = vmatmul.f32.gmra.mxu0 %v589
      %v716 = vpop.f32.mrf.mxu0
      %v717 = vadd.f32 %v481, %v716
      %718 = vmatmul.f32.gmra.mxu0 %v592
      %v719 = vpop.f32.mrf.mxu0
      %v720 = vadd.f32 %v484, %v719
      %721 = vmatmul.f32.gmra.mxu0 %v595
      %v722 = vpop.f32.mrf.mxu0
      %v723 = vadd.f32 %v487, %v722
      %724 = vdwg.mxu0
      %v725 = vld [vmem:[%s169 + $0x2] sm:$0xff]
      %v726 = vld [vmem:[%s169 + $0xa] sm:$0xff]
      %v727 = vld [vmem:[%s169 + $0x12] sm:$0xff]
      %v728 = vld [vmem:[%s169 + $0x1a] sm:$0xff]
      %v729 = vld [vmem:[%s169 + $0x22] sm:$0xff]
      %v730 = vld [vmem:[%s169 + $0x2a] sm:$0xff]
      %v731 = vld [vmem:[%s169 + $0x32] sm:$0xff]
      %v732 = vld [vmem:[%s169 + $0x3a] sm:$0xff]
      %v733 = vld [vmem:[%s169 + $0x42] sm:$0xff]
      %v734 = vld [vmem:[%s169 + $0x4a] sm:$0xff]
      %v735 = vld [vmem:[%s169 + $0x52] sm:$0xff]
      %v736 = vld [vmem:[%s169 + $0x5a] sm:$0xff]
      %v737 = vld [vmem:[%s169 + $0x62] sm:$0xff]
      %v738 = vld [vmem:[%s169 + $0x6a] sm:$0xff]
      %v739 = vld [vmem:[%s169 + $0x72] sm:$0xff]
      %v740 = vld [vmem:[%s169 + $0x7a] sm:$0xff]
      %v741 = vld [vmem:[%s169 + $0x82] sm:$0xff]
      %v742 = vld [vmem:[%s169 + $0x8a] sm:$0xff]
      %v743 = vld [vmem:[%s169 + $0x92] sm:$0xff]
      %v744 = vld [vmem:[%s169 + $0x9a] sm:$0xff]
      %v745 = vld [vmem:[%s169 + $0xa2] sm:$0xff]
      %v746 = vld [vmem:[%s169 + $0xaa] sm:$0xff]
      %v747 = vld [vmem:[%s169 + $0xb2] sm:$0xff]
      %v748 = vld [vmem:[%s169 + $0xba] sm:$0xff]
      %v749 = vld [vmem:[%s169 + $0xc2] sm:$0xff]
      %v750 = vld [vmem:[%s169 + $0xca] sm:$0xff]
      %v751 = vld [vmem:[%s169 + $0xd2] sm:$0xff]
      %v752 = vld [vmem:[%s169 + $0xda] sm:$0xff]
      %v753 = vld [vmem:[%s169 + $0xe2] sm:$0xff]
      %v754 = vld [vmem:[%s169 + $0xea] sm:$0xff]
      %v755 = vld [vmem:[%s169 + $0xf2] sm:$0xff]
      %v756 = vld [vmem:[%s169 + $0xfa] sm:$0xff]
      %v757 = vld [vmem:[%s169 + $0x102] sm:$0xff]
      %v758 = vld [vmem:[%s169 + $0x10a] sm:$0xff]
      %v759 = vld [vmem:[%s169 + $0x112] sm:$0xff]
      %v760 = vld [vmem:[%s169 + $0x11a] sm:$0xff]
      %s761 = scalar_lea.vmem %s1, 8
      %v762 = vld [vmem:[%s761] sm:$0xf]
      %v764 = vsel %vm251, %v725, 0
      %v767 = vsel %vm251, %v726, 0
      %v770 = vsel %vm251, %v727, 0
      %v773 = vsel %vm251, %v728, 0
      %v776 = vsel %vm251, %v729, 0
      %v779 = vsel %vm251, %v730, 0
      %v782 = vsel %vm251, %v731, 0
      %v785 = vsel %vm251, %v732, 0
      %v788 = vsel %vm251, %v733, 0
      %v791 = vsel %vm251, %v734, 0
      %v794 = vsel %vm251, %v735, 0
      %v797 = vsel %vm251, %v736, 0
      %v800 = vsel %vm251, %v737, 0
      %v803 = vsel %vm251, %v738, 0
      %v806 = vsel %vm251, %v739, 0
      %v809 = vsel %vm251, %v740, 0
      %v812 = vsel %vm251, %v741, 0
      %v815 = vsel %vm251, %v742, 0
      %v818 = vsel %vm251, %v743, 0
      %v821 = vsel %vm251, %v744, 0
      %v824 = vsel %vm251, %v745, 0
      %v827 = vsel %vm251, %v746, 0
      %v830 = vsel %vm251, %v747, 0
      %v833 = vsel %vm251, %v748, 0
      %v836 = vsel %vm251, %v749, 0
      %v839 = vsel %vm251, %v750, 0
      %v842 = vsel %vm251, %v751, 0
      %v845 = vsel %vm251, %v752, 0
      %v848 = vsel %vm251, %v753, 0
      %v851 = vsel %vm251, %v754, 0
      %v854 = vsel %vm251, %v755, 0
      %v857 = vsel %vm251, %v756, 0
      %v860 = vsel %vm251, %v757, 0
      %v863 = vsel %vm251, %v758, 0
      %v866 = vsel %vm251, %v759, 0
      %v869 = vsel %vm251, %v760, 0
      %v872 = vsel %vm360, %v762, 0
      %874 = vmatpush.msra.mxu0 0.0
      %875 = vmatpush.msra.mxu0 0.0
      %876 = vmatpush.msra.mxu0 0.0
      %877 = vmatpush.msra.mxu0 0.0
      %878 = vmatpush.msra.mxu0 0.0
      %879 = vmatpush.msra.mxu0 0.0
      %880 = vmatpush.msra.mxu0 0.0
      %881 = vmatpush.msra.mxu0 0.0
      %882 = vmatpush.msra.mxu0 0.0
      %883 = vmatpush.msra.mxu0 0.0
      %884 = vmatpush.msra.mxu0 0.0
      %885 = vmatpush.msra.mxu0 0.0
      %886 = vmatpush.msra.mxu0 0.0
      %887 = vmatpush.msra.mxu0 0.0
      %888 = vmatpush.msra.mxu0 0.0
      %889 = vmatpush.msra.mxu0 %v872
      %890 = vmatmul.f32.gmra.mxu0 %v764
      %v891 = vpop.f32.mrf.mxu0
      %v892 = vadd.f32 0.0, %v891
      %893 = vmatmul.f32.gmra.mxu0 %v767
      %v894 = vpop.f32.mrf.mxu0
      %v895 = vadd.f32 0.0, %v894
      %896 = vmatmul.f32.gmra.mxu0 %v770
      %v897 = vpop.f32.mrf.mxu0
      %v898 = vadd.f32 0.0, %v897
      %899 = vmatmul.f32.gmra.mxu0 %v773
      %v900 = vpop.f32.mrf.mxu0
      %v901 = vadd.f32 0.0, %v900
      %902 = vmatmul.f32.gmra.mxu0 %v776
      %v903 = vpop.f32.mrf.mxu0
      %v904 = vadd.f32 0.0, %v903
      %905 = vmatmul.f32.gmra.mxu0 %v779
      %v906 = vpop.f32.mrf.mxu0
      %v907 = vadd.f32 0.0, %v906
      %908 = vmatmul.f32.gmra.mxu0 %v782
      %v909 = vpop.f32.mrf.mxu0
      %v910 = vadd.f32 0.0, %v909
      %911 = vmatmul.f32.gmra.mxu0 %v785
      %v912 = vpop.f32.mrf.mxu0
      %v913 = vadd.f32 0.0, %v912
      %914 = vmatmul.f32.gmra.mxu0 %v788
      %v915 = vpop.f32.mrf.mxu0
      %v916 = vadd.f32 0.0, %v915
      %917 = vmatmul.f32.gmra.mxu0 %v791
      %v918 = vpop.f32.mrf.mxu0
      %v919 = vadd.f32 0.0, %v918
      %920 = vmatmul.f32.gmra.mxu0 %v794
      %v921 = vpop.f32.mrf.mxu0
      %v922 = vadd.f32 0.0, %v921
      %923 = vmatmul.f32.gmra.mxu0 %v797
      %v924 = vpop.f32.mrf.mxu0
      %v925 = vadd.f32 0.0, %v924
      %926 = vmatmul.f32.gmra.mxu0 %v800
      %v927 = vpop.f32.mrf.mxu0
      %v928 = vadd.f32 0.0, %v927
      %929 = vmatmul.f32.gmra.mxu0 %v803
      %v930 = vpop.f32.mrf.mxu0
      %v931 = vadd.f32 0.0, %v930
      %932 = vmatmul.f32.gmra.mxu0 %v806
      %v933 = vpop.f32.mrf.mxu0
      %v934 = vadd.f32 0.0, %v933
      %935 = vmatmul.f32.gmra.mxu0 %v809
      %v936 = vpop.f32.mrf.mxu0
      %v937 = vadd.f32 0.0, %v936
      %938 = vmatmul.f32.gmra.mxu0 %v812
      %v939 = vpop.f32.mrf.mxu0
      %v940 = vadd.f32 0.0, %v939
      %941 = vmatmul.f32.gmra.mxu0 %v815
      %v942 = vpop.f32.mrf.mxu0
      %v943 = vadd.f32 0.0, %v942
      %944 = vmatmul.f32.gmra.mxu0 %v818
      %v945 = vpop.f32.mrf.mxu0
      %v946 = vadd.f32 0.0, %v945
      %947 = vmatmul.f32.gmra.mxu0 %v821
      %v948 = vpop.f32.mrf.mxu0
      %v949 = vadd.f32 0.0, %v948
      %950 = vmatmul.f32.gmra.mxu0 %v824
      %v951 = vpop.f32.mrf.mxu0
      %v952 = vadd.f32 0.0, %v951
      %953 = vmatmul.f32.gmra.mxu0 %v827
      %v954 = vpop.f32.mrf.mxu0
      %v955 = vadd.f32 0.0, %v954
      %956 = vmatmul.f32.gmra.mxu0 %v830
      %v957 = vpop.f32.mrf.mxu0
      %v958 = vadd.f32 0.0, %v957
      %959 = vmatmul.f32.gmra.mxu0 %v833
      %v960 = vpop.f32.mrf.mxu0
      %v961 = vadd.f32 0.0, %v960
      %962 = vmatmul.f32.gmra.mxu0 %v836
      %v963 = vpop.f32.mrf.mxu0
      %v964 = vadd.f32 0.0, %v963
      %965 = vmatmul.f32.gmra.mxu0 %v839
      %v966 = vpop.f32.mrf.mxu0
      %v967 = vadd.f32 0.0, %v966
      %968 = vmatmul.f32.gmra.mxu0 %v842
      %v969 = vpop.f32.mrf.mxu0
      %v970 = vadd.f32 0.0, %v969
      %971 = vmatmul.f32.gmra.mxu0 %v845
      %v972 = vpop.f32.mrf.mxu0
      %v973 = vadd.f32 0.0, %v972
      %974 = vmatmul.f32.gmra.mxu0 %v848
      %v975 = vpop.f32.mrf.mxu0
      %v976 = vadd.f32 0.0, %v975
      %977 = vmatmul.f32.gmra.mxu0 %v851
      %v978 = vpop.f32.mrf.mxu0
      %v979 = vadd.f32 0.0, %v978
      %980 = vmatmul.f32.gmra.mxu0 %v854
      %v981 = vpop.f32.mrf.mxu0
      %v982 = vadd.f32 0.0, %v981
      %983 = vmatmul.f32.gmra.mxu0 %v857
      %v984 = vpop.f32.mrf.mxu0
      %v985 = vadd.f32 0.0, %v984
      %986 = vmatmul.f32.gmra.mxu0 %v860
      %v987 = vpop.f32.mrf.mxu0
      %v988 = vadd.f32 0.0, %v987
      %989 = vmatmul.f32.gmra.mxu0 %v863
      %v990 = vpop.f32.mrf.mxu0
      %v991 = vadd.f32 0.0, %v990
      %992 = vmatmul.f32.gmra.mxu0 %v866
      %v993 = vpop.f32.mrf.mxu0
      %v994 = vadd.f32 0.0, %v993
      %995 = vmatmul.f32.gmra.mxu0 %v869
      %v996 = vpop.f32.mrf.mxu0
      %v997 = vadd.f32 0.0, %v996
      %998 = vdwg.mxu0
      %v999 = vadd.f32 %v618, %v892
      %v1000 = vadd.f32 %v621, %v895
      %v1001 = vadd.f32 %v624, %v898
      %v1002 = vadd.f32 %v627, %v901
      %v1003 = vadd.f32 %v630, %v904
      %v1004 = vadd.f32 %v633, %v907
      %v1005 = vadd.f32 %v636, %v910
      %v1006 = vadd.f32 %v639, %v913
      %v1007 = vadd.f32 %v642, %v916
      %v1008 = vadd.f32 %v645, %v919
      %v1009 = vadd.f32 %v648, %v922
      %v1010 = vadd.f32 %v651, %v925
      %v1011 = vadd.f32 %v654, %v928
      %v1012 = vadd.f32 %v657, %v931
      %v1013 = vadd.f32 %v660, %v934
      %v1014 = vadd.f32 %v663, %v937
      %v1015 = vadd.f32 %v666, %v940
      %v1016 = vadd.f32 %v669, %v943
      %v1017 = vadd.f32 %v672, %v946
      %v1018 = vadd.f32 %v675, %v949
      %v1019 = vadd.f32 %v678, %v952
      %v1020 = vadd.f32 %v681, %v955
      %v1021 = vadd.f32 %v684, %v958
      %v1022 = vadd.f32 %v687, %v961
      %v1023 = vadd.f32 %v690, %v964
      %v1024 = vadd.f32 %v693, %v967
      %v1025 = vadd.f32 %v696, %v970
      %v1026 = vadd.f32 %v699, %v973
      %v1027 = vadd.f32 %v702, %v976
      %v1028 = vadd.f32 %v705, %v979
      %v1029 = vadd.f32 %v708, %v982
      %v1030 = vadd.f32 %v711, %v985
      %v1031 = vadd.f32 %v714, %v988
      %v1032 = vadd.f32 %v717, %v991
      %v1033 = vadd.f32 %v720, %v994
      %v1034 = vadd.f32 %v723, %v997
      %v1035 = vld [vmem:[%s169 + $0x12] sm:$0xff]
      %v1036 = vld [vmem:[%s169 + $0x1a] sm:$0xff]
      %v1037 = vld [vmem:[%s169 + $0x22] sm:$0xff]
      %v1038 = vld [vmem:[%s169 + $0x2a] sm:$0xff]
      %v1039 = vld [vmem:[%s169 + $0x32] sm:$0xff]
      %v1040 = vld [vmem:[%s169 + $0x3a] sm:$0xff]
      %v1041 = vld [vmem:[%s169 + $0x42] sm:$0xff]
      %v1042 = vld [vmem:[%s169 + $0x4a] sm:$0xff]
      %v1043 = vld [vmem:[%s169 + $0x52] sm:$0xff]
      %v1044 = vld [vmem:[%s169 + $0x5a] sm:$0xff]
      %v1045 = vld [vmem:[%s169 + $0x62] sm:$0xff]
      %v1046 = vld [vmem:[%s169 + $0x6a] sm:$0xff]
      %v1047 = vld [vmem:[%s169 + $0x72] sm:$0xff]
      %v1048 = vld [vmem:[%s169 + $0x7a] sm:$0xff]
      %v1049 = vld [vmem:[%s169 + $0x82] sm:$0xff]
      %v1050 = vld [vmem:[%s169 + $0x8a] sm:$0xff]
      %v1051 = vld [vmem:[%s169 + $0x92] sm:$0xff]
      %v1052 = vld [vmem:[%s169 + $0x9a] sm:$0xff]
      %v1053 = vld [vmem:[%s169 + $0xa2] sm:$0xff]
      %v1054 = vld [vmem:[%s169 + $0xaa] sm:$0xff]
      %v1055 = vld [vmem:[%s169 + $0xb2] sm:$0xff]
      %v1056 = vld [vmem:[%s169 + $0xba] sm:$0xff]
      %v1057 = vld [vmem:[%s169 + $0xc2] sm:$0xff]
      %v1058 = vld [vmem:[%s169 + $0xca] sm:$0xff]
      %v1059 = vld [vmem:[%s169 + $0xd2] sm:$0xff]
      %v1060 = vld [vmem:[%s169 + $0xda] sm:$0xff]
      %v1061 = vld [vmem:[%s169 + $0xe2] sm:$0xff]
      %v1062 = vld [vmem:[%s169 + $0xea] sm:$0xff]
      %v1063 = vld [vmem:[%s169 + $0xf2] sm:$0xff]
      %v1064 = vld [vmem:[%s169 + $0xfa] sm:$0xff]
      %v1065 = vld [vmem:[%s169 + $0x102] sm:$0xff]
      %v1066 = vld [vmem:[%s169 + $0x10a] sm:$0xff]
      %v1067 = vld [vmem:[%s169 + $0x112] sm:$0xff]
      %v1068 = vld [vmem:[%s169 + $0x11a] sm:$0xff]
      %v1069 = vld [vmem:[%s169 + $0x122] sm:$0xff]
      %v1070 = vld [vmem:[%s169 + $0x12a] sm:$0xff]
      %s1071 = scalar_lea.vmem %s1, 12
      %v1072 = vld [vmem:[%s1071] sm:$0xf]
      %v1074 = vsel %vm251, %v1035, 0
      %v1077 = vsel %vm251, %v1036, 0
      %v1080 = vsel %vm251, %v1037, 0
      %v1083 = vsel %vm251, %v1038, 0
      %v1086 = vsel %vm251, %v1039, 0
      %v1089 = vsel %vm251, %v1040, 0
      %v1092 = vsel %vm251, %v1041, 0
      %v1095 = vsel %vm251, %v1042, 0
      %v1098 = vsel %vm251, %v1043, 0
      %v1101 = vsel %vm251, %v1044, 0
      %v1104 = vsel %vm251, %v1045, 0
      %v1107 = vsel %vm251, %v1046, 0
      %v1110 = vsel %vm251, %v1047, 0
      %v1113 = vsel %vm251, %v1048, 0
      %v1116 = vsel %vm251, %v1049, 0
      %v1119 = vsel %vm251, %v1050, 0
      %v1122 = vsel %vm251, %v1051, 0
      %v1125 = vsel %vm251, %v1052, 0
      %v1128 = vsel %vm251, %v1053, 0
      %v1131 = vsel %vm251, %v1054, 0
      %v1134 = vsel %vm251, %v1055, 0
      %v1137 = vsel %vm251, %v1056, 0
      %v1140 = vsel %vm251, %v1057, 0
      %v1143 = vsel %vm251, %v1058, 0
      %v1146 = vsel %vm251, %v1059, 0
      %v1149 = vsel %vm251, %v1060, 0
      %v1152 = vsel %vm251, %v1061, 0
      %v1155 = vsel %vm251, %v1062, 0
      %v1158 = vsel %vm251, %v1063, 0
      %v1161 = vsel %vm251, %v1064, 0
      %v1164 = vsel %vm251, %v1065, 0
      %v1167 = vsel %vm251, %v1066, 0
      %v1170 = vsel %vm251, %v1067, 0
      %v1173 = vsel %vm251, %v1068, 0
      %v1176 = vsel %vm251, %v1069, 0
      %v1179 = vsel %vm251, %v1070, 0
      %v1182 = vsel %vm360, %v1072, 0
      %1184 = vmatpush.msra.mxu0 0.0
      %1185 = vmatpush.msra.mxu0 0.0
      %1186 = vmatpush.msra.mxu0 0.0
      %1187 = vmatpush.msra.mxu0 0.0
      %1188 = vmatpush.msra.mxu0 0.0
      %1189 = vmatpush.msra.mxu0 0.0
      %1190 = vmatpush.msra.mxu0 0.0
      %1191 = vmatpush.msra.mxu0 0.0
      %1192 = vmatpush.msra.mxu0 0.0
      %1193 = vmatpush.msra.mxu0 0.0
      %1194 = vmatpush.msra.mxu0 0.0
      %1195 = vmatpush.msra.mxu0 0.0
      %1196 = vmatpush.msra.mxu0 0.0
      %1197 = vmatpush.msra.mxu0 0.0
      %1198 = vmatpush.msra.mxu0 0.0
      %1199 = vmatpush.msra.mxu0 %v1182
      %1200 = vmatmul.f32.gmra.mxu0 %v1074
      %v1201 = vpop.f32.mrf.mxu0
      %v1202 = vadd.f32 0.0, %v1201
      %1203 = vmatmul.f32.gmra.mxu0 %v1077
      %v1204 = vpop.f32.mrf.mxu0
      %v1205 = vadd.f32 0.0, %v1204
      %1206 = vmatmul.f32.gmra.mxu0 %v1080
      %v1207 = vpop.f32.mrf.mxu0
      %v1208 = vadd.f32 0.0, %v1207
      %1209 = vmatmul.f32.gmra.mxu0 %v1083
      %v1210 = vpop.f32.mrf.mxu0
      %v1211 = vadd.f32 0.0, %v1210
      %1212 = vmatmul.f32.gmra.mxu0 %v1086
      %v1213 = vpop.f32.mrf.mxu0
      %v1214 = vadd.f32 0.0, %v1213
      %1215 = vmatmul.f32.gmra.mxu0 %v1089
      %v1216 = vpop.f32.mrf.mxu0
      %v1217 = vadd.f32 0.0, %v1216
      %1218 = vmatmul.f32.gmra.mxu0 %v1092
      %v1219 = vpop.f32.mrf.mxu0
      %v1220 = vadd.f32 0.0, %v1219
      %1221 = vmatmul.f32.gmra.mxu0 %v1095
      %v1222 = vpop.f32.mrf.mxu0
      %v1223 = vadd.f32 0.0, %v1222
      %1224 = vmatmul.f32.gmra.mxu0 %v1098
      %v1225 = vpop.f32.mrf.mxu0
      %v1226 = vadd.f32 0.0, %v1225
      %1227 = vmatmul.f32.gmra.mxu0 %v1101
      %v1228 = vpop.f32.mrf.mxu0
      %v1229 = vadd.f32 0.0, %v1228
      %1230 = vmatmul.f32.gmra.mxu0 %v1104
      %v1231 = vpop.f32.mrf.mxu0
      %v1232 = vadd.f32 0.0, %v1231
      %1233 = vmatmul.f32.gmra.mxu0 %v1107
      %v1234 = vpop.f32.mrf.mxu0
      %v1235 = vadd.f32 0.0, %v1234
      %1236 = vmatmul.f32.gmra.mxu0 %v1110
      %v1237 = vpop.f32.mrf.mxu0
      %v1238 = vadd.f32 0.0, %v1237
      %1239 = vmatmul.f32.gmra.mxu0 %v1113
      %v1240 = vpop.f32.mrf.mxu0
      %v1241 = vadd.f32 0.0, %v1240
      %1242 = vmatmul.f32.gmra.mxu0 %v1116
      %v1243 = vpop.f32.mrf.mxu0
      %v1244 = vadd.f32 0.0, %v1243
      %1245 = vmatmul.f32.gmra.mxu0 %v1119
      %v1246 = vpop.f32.mrf.mxu0
      %v1247 = vadd.f32 0.0, %v1246
      %1248 = vmatmul.f32.gmra.mxu0 %v1122
      %v1249 = vpop.f32.mrf.mxu0
      %v1250 = vadd.f32 0.0, %v1249
      %1251 = vmatmul.f32.gmra.mxu0 %v1125
      %v1252 = vpop.f32.mrf.mxu0
      %v1253 = vadd.f32 0.0, %v1252
      %1254 = vmatmul.f32.gmra.mxu0 %v1128
      %v1255 = vpop.f32.mrf.mxu0
      %v1256 = vadd.f32 0.0, %v1255
      %1257 = vmatmul.f32.gmra.mxu0 %v1131
      %v1258 = vpop.f32.mrf.mxu0
      %v1259 = vadd.f32 0.0, %v1258
      %1260 = vmatmul.f32.gmra.mxu0 %v1134
      %v1261 = vpop.f32.mrf.mxu0
      %v1262 = vadd.f32 0.0, %v1261
      %1263 = vmatmul.f32.gmra.mxu0 %v1137
      %v1264 = vpop.f32.mrf.mxu0
      %v1265 = vadd.f32 0.0, %v1264
      %1266 = vmatmul.f32.gmra.mxu0 %v1140
      %v1267 = vpop.f32.mrf.mxu0
      %v1268 = vadd.f32 0.0, %v1267
      %1269 = vmatmul.f32.gmra.mxu0 %v1143
      %v1270 = vpop.f32.mrf.mxu0
      %v1271 = vadd.f32 0.0, %v1270
      %1272 = vmatmul.f32.gmra.mxu0 %v1146
      %v1273 = vpop.f32.mrf.mxu0
      %v1274 = vadd.f32 0.0, %v1273
      %1275 = vmatmul.f32.gmra.mxu0 %v1149
      %v1276 = vpop.f32.mrf.mxu0
      %v1277 = vadd.f32 0.0, %v1276
      %1278 = vmatmul.f32.gmra.mxu0 %v1152
      %v1279 = vpop.f32.mrf.mxu0
      %v1280 = vadd.f32 0.0, %v1279
      %1281 = vmatmul.f32.gmra.mxu0 %v1155
      %v1282 = vpop.f32.mrf.mxu0
      %v1283 = vadd.f32 0.0, %v1282
      %1284 = vmatmul.f32.gmra.mxu0 %v1158
      %v1285 = vpop.f32.mrf.mxu0
      %v1286 = vadd.f32 0.0, %v1285
      %1287 = vmatmul.f32.gmra.mxu0 %v1161
      %v1288 = vpop.f32.mrf.mxu0
      %v1289 = vadd.f32 0.0, %v1288
      %1290 = vmatmul.f32.gmra.mxu0 %v1164
      %v1291 = vpop.f32.mrf.mxu0
      %v1292 = vadd.f32 0.0, %v1291
      %1293 = vmatmul.f32.gmra.mxu0 %v1167
      %v1294 = vpop.f32.mrf.mxu0
      %v1295 = vadd.f32 0.0, %v1294
      %1296 = vmatmul.f32.gmra.mxu0 %v1170
      %v1297 = vpop.f32.mrf.mxu0
      %v1298 = vadd.f32 0.0, %v1297
      %1299 = vmatmul.f32.gmra.mxu0 %v1173
      %v1300 = vpop.f32.mrf.mxu0
      %v1301 = vadd.f32 0.0, %v1300
      %1302 = vmatmul.f32.gmra.mxu0 %v1176
      %v1303 = vpop.f32.mrf.mxu0
      %v1304 = vadd.f32 0.0, %v1303
      %1305 = vmatmul.f32.gmra.mxu0 %v1179
      %v1306 = vpop.f32.mrf.mxu0
      %v1307 = vadd.f32 0.0, %v1306
      %1308 = vdwg.mxu0
      %v1309 = vadd.f32 %v999, %v1202
      %v1310 = vadd.f32 %v1000, %v1205
      %v1311 = vadd.f32 %v1001, %v1208
      %v1312 = vadd.f32 %v1002, %v1211
      %v1313 = vadd.f32 %v1003, %v1214
      %v1314 = vadd.f32 %v1004, %v1217
      %v1315 = vadd.f32 %v1005, %v1220
      %v1316 = vadd.f32 %v1006, %v1223
      %v1317 = vadd.f32 %v1007, %v1226
      %v1318 = vadd.f32 %v1008, %v1229
      %v1319 = vadd.f32 %v1009, %v1232
      %v1320 = vadd.f32 %v1010, %v1235
      %v1321 = vadd.f32 %v1011, %v1238
      %v1322 = vadd.f32 %v1012, %v1241
      %v1323 = vadd.f32 %v1013, %v1244
      %v1324 = vadd.f32 %v1014, %v1247
      %v1325 = vadd.f32 %v1015, %v1250
      %v1326 = vadd.f32 %v1016, %v1253
      %v1327 = vadd.f32 %v1017, %v1256
      %v1328 = vadd.f32 %v1018, %v1259
      %v1329 = vadd.f32 %v1019, %v1262
      %v1330 = vadd.f32 %v1020, %v1265
      %v1331 = vadd.f32 %v1021, %v1268
      %v1332 = vadd.f32 %v1022, %v1271
      %v1333 = vadd.f32 %v1023, %v1274
      %v1334 = vadd.f32 %v1024, %v1277
      %v1335 = vadd.f32 %v1025, %v1280
      %v1336 = vadd.f32 %v1026, %v1283
      %v1337 = vadd.f32 %v1027, %v1286
      %v1338 = vadd.f32 %v1028, %v1289
      %v1339 = vadd.f32 %v1029, %v1292
      %v1340 = vadd.f32 %v1030, %v1295
      %v1341 = vadd.f32 %v1031, %v1298
      %v1342 = vadd.f32 %v1032, %v1301
      %v1343 = vadd.f32 %v1033, %v1304
      %v1344 = vadd.f32 %v1034, %v1307
      %v1345 = vld [vmem:[%s169 + $0x13] sm:$0xff]
      %v1346 = vld [vmem:[%s169 + $0x1b] sm:$0xff]
      %v1347 = vld [vmem:[%s169 + $0x23] sm:$0xff]
      %v1348 = vld [vmem:[%s169 + $0x2b] sm:$0xff]
      %v1349 = vld [vmem:[%s169 + $0x33] sm:$0xff]
      %v1350 = vld [vmem:[%s169 + $0x3b] sm:$0xff]
      %v1351 = vld [vmem:[%s169 + $0x43] sm:$0xff]
      %v1352 = vld [vmem:[%s169 + $0x4b] sm:$0xff]
      %v1353 = vld [vmem:[%s169 + $0x53] sm:$0xff]
      %v1354 = vld [vmem:[%s169 + $0x5b] sm:$0xff]
      %v1355 = vld [vmem:[%s169 + $0x63] sm:$0xff]
      %v1356 = vld [vmem:[%s169 + $0x6b] sm:$0xff]
      %v1357 = vld [vmem:[%s169 + $0x73] sm:$0xff]
      %v1358 = vld [vmem:[%s169 + $0x7b] sm:$0xff]
      %v1359 = vld [vmem:[%s169 + $0x83] sm:$0xff]
      %v1360 = vld [vmem:[%s169 + $0x8b] sm:$0xff]
      %v1361 = vld [vmem:[%s169 + $0x93] sm:$0xff]
      %v1362 = vld [vmem:[%s169 + $0x9b] sm:$0xff]
      %v1363 = vld [vmem:[%s169 + $0xa3] sm:$0xff]
      %v1364 = vld [vmem:[%s169 + $0xab] sm:$0xff]
      %v1365 = vld [vmem:[%s169 + $0xb3] sm:$0xff]
      %v1366 = vld [vmem:[%s169 + $0xbb] sm:$0xff]
      %v1367 = vld [vmem:[%s169 + $0xc3] sm:$0xff]
      %v1368 = vld [vmem:[%s169 + $0xcb] sm:$0xff]
      %v1369 = vld [vmem:[%s169 + $0xd3] sm:$0xff]
      %v1370 = vld [vmem:[%s169 + $0xdb] sm:$0xff]
      %v1371 = vld [vmem:[%s169 + $0xe3] sm:$0xff]
      %v1372 = vld [vmem:[%s169 + $0xeb] sm:$0xff]
      %v1373 = vld [vmem:[%s169 + $0xf3] sm:$0xff]
      %v1374 = vld [vmem:[%s169 + $0xfb] sm:$0xff]
      %v1375 = vld [vmem:[%s169 + $0x103] sm:$0xff]
      %v1376 = vld [vmem:[%s169 + $0x10b] sm:$0xff]
      %v1377 = vld [vmem:[%s169 + $0x113] sm:$0xff]
      %v1378 = vld [vmem:[%s169 + $0x11b] sm:$0xff]
      %v1379 = vld [vmem:[%s169 + $0x123] sm:$0xff]
      %v1380 = vld [vmem:[%s169 + $0x12b] sm:$0xff]
      %s1381 = scalar_lea.vmem %s1, 16
      %v1382 = vld [vmem:[%s1381] sm:$0xf]
      %v1384 = vsel %vm251, %v1345, 0
      %v1387 = vsel %vm251, %v1346, 0
      %v1390 = vsel %vm251, %v1347, 0
      %v1393 = vsel %vm251, %v1348, 0
      %v1396 = vsel %vm251, %v1349, 0
      %v1399 = vsel %vm251, %v1350, 0
      %v1402 = vsel %vm251, %v1351, 0
      %v1405 = vsel %vm251, %v1352, 0
      %v1408 = vsel %vm251, %v1353, 0
      %v1411 = vsel %vm251, %v1354, 0
      %v1414 = vsel %vm251, %v1355, 0
      %v1417 = vsel %vm251, %v1356, 0
      %v1420 = vsel %vm251, %v1357, 0
      %v1423 = vsel %vm251, %v1358, 0
      %v1426 = vsel %vm251, %v1359, 0
      %v1429 = vsel %vm251, %v1360, 0
      %v1432 = vsel %vm251, %v1361, 0
      %v1435 = vsel %vm251, %v1362, 0
      %v1438 = vsel %vm251, %v1363, 0
      %v1441 = vsel %vm251, %v1364, 0
      %v1444 = vsel %vm251, %v1365, 0
      %v1447 = vsel %vm251, %v1366, 0
      %v1450 = vsel %vm251, %v1367, 0
      %v1453 = vsel %vm251, %v1368, 0
      %v1456 = vsel %vm251, %v1369, 0
      %v1459 = vsel %vm251, %v1370, 0
      %v1462 = vsel %vm251, %v1371, 0
      %v1465 = vsel %vm251, %v1372, 0
      %v1468 = vsel %vm251, %v1373, 0
      %v1471 = vsel %vm251, %v1374, 0
      %v1474 = vsel %vm251, %v1375, 0
      %v1477 = vsel %vm251, %v1376, 0
      %v1480 = vsel %vm251, %v1377, 0
      %v1483 = vsel %vm251, %v1378, 0
      %v1486 = vsel %vm251, %v1379, 0
      %v1489 = vsel %vm251, %v1380, 0
      %v1492 = vsel %vm360, %v1382, 0
      %1494 = vmatpush.msra.mxu0 0.0
      %1495 = vmatpush.msra.mxu0 0.0
      %1496 = vmatpush.msra.mxu0 0.0
      %1497 = vmatpush.msra.mxu0 0.0
      %1498 = vmatpush.msra.mxu0 0.0
      %1499 = vmatpush.msra.mxu0 0.0
      %1500 = vmatpush.msra.mxu0 0.0
      %1501 = vmatpush.msra.mxu0 0.0
      %1502 = vmatpush.msra.mxu0 0.0
      %1503 = vmatpush.msra.mxu0 0.0
      %1504 = vmatpush.msra.mxu0 0.0
      %1505 = vmatpush.msra.mxu0 0.0
      %1506 = vmatpush.msra.mxu0 0.0
      %1507 = vmatpush.msra.mxu0 0.0
      %1508 = vmatpush.msra.mxu0 0.0
      %1509 = vmatpush.msra.mxu0 %v1492
      %1510 = vmatmul.f32.gmra.mxu0 %v1384
      %v1511 = vpop.f32.mrf.mxu0
      %v1512 = vadd.f32 0.0, %v1511
      %1513 = vmatmul.f32.gmra.mxu0 %v1387
      %v1514 = vpop.f32.mrf.mxu0
      %v1515 = vadd.f32 0.0, %v1514
      %1516 = vmatmul.f32.gmra.mxu0 %v1390
      %v1517 = vpop.f32.mrf.mxu0
      %v1518 = vadd.f32 0.0, %v1517
      %1519 = vmatmul.f32.gmra.mxu0 %v1393
      %v1520 = vpop.f32.mrf.mxu0
      %v1521 = vadd.f32 0.0, %v1520
      %1522 = vmatmul.f32.gmra.mxu0 %v1396
      %v1523 = vpop.f32.mrf.mxu0
      %v1524 = vadd.f32 0.0, %v1523
      %1525 = vmatmul.f32.gmra.mxu0 %v1399
      %v1526 = vpop.f32.mrf.mxu0
      %v1527 = vadd.f32 0.0, %v1526
      %1528 = vmatmul.f32.gmra.mxu0 %v1402
      %v1529 = vpop.f32.mrf.mxu0
      %v1530 = vadd.f32 0.0, %v1529
      %1531 = vmatmul.f32.gmra.mxu0 %v1405
      %v1532 = vpop.f32.mrf.mxu0
      %v1533 = vadd.f32 0.0, %v1532
      %1534 = vmatmul.f32.gmra.mxu0 %v1408
      %v1535 = vpop.f32.mrf.mxu0
      %v1536 = vadd.f32 0.0, %v1535
      %1537 = vmatmul.f32.gmra.mxu0 %v1411
      %v1538 = vpop.f32.mrf.mxu0
      %v1539 = vadd.f32 0.0, %v1538
      %1540 = vmatmul.f32.gmra.mxu0 %v1414
      %v1541 = vpop.f32.mrf.mxu0
      %v1542 = vadd.f32 0.0, %v1541
      %1543 = vmatmul.f32.gmra.mxu0 %v1417
      %v1544 = vpop.f32.mrf.mxu0
      %v1545 = vadd.f32 0.0, %v1544
      %1546 = vmatmul.f32.gmra.mxu0 %v1420
      %v1547 = vpop.f32.mrf.mxu0
      %v1548 = vadd.f32 0.0, %v1547
      %1549 = vmatmul.f32.gmra.mxu0 %v1423
      %v1550 = vpop.f32.mrf.mxu0
      %v1551 = vadd.f32 0.0, %v1550
      %1552 = vmatmul.f32.gmra.mxu0 %v1426
      %v1553 = vpop.f32.mrf.mxu0
      %v1554 = vadd.f32 0.0, %v1553
      %1555 = vmatmul.f32.gmra.mxu0 %v1429
      %v1556 = vpop.f32.mrf.mxu0
      %v1557 = vadd.f32 0.0, %v1556
      %1558 = vmatmul.f32.gmra.mxu0 %v1432
      %v1559 = vpop.f32.mrf.mxu0
      %v1560 = vadd.f32 0.0, %v1559
      %1561 = vmatmul.f32.gmra.mxu0 %v1435
      %v1562 = vpop.f32.mrf.mxu0
      %v1563 = vadd.f32 0.0, %v1562
      %1564 = vmatmul.f32.gmra.mxu0 %v1438
      %v1565 = vpop.f32.mrf.mxu0
      %v1566 = vadd.f32 0.0, %v1565
      %1567 = vmatmul.f32.gmra.mxu0 %v1441
      %v1568 = vpop.f32.mrf.mxu0
      %v1569 = vadd.f32 0.0, %v1568
      %1570 = vmatmul.f32.gmra.mxu0 %v1444
      %v1571 = vpop.f32.mrf.mxu0
      %v1572 = vadd.f32 0.0, %v1571
      %1573 = vmatmul.f32.gmra.mxu0 %v1447
      %v1574 = vpop.f32.mrf.mxu0
      %v1575 = vadd.f32 0.0, %v1574
      %1576 = vmatmul.f32.gmra.mxu0 %v1450
      %v1577 = vpop.f32.mrf.mxu0
      %v1578 = vadd.f32 0.0, %v1577
      %1579 = vmatmul.f32.gmra.mxu0 %v1453
      %v1580 = vpop.f32.mrf.mxu0
      %v1581 = vadd.f32 0.0, %v1580
      %1582 = vmatmul.f32.gmra.mxu0 %v1456
      %v1583 = vpop.f32.mrf.mxu0
      %v1584 = vadd.f32 0.0, %v1583
      %1585 = vmatmul.f32.gmra.mxu0 %v1459
      %v1586 = vpop.f32.mrf.mxu0
      %v1587 = vadd.f32 0.0, %v1586
      %1588 = vmatmul.f32.gmra.mxu0 %v1462
      %v1589 = vpop.f32.mrf.mxu0
      %v1590 = vadd.f32 0.0, %v1589
      %1591 = vmatmul.f32.gmra.mxu0 %v1465
      %v1592 = vpop.f32.mrf.mxu0
      %v1593 = vadd.f32 0.0, %v1592
      %1594 = vmatmul.f32.gmra.mxu0 %v1468
      %v1595 = vpop.f32.mrf.mxu0
      %v1596 = vadd.f32 0.0, %v1595
      %1597 = vmatmul.f32.gmra.mxu0 %v1471
      %v1598 = vpop.f32.mrf.mxu0
      %v1599 = vadd.f32 0.0, %v1598
      %1600 = vmatmul.f32.gmra.mxu0 %v1474
      %v1601 = vpop.f32.mrf.mxu0
      %v1602 = vadd.f32 0.0, %v1601
      %1603 = vmatmul.f32.gmra.mxu0 %v1477
      %v1604 = vpop.f32.mrf.mxu0
      %v1605 = vadd.f32 0.0, %v1604
      %1606 = vmatmul.f32.gmra.mxu0 %v1480
      %v1607 = vpop.f32.mrf.mxu0
      %v1608 = vadd.f32 0.0, %v1607
      %1609 = vmatmul.f32.gmra.mxu0 %v1483
      %v1610 = vpop.f32.mrf.mxu0
      %v1611 = vadd.f32 0.0, %v1610
      %1612 = vmatmul.f32.gmra.mxu0 %v1486
      %v1613 = vpop.f32.mrf.mxu0
      %v1614 = vadd.f32 0.0, %v1613
      %1615 = vmatmul.f32.gmra.mxu0 %v1489
      %v1616 = vpop.f32.mrf.mxu0
      %v1617 = vadd.f32 0.0, %v1616
      %1618 = vdwg.mxu0
      %v1619 = vadd.f32 %v1309, %v1512
      %v1620 = vadd.f32 %v1310, %v1515
      %v1621 = vadd.f32 %v1311, %v1518
      %v1622 = vadd.f32 %v1312, %v1521
      %v1623 = vadd.f32 %v1313, %v1524
      %v1624 = vadd.f32 %v1314, %v1527
      %v1625 = vadd.f32 %v1315, %v1530
      %v1626 = vadd.f32 %v1316, %v1533
      %v1627 = vadd.f32 %v1317, %v1536
      %v1628 = vadd.f32 %v1318, %v1539
      %v1629 = vadd.f32 %v1319, %v1542
      %v1630 = vadd.f32 %v1320, %v1545
      %v1631 = vadd.f32 %v1321, %v1548
      %v1632 = vadd.f32 %v1322, %v1551
      %v1633 = vadd.f32 %v1323, %v1554
      %v1634 = vadd.f32 %v1324, %v1557
      %v1635 = vadd.f32 %v1325, %v1560
      %v1636 = vadd.f32 %v1326, %v1563
      %v1637 = vadd.f32 %v1327, %v1566
      %v1638 = vadd.f32 %v1328, %v1569
      %v1639 = vadd.f32 %v1329, %v1572
      %v1640 = vadd.f32 %v1330, %v1575
      %v1641 = vadd.f32 %v1331, %v1578
      %v1642 = vadd.f32 %v1332, %v1581
      %v1643 = vadd.f32 %v1333, %v1584
      %v1644 = vadd.f32 %v1334, %v1587
      %v1645 = vadd.f32 %v1335, %v1590
      %v1646 = vadd.f32 %v1336, %v1593
      %v1647 = vadd.f32 %v1337, %v1596
      %v1648 = vadd.f32 %v1338, %v1599
      %v1649 = vadd.f32 %v1339, %v1602
      %v1650 = vadd.f32 %v1340, %v1605
      %v1651 = vadd.f32 %v1341, %v1608
      %v1652 = vadd.f32 %v1342, %v1611
      %v1653 = vadd.f32 %v1343, %v1614
      %v1654 = vadd.f32 %v1344, %v1617
      %v1655 = vld [vmem:[%s169 + $0x14] sm:$0xff]
      %v1656 = vld [vmem:[%s169 + $0x1c] sm:$0xff]
      %v1657 = vld [vmem:[%s169 + $0x24] sm:$0xff]
      %v1658 = vld [vmem:[%s169 + $0x2c] sm:$0xff]
      %v1659 = vld [vmem:[%s169 + $0x34] sm:$0xff]
      %v1660 = vld [vmem:[%s169 + $0x3c] sm:$0xff]
      %v1661 = vld [vmem:[%s169 + $0x44] sm:$0xff]
      %v1662 = vld [vmem:[%s169 + $0x4c] sm:$0xff]
      %v1663 = vld [vmem:[%s169 + $0x54] sm:$0xff]
      %v1664 = vld [vmem:[%s169 + $0x5c] sm:$0xff]
      %v1665 = vld [vmem:[%s169 + $0x64] sm:$0xff]
      %v1666 = vld [vmem:[%s169 + $0x6c] sm:$0xff]
      %v1667 = vld [vmem:[%s169 + $0x74] sm:$0xff]
      %v1668 = vld [vmem:[%s169 + $0x7c] sm:$0xff]
      %v1669 = vld [vmem:[%s169 + $0x84] sm:$0xff]
      %v1670 = vld [vmem:[%s169 + $0x8c] sm:$0xff]
      %v1671 = vld [vmem:[%s169 + $0x94] sm:$0xff]
      %v1672 = vld [vmem:[%s169 + $0x9c] sm:$0xff]
      %v1673 = vld [vmem:[%s169 + $0xa4] sm:$0xff]
      %v1674 = vld [vmem:[%s169 + $0xac] sm:$0xff]
      %v1675 = vld [vmem:[%s169 + $0xb4] sm:$0xff]
      %v1676 = vld [vmem:[%s169 + $0xbc] sm:$0xff]
      %v1677 = vld [vmem:[%s169 + $0xc4] sm:$0xff]
      %v1678 = vld [vmem:[%s169 + $0xcc] sm:$0xff]
      %v1679 = vld [vmem:[%s169 + $0xd4] sm:$0xff]
      %v1680 = vld [vmem:[%s169 + $0xdc] sm:$0xff]
      %v1681 = vld [vmem:[%s169 + $0xe4] sm:$0xff]
      %v1682 = vld [vmem:[%s169 + $0xec] sm:$0xff]
      %v1683 = vld [vmem:[%s169 + $0xf4] sm:$0xff]
      %v1684 = vld [vmem:[%s169 + $0xfc] sm:$0xff]
      %v1685 = vld [vmem:[%s169 + $0x104] sm:$0xff]
      %v1686 = vld [vmem:[%s169 + $0x10c] sm:$0xff]
      %v1687 = vld [vmem:[%s169 + $0x114] sm:$0xff]
      %v1688 = vld [vmem:[%s169 + $0x11c] sm:$0xff]
      %v1689 = vld [vmem:[%s169 + $0x124] sm:$0xff]
      %v1690 = vld [vmem:[%s169 + $0x12c] sm:$0xff]
      %s1691 = scalar_lea.vmem %s1, 20
      %v1692 = vld [vmem:[%s1691] sm:$0xf]
      %v1694 = vsel %vm251, %v1655, 0
      %v1697 = vsel %vm251, %v1656, 0
      %v1700 = vsel %vm251, %v1657, 0
      %v1703 = vsel %vm251, %v1658, 0
      %v1706 = vsel %vm251, %v1659, 0
      %v1709 = vsel %vm251, %v1660, 0
      %v1712 = vsel %vm251, %v1661, 0
      %v1715 = vsel %vm251, %v1662, 0
      %v1718 = vsel %vm251, %v1663, 0
      %v1721 = vsel %vm251, %v1664, 0
      %v1724 = vsel %vm251, %v1665, 0
      %v1727 = vsel %vm251, %v1666, 0
      %v1730 = vsel %vm251, %v1667, 0
      %v1733 = vsel %vm251, %v1668, 0
      %v1736 = vsel %vm251, %v1669, 0
      %v1739 = vsel %vm251, %v1670, 0
      %v1742 = vsel %vm251, %v1671, 0
      %v1745 = vsel %vm251, %v1672, 0
      %v1748 = vsel %vm251, %v1673, 0
      %v1751 = vsel %vm251, %v1674, 0
      %v1754 = vsel %vm251, %v1675, 0
      %v1757 = vsel %vm251, %v1676, 0
      %v1760 = vsel %vm251, %v1677, 0
      %v1763 = vsel %vm251, %v1678, 0
      %v1766 = vsel %vm251, %v1679, 0
      %v1769 = vsel %vm251, %v1680, 0
      %v1772 = vsel %vm251, %v1681, 0
      %v1775 = vsel %vm251, %v1682, 0
      %v1778 = vsel %vm251, %v1683, 0
      %v1781 = vsel %vm251, %v1684, 0
      %v1784 = vsel %vm251, %v1685, 0
      %v1787 = vsel %vm251, %v1686, 0
      %v1790 = vsel %vm251, %v1687, 0
      %v1793 = vsel %vm251, %v1688, 0
      %v1796 = vsel %vm251, %v1689, 0
      %v1799 = vsel %vm251, %v1690, 0
      %v1802 = vsel %vm360, %v1692, 0
      %1804 = vmatpush.msra.mxu0 0.0
      %1805 = vmatpush.msra.mxu0 0.0
      %1806 = vmatpush.msra.mxu0 0.0
      %1807 = vmatpush.msra.mxu0 0.0
      %1808 = vmatpush.msra.mxu0 0.0
      %1809 = vmatpush.msra.mxu0 0.0
      %1810 = vmatpush.msra.mxu0 0.0
      %1811 = vmatpush.msra.mxu0 0.0
      %1812 = vmatpush.msra.mxu0 0.0
      %1813 = vmatpush.msra.mxu0 0.0
      %1814 = vmatpush.msra.mxu0 0.0
      %1815 = vmatpush.msra.mxu0 0.0
      %1816 = vmatpush.msra.mxu0 0.0
      %1817 = vmatpush.msra.mxu0 0.0
      %1818 = vmatpush.msra.mxu0 0.0
      %1819 = vmatpush.msra.mxu0 %v1802
      %1820 = vmatmul.f32.gmra.mxu0 %v1694
      %v1821 = vpop.f32.mrf.mxu0
      %v1822 = vadd.f32 0.0, %v1821
      %1823 = vmatmul.f32.gmra.mxu0 %v1697
      %v1824 = vpop.f32.mrf.mxu0
      %v1825 = vadd.f32 0.0, %v1824
      %1826 = vmatmul.f32.gmra.mxu0 %v1700
      %v1827 = vpop.f32.mrf.mxu0
      %v1828 = vadd.f32 0.0, %v1827
      %1829 = vmatmul.f32.gmra.mxu0 %v1703
      %v1830 = vpop.f32.mrf.mxu0
      %v1831 = vadd.f32 0.0, %v1830
      %1832 = vmatmul.f32.gmra.mxu0 %v1706
      %v1833 = vpop.f32.mrf.mxu0
      %v1834 = vadd.f32 0.0, %v1833
      %1835 = vmatmul.f32.gmra.mxu0 %v1709
      %v1836 = vpop.f32.mrf.mxu0
      %v1837 = vadd.f32 0.0, %v1836
      %1838 = vmatmul.f32.gmra.mxu0 %v1712
      %v1839 = vpop.f32.mrf.mxu0
      %v1840 = vadd.f32 0.0, %v1839
      %1841 = vmatmul.f32.gmra.mxu0 %v1715
      %v1842 = vpop.f32.mrf.mxu0
      %v1843 = vadd.f32 0.0, %v1842
      %1844 = vmatmul.f32.gmra.mxu0 %v1718
      %v1845 = vpop.f32.mrf.mxu0
      %v1846 = vadd.f32 0.0, %v1845
      %1847 = vmatmul.f32.gmra.mxu0 %v1721
      %v1848 = vpop.f32.mrf.mxu0
      %v1849 = vadd.f32 0.0, %v1848
      %1850 = vmatmul.f32.gmra.mxu0 %v1724
      %v1851 = vpop.f32.mrf.mxu0
      %v1852 = vadd.f32 0.0, %v1851
      %1853 = vmatmul.f32.gmra.mxu0 %v1727
      %v1854 = vpop.f32.mrf.mxu0
      %v1855 = vadd.f32 0.0, %v1854
      %1856 = vmatmul.f32.gmra.mxu0 %v1730
      %v1857 = vpop.f32.mrf.mxu0
      %v1858 = vadd.f32 0.0, %v1857
      %1859 = vmatmul.f32.gmra.mxu0 %v1733
      %v1860 = vpop.f32.mrf.mxu0
      %v1861 = vadd.f32 0.0, %v1860
      %1862 = vmatmul.f32.gmra.mxu0 %v1736
      %v1863 = vpop.f32.mrf.mxu0
      %v1864 = vadd.f32 0.0, %v1863
      %1865 = vmatmul.f32.gmra.mxu0 %v1739
      %v1866 = vpop.f32.mrf.mxu0
      %v1867 = vadd.f32 0.0, %v1866
      %1868 = vmatmul.f32.gmra.mxu0 %v1742
      %v1869 = vpop.f32.mrf.mxu0
      %v1870 = vadd.f32 0.0, %v1869
      %1871 = vmatmul.f32.gmra.mxu0 %v1745
      %v1872 = vpop.f32.mrf.mxu0
      %v1873 = vadd.f32 0.0, %v1872
      %1874 = vmatmul.f32.gmra.mxu0 %v1748
      %v1875 = vpop.f32.mrf.mxu0
      %v1876 = vadd.f32 0.0, %v1875
      %1877 = vmatmul.f32.gmra.mxu0 %v1751
      %v1878 = vpop.f32.mrf.mxu0
      %v1879 = vadd.f32 0.0, %v1878
      %1880 = vmatmul.f32.gmra.mxu0 %v1754
      %v1881 = vpop.f32.mrf.mxu0
      %v1882 = vadd.f32 0.0, %v1881
      %1883 = vmatmul.f32.gmra.mxu0 %v1757
      %v1884 = vpop.f32.mrf.mxu0
      %v1885 = vadd.f32 0.0, %v1884
      %1886 = vmatmul.f32.gmra.mxu0 %v1760
      %v1887 = vpop.f32.mrf.mxu0
      %v1888 = vadd.f32 0.0, %v1887
      %1889 = vmatmul.f32.gmra.mxu0 %v1763
      %v1890 = vpop.f32.mrf.mxu0
      %v1891 = vadd.f32 0.0, %v1890
      %1892 = vmatmul.f32.gmra.mxu0 %v1766
      %v1893 = vpop.f32.mrf.mxu0
      %v1894 = vadd.f32 0.0, %v1893
      %1895 = vmatmul.f32.gmra.mxu0 %v1769
      %v1896 = vpop.f32.mrf.mxu0
      %v1897 = vadd.f32 0.0, %v1896
      %1898 = vmatmul.f32.gmra.mxu0 %v1772
      %v1899 = vpop.f32.mrf.mxu0
      %v1900 = vadd.f32 0.0, %v1899
      %1901 = vmatmul.f32.gmra.mxu0 %v1775
      %v1902 = vpop.f32.mrf.mxu0
      %v1903 = vadd.f32 0.0, %v1902
      %1904 = vmatmul.f32.gmra.mxu0 %v1778
      %v1905 = vpop.f32.mrf.mxu0
      %v1906 = vadd.f32 0.0, %v1905
      %1907 = vmatmul.f32.gmra.mxu0 %v1781
      %v1908 = vpop.f32.mrf.mxu0
      %v1909 = vadd.f32 0.0, %v1908
      %1910 = vmatmul.f32.gmra.mxu0 %v1784
      %v1911 = vpop.f32.mrf.mxu0
      %v1912 = vadd.f32 0.0, %v1911
      %1913 = vmatmul.f32.gmra.mxu0 %v1787
      %v1914 = vpop.f32.mrf.mxu0
      %v1915 = vadd.f32 0.0, %v1914
      %1916 = vmatmul.f32.gmra.mxu0 %v1790
      %v1917 = vpop.f32.mrf.mxu0
      %v1918 = vadd.f32 0.0, %v1917
      %1919 = vmatmul.f32.gmra.mxu0 %v1793
      %v1920 = vpop.f32.mrf.mxu0
      %v1921 = vadd.f32 0.0, %v1920
      %1922 = vmatmul.f32.gmra.mxu0 %v1796
      %v1923 = vpop.f32.mrf.mxu0
      %v1924 = vadd.f32 0.0, %v1923
      %1925 = vmatmul.f32.gmra.mxu0 %v1799
      %v1926 = vpop.f32.mrf.mxu0
      %v1927 = vadd.f32 0.0, %v1926
      %1928 = vdwg.mxu0
      %v1929 = vadd.f32 %v1619, %v1822
      %v1930 = vadd.f32 %v1620, %v1825
      %v1931 = vadd.f32 %v1621, %v1828
      %v1932 = vadd.f32 %v1622, %v1831
      %v1933 = vadd.f32 %v1623, %v1834
      %v1934 = vadd.f32 %v1624, %v1837
      %v1935 = vadd.f32 %v1625, %v1840
      %v1936 = vadd.f32 %v1626, %v1843
      %v1937 = vadd.f32 %v1627, %v1846
      %v1938 = vadd.f32 %v1628, %v1849
      %v1939 = vadd.f32 %v1629, %v1852
      %v1940 = vadd.f32 %v1630, %v1855
      %v1941 = vadd.f32 %v1631, %v1858
      %v1942 = vadd.f32 %v1632, %v1861
      %v1943 = vadd.f32 %v1633, %v1864
      %v1944 = vadd.f32 %v1634, %v1867
      %v1945 = vadd.f32 %v1635, %v1870
      %v1946 = vadd.f32 %v1636, %v1873
      %v1947 = vadd.f32 %v1637, %v1876
      %v1948 = vadd.f32 %v1638, %v1879
      %v1949 = vadd.f32 %v1639, %v1882
      %v1950 = vadd.f32 %v1640, %v1885
      %v1951 = vadd.f32 %v1641, %v1888
      %v1952 = vadd.f32 %v1642, %v1891
      %v1953 = vadd.f32 %v1643, %v1894
      %v1954 = vadd.f32 %v1644, %v1897
      %v1955 = vadd.f32 %v1645, %v1900
      %v1956 = vadd.f32 %v1646, %v1903
      %v1957 = vadd.f32 %v1647, %v1906
      %v1958 = vadd.f32 %v1648, %v1909
      %v1959 = vadd.f32 %v1649, %v1912
      %v1960 = vadd.f32 %v1650, %v1915
      %v1961 = vadd.f32 %v1651, %v1918
      %v1962 = vadd.f32 %v1652, %v1921
      %v1963 = vadd.f32 %v1653, %v1924
      %v1964 = vadd.f32 %v1654, %v1927
      %v1965 = vld [vmem:[%s169 + $0x24] sm:$0xff]
      %v1966 = vld [vmem:[%s169 + $0x2c] sm:$0xff]
      %v1967 = vld [vmem:[%s169 + $0x34] sm:$0xff]
      %v1968 = vld [vmem:[%s169 + $0x3c] sm:$0xff]
      %v1969 = vld [vmem:[%s169 + $0x44] sm:$0xff]
      %v1970 = vld [vmem:[%s169 + $0x4c] sm:$0xff]
      %v1971 = vld [vmem:[%s169 + $0x54] sm:$0xff]
      %v1972 = vld [vmem:[%s169 + $0x5c] sm:$0xff]
      %v1973 = vld [vmem:[%s169 + $0x64] sm:$0xff]
      %v1974 = vld [vmem:[%s169 + $0x6c] sm:$0xff]
      %v1975 = vld [vmem:[%s169 + $0x74] sm:$0xff]
      %v1976 = vld [vmem:[%s169 + $0x7c] sm:$0xff]
      %v1977 = vld [vmem:[%s169 + $0x84] sm:$0xff]
      %v1978 = vld [vmem:[%s169 + $0x8c] sm:$0xff]
      %v1979 = vld [vmem:[%s169 + $0x94] sm:$0xff]
      %v1980 = vld [vmem:[%s169 + $0x9c] sm:$0xff]
      %v1981 = vld [vmem:[%s169 + $0xa4] sm:$0xff]
      %v1982 = vld [vmem:[%s169 + $0xac] sm:$0xff]
      %v1983 = vld [vmem:[%s169 + $0xb4] sm:$0xff]
      %v1984 = vld [vmem:[%s169 + $0xbc] sm:$0xff]
      %v1985 = vld [vmem:[%s169 + $0xc4] sm:$0xff]
      %v1986 = vld [vmem:[%s169 + $0xcc] sm:$0xff]
      %v1987 = vld [vmem:[%s169 + $0xd4] sm:$0xff]
      %v1988 = vld [vmem:[%s169 + $0xdc] sm:$0xff]
      %v1989 = vld [vmem:[%s169 + $0xe4] sm:$0xff]
      %v1990 = vld [vmem:[%s169 + $0xec] sm:$0xff]
      %v1991 = vld [vmem:[%s169 + $0xf4] sm:$0xff]
      %v1992 = vld [vmem:[%s169 + $0xfc] sm:$0xff]
      %v1993 = vld [vmem:[%s169 + $0x104] sm:$0xff]
      %v1994 = vld [vmem:[%s169 + $0x10c] sm:$0xff]
      %v1995 = vld [vmem:[%s169 + $0x114] sm:$0xff]
      %v1996 = vld [vmem:[%s169 + $0x11c] sm:$0xff]
      %v1997 = vld [vmem:[%s169 + $0x124] sm:$0xff]
      %v1998 = vld [vmem:[%s169 + $0x12c] sm:$0xff]
      %v1999 = vld [vmem:[%s169 + $0x134] sm:$0xff]
      %v2000 = vld [vmem:[%s169 + $0x13c] sm:$0xff]
      %s2001 = scalar_lea.vmem %s1, 24
      %v2002 = vld [vmem:[%s2001] sm:$0xf]
      %v2004 = vsel %vm251, %v1965, 0
      %v2007 = vsel %vm251, %v1966, 0
      %v2010 = vsel %vm251, %v1967, 0
      %v2013 = vsel %vm251, %v1968, 0
      %v2016 = vsel %vm251, %v1969, 0
      %v2019 = vsel %vm251, %v1970, 0
      %v2022 = vsel %vm251, %v1971, 0
      %v2025 = vsel %vm251, %v1972, 0
      %v2028 = vsel %vm251, %v1973, 0
      %v2031 = vsel %vm251, %v1974, 0
      %v2034 = vsel %vm251, %v1975, 0
      %v2037 = vsel %vm251, %v1976, 0
      %v2040 = vsel %vm251, %v1977, 0
      %v2043 = vsel %vm251, %v1978, 0
      %v2046 = vsel %vm251, %v1979, 0
      %v2049 = vsel %vm251, %v1980, 0
      %v2052 = vsel %vm251, %v1981, 0
      %v2055 = vsel %vm251, %v1982, 0
      %v2058 = vsel %vm251, %v1983, 0
      %v2061 = vsel %vm251, %v1984, 0
      %v2064 = vsel %vm251, %v1985, 0
      %v2067 = vsel %vm251, %v1986, 0
      %v2070 = vsel %vm251, %v1987, 0
      %v2073 = vsel %vm251, %v1988, 0
      %v2076 = vsel %vm251, %v1989, 0
      %v2079 = vsel %vm251, %v1990, 0
      %v2082 = vsel %vm251, %v1991, 0
      %v2085 = vsel %vm251, %v1992, 0
      %v2088 = vsel %vm251, %v1993, 0
      %v2091 = vsel %vm251, %v1994, 0
      %v2094 = vsel %vm251, %v1995, 0
      %v2097 = vsel %vm251, %v1996, 0
      %v2100 = vsel %vm251, %v1997, 0
      %v2103 = vsel %vm251, %v1998, 0
      %v2106 = vsel %vm251, %v1999, 0
      %v2109 = vsel %vm251, %v2000, 0
      %v2112 = vsel %vm360, %v2002, 0
      %2114 = vmatpush.msra.mxu0 0.0
      %2115 = vmatpush.msra.mxu0 0.0
      %2116 = vmatpush.msra.mxu0 0.0
      %2117 = vmatpush.msra.mxu0 0.0
      %2118 = vmatpush.msra.mxu0 0.0
      %2119 = vmatpush.msra.mxu0 0.0
      %2120 = vmatpush.msra.mxu0 0.0
      %2121 = vmatpush.msra.mxu0 0.0
      %2122 = vmatpush.msra.mxu0 0.0
      %2123 = vmatpush.msra.mxu0 0.0
      %2124 = vmatpush.msra.mxu0 0.0
      %2125 = vmatpush.msra.mxu0 0.0
      %2126 = vmatpush.msra.mxu0 0.0
      %2127 = vmatpush.msra.mxu0 0.0
      %2128 = vmatpush.msra.mxu0 0.0
      %2129 = vmatpush.msra.mxu0 %v2112
      %2130 = vmatmul.f32.gmra.mxu0 %v2004
      %v2131 = vpop.f32.mrf.mxu0
      %v2132 = vadd.f32 0.0, %v2131
      %2133 = vmatmul.f32.gmra.mxu0 %v2007
      %v2134 = vpop.f32.mrf.mxu0
      %v2135 = vadd.f32 0.0, %v2134
      %2136 = vmatmul.f32.gmra.mxu0 %v2010
      %v2137 = vpop.f32.mrf.mxu0
      %v2138 = vadd.f32 0.0, %v2137
      %2139 = vmatmul.f32.gmra.mxu0 %v2013
      %v2140 = vpop.f32.mrf.mxu0
      %v2141 = vadd.f32 0.0, %v2140
      %2142 = vmatmul.f32.gmra.mxu0 %v2016
      %v2143 = vpop.f32.mrf.mxu0
      %v2144 = vadd.f32 0.0, %v2143
      %2145 = vmatmul.f32.gmra.mxu0 %v2019
      %v2146 = vpop.f32.mrf.mxu0
      %v2147 = vadd.f32 0.0, %v2146
      %2148 = vmatmul.f32.gmra.mxu0 %v2022
      %v2149 = vpop.f32.mrf.mxu0
      %v2150 = vadd.f32 0.0, %v2149
      %2151 = vmatmul.f32.gmra.mxu0 %v2025
      %v2152 = vpop.f32.mrf.mxu0
      %v2153 = vadd.f32 0.0, %v2152
      %2154 = vmatmul.f32.gmra.mxu0 %v2028
      %v2155 = vpop.f32.mrf.mxu0
      %v2156 = vadd.f32 0.0, %v2155
      %2157 = vmatmul.f32.gmra.mxu0 %v2031
      %v2158 = vpop.f32.mrf.mxu0
      %v2159 = vadd.f32 0.0, %v2158
      %2160 = vmatmul.f32.gmra.mxu0 %v2034
      %v2161 = vpop.f32.mrf.mxu0
      %v2162 = vadd.f32 0.0, %v2161
      %2163 = vmatmul.f32.gmra.mxu0 %v2037
      %v2164 = vpop.f32.mrf.mxu0
      %v2165 = vadd.f32 0.0, %v2164
      %2166 = vmatmul.f32.gmra.mxu0 %v2040
      %v2167 = vpop.f32.mrf.mxu0
      %v2168 = vadd.f32 0.0, %v2167
      %2169 = vmatmul.f32.gmra.mxu0 %v2043
      %v2170 = vpop.f32.mrf.mxu0
      %v2171 = vadd.f32 0.0, %v2170
      %2172 = vmatmul.f32.gmra.mxu0 %v2046
      %v2173 = vpop.f32.mrf.mxu0
      %v2174 = vadd.f32 0.0, %v2173
      %2175 = vmatmul.f32.gmra.mxu0 %v2049
      %v2176 = vpop.f32.mrf.mxu0
      %v2177 = vadd.f32 0.0, %v2176
      %2178 = vmatmul.f32.gmra.mxu0 %v2052
      %v2179 = vpop.f32.mrf.mxu0
      %v2180 = vadd.f32 0.0, %v2179
      %2181 = vmatmul.f32.gmra.mxu0 %v2055
      %v2182 = vpop.f32.mrf.mxu0
      %v2183 = vadd.f32 0.0, %v2182
      %2184 = vmatmul.f32.gmra.mxu0 %v2058
      %v2185 = vpop.f32.mrf.mxu0
      %v2186 = vadd.f32 0.0, %v2185
      %2187 = vmatmul.f32.gmra.mxu0 %v2061
      %v2188 = vpop.f32.mrf.mxu0
      %v2189 = vadd.f32 0.0, %v2188
      %2190 = vmatmul.f32.gmra.mxu0 %v2064
      %v2191 = vpop.f32.mrf.mxu0
      %v2192 = vadd.f32 0.0, %v2191
      %2193 = vmatmul.f32.gmra.mxu0 %v2067
      %v2194 = vpop.f32.mrf.mxu0
      %v2195 = vadd.f32 0.0, %v2194
      %2196 = vmatmul.f32.gmra.mxu0 %v2070
      %v2197 = vpop.f32.mrf.mxu0
      %v2198 = vadd.f32 0.0, %v2197
      %2199 = vmatmul.f32.gmra.mxu0 %v2073
      %v2200 = vpop.f32.mrf.mxu0
      %v2201 = vadd.f32 0.0, %v2200
      %2202 = vmatmul.f32.gmra.mxu0 %v2076
      %v2203 = vpop.f32.mrf.mxu0
      %v2204 = vadd.f32 0.0, %v2203
      %2205 = vmatmul.f32.gmra.mxu0 %v2079
      %v2206 = vpop.f32.mrf.mxu0
      %v2207 = vadd.f32 0.0, %v2206
      %2208 = vmatmul.f32.gmra.mxu0 %v2082
      %v2209 = vpop.f32.mrf.mxu0
      %v2210 = vadd.f32 0.0, %v2209
      %2211 = vmatmul.f32.gmra.mxu0 %v2085
      %v2212 = vpop.f32.mrf.mxu0
      %v2213 = vadd.f32 0.0, %v2212
      %2214 = vmatmul.f32.gmra.mxu0 %v2088
      %v2215 = vpop.f32.mrf.mxu0
      %v2216 = vadd.f32 0.0, %v2215
      %2217 = vmatmul.f32.gmra.mxu0 %v2091
      %v2218 = vpop.f32.mrf.mxu0
      %v2219 = vadd.f32 0.0, %v2218
      %2220 = vmatmul.f32.gmra.mxu0 %v2094
      %v2221 = vpop.f32.mrf.mxu0
      %v2222 = vadd.f32 0.0, %v2221
      %2223 = vmatmul.f32.gmra.mxu0 %v2097
      %v2224 = vpop.f32.mrf.mxu0
      %v2225 = vadd.f32 0.0, %v2224
      %2226 = vmatmul.f32.gmra.mxu0 %v2100
      %v2227 = vpop.f32.mrf.mxu0
      %v2228 = vadd.f32 0.0, %v2227
      %2229 = vmatmul.f32.gmra.mxu0 %v2103
      %v2230 = vpop.f32.mrf.mxu0
      %v2231 = vadd.f32 0.0, %v2230
      %2232 = vmatmul.f32.gmra.mxu0 %v2106
      %v2233 = vpop.f32.mrf.mxu0
      %v2234 = vadd.f32 0.0, %v2233
      %2235 = vmatmul.f32.gmra.mxu0 %v2109
      %v2236 = vpop.f32.mrf.mxu0
      %v2237 = vadd.f32 0.0, %v2236
      %2238 = vdwg.mxu0
      %v2239 = vadd.f32 %v1929, %v2132
      %v2240 = vadd.f32 %v1930, %v2135
      %v2241 = vadd.f32 %v1931, %v2138
      %v2242 = vadd.f32 %v1932, %v2141
      %v2243 = vadd.f32 %v1933, %v2144
      %v2244 = vadd.f32 %v1934, %v2147
      %v2245 = vadd.f32 %v1935, %v2150
      %v2246 = vadd.f32 %v1936, %v2153
      %v2247 = vadd.f32 %v1937, %v2156
      %v2248 = vadd.f32 %v1938, %v2159
      %v2249 = vadd.f32 %v1939, %v2162
      %v2250 = vadd.f32 %v1940, %v2165
      %v2251 = vadd.f32 %v1941, %v2168
      %v2252 = vadd.f32 %v1942, %v2171
      %v2253 = vadd.f32 %v1943, %v2174
      %v2254 = vadd.f32 %v1944, %v2177
      %v2255 = vadd.f32 %v1945, %v2180
      %v2256 = vadd.f32 %v1946, %v2183
      %v2257 = vadd.f32 %v1947, %v2186
      %v2258 = vadd.f32 %v1948, %v2189
      %v2259 = vadd.f32 %v1949, %v2192
      %v2260 = vadd.f32 %v1950, %v2195
      %v2261 = vadd.f32 %v1951, %v2198
      %v2262 = vadd.f32 %v1952, %v2201
      %v2263 = vadd.f32 %v1953, %v2204
      %v2264 = vadd.f32 %v1954, %v2207
      %v2265 = vadd.f32 %v1955, %v2210
      %v2266 = vadd.f32 %v1956, %v2213
      %v2267 = vadd.f32 %v1957, %v2216
      %v2268 = vadd.f32 %v1958, %v2219
      %v2269 = vadd.f32 %v1959, %v2222
      %v2270 = vadd.f32 %v1960, %v2225
      %v2271 = vadd.f32 %v1961, %v2228
      %v2272 = vadd.f32 %v1962, %v2231
      %v2273 = vadd.f32 %v1963, %v2234
      %v2274 = vadd.f32 %v1964, %v2237
      %v2275 = vld [vmem:[%s169 + $0x25] sm:$0xff]
      %v2276 = vld [vmem:[%s169 + $0x2d] sm:$0xff]
      %v2277 = vld [vmem:[%s169 + $0x35] sm:$0xff]
      %v2278 = vld [vmem:[%s169 + $0x3d] sm:$0xff]
      %v2279 = vld [vmem:[%s169 + $0x45] sm:$0xff]
      %v2280 = vld [vmem:[%s169 + $0x4d] sm:$0xff]
      %v2281 = vld [vmem:[%s169 + $0x55] sm:$0xff]
      %v2282 = vld [vmem:[%s169 + $0x5d] sm:$0xff]
      %v2283 = vld [vmem:[%s169 + $0x65] sm:$0xff]
      %v2284 = vld [vmem:[%s169 + $0x6d] sm:$0xff]
      %v2285 = vld [vmem:[%s169 + $0x75] sm:$0xff]
      %v2286 = vld [vmem:[%s169 + $0x7d] sm:$0xff]
      %v2287 = vld [vmem:[%s169 + $0x85] sm:$0xff]
      %v2288 = vld [vmem:[%s169 + $0x8d] sm:$0xff]
      %v2289 = vld [vmem:[%s169 + $0x95] sm:$0xff]
      %v2290 = vld [vmem:[%s169 + $0x9d] sm:$0xff]
      %v2291 = vld [vmem:[%s169 + $0xa5] sm:$0xff]
      %v2292 = vld [vmem:[%s169 + $0xad] sm:$0xff]
      %v2293 = vld [vmem:[%s169 + $0xb5] sm:$0xff]
      %v2294 = vld [vmem:[%s169 + $0xbd] sm:$0xff]
      %v2295 = vld [vmem:[%s169 + $0xc5] sm:$0xff]
      %v2296 = vld [vmem:[%s169 + $0xcd] sm:$0xff]
      %v2297 = vld [vmem:[%s169 + $0xd5] sm:$0xff]
      %v2298 = vld [vmem:[%s169 + $0xdd] sm:$0xff]
      %v2299 = vld [vmem:[%s169 + $0xe5] sm:$0xff]
      %v2300 = vld [vmem:[%s169 + $0xed] sm:$0xff]
      %v2301 = vld [vmem:[%s169 + $0xf5] sm:$0xff]
      %v2302 = vld [vmem:[%s169 + $0xfd] sm:$0xff]
      %v2303 = vld [vmem:[%s169 + $0x105] sm:$0xff]
      %v2304 = vld [vmem:[%s169 + $0x10d] sm:$0xff]
      %v2305 = vld [vmem:[%s169 + $0x115] sm:$0xff]
      %v2306 = vld [vmem:[%s169 + $0x11d] sm:$0xff]
      %v2307 = vld [vmem:[%s169 + $0x125] sm:$0xff]
      %v2308 = vld [vmem:[%s169 + $0x12d] sm:$0xff]
      %v2309 = vld [vmem:[%s169 + $0x135] sm:$0xff]
      %v2310 = vld [vmem:[%s169 + $0x13d] sm:$0xff]
      %s2311 = scalar_lea.vmem %s1, 28
      %v2312 = vld [vmem:[%s2311] sm:$0xf]
      %v2314 = vsel %vm251, %v2275, 0
      %v2317 = vsel %vm251, %v2276, 0
      %v2320 = vsel %vm251, %v2277, 0
      %v2323 = vsel %vm251, %v2278, 0
      %v2326 = vsel %vm251, %v2279, 0
      %v2329 = vsel %vm251, %v2280, 0
      %v2332 = vsel %vm251, %v2281, 0
      %v2335 = vsel %vm251, %v2282, 0
      %v2338 = vsel %vm251, %v2283, 0
      %v2341 = vsel %vm251, %v2284, 0
      %v2344 = vsel %vm251, %v2285, 0
      %v2347 = vsel %vm251, %v2286, 0
      %v2350 = vsel %vm251, %v2287, 0
      %v2353 = vsel %vm251, %v2288, 0
      %v2356 = vsel %vm251, %v2289, 0
      %v2359 = vsel %vm251, %v2290, 0
      %v2362 = vsel %vm251, %v2291, 0
      %v2365 = vsel %vm251, %v2292, 0
      %v2368 = vsel %vm251, %v2293, 0
      %v2371 = vsel %vm251, %v2294, 0
      %v2374 = vsel %vm251, %v2295, 0
      %v2377 = vsel %vm251, %v2296, 0
      %v2380 = vsel %vm251, %v2297, 0
      %v2383 = vsel %vm251, %v2298, 0
      %v2386 = vsel %vm251, %v2299, 0
      %v2389 = vsel %vm251, %v2300, 0
      %v2392 = vsel %vm251, %v2301, 0
      %v2395 = vsel %vm251, %v2302, 0
      %v2398 = vsel %vm251, %v2303, 0
      %v2401 = vsel %vm251, %v2304, 0
      %v2404 = vsel %vm251, %v2305, 0
      %v2407 = vsel %vm251, %v2306, 0
      %v2410 = vsel %vm251, %v2307, 0
      %v2413 = vsel %vm251, %v2308, 0
      %v2416 = vsel %vm251, %v2309, 0
      %v2419 = vsel %vm251, %v2310, 0
      %v2422 = vsel %vm360, %v2312, 0
      %2424 = vmatpush.msra.mxu0 0.0
      %2425 = vmatpush.msra.mxu0 0.0
      %2426 = vmatpush.msra.mxu0 0.0
      %2427 = vmatpush.msra.mxu0 0.0
      %2428 = vmatpush.msra.mxu0 0.0
      %2429 = vmatpush.msra.mxu0 0.0
      %2430 = vmatpush.msra.mxu0 0.0
      %2431 = vmatpush.msra.mxu0 0.0
      %2432 = vmatpush.msra.mxu0 0.0
      %2433 = vmatpush.msra.mxu0 0.0
      %2434 = vmatpush.msra.mxu0 0.0
      %2435 = vmatpush.msra.mxu0 0.0
      %2436 = vmatpush.msra.mxu0 0.0
      %2437 = vmatpush.msra.mxu0 0.0
      %2438 = vmatpush.msra.mxu0 0.0
      %2439 = vmatpush.msra.mxu0 %v2422
      %2440 = vmatmul.f32.gmra.mxu0 %v2314
      %v2441 = vpop.f32.mrf.mxu0
      %v2442 = vadd.f32 0.0, %v2441
      %2443 = vmatmul.f32.gmra.mxu0 %v2317
      %v2444 = vpop.f32.mrf.mxu0
      %v2445 = vadd.f32 0.0, %v2444
      %2446 = vmatmul.f32.gmra.mxu0 %v2320
      %v2447 = vpop.f32.mrf.mxu0
      %v2448 = vadd.f32 0.0, %v2447
      %2449 = vmatmul.f32.gmra.mxu0 %v2323
      %v2450 = vpop.f32.mrf.mxu0
      %v2451 = vadd.f32 0.0, %v2450
      %2452 = vmatmul.f32.gmra.mxu0 %v2326
      %v2453 = vpop.f32.mrf.mxu0
      %v2454 = vadd.f32 0.0, %v2453
      %2455 = vmatmul.f32.gmra.mxu0 %v2329
      %v2456 = vpop.f32.mrf.mxu0
      %v2457 = vadd.f32 0.0, %v2456
      %2458 = vmatmul.f32.gmra.mxu0 %v2332
      %v2459 = vpop.f32.mrf.mxu0
      %v2460 = vadd.f32 0.0, %v2459
      %2461 = vmatmul.f32.gmra.mxu0 %v2335
      %v2462 = vpop.f32.mrf.mxu0
      %v2463 = vadd.f32 0.0, %v2462
      %2464 = vmatmul.f32.gmra.mxu0 %v2338
      %v2465 = vpop.f32.mrf.mxu0
      %v2466 = vadd.f32 0.0, %v2465
      %2467 = vmatmul.f32.gmra.mxu0 %v2341
      %v2468 = vpop.f32.mrf.mxu0
      %v2469 = vadd.f32 0.0, %v2468
      %2470 = vmatmul.f32.gmra.mxu0 %v2344
      %v2471 = vpop.f32.mrf.mxu0
      %v2472 = vadd.f32 0.0, %v2471
      %2473 = vmatmul.f32.gmra.mxu0 %v2347
      %v2474 = vpop.f32.mrf.mxu0
      %v2475 = vadd.f32 0.0, %v2474
      %2476 = vmatmul.f32.gmra.mxu0 %v2350
      %v2477 = vpop.f32.mrf.mxu0
      %v2478 = vadd.f32 0.0, %v2477
      %2479 = vmatmul.f32.gmra.mxu0 %v2353
      %v2480 = vpop.f32.mrf.mxu0
      %v2481 = vadd.f32 0.0, %v2480
      %2482 = vmatmul.f32.gmra.mxu0 %v2356
      %v2483 = vpop.f32.mrf.mxu0
      %v2484 = vadd.f32 0.0, %v2483
      %2485 = vmatmul.f32.gmra.mxu0 %v2359
      %v2486 = vpop.f32.mrf.mxu0
      %v2487 = vadd.f32 0.0, %v2486
      %2488 = vmatmul.f32.gmra.mxu0 %v2362
      %v2489 = vpop.f32.mrf.mxu0
      %v2490 = vadd.f32 0.0, %v2489
      %2491 = vmatmul.f32.gmra.mxu0 %v2365
      %v2492 = vpop.f32.mrf.mxu0
      %v2493 = vadd.f32 0.0, %v2492
      %2494 = vmatmul.f32.gmra.mxu0 %v2368
      %v2495 = vpop.f32.mrf.mxu0
      %v2496 = vadd.f32 0.0, %v2495
      %2497 = vmatmul.f32.gmra.mxu0 %v2371
      %v2498 = vpop.f32.mrf.mxu0
      %v2499 = vadd.f32 0.0, %v2498
      %2500 = vmatmul.f32.gmra.mxu0 %v2374
      %v2501 = vpop.f32.mrf.mxu0
      %v2502 = vadd.f32 0.0, %v2501
      %2503 = vmatmul.f32.gmra.mxu0 %v2377
      %v2504 = vpop.f32.mrf.mxu0
      %v2505 = vadd.f32 0.0, %v2504
      %2506 = vmatmul.f32.gmra.mxu0 %v2380
      %v2507 = vpop.f32.mrf.mxu0
      %v2508 = vadd.f32 0.0, %v2507
      %2509 = vmatmul.f32.gmra.mxu0 %v2383
      %v2510 = vpop.f32.mrf.mxu0
      %v2511 = vadd.f32 0.0, %v2510
      %2512 = vmatmul.f32.gmra.mxu0 %v2386
      %v2513 = vpop.f32.mrf.mxu0
      %v2514 = vadd.f32 0.0, %v2513
      %2515 = vmatmul.f32.gmra.mxu0 %v2389
      %v2516 = vpop.f32.mrf.mxu0
      %v2517 = vadd.f32 0.0, %v2516
      %2518 = vmatmul.f32.gmra.mxu0 %v2392
      %v2519 = vpop.f32.mrf.mxu0
      %v2520 = vadd.f32 0.0, %v2519
      %2521 = vmatmul.f32.gmra.mxu0 %v2395
      %v2522 = vpop.f32.mrf.mxu0
      %v2523 = vadd.f32 0.0, %v2522
      %2524 = vmatmul.f32.gmra.mxu0 %v2398
      %v2525 = vpop.f32.mrf.mxu0
      %v2526 = vadd.f32 0.0, %v2525
      %2527 = vmatmul.f32.gmra.mxu0 %v2401
      %v2528 = vpop.f32.mrf.mxu0
      %v2529 = vadd.f32 0.0, %v2528
      %2530 = vmatmul.f32.gmra.mxu0 %v2404
      %v2531 = vpop.f32.mrf.mxu0
      %v2532 = vadd.f32 0.0, %v2531
      %2533 = vmatmul.f32.gmra.mxu0 %v2407
      %v2534 = vpop.f32.mrf.mxu0
      %v2535 = vadd.f32 0.0, %v2534
      %2536 = vmatmul.f32.gmra.mxu0 %v2410
      %v2537 = vpop.f32.mrf.mxu0
      %v2538 = vadd.f32 0.0, %v2537
      %2539 = vmatmul.f32.gmra.mxu0 %v2413
      %v2540 = vpop.f32.mrf.mxu0
      %v2541 = vadd.f32 0.0, %v2540
      %2542 = vmatmul.f32.gmra.mxu0 %v2416
      %v2543 = vpop.f32.mrf.mxu0
      %v2544 = vadd.f32 0.0, %v2543
      %2545 = vmatmul.f32.gmra.mxu0 %v2419
      %v2546 = vpop.f32.mrf.mxu0
      %v2547 = vadd.f32 0.0, %v2546
      %2548 = vdwg.mxu0
      %v2549 = vadd.f32 %v2239, %v2442
      %v2550 = vadd.f32 %v2240, %v2445
      %v2551 = vadd.f32 %v2241, %v2448
      %v2552 = vadd.f32 %v2242, %v2451
      %v2553 = vadd.f32 %v2243, %v2454
      %v2554 = vadd.f32 %v2244, %v2457
      %v2555 = vadd.f32 %v2245, %v2460
      %v2556 = vadd.f32 %v2246, %v2463
      %v2557 = vadd.f32 %v2247, %v2466
      %v2558 = vadd.f32 %v2248, %v2469
      %v2559 = vadd.f32 %v2249, %v2472
      %v2560 = vadd.f32 %v2250, %v2475
      %v2561 = vadd.f32 %v2251, %v2478
      %v2562 = vadd.f32 %v2252, %v2481
      %v2563 = vadd.f32 %v2253, %v2484
      %v2564 = vadd.f32 %v2254, %v2487
      %v2565 = vadd.f32 %v2255, %v2490
      %v2566 = vadd.f32 %v2256, %v2493
      %v2567 = vadd.f32 %v2257, %v2496
      %v2568 = vadd.f32 %v2258, %v2499
      %v2569 = vadd.f32 %v2259, %v2502
      %v2570 = vadd.f32 %v2260, %v2505
      %v2571 = vadd.f32 %v2261, %v2508
      %v2572 = vadd.f32 %v2262, %v2511
      %v2573 = vadd.f32 %v2263, %v2514
      %v2574 = vadd.f32 %v2264, %v2517
      %v2575 = vadd.f32 %v2265, %v2520
      %v2576 = vadd.f32 %v2266, %v2523
      %v2577 = vadd.f32 %v2267, %v2526
      %v2578 = vadd.f32 %v2268, %v2529
      %v2579 = vadd.f32 %v2269, %v2532
      %v2580 = vadd.f32 %v2270, %v2535
      %v2581 = vadd.f32 %v2271, %v2538
      %v2582 = vadd.f32 %v2272, %v2541
      %v2583 = vadd.f32 %v2273, %v2544
      %v2584 = vadd.f32 %v2274, %v2547
      %v2585 = vld [vmem:[%s169 + $0x26] sm:$0xff]
      %v2586 = vld [vmem:[%s169 + $0x2e] sm:$0xff]
      %v2587 = vld [vmem:[%s169 + $0x36] sm:$0xff]
      %v2588 = vld [vmem:[%s169 + $0x3e] sm:$0xff]
      %v2589 = vld [vmem:[%s169 + $0x46] sm:$0xff]
      %v2590 = vld [vmem:[%s169 + $0x4e] sm:$0xff]
      %v2591 = vld [vmem:[%s169 + $0x56] sm:$0xff]
      %v2592 = vld [vmem:[%s169 + $0x5e] sm:$0xff]
      %v2593 = vld [vmem:[%s169 + $0x66] sm:$0xff]
      %v2594 = vld [vmem:[%s169 + $0x6e] sm:$0xff]
      %v2595 = vld [vmem:[%s169 + $0x76] sm:$0xff]
      %v2596 = vld [vmem:[%s169 + $0x7e] sm:$0xff]
      %v2597 = vld [vmem:[%s169 + $0x86] sm:$0xff]
      %v2598 = vld [vmem:[%s169 + $0x8e] sm:$0xff]
      %v2599 = vld [vmem:[%s169 + $0x96] sm:$0xff]
      %v2600 = vld [vmem:[%s169 + $0x9e] sm:$0xff]
      %v2601 = vld [vmem:[%s169 + $0xa6] sm:$0xff]
      %v2602 = vld [vmem:[%s169 + $0xae] sm:$0xff]
      %v2603 = vld [vmem:[%s169 + $0xb6] sm:$0xff]
      %v2604 = vld [vmem:[%s169 + $0xbe] sm:$0xff]
      %v2605 = vld [vmem:[%s169 + $0xc6] sm:$0xff]
      %v2606 = vld [vmem:[%s169 + $0xce] sm:$0xff]
      %v2607 = vld [vmem:[%s169 + $0xd6] sm:$0xff]
      %v2608 = vld [vmem:[%s169 + $0xde] sm:$0xff]
      %v2609 = vld [vmem:[%s169 + $0xe6] sm:$0xff]
      %v2610 = vld [vmem:[%s169 + $0xee] sm:$0xff]
      %v2611 = vld [vmem:[%s169 + $0xf6] sm:$0xff]
      %v2612 = vld [vmem:[%s169 + $0xfe] sm:$0xff]
      %v2613 = vld [vmem:[%s169 + $0x106] sm:$0xff]
      %v2614 = vld [vmem:[%s169 + $0x10e] sm:$0xff]
      %v2615 = vld [vmem:[%s169 + $0x116] sm:$0xff]
      %v2616 = vld [vmem:[%s169 + $0x11e] sm:$0xff]
      %v2617 = vld [vmem:[%s169 + $0x126] sm:$0xff]
      %v2618 = vld [vmem:[%s169 + $0x12e] sm:$0xff]
      %v2619 = vld [vmem:[%s169 + $0x136] sm:$0xff]
      %v2620 = vld [vmem:[%s169 + $0x13e] sm:$0xff]
      %s2621 = scalar_lea.vmem %s1, 32
      %v2622 = vld [vmem:[%s2621] sm:$0xf]
      %v2624 = vsel %vm251, %v2585, 0
      %v2627 = vsel %vm251, %v2586, 0
      %v2630 = vsel %vm251, %v2587, 0
      %v2633 = vsel %vm251, %v2588, 0
      %v2636 = vsel %vm251, %v2589, 0
      %v2639 = vsel %vm251, %v2590, 0
      %v2642 = vsel %vm251, %v2591, 0
      %v2645 = vsel %vm251, %v2592, 0
      %v2648 = vsel %vm251, %v2593, 0
      %v2651 = vsel %vm251, %v2594, 0
      %v2654 = vsel %vm251, %v2595, 0
      %v2657 = vsel %vm251, %v2596, 0
      %v2660 = vsel %vm251, %v2597, 0
      %v2663 = vsel %vm251, %v2598, 0
      %v2666 = vsel %vm251, %v2599, 0
      %v2669 = vsel %vm251, %v2600, 0
      %v2672 = vsel %vm251, %v2601, 0
      %v2675 = vsel %vm251, %v2602, 0
      %v2678 = vsel %vm251, %v2603, 0
      %v2681 = vsel %vm251, %v2604, 0
      %v2684 = vsel %vm251, %v2605, 0
      %v2687 = vsel %vm251, %v2606, 0
      %v2690 = vsel %vm251, %v2607, 0
      %v2693 = vsel %vm251, %v2608, 0
      %v2696 = vsel %vm251, %v2609, 0
      %v2699 = vsel %vm251, %v2610, 0
      %v2702 = vsel %vm251, %v2611, 0
      %v2705 = vsel %vm251, %v2612, 0
      %v2708 = vsel %vm251, %v2613, 0
      %v2711 = vsel %vm251, %v2614, 0
      %v2714 = vsel %vm251, %v2615, 0
      %v2717 = vsel %vm251, %v2616, 0
      %v2720 = vsel %vm251, %v2617, 0
      %v2723 = vsel %vm251, %v2618, 0
      %v2726 = vsel %vm251, %v2619, 0
      %v2729 = vsel %vm251, %v2620, 0
      %v2732 = vsel %vm360, %v2622, 0
      %2734 = vmatpush.msra.mxu0 0.0
      %2735 = vmatpush.msra.mxu0 0.0
      %2736 = vmatpush.msra.mxu0 0.0
      %2737 = vmatpush.msra.mxu0 0.0
      %2738 = vmatpush.msra.mxu0 0.0
      %2739 = vmatpush.msra.mxu0 0.0
      %2740 = vmatpush.msra.mxu0 0.0
      %2741 = vmatpush.msra.mxu0 0.0
      %2742 = vmatpush.msra.mxu0 0.0
      %2743 = vmatpush.msra.mxu0 0.0
      %2744 = vmatpush.msra.mxu0 0.0
      %2745 = vmatpush.msra.mxu0 0.0
      %2746 = vmatpush.msra.mxu0 0.0
      %2747 = vmatpush.msra.mxu0 0.0
      %2748 = vmatpush.msra.mxu0 0.0
      %2749 = vmatpush.msra.mxu0 %v2732
      %2750 = vmatmul.f32.gmra.mxu0 %v2624
      %v2751 = vpop.f32.mrf.mxu0
      %v2752 = vadd.f32 0.0, %v2751
      %2753 = vmatmul.f32.gmra.mxu0 %v2627
      %v2754 = vpop.f32.mrf.mxu0
      %v2755 = vadd.f32 0.0, %v2754
      %2756 = vmatmul.f32.gmra.mxu0 %v2630
      %v2757 = vpop.f32.mrf.mxu0
      %v2758 = vadd.f32 0.0, %v2757
      %2759 = vmatmul.f32.gmra.mxu0 %v2633
      %v2760 = vpop.f32.mrf.mxu0
      %v2761 = vadd.f32 0.0, %v2760
      %2762 = vmatmul.f32.gmra.mxu0 %v2636
      %v2763 = vpop.f32.mrf.mxu0
      %v2764 = vadd.f32 0.0, %v2763
      %2765 = vmatmul.f32.gmra.mxu0 %v2639
      %v2766 = vpop.f32.mrf.mxu0
      %v2767 = vadd.f32 0.0, %v2766
      %2768 = vmatmul.f32.gmra.mxu0 %v2642
      %v2769 = vpop.f32.mrf.mxu0
      %v2770 = vadd.f32 0.0, %v2769
      %2771 = vmatmul.f32.gmra.mxu0 %v2645
      %v2772 = vpop.f32.mrf.mxu0
      %v2773 = vadd.f32 0.0, %v2772
      %2774 = vmatmul.f32.gmra.mxu0 %v2648
      %v2775 = vpop.f32.mrf.mxu0
      %v2776 = vadd.f32 0.0, %v2775
      %2777 = vmatmul.f32.gmra.mxu0 %v2651
      %v2778 = vpop.f32.mrf.mxu0
      %v2779 = vadd.f32 0.0, %v2778
      %2780 = vmatmul.f32.gmra.mxu0 %v2654
      %v2781 = vpop.f32.mrf.mxu0
      %v2782 = vadd.f32 0.0, %v2781
      %2783 = vmatmul.f32.gmra.mxu0 %v2657
      %v2784 = vpop.f32.mrf.mxu0
      %v2785 = vadd.f32 0.0, %v2784
      %2786 = vmatmul.f32.gmra.mxu0 %v2660
      %v2787 = vpop.f32.mrf.mxu0
      %v2788 = vadd.f32 0.0, %v2787
      %2789 = vmatmul.f32.gmra.mxu0 %v2663
      %v2790 = vpop.f32.mrf.mxu0
      %v2791 = vadd.f32 0.0, %v2790
      %2792 = vmatmul.f32.gmra.mxu0 %v2666
      %v2793 = vpop.f32.mrf.mxu0
      %v2794 = vadd.f32 0.0, %v2793
      %2795 = vmatmul.f32.gmra.mxu0 %v2669
      %v2796 = vpop.f32.mrf.mxu0
      %v2797 = vadd.f32 0.0, %v2796
      %2798 = vmatmul.f32.gmra.mxu0 %v2672
      %v2799 = vpop.f32.mrf.mxu0
      %v2800 = vadd.f32 0.0, %v2799
      %2801 = vmatmul.f32.gmra.mxu0 %v2675
      %v2802 = vpop.f32.mrf.mxu0
      %v2803 = vadd.f32 0.0, %v2802
      %2804 = vmatmul.f32.gmra.mxu0 %v2678
      %v2805 = vpop.f32.mrf.mxu0
      %v2806 = vadd.f32 0.0, %v2805
      %2807 = vmatmul.f32.gmra.mxu0 %v2681
      %v2808 = vpop.f32.mrf.mxu0
      %v2809 = vadd.f32 0.0, %v2808
      %2810 = vmatmul.f32.gmra.mxu0 %v2684
      %v2811 = vpop.f32.mrf.mxu0
      %v2812 = vadd.f32 0.0, %v2811
      %2813 = vmatmul.f32.gmra.mxu0 %v2687
      %v2814 = vpop.f32.mrf.mxu0
      %v2815 = vadd.f32 0.0, %v2814
      %2816 = vmatmul.f32.gmra.mxu0 %v2690
      %v2817 = vpop.f32.mrf.mxu0
      %v2818 = vadd.f32 0.0, %v2817
      %2819 = vmatmul.f32.gmra.mxu0 %v2693
      %v2820 = vpop.f32.mrf.mxu0
      %v2821 = vadd.f32 0.0, %v2820
      %2822 = vmatmul.f32.gmra.mxu0 %v2696
      %v2823 = vpop.f32.mrf.mxu0
      %v2824 = vadd.f32 0.0, %v2823
      %2825 = vmatmul.f32.gmra.mxu0 %v2699
      %v2826 = vpop.f32.mrf.mxu0
      %v2827 = vadd.f32 0.0, %v2826
      %2828 = vmatmul.f32.gmra.mxu0 %v2702
      %v2829 = vpop.f32.mrf.mxu0
      %v2830 = vadd.f32 0.0, %v2829
      %2831 = vmatmul.f32.gmra.mxu0 %v2705
      %v2832 = vpop.f32.mrf.mxu0
      %v2833 = vadd.f32 0.0, %v2832
      %2834 = vmatmul.f32.gmra.mxu0 %v2708
      %v2835 = vpop.f32.mrf.mxu0
      %v2836 = vadd.f32 0.0, %v2835
      %2837 = vmatmul.f32.gmra.mxu0 %v2711
      %v2838 = vpop.f32.mrf.mxu0
      %v2839 = vadd.f32 0.0, %v2838
      %2840 = vmatmul.f32.gmra.mxu0 %v2714
      %v2841 = vpop.f32.mrf.mxu0
      %v2842 = vadd.f32 0.0, %v2841
      %2843 = vmatmul.f32.gmra.mxu0 %v2717
      %v2844 = vpop.f32.mrf.mxu0
      %v2845 = vadd.f32 0.0, %v2844
      %2846 = vmatmul.f32.gmra.mxu0 %v2720
      %v2847 = vpop.f32.mrf.mxu0
      %v2848 = vadd.f32 0.0, %v2847
      %2849 = vmatmul.f32.gmra.mxu0 %v2723
      %v2850 = vpop.f32.mrf.mxu0
      %v2851 = vadd.f32 0.0, %v2850
      %2852 = vmatmul.f32.gmra.mxu0 %v2726
      %v2853 = vpop.f32.mrf.mxu0
      %v2854 = vadd.f32 0.0, %v2853
      %2855 = vmatmul.f32.gmra.mxu0 %v2729
      %v2856 = vpop.f32.mrf.mxu0
      %v2857 = vadd.f32 0.0, %v2856
      %2858 = vdwg.mxu0
      %v2859 = vadd.f32 %v2549, %v2752
      %v2860 = vadd.f32 %v2550, %v2755
      %v2861 = vadd.f32 %v2551, %v2758
      %v2862 = vadd.f32 %v2552, %v2761
      %v2863 = vadd.f32 %v2553, %v2764
      %v2864 = vadd.f32 %v2554, %v2767
      %v2865 = vadd.f32 %v2555, %v2770
      %v2866 = vadd.f32 %v2556, %v2773
      %v2867 = vadd.f32 %v2557, %v2776
      %v2868 = vadd.f32 %v2558, %v2779
      %v2869 = vadd.f32 %v2559, %v2782
      %v2870 = vadd.f32 %v2560, %v2785
      %v2871 = vadd.f32 %v2561, %v2788
      %v2872 = vadd.f32 %v2562, %v2791
      %v2873 = vadd.f32 %v2563, %v2794
      %v2874 = vadd.f32 %v2564, %v2797
      %v2875 = vadd.f32 %v2565, %v2800
      %v2876 = vadd.f32 %v2566, %v2803
      %v2877 = vadd.f32 %v2567, %v2806
      %v2878 = vadd.f32 %v2568, %v2809
      %v2879 = vadd.f32 %v2569, %v2812
      %v2880 = vadd.f32 %v2570, %v2815
      %v2881 = vadd.f32 %v2571, %v2818
      %v2882 = vadd.f32 %v2572, %v2821
      %v2883 = vadd.f32 %v2573, %v2824
      %v2884 = vadd.f32 %v2574, %v2827
      %v2885 = vadd.f32 %v2575, %v2830
      %v2886 = vadd.f32 %v2576, %v2833
      %v2887 = vadd.f32 %v2577, %v2836
      %v2888 = vadd.f32 %v2578, %v2839
      %v2889 = vadd.f32 %v2579, %v2842
      %v2890 = vadd.f32 %v2580, %v2845
      %v2891 = vadd.f32 %v2581, %v2848
      %v2892 = vadd.f32 %v2582, %v2851
      %v2893 = vadd.f32 %v2583, %v2854
      %v2894 = vadd.f32 %v2584, %v2857
      %v2895 = vlaneseq
      %v2896 = vshrl.u32 %v2895, 7
      %v2897 = vadd.s32 %v2896, 8
      %v2898 = vadd.s32 %v2896, 16
      %v2899 = vadd.s32 %v2896, 24
      %v2900 = vadd.s32 %v2896, 32
      %v2901 = vadd.s32 %v2896, 40
      %v2902 = vadd.s32 %v2896, 48
      %v2903 = vadd.s32 %v2896, 56
      %v2904 = vadd.s32 %v2896, 64
      %v2905 = vadd.s32 %v2896, 72
      %v2906 = vadd.s32 %v2896, 80
      %v2907 = vadd.s32 %v2896, 88
      %v2908 = vadd.s32 %v2896, 96
      %v2909 = vadd.s32 %v2896, 104
      %v2910 = vadd.s32 %v2896, 112
      %v2911 = vadd.s32 %v2896, 120
      %v2912 = vadd.s32 %v2896, 128
      %v2913 = vadd.s32 %v2896, 136
      %v2914 = vadd.s32 %v2896, 144
      %v2915 = vadd.s32 %v2896, 152
      %v2916 = vadd.s32 %v2896, 160
      %v2917 = vadd.s32 %v2896, 168
      %v2918 = vadd.s32 %v2896, 176
      %v2919 = vadd.s32 %v2896, 184
      %v2920 = vadd.s32 %v2896, 192
      %v2921 = vadd.s32 %v2896, 200
      %v2922 = vadd.s32 %v2896, 208
      %v2923 = vadd.s32 %v2896, 216
      %v2924 = vadd.s32 %v2896, 224
      %v2925 = vadd.s32 %v2896, 232
      %v2926 = vadd.s32 %v2896, 240
      %v2927 = vadd.s32 %v2896, 248
      %v2928 = vadd.s32 %v2896, 256
      %v2929 = vadd.s32 %v2896, 264
      %v2930 = vadd.s32 %v2896, 272
      %v2931 = vadd.s32 %v2896, 280
      %vm2932 = vcmp.lt.s32.totalorder %v2896, 0
      %v2933 = vsub.s32 0, %v2896
      %v2934 = vsel %vm2932, %v2933, %v2896
      %v2935 = vand.u32 %v2934, 65535
      %v2936 = vshrl.u32 %v2934, 16
      %v2938 = vmul.u32 %v2935, 14564
      %v2939 = vmul.u32 %v2935, 58254
      %v2940 = vmul.u32 %v2936, 14564
      %v2941 = vmul.u32 %v2936, 58254
      %v2942 = vshll.u32 %v2939, 16
      %v2943 = vshrl.u32 %v2939, 16
      %v2944 = vshll.u32 %v2940, 16
      %v2945 = vshrl.u32 %v2940, 16
      %vm2946 = vc.u32 %v2938, %v2942
      %v2947 = vsel %vm2946, 1, 0
      %v2948 = vadd.s32 %v2938, %v2942
      %v2949 = vadd.s32 %v2941, %v2947
      %vm2950 = vc.u32 %v2948, %v2944
      %v2951 = vsel %vm2950, 1, 0
      %v2952 = vadd.s32 %v2948, %v2944
      %v2953 = vadd.s32 %v2949, %v2951
      %v2954 = vadd.s32 %v2953, %v2943
      %v2955 = vadd.s32 %v2954, %v2945
      %v2956 = vshrl.u32 %v2955, 4
      %v2957 = vmul.u32 %v2956, 18
      %v2958 = vsub.s32 %v2934, %v2957
      %v2959 = vsub.s32 0, %v2958
      %v2960 = vsel %vm2932, %v2959, %v2958
      %vm2961 = vcmp.lt.s32.totalorder %v2897, 0
      %v2962 = vsub.s32 0, %v2897
      %v2963 = vsel %vm2961, %v2962, %v2897
      %v2964 = vand.u32 %v2963, 65535
      %v2965 = vshrl.u32 %v2963, 16
      %v2967 = vmul.u32 %v2964, 14564
      %v2968 = vmul.u32 %v2964, 58254
      %v2969 = vmul.u32 %v2965, 14564
      %v2970 = vmul.u32 %v2965, 58254
      %v2971 = vshll.u32 %v2968, 16
      %v2972 = vshrl.u32 %v2968, 16
      %v2973 = vshll.u32 %v2969, 16
      %v2974 = vshrl.u32 %v2969, 16
      %vm2975 = vc.u32 %v2967, %v2971
      %v2976 = vsel %vm2975, 1, 0
      %v2977 = vadd.s32 %v2967, %v2971
      %v2978 = vadd.s32 %v2970, %v2976
      %vm2979 = vc.u32 %v2977, %v2973
      %v2980 = vsel %vm2979, 1, 0
      %v2981 = vadd.s32 %v2977, %v2973
      %v2982 = vadd.s32 %v2978, %v2980
      %v2983 = vadd.s32 %v2982, %v2972
      %v2984 = vadd.s32 %v2983, %v2974
      %v2985 = vshrl.u32 %v2984, 4
      %v2986 = vmul.u32 %v2985, 18
      %v2987 = vsub.s32 %v2963, %v2986
      %v2988 = vsub.s32 0, %v2987
      %v2989 = vsel %vm2961, %v2988, %v2987
      %vm2990 = vcmp.lt.s32.totalorder %v2898, 0
      %v2991 = vsub.s32 0, %v2898
      %v2992 = vsel %vm2990, %v2991, %v2898
      %v2993 = vand.u32 %v2992, 65535
      %v2994 = vshrl.u32 %v2992, 16
      %v2996 = vmul.u32 %v2993, 14564
      %v2997 = vmul.u32 %v2993, 58254
      %v2998 = vmul.u32 %v2994, 14564
      %v2999 = vmul.u32 %v2994, 58254
      %v3000 = vshll.u32 %v2997, 16
      %v3001 = vshrl.u32 %v2997, 16
      %v3002 = vshll.u32 %v2998, 16
      %v3003 = vshrl.u32 %v2998, 16
      %vm3004 = vc.u32 %v2996, %v3000
      %v3005 = vsel %vm3004, 1, 0
      %v3006 = vadd.s32 %v2996, %v3000
      %v3007 = vadd.s32 %v2999, %v3005
      %vm3008 = vc.u32 %v3006, %v3002
      %v3009 = vsel %vm3008, 1, 0
      %v3010 = vadd.s32 %v3006, %v3002
      %v3011 = vadd.s32 %v3007, %v3009
      %v3012 = vadd.s32 %v3011, %v3001
      %v3013 = vadd.s32 %v3012, %v3003
      %v3014 = vshrl.u32 %v3013, 4
      %v3015 = vmul.u32 %v3014, 18
      %v3016 = vsub.s32 %v2992, %v3015
      %v3017 = vsub.s32 0, %v3016
      %v3018 = vsel %vm2990, %v3017, %v3016
      %vm3019 = vcmp.lt.s32.totalorder %v2899, 0
      %v3020 = vsub.s32 0, %v2899
      %v3021 = vsel %vm3019, %v3020, %v2899
      %v3022 = vand.u32 %v3021, 65535
      %v3023 = vshrl.u32 %v3021, 16
      %v3025 = vmul.u32 %v3022, 14564
      %v3026 = vmul.u32 %v3022, 58254
      %v3027 = vmul.u32 %v3023, 14564
      %v3028 = vmul.u32 %v3023, 58254
      %v3029 = vshll.u32 %v3026, 16
      %v3030 = vshrl.u32 %v3026, 16
      %v3031 = vshll.u32 %v3027, 16
      %v3032 = vshrl.u32 %v3027, 16
      %vm3033 = vc.u32 %v3025, %v3029
      %v3034 = vsel %vm3033, 1, 0
      %v3035 = vadd.s32 %v3025, %v3029
      %v3036 = vadd.s32 %v3028, %v3034
      %vm3037 = vc.u32 %v3035, %v3031
      %v3038 = vsel %vm3037, 1, 0
      %v3039 = vadd.s32 %v3035, %v3031
      %v3040 = vadd.s32 %v3036, %v3038
      %v3041 = vadd.s32 %v3040, %v3030
      %v3042 = vadd.s32 %v3041, %v3032
      %v3043 = vshrl.u32 %v3042, 4
      %v3044 = vmul.u32 %v3043, 18
      %v3045 = vsub.s32 %v3021, %v3044
      %v3046 = vsub.s32 0, %v3045
      %v3047 = vsel %vm3019, %v3046, %v3045
      %vm3048 = vcmp.lt.s32.totalorder %v2900, 0
      %v3049 = vsub.s32 0, %v2900
      %v3050 = vsel %vm3048, %v3049, %v2900
      %v3051 = vand.u32 %v3050, 65535
      %v3052 = vshrl.u32 %v3050, 16
      %v3054 = vmul.u32 %v3051, 14564
      %v3055 = vmul.u32 %v3051, 58254
      %v3056 = vmul.u32 %v3052, 14564
      %v3057 = vmul.u32 %v3052, 58254
      %v3058 = vshll.u32 %v3055, 16
      %v3059 = vshrl.u32 %v3055, 16
      %v3060 = vshll.u32 %v3056, 16
      %v3061 = vshrl.u32 %v3056, 16
      %vm3062 = vc.u32 %v3054, %v3058
      %v3063 = vsel %vm3062, 1, 0
      %v3064 = vadd.s32 %v3054, %v3058
      %v3065 = vadd.s32 %v3057, %v3063
      %vm3066 = vc.u32 %v3064, %v3060
      %v3067 = vsel %vm3066, 1, 0
      %v3068 = vadd.s32 %v3064, %v3060
      %v3069 = vadd.s32 %v3065, %v3067
      %v3070 = vadd.s32 %v3069, %v3059
      %v3071 = vadd.s32 %v3070, %v3061
      %v3072 = vshrl.u32 %v3071, 4
      %v3073 = vmul.u32 %v3072, 18
      %v3074 = vsub.s32 %v3050, %v3073
      %v3075 = vsub.s32 0, %v3074
      %v3076 = vsel %vm3048, %v3075, %v3074
      %vm3077 = vcmp.lt.s32.totalorder %v2901, 0
      %v3078 = vsub.s32 0, %v2901
      %v3079 = vsel %vm3077, %v3078, %v2901
      %v3080 = vand.u32 %v3079, 65535
      %v3081 = vshrl.u32 %v3079, 16
      %v3083 = vmul.u32 %v3080, 14564
      %v3084 = vmul.u32 %v3080, 58254
      %v3085 = vmul.u32 %v3081, 14564
      %v3086 = vmul.u32 %v3081, 58254
      %v3087 = vshll.u32 %v3084, 16
      %v3088 = vshrl.u32 %v3084, 16
      %v3089 = vshll.u32 %v3085, 16
      %v3090 = vshrl.u32 %v3085, 16
      %vm3091 = vc.u32 %v3083, %v3087
      %v3092 = vsel %vm3091, 1, 0
      %v3093 = vadd.s32 %v3083, %v3087
      %v3094 = vadd.s32 %v3086, %v3092
      %vm3095 = vc.u32 %v3093, %v3089
      %v3096 = vsel %vm3095, 1, 0
      %v3097 = vadd.s32 %v3093, %v3089
      %v3098 = vadd.s32 %v3094, %v3096
      %v3099 = vadd.s32 %v3098, %v3088
      %v3100 = vadd.s32 %v3099, %v3090
      %v3101 = vshrl.u32 %v3100, 4
      %v3102 = vmul.u32 %v3101, 18
      %v3103 = vsub.s32 %v3079, %v3102
      %v3104 = vsub.s32 0, %v3103
      %v3105 = vsel %vm3077, %v3104, %v3103
      %vm3106 = vcmp.lt.s32.totalorder %v2902, 0
      %v3107 = vsub.s32 0, %v2902
      %v3108 = vsel %vm3106, %v3107, %v2902
      %v3109 = vand.u32 %v3108, 65535
      %v3110 = vshrl.u32 %v3108, 16
      %v3112 = vmul.u32 %v3109, 14564
      %v3113 = vmul.u32 %v3109, 58254
      %v3114 = vmul.u32 %v3110, 14564
      %v3115 = vmul.u32 %v3110, 58254
      %v3116 = vshll.u32 %v3113, 16
      %v3117 = vshrl.u32 %v3113, 16
      %v3118 = vshll.u32 %v3114, 16
      %v3119 = vshrl.u32 %v3114, 16
      %vm3120 = vc.u32 %v3112, %v3116
      %v3121 = vsel %vm3120, 1, 0
      %v3122 = vadd.s32 %v3112, %v3116
      %v3123 = vadd.s32 %v3115, %v3121
      %vm3124 = vc.u32 %v3122, %v3118
      %v3125 = vsel %vm3124, 1, 0
      %v3126 = vadd.s32 %v3122, %v3118
      %v3127 = vadd.s32 %v3123, %v3125
      %v3128 = vadd.s32 %v3127, %v3117
      %v3129 = vadd.s32 %v3128, %v3119
      %v3130 = vshrl.u32 %v3129, 4
      %v3131 = vmul.u32 %v3130, 18
      %v3132 = vsub.s32 %v3108, %v3131
      %v3133 = vsub.s32 0, %v3132
      %v3134 = vsel %vm3106, %v3133, %v3132
      %vm3135 = vcmp.lt.s32.totalorder %v2903, 0
      %v3136 = vsub.s32 0, %v2903
      %v3137 = vsel %vm3135, %v3136, %v2903
      %v3138 = vand.u32 %v3137, 65535
      %v3139 = vshrl.u32 %v3137, 16
      %v3141 = vmul.u32 %v3138, 14564
      %v3142 = vmul.u32 %v3138, 58254
      %v3143 = vmul.u32 %v3139, 14564
      %v3144 = vmul.u32 %v3139, 58254
      %v3145 = vshll.u32 %v3142, 16
      %v3146 = vshrl.u32 %v3142, 16
      %v3147 = vshll.u32 %v3143, 16
      %v3148 = vshrl.u32 %v3143, 16
      %vm3149 = vc.u32 %v3141, %v3145
      %v3150 = vsel %vm3149, 1, 0
      %v3151 = vadd.s32 %v3141, %v3145
      %v3152 = vadd.s32 %v3144, %v3150
      %vm3153 = vc.u32 %v3151, %v3147
      %v3154 = vsel %vm3153, 1, 0
      %v3155 = vadd.s32 %v3151, %v3147
      %v3156 = vadd.s32 %v3152, %v3154
      %v3157 = vadd.s32 %v3156, %v3146
      %v3158 = vadd.s32 %v3157, %v3148
      %v3159 = vshrl.u32 %v3158, 4
      %v3160 = vmul.u32 %v3159, 18
      %v3161 = vsub.s32 %v3137, %v3160
      %v3162 = vsub.s32 0, %v3161
      %v3163 = vsel %vm3135, %v3162, %v3161
      %vm3164 = vcmp.lt.s32.totalorder %v2904, 0
      %v3165 = vsub.s32 0, %v2904
      %v3166 = vsel %vm3164, %v3165, %v2904
      %v3167 = vand.u32 %v3166, 65535
      %v3168 = vshrl.u32 %v3166, 16
      %v3170 = vmul.u32 %v3167, 14564
      %v3171 = vmul.u32 %v3167, 58254
      %v3172 = vmul.u32 %v3168, 14564
      %v3173 = vmul.u32 %v3168, 58254
      %v3174 = vshll.u32 %v3171, 16
      %v3175 = vshrl.u32 %v3171, 16
      %v3176 = vshll.u32 %v3172, 16
      %v3177 = vshrl.u32 %v3172, 16
      %vm3178 = vc.u32 %v3170, %v3174
      %v3179 = vsel %vm3178, 1, 0
      %v3180 = vadd.s32 %v3170, %v3174
      %v3181 = vadd.s32 %v3173, %v3179
      %vm3182 = vc.u32 %v3180, %v3176
      %v3183 = vsel %vm3182, 1, 0
      %v3184 = vadd.s32 %v3180, %v3176
      %v3185 = vadd.s32 %v3181, %v3183
      %v3186 = vadd.s32 %v3185, %v3175
      %v3187 = vadd.s32 %v3186, %v3177
      %v3188 = vshrl.u32 %v3187, 4
      %v3189 = vmul.u32 %v3188, 18
      %v3190 = vsub.s32 %v3166, %v3189
      %v3191 = vsub.s32 0, %v3190
      %v3192 = vsel %vm3164, %v3191, %v3190
      %vm3193 = vcmp.lt.s32.totalorder %v2905, 0
      %v3194 = vsub.s32 0, %v2905
      %v3195 = vsel %vm3193, %v3194, %v2905
      %v3196 = vand.u32 %v3195, 65535
      %v3197 = vshrl.u32 %v3195, 16
      %v3199 = vmul.u32 %v3196, 14564
      %v3200 = vmul.u32 %v3196, 58254
      %v3201 = vmul.u32 %v3197, 14564
      %v3202 = vmul.u32 %v3197, 58254
      %v3203 = vshll.u32 %v3200, 16
      %v3204 = vshrl.u32 %v3200, 16
      %v3205 = vshll.u32 %v3201, 16
      %v3206 = vshrl.u32 %v3201, 16
      %vm3207 = vc.u32 %v3199, %v3203
      %v3208 = vsel %vm3207, 1, 0
      %v3209 = vadd.s32 %v3199, %v3203
      %v3210 = vadd.s32 %v3202, %v3208
      %vm3211 = vc.u32 %v3209, %v3205
      %v3212 = vsel %vm3211, 1, 0
      %v3213 = vadd.s32 %v3209, %v3205
      %v3214 = vadd.s32 %v3210, %v3212
      %v3215 = vadd.s32 %v3214, %v3204
      %v3216 = vadd.s32 %v3215, %v3206
      %v3217 = vshrl.u32 %v3216, 4
      %v3218 = vmul.u32 %v3217, 18
      %v3219 = vsub.s32 %v3195, %v3218
      %v3220 = vsub.s32 0, %v3219
      %v3221 = vsel %vm3193, %v3220, %v3219
      %vm3222 = vcmp.lt.s32.totalorder %v2906, 0
      %v3223 = vsub.s32 0, %v2906
      %v3224 = vsel %vm3222, %v3223, %v2906
      %v3225 = vand.u32 %v3224, 65535
      %v3226 = vshrl.u32 %v3224, 16
      %v3228 = vmul.u32 %v3225, 14564
      %v3229 = vmul.u32 %v3225, 58254
      %v3230 = vmul.u32 %v3226, 14564
      %v3231 = vmul.u32 %v3226, 58254
      %v3232 = vshll.u32 %v3229, 16
      %v3233 = vshrl.u32 %v3229, 16
      %v3234 = vshll.u32 %v3230, 16
      %v3235 = vshrl.u32 %v3230, 16
      %vm3236 = vc.u32 %v3228, %v3232
      %v3237 = vsel %vm3236, 1, 0
      %v3238 = vadd.s32 %v3228, %v3232
      %v3239 = vadd.s32 %v3231, %v3237
      %vm3240 = vc.u32 %v3238, %v3234
      %v3241 = vsel %vm3240, 1, 0
      %v3242 = vadd.s32 %v3238, %v3234
      %v3243 = vadd.s32 %v3239, %v3241
      %v3244 = vadd.s32 %v3243, %v3233
      %v3245 = vadd.s32 %v3244, %v3235
      %v3246 = vshrl.u32 %v3245, 4
      %v3247 = vmul.u32 %v3246, 18
      %v3248 = vsub.s32 %v3224, %v3247
      %v3249 = vsub.s32 0, %v3248
      %v3250 = vsel %vm3222, %v3249, %v3248
      %vm3251 = vcmp.lt.s32.totalorder %v2907, 0
      %v3252 = vsub.s32 0, %v2907
      %v3253 = vsel %vm3251, %v3252, %v2907
      %v3254 = vand.u32 %v3253, 65535
      %v3255 = vshrl.u32 %v3253, 16
      %v3257 = vmul.u32 %v3254, 14564
      %v3258 = vmul.u32 %v3254, 58254
      %v3259 = vmul.u32 %v3255, 14564
      %v3260 = vmul.u32 %v3255, 58254
      %v3261 = vshll.u32 %v3258, 16
      %v3262 = vshrl.u32 %v3258, 16
      %v3263 = vshll.u32 %v3259, 16
      %v3264 = vshrl.u32 %v3259, 16
      %vm3265 = vc.u32 %v3257, %v3261
      %v3266 = vsel %vm3265, 1, 0
      %v3267 = vadd.s32 %v3257, %v3261
      %v3268 = vadd.s32 %v3260, %v3266
      %vm3269 = vc.u32 %v3267, %v3263
      %v3270 = vsel %vm3269, 1, 0
      %v3271 = vadd.s32 %v3267, %v3263
      %v3272 = vadd.s32 %v3268, %v3270
      %v3273 = vadd.s32 %v3272, %v3262
      %v3274 = vadd.s32 %v3273, %v3264
      %v3275 = vshrl.u32 %v3274, 4
      %v3276 = vmul.u32 %v3275, 18
      %v3277 = vsub.s32 %v3253, %v3276
      %v3278 = vsub.s32 0, %v3277
      %v3279 = vsel %vm3251, %v3278, %v3277
      %vm3280 = vcmp.lt.s32.totalorder %v2908, 0
      %v3281 = vsub.s32 0, %v2908
      %v3282 = vsel %vm3280, %v3281, %v2908
      %v3283 = vand.u32 %v3282, 65535
      %v3284 = vshrl.u32 %v3282, 16
      %v3286 = vmul.u32 %v3283, 14564
      %v3287 = vmul.u32 %v3283, 58254
      %v3288 = vmul.u32 %v3284, 14564
      %v3289 = vmul.u32 %v3284, 58254
      %v3290 = vshll.u32 %v3287, 16
      %v3291 = vshrl.u32 %v3287, 16
      %v3292 = vshll.u32 %v3288, 16
      %v3293 = vshrl.u32 %v3288, 16
      %vm3294 = vc.u32 %v3286, %v3290
      %v3295 = vsel %vm3294, 1, 0
      %v3296 = vadd.s32 %v3286, %v3290
      %v3297 = vadd.s32 %v3289, %v3295
      %vm3298 = vc.u32 %v3296, %v3292
      %v3299 = vsel %vm3298, 1, 0
      %v3300 = vadd.s32 %v3296, %v3292
      %v3301 = vadd.s32 %v3297, %v3299
      %v3302 = vadd.s32 %v3301, %v3291
      %v3303 = vadd.s32 %v3302, %v3293
      %v3304 = vshrl.u32 %v3303, 4
      %v3305 = vmul.u32 %v3304, 18
      %v3306 = vsub.s32 %v3282, %v3305
      %v3307 = vsub.s32 0, %v3306
      %v3308 = vsel %vm3280, %v3307, %v3306
      %vm3309 = vcmp.lt.s32.totalorder %v2909, 0
      %v3310 = vsub.s32 0, %v2909
      %v3311 = vsel %vm3309, %v3310, %v2909
      %v3312 = vand.u32 %v3311, 65535
      %v3313 = vshrl.u32 %v3311, 16
      %v3315 = vmul.u32 %v3312, 14564
      %v3316 = vmul.u32 %v3312, 58254
      %v3317 = vmul.u32 %v3313, 14564
      %v3318 = vmul.u32 %v3313, 58254
      %v3319 = vshll.u32 %v3316, 16
      %v3320 = vshrl.u32 %v3316, 16
      %v3321 = vshll.u32 %v3317, 16
      %v3322 = vshrl.u32 %v3317, 16
      %vm3323 = vc.u32 %v3315, %v3319
      %v3324 = vsel %vm3323, 1, 0
      %v3325 = vadd.s32 %v3315, %v3319
      %v3326 = vadd.s32 %v3318, %v3324
      %vm3327 = vc.u32 %v3325, %v3321
      %v3328 = vsel %vm3327, 1, 0
      %v3329 = vadd.s32 %v3325, %v3321
      %v3330 = vadd.s32 %v3326, %v3328
      %v3331 = vadd.s32 %v3330, %v3320
      %v3332 = vadd.s32 %v3331, %v3322
      %v3333 = vshrl.u32 %v3332, 4
      %v3334 = vmul.u32 %v3333, 18
      %v3335 = vsub.s32 %v3311, %v3334
      %v3336 = vsub.s32 0, %v3335
      %v3337 = vsel %vm3309, %v3336, %v3335
      %vm3338 = vcmp.lt.s32.totalorder %v2910, 0
      %v3339 = vsub.s32 0, %v2910
      %v3340 = vsel %vm3338, %v3339, %v2910
      %v3341 = vand.u32 %v3340, 65535
      %v3342 = vshrl.u32 %v3340, 16
      %v3344 = vmul.u32 %v3341, 14564
      %v3345 = vmul.u32 %v3341, 58254
      %v3346 = vmul.u32 %v3342, 14564
      %v3347 = vmul.u32 %v3342, 58254
      %v3348 = vshll.u32 %v3345, 16
      %v3349 = vshrl.u32 %v3345, 16
      %v3350 = vshll.u32 %v3346, 16
      %v3351 = vshrl.u32 %v3346, 16
      %vm3352 = vc.u32 %v3344, %v3348
      %v3353 = vsel %vm3352, 1, 0
      %v3354 = vadd.s32 %v3344, %v3348
      %v3355 = vadd.s32 %v3347, %v3353
      %vm3356 = vc.u32 %v3354, %v3350
      %v3357 = vsel %vm3356, 1, 0
      %v3358 = vadd.s32 %v3354, %v3350
      %v3359 = vadd.s32 %v3355, %v3357
      %v3360 = vadd.s32 %v3359, %v3349
      %v3361 = vadd.s32 %v3360, %v3351
      %v3362 = vshrl.u32 %v3361, 4
      %v3363 = vmul.u32 %v3362, 18
      %v3364 = vsub.s32 %v3340, %v3363
      %v3365 = vsub.s32 0, %v3364
      %v3366 = vsel %vm3338, %v3365, %v3364
      %vm3367 = vcmp.lt.s32.totalorder %v2911, 0
      %v3368 = vsub.s32 0, %v2911
      %v3369 = vsel %vm3367, %v3368, %v2911
      %v3370 = vand.u32 %v3369, 65535
      %v3371 = vshrl.u32 %v3369, 16
      %v3373 = vmul.u32 %v3370, 14564
      %v3374 = vmul.u32 %v3370, 58254
      %v3375 = vmul.u32 %v3371, 14564
      %v3376 = vmul.u32 %v3371, 58254
      %v3377 = vshll.u32 %v3374, 16
      %v3378 = vshrl.u32 %v3374, 16
      %v3379 = vshll.u32 %v3375, 16
      %v3380 = vshrl.u32 %v3375, 16
      %vm3381 = vc.u32 %v3373, %v3377
      %v3382 = vsel %vm3381, 1, 0
      %v3383 = vadd.s32 %v3373, %v3377
      %v3384 = vadd.s32 %v3376, %v3382
      %vm3385 = vc.u32 %v3383, %v3379
      %v3386 = vsel %vm3385, 1, 0
      %v3387 = vadd.s32 %v3383, %v3379
      %v3388 = vadd.s32 %v3384, %v3386
      %v3389 = vadd.s32 %v3388, %v3378
      %v3390 = vadd.s32 %v3389, %v3380
      %v3391 = vshrl.u32 %v3390, 4
      %v3392 = vmul.u32 %v3391, 18
      %v3393 = vsub.s32 %v3369, %v3392
      %v3394 = vsub.s32 0, %v3393
      %v3395 = vsel %vm3367, %v3394, %v3393
      %vm3396 = vcmp.lt.s32.totalorder %v2912, 0
      %v3397 = vsub.s32 0, %v2912
      %v3398 = vsel %vm3396, %v3397, %v2912
      %v3399 = vand.u32 %v3398, 65535
      %v3400 = vshrl.u32 %v3398, 16
      %v3402 = vmul.u32 %v3399, 14564
      %v3403 = vmul.u32 %v3399, 58254
      %v3404 = vmul.u32 %v3400, 14564
      %v3405 = vmul.u32 %v3400, 58254
      %v3406 = vshll.u32 %v3403, 16
      %v3407 = vshrl.u32 %v3403, 16
      %v3408 = vshll.u32 %v3404, 16
      %v3409 = vshrl.u32 %v3404, 16
      %vm3410 = vc.u32 %v3402, %v3406
      %v3411 = vsel %vm3410, 1, 0
      %v3412 = vadd.s32 %v3402, %v3406
      %v3413 = vadd.s32 %v3405, %v3411
      %vm3414 = vc.u32 %v3412, %v3408
      %v3415 = vsel %vm3414, 1, 0
      %v3416 = vadd.s32 %v3412, %v3408
      %v3417 = vadd.s32 %v3413, %v3415
      %v3418 = vadd.s32 %v3417, %v3407
      %v3419 = vadd.s32 %v3418, %v3409
      %v3420 = vshrl.u32 %v3419, 4
      %v3421 = vmul.u32 %v3420, 18
      %v3422 = vsub.s32 %v3398, %v3421
      %v3423 = vsub.s32 0, %v3422
      %v3424 = vsel %vm3396, %v3423, %v3422
      %vm3425 = vcmp.lt.s32.totalorder %v2913, 0
      %v3426 = vsub.s32 0, %v2913
      %v3427 = vsel %vm3425, %v3426, %v2913
      %v3428 = vand.u32 %v3427, 65535
      %v3429 = vshrl.u32 %v3427, 16
      %v3431 = vmul.u32 %v3428, 14564
      %v3432 = vmul.u32 %v3428, 58254
      %v3433 = vmul.u32 %v3429, 14564
      %v3434 = vmul.u32 %v3429, 58254
      %v3435 = vshll.u32 %v3432, 16
      %v3436 = vshrl.u32 %v3432, 16
      %v3437 = vshll.u32 %v3433, 16
      %v3438 = vshrl.u32 %v3433, 16
      %vm3439 = vc.u32 %v3431, %v3435
      %v3440 = vsel %vm3439, 1, 0
      %v3441 = vadd.s32 %v3431, %v3435
      %v3442 = vadd.s32 %v3434, %v3440
      %vm3443 = vc.u32 %v3441, %v3437
      %v3444 = vsel %vm3443, 1, 0
      %v3445 = vadd.s32 %v3441, %v3437
      %v3446 = vadd.s32 %v3442, %v3444
      %v3447 = vadd.s32 %v3446, %v3436
      %v3448 = vadd.s32 %v3447, %v3438
      %v3449 = vshrl.u32 %v3448, 4
      %v3450 = vmul.u32 %v3449, 18
      %v3451 = vsub.s32 %v3427, %v3450
      %v3452 = vsub.s32 0, %v3451
      %v3453 = vsel %vm3425, %v3452, %v3451
      %vm3454 = vcmp.lt.s32.totalorder %v2914, 0
      %v3455 = vsub.s32 0, %v2914
      %v3456 = vsel %vm3454, %v3455, %v2914
      %v3457 = vand.u32 %v3456, 65535
      %v3458 = vshrl.u32 %v3456, 16
      %v3460 = vmul.u32 %v3457, 14564
      %v3461 = vmul.u32 %v3457, 58254
      %v3462 = vmul.u32 %v3458, 14564
      %v3463 = vmul.u32 %v3458, 58254
      %v3464 = vshll.u32 %v3461, 16
      %v3465 = vshrl.u32 %v3461, 16
      %v3466 = vshll.u32 %v3462, 16
      %v3467 = vshrl.u32 %v3462, 16
      %vm3468 = vc.u32 %v3460, %v3464
      %v3469 = vsel %vm3468, 1, 0
      %v3470 = vadd.s32 %v3460, %v3464
      %v3471 = vadd.s32 %v3463, %v3469
      %vm3472 = vc.u32 %v3470, %v3466
      %v3473 = vsel %vm3472, 1, 0
      %v3474 = vadd.s32 %v3470, %v3466
      %v3475 = vadd.s32 %v3471, %v3473
      %v3476 = vadd.s32 %v3475, %v3465
      %v3477 = vadd.s32 %v3476, %v3467
      %v3478 = vshrl.u32 %v3477, 4
      %v3479 = vmul.u32 %v3478, 18
      %v3480 = vsub.s32 %v3456, %v3479
      %v3481 = vsub.s32 0, %v3480
      %v3482 = vsel %vm3454, %v3481, %v3480
      %vm3483 = vcmp.lt.s32.totalorder %v2915, 0
      %v3484 = vsub.s32 0, %v2915
      %v3485 = vsel %vm3483, %v3484, %v2915
      %v3486 = vand.u32 %v3485, 65535
      %v3487 = vshrl.u32 %v3485, 16
      %v3489 = vmul.u32 %v3486, 14564
      %v3490 = vmul.u32 %v3486, 58254
      %v3491 = vmul.u32 %v3487, 14564
      %v3492 = vmul.u32 %v3487, 58254
      %v3493 = vshll.u32 %v3490, 16
      %v3494 = vshrl.u32 %v3490, 16
      %v3495 = vshll.u32 %v3491, 16
      %v3496 = vshrl.u32 %v3491, 16
      %vm3497 = vc.u32 %v3489, %v3493
      %v3498 = vsel %vm3497, 1, 0
      %v3499 = vadd.s32 %v3489, %v3493
      %v3500 = vadd.s32 %v3492, %v3498
      %vm3501 = vc.u32 %v3499, %v3495
      %v3502 = vsel %vm3501, 1, 0
      %v3503 = vadd.s32 %v3499, %v3495
      %v3504 = vadd.s32 %v3500, %v3502
      %v3505 = vadd.s32 %v3504, %v3494
      %v3506 = vadd.s32 %v3505, %v3496
      %v3507 = vshrl.u32 %v3506, 4
      %v3508 = vmul.u32 %v3507, 18
      %v3509 = vsub.s32 %v3485, %v3508
      %v3510 = vsub.s32 0, %v3509
      %v3511 = vsel %vm3483, %v3510, %v3509
      %vm3512 = vcmp.lt.s32.totalorder %v2916, 0
      %v3513 = vsub.s32 0, %v2916
      %v3514 = vsel %vm3512, %v3513, %v2916
      %v3515 = vand.u32 %v3514, 65535
      %v3516 = vshrl.u32 %v3514, 16
      %v3518 = vmul.u32 %v3515, 14564
      %v3519 = vmul.u32 %v3515, 58254
      %v3520 = vmul.u32 %v3516, 14564
      %v3521 = vmul.u32 %v3516, 58254
      %v3522 = vshll.u32 %v3519, 16
      %v3523 = vshrl.u32 %v3519, 16
      %v3524 = vshll.u32 %v3520, 16
      %v3525 = vshrl.u32 %v3520, 16
      %vm3526 = vc.u32 %v3518, %v3522
      %v3527 = vsel %vm3526, 1, 0
      %v3528 = vadd.s32 %v3518, %v3522
      %v3529 = vadd.s32 %v3521, %v3527
      %vm3530 = vc.u32 %v3528, %v3524
      %v3531 = vsel %vm3530, 1, 0
      %v3532 = vadd.s32 %v3528, %v3524
      %v3533 = vadd.s32 %v3529, %v3531
      %v3534 = vadd.s32 %v3533, %v3523
      %v3535 = vadd.s32 %v3534, %v3525
      %v3536 = vshrl.u32 %v3535, 4
      %v3537 = vmul.u32 %v3536, 18
      %v3538 = vsub.s32 %v3514, %v3537
      %v3539 = vsub.s32 0, %v3538
      %v3540 = vsel %vm3512, %v3539, %v3538
      %vm3541 = vcmp.lt.s32.totalorder %v2917, 0
      %v3542 = vsub.s32 0, %v2917
      %v3543 = vsel %vm3541, %v3542, %v2917
      %v3544 = vand.u32 %v3543, 65535
      %v3545 = vshrl.u32 %v3543, 16
      %v3547 = vmul.u32 %v3544, 14564
      %v3548 = vmul.u32 %v3544, 58254
      %v3549 = vmul.u32 %v3545, 14564
      %v3550 = vmul.u32 %v3545, 58254
      %v3551 = vshll.u32 %v3548, 16
      %v3552 = vshrl.u32 %v3548, 16
      %v3553 = vshll.u32 %v3549, 16
      %v3554 = vshrl.u32 %v3549, 16
      %vm3555 = vc.u32 %v3547, %v3551
      %v3556 = vsel %vm3555, 1, 0
      %v3557 = vadd.s32 %v3547, %v3551
      %v3558 = vadd.s32 %v3550, %v3556
      %vm3559 = vc.u32 %v3557, %v3553
      %v3560 = vsel %vm3559, 1, 0
      %v3561 = vadd.s32 %v3557, %v3553
      %v3562 = vadd.s32 %v3558, %v3560
      %v3563 = vadd.s32 %v3562, %v3552
      %v3564 = vadd.s32 %v3563, %v3554
      %v3565 = vshrl.u32 %v3564, 4
      %v3566 = vmul.u32 %v3565, 18
      %v3567 = vsub.s32 %v3543, %v3566
      %v3568 = vsub.s32 0, %v3567
      %v3569 = vsel %vm3541, %v3568, %v3567
      %vm3570 = vcmp.lt.s32.totalorder %v2918, 0
      %v3571 = vsub.s32 0, %v2918
      %v3572 = vsel %vm3570, %v3571, %v2918
      %v3573 = vand.u32 %v3572, 65535
      %v3574 = vshrl.u32 %v3572, 16
      %v3576 = vmul.u32 %v3573, 14564
      %v3577 = vmul.u32 %v3573, 58254
      %v3578 = vmul.u32 %v3574, 14564
      %v3579 = vmul.u32 %v3574, 58254
      %v3580 = vshll.u32 %v3577, 16
      %v3581 = vshrl.u32 %v3577, 16
      %v3582 = vshll.u32 %v3578, 16
      %v3583 = vshrl.u32 %v3578, 16
      %vm3584 = vc.u32 %v3576, %v3580
      %v3585 = vsel %vm3584, 1, 0
      %v3586 = vadd.s32 %v3576, %v3580
      %v3587 = vadd.s32 %v3579, %v3585
      %vm3588 = vc.u32 %v3586, %v3582
      %v3589 = vsel %vm3588, 1, 0
      %v3590 = vadd.s32 %v3586, %v3582
      %v3591 = vadd.s32 %v3587, %v3589
      %v3592 = vadd.s32 %v3591, %v3581
      %v3593 = vadd.s32 %v3592, %v3583
      %v3594 = vshrl.u32 %v3593, 4
      %v3595 = vmul.u32 %v3594, 18
      %v3596 = vsub.s32 %v3572, %v3595
      %v3597 = vsub.s32 0, %v3596
      %v3598 = vsel %vm3570, %v3597, %v3596
      %vm3599 = vcmp.lt.s32.totalorder %v2919, 0
      %v3600 = vsub.s32 0, %v2919
      %v3601 = vsel %vm3599, %v3600, %v2919
      %v3602 = vand.u32 %v3601, 65535
      %v3603 = vshrl.u32 %v3601, 16
      %v3605 = vmul.u32 %v3602, 14564
      %v3606 = vmul.u32 %v3602, 58254
      %v3607 = vmul.u32 %v3603, 14564
      %v3608 = vmul.u32 %v3603, 58254
      %v3609 = vshll.u32 %v3606, 16
      %v3610 = vshrl.u32 %v3606, 16
      %v3611 = vshll.u32 %v3607, 16
      %v3612 = vshrl.u32 %v3607, 16
      %vm3613 = vc.u32 %v3605, %v3609
      %v3614 = vsel %vm3613, 1, 0
      %v3615 = vadd.s32 %v3605, %v3609
      %v3616 = vadd.s32 %v3608, %v3614
      %vm3617 = vc.u32 %v3615, %v3611
      %v3618 = vsel %vm3617, 1, 0
      %v3619 = vadd.s32 %v3615, %v3611
      %v3620 = vadd.s32 %v3616, %v3618
      %v3621 = vadd.s32 %v3620, %v3610
      %v3622 = vadd.s32 %v3621, %v3612
      %v3623 = vshrl.u32 %v3622, 4
      %v3624 = vmul.u32 %v3623, 18
      %v3625 = vsub.s32 %v3601, %v3624
      %v3626 = vsub.s32 0, %v3625
      %v3627 = vsel %vm3599, %v3626, %v3625
      %vm3628 = vcmp.lt.s32.totalorder %v2920, 0
      %v3629 = vsub.s32 0, %v2920
      %v3630 = vsel %vm3628, %v3629, %v2920
      %v3631 = vand.u32 %v3630, 65535
      %v3632 = vshrl.u32 %v3630, 16
      %v3634 = vmul.u32 %v3631, 14564
      %v3635 = vmul.u32 %v3631, 58254
      %v3636 = vmul.u32 %v3632, 14564
      %v3637 = vmul.u32 %v3632, 58254
      %v3638 = vshll.u32 %v3635, 16
      %v3639 = vshrl.u32 %v3635, 16
      %v3640 = vshll.u32 %v3636, 16
      %v3641 = vshrl.u32 %v3636, 16
      %vm3642 = vc.u32 %v3634, %v3638
      %v3643 = vsel %vm3642, 1, 0
      %v3644 = vadd.s32 %v3634, %v3638
      %v3645 = vadd.s32 %v3637, %v3643
      %vm3646 = vc.u32 %v3644, %v3640
      %v3647 = vsel %vm3646, 1, 0
      %v3648 = vadd.s32 %v3644, %v3640
      %v3649 = vadd.s32 %v3645, %v3647
      %v3650 = vadd.s32 %v3649, %v3639
      %v3651 = vadd.s32 %v3650, %v3641
      %v3652 = vshrl.u32 %v3651, 4
      %v3653 = vmul.u32 %v3652, 18
      %v3654 = vsub.s32 %v3630, %v3653
      %v3655 = vsub.s32 0, %v3654
      %v3656 = vsel %vm3628, %v3655, %v3654
      %vm3657 = vcmp.lt.s32.totalorder %v2921, 0
      %v3658 = vsub.s32 0, %v2921
      %v3659 = vsel %vm3657, %v3658, %v2921
      %v3660 = vand.u32 %v3659, 65535
      %v3661 = vshrl.u32 %v3659, 16
      %v3663 = vmul.u32 %v3660, 14564
      %v3664 = vmul.u32 %v3660, 58254
      %v3665 = vmul.u32 %v3661, 14564
      %v3666 = vmul.u32 %v3661, 58254
      %v3667 = vshll.u32 %v3664, 16
      %v3668 = vshrl.u32 %v3664, 16
      %v3669 = vshll.u32 %v3665, 16
      %v3670 = vshrl.u32 %v3665, 16
      %vm3671 = vc.u32 %v3663, %v3667
      %v3672 = vsel %vm3671, 1, 0
      %v3673 = vadd.s32 %v3663, %v3667
      %v3674 = vadd.s32 %v3666, %v3672
      %vm3675 = vc.u32 %v3673, %v3669
      %v3676 = vsel %vm3675, 1, 0
      %v3677 = vadd.s32 %v3673, %v3669
      %v3678 = vadd.s32 %v3674, %v3676
      %v3679 = vadd.s32 %v3678, %v3668
      %v3680 = vadd.s32 %v3679, %v3670
      %v3681 = vshrl.u32 %v3680, 4
      %v3682 = vmul.u32 %v3681, 18
      %v3683 = vsub.s32 %v3659, %v3682
      %v3684 = vsub.s32 0, %v3683
      %v3685 = vsel %vm3657, %v3684, %v3683
      %vm3686 = vcmp.lt.s32.totalorder %v2922, 0
      %v3687 = vsub.s32 0, %v2922
      %v3688 = vsel %vm3686, %v3687, %v2922
      %v3689 = vand.u32 %v3688, 65535
      %v3690 = vshrl.u32 %v3688, 16
      %v3692 = vmul.u32 %v3689, 14564
      %v3693 = vmul.u32 %v3689, 58254
      %v3694 = vmul.u32 %v3690, 14564
      %v3695 = vmul.u32 %v3690, 58254
      %v3696 = vshll.u32 %v3693, 16
      %v3697 = vshrl.u32 %v3693, 16
      %v3698 = vshll.u32 %v3694, 16
      %v3699 = vshrl.u32 %v3694, 16
      %vm3700 = vc.u32 %v3692, %v3696
      %v3701 = vsel %vm3700, 1, 0
      %v3702 = vadd.s32 %v3692, %v3696
      %v3703 = vadd.s32 %v3695, %v3701
      %vm3704 = vc.u32 %v3702, %v3698
      %v3705 = vsel %vm3704, 1, 0
      %v3706 = vadd.s32 %v3702, %v3698
      %v3707 = vadd.s32 %v3703, %v3705
      %v3708 = vadd.s32 %v3707, %v3697
      %v3709 = vadd.s32 %v3708, %v3699
      %v3710 = vshrl.u32 %v3709, 4
      %v3711 = vmul.u32 %v3710, 18
      %v3712 = vsub.s32 %v3688, %v3711
      %v3713 = vsub.s32 0, %v3712
      %v3714 = vsel %vm3686, %v3713, %v3712
      %vm3715 = vcmp.lt.s32.totalorder %v2923, 0
      %v3716 = vsub.s32 0, %v2923
      %v3717 = vsel %vm3715, %v3716, %v2923
      %v3718 = vand.u32 %v3717, 65535
      %v3719 = vshrl.u32 %v3717, 16
      %v3721 = vmul.u32 %v3718, 14564
      %v3722 = vmul.u32 %v3718, 58254
      %v3723 = vmul.u32 %v3719, 14564
      %v3724 = vmul.u32 %v3719, 58254
      %v3725 = vshll.u32 %v3722, 16
      %v3726 = vshrl.u32 %v3722, 16
      %v3727 = vshll.u32 %v3723, 16
      %v3728 = vshrl.u32 %v3723, 16
      %vm3729 = vc.u32 %v3721, %v3725
      %v3730 = vsel %vm3729, 1, 0
      %v3731 = vadd.s32 %v3721, %v3725
      %v3732 = vadd.s32 %v3724, %v3730
      %vm3733 = vc.u32 %v3731, %v3727
      %v3734 = vsel %vm3733, 1, 0
      %v3735 = vadd.s32 %v3731, %v3727
      %v3736 = vadd.s32 %v3732, %v3734
      %v3737 = vadd.s32 %v3736, %v3726
      %v3738 = vadd.s32 %v3737, %v3728
      %v3739 = vshrl.u32 %v3738, 4
      %v3740 = vmul.u32 %v3739, 18
      %v3741 = vsub.s32 %v3717, %v3740
      %v3742 = vsub.s32 0, %v3741
      %v3743 = vsel %vm3715, %v3742, %v3741
      %vm3744 = vcmp.lt.s32.totalorder %v2924, 0
      %v3745 = vsub.s32 0, %v2924
      %v3746 = vsel %vm3744, %v3745, %v2924
      %v3747 = vand.u32 %v3746, 65535
      %v3748 = vshrl.u32 %v3746, 16
      %v3750 = vmul.u32 %v3747, 14564
      %v3751 = vmul.u32 %v3747, 58254
      %v3752 = vmul.u32 %v3748, 14564
      %v3753 = vmul.u32 %v3748, 58254
      %v3754 = vshll.u32 %v3751, 16
      %v3755 = vshrl.u32 %v3751, 16
      %v3756 = vshll.u32 %v3752, 16
      %v3757 = vshrl.u32 %v3752, 16
      %vm3758 = vc.u32 %v3750, %v3754
      %v3759 = vsel %vm3758, 1, 0
      %v3760 = vadd.s32 %v3750, %v3754
      %v3761 = vadd.s32 %v3753, %v3759
      %vm3762 = vc.u32 %v3760, %v3756
      %v3763 = vsel %vm3762, 1, 0
      %v3764 = vadd.s32 %v3760, %v3756
      %v3765 = vadd.s32 %v3761, %v3763
      %v3766 = vadd.s32 %v3765, %v3755
      %v3767 = vadd.s32 %v3766, %v3757
      %v3768 = vshrl.u32 %v3767, 4
      %v3769 = vmul.u32 %v3768, 18
      %v3770 = vsub.s32 %v3746, %v3769
      %v3771 = vsub.s32 0, %v3770
      %v3772 = vsel %vm3744, %v3771, %v3770
      %vm3773 = vcmp.lt.s32.totalorder %v2925, 0
      %v3774 = vsub.s32 0, %v2925
      %v3775 = vsel %vm3773, %v3774, %v2925
      %v3776 = vand.u32 %v3775, 65535
      %v3777 = vshrl.u32 %v3775, 16
      %v3779 = vmul.u32 %v3776, 14564
      %v3780 = vmul.u32 %v3776, 58254
      %v3781 = vmul.u32 %v3777, 14564
      %v3782 = vmul.u32 %v3777, 58254
      %v3783 = vshll.u32 %v3780, 16
      %v3784 = vshrl.u32 %v3780, 16
      %v3785 = vshll.u32 %v3781, 16
      %v3786 = vshrl.u32 %v3781, 16
      %vm3787 = vc.u32 %v3779, %v3783
      %v3788 = vsel %vm3787, 1, 0
      %v3789 = vadd.s32 %v3779, %v3783
      %v3790 = vadd.s32 %v3782, %v3788
      %vm3791 = vc.u32 %v3789, %v3785
      %v3792 = vsel %vm3791, 1, 0
      %v3793 = vadd.s32 %v3789, %v3785
      %v3794 = vadd.s32 %v3790, %v3792
      %v3795 = vadd.s32 %v3794, %v3784
      %v3796 = vadd.s32 %v3795, %v3786
      %v3797 = vshrl.u32 %v3796, 4
      %v3798 = vmul.u32 %v3797, 18
      %v3799 = vsub.s32 %v3775, %v3798
      %v3800 = vsub.s32 0, %v3799
      %v3801 = vsel %vm3773, %v3800, %v3799
      %vm3802 = vcmp.lt.s32.totalorder %v2926, 0
      %v3803 = vsub.s32 0, %v2926
      %v3804 = vsel %vm3802, %v3803, %v2926
      %v3805 = vand.u32 %v3804, 65535
      %v3806 = vshrl.u32 %v3804, 16
      %v3808 = vmul.u32 %v3805, 14564
      %v3809 = vmul.u32 %v3805, 58254
      %v3810 = vmul.u32 %v3806, 14564
      %v3811 = vmul.u32 %v3806, 58254
      %v3812 = vshll.u32 %v3809, 16
      %v3813 = vshrl.u32 %v3809, 16
      %v3814 = vshll.u32 %v3810, 16
      %v3815 = vshrl.u32 %v3810, 16
      %vm3816 = vc.u32 %v3808, %v3812
      %v3817 = vsel %vm3816, 1, 0
      %v3818 = vadd.s32 %v3808, %v3812
      %v3819 = vadd.s32 %v3811, %v3817
      %vm3820 = vc.u32 %v3818, %v3814
      %v3821 = vsel %vm3820, 1, 0
      %v3822 = vadd.s32 %v3818, %v3814
      %v3823 = vadd.s32 %v3819, %v3821
      %v3824 = vadd.s32 %v3823, %v3813
      %v3825 = vadd.s32 %v3824, %v3815
      %v3826 = vshrl.u32 %v3825, 4
      %v3827 = vmul.u32 %v3826, 18
      %v3828 = vsub.s32 %v3804, %v3827
      %v3829 = vsub.s32 0, %v3828
      %v3830 = vsel %vm3802, %v3829, %v3828
      %vm3831 = vcmp.lt.s32.totalorder %v2927, 0
      %v3832 = vsub.s32 0, %v2927
      %v3833 = vsel %vm3831, %v3832, %v2927
      %v3834 = vand.u32 %v3833, 65535
      %v3835 = vshrl.u32 %v3833, 16
      %v3837 = vmul.u32 %v3834, 14564
      %v3838 = vmul.u32 %v3834, 58254
      %v3839 = vmul.u32 %v3835, 14564
      %v3840 = vmul.u32 %v3835, 58254
      %v3841 = vshll.u32 %v3838, 16
      %v3842 = vshrl.u32 %v3838, 16
      %v3843 = vshll.u32 %v3839, 16
      %v3844 = vshrl.u32 %v3839, 16
      %vm3845 = vc.u32 %v3837, %v3841
      %v3846 = vsel %vm3845, 1, 0
      %v3847 = vadd.s32 %v3837, %v3841
      %v3848 = vadd.s32 %v3840, %v3846
      %vm3849 = vc.u32 %v3847, %v3843
      %v3850 = vsel %vm3849, 1, 0
      %v3851 = vadd.s32 %v3847, %v3843
      %v3852 = vadd.s32 %v3848, %v3850
      %v3853 = vadd.s32 %v3852, %v3842
      %v3854 = vadd.s32 %v3853, %v3844
      %v3855 = vshrl.u32 %v3854, 4
      %v3856 = vmul.u32 %v3855, 18
      %v3857 = vsub.s32 %v3833, %v3856
      %v3858 = vsub.s32 0, %v3857
      %v3859 = vsel %vm3831, %v3858, %v3857
      %vm3860 = vcmp.lt.s32.totalorder %v2928, 0
      %v3861 = vsub.s32 0, %v2928
      %v3862 = vsel %vm3860, %v3861, %v2928
      %v3863 = vand.u32 %v3862, 65535
      %v3864 = vshrl.u32 %v3862, 16
      %v3866 = vmul.u32 %v3863, 14564
      %v3867 = vmul.u32 %v3863, 58254
      %v3868 = vmul.u32 %v3864, 14564
      %v3869 = vmul.u32 %v3864, 58254
      %v3870 = vshll.u32 %v3867, 16
      %v3871 = vshrl.u32 %v3867, 16
      %v3872 = vshll.u32 %v3868, 16
      %v3873 = vshrl.u32 %v3868, 16
      %vm3874 = vc.u32 %v3866, %v3870
      %v3875 = vsel %vm3874, 1, 0
      %v3876 = vadd.s32 %v3866, %v3870
      %v3877 = vadd.s32 %v3869, %v3875
      %vm3878 = vc.u32 %v3876, %v3872
      %v3879 = vsel %vm3878, 1, 0
      %v3880 = vadd.s32 %v3876, %v3872
      %v3881 = vadd.s32 %v3877, %v3879
      %v3882 = vadd.s32 %v3881, %v3871
      %v3883 = vadd.s32 %v3882, %v3873
      %v3884 = vshrl.u32 %v3883, 4
      %v3885 = vmul.u32 %v3884, 18
      %v3886 = vsub.s32 %v3862, %v3885
      %v3887 = vsub.s32 0, %v3886
      %v3888 = vsel %vm3860, %v3887, %v3886
      %vm3889 = vcmp.lt.s32.totalorder %v2929, 0
      %v3890 = vsub.s32 0, %v2929
      %v3891 = vsel %vm3889, %v3890, %v2929
      %v3892 = vand.u32 %v3891, 65535
      %v3893 = vshrl.u32 %v3891, 16
      %v3895 = vmul.u32 %v3892, 14564
      %v3896 = vmul.u32 %v3892, 58254
      %v3897 = vmul.u32 %v3893, 14564
      %v3898 = vmul.u32 %v3893, 58254
      %v3899 = vshll.u32 %v3896, 16
      %v3900 = vshrl.u32 %v3896, 16
      %v3901 = vshll.u32 %v3897, 16
      %v3902 = vshrl.u32 %v3897, 16
      %vm3903 = vc.u32 %v3895, %v3899
      %v3904 = vsel %vm3903, 1, 0
      %v3905 = vadd.s32 %v3895, %v3899
      %v3906 = vadd.s32 %v3898, %v3904
      %vm3907 = vc.u32 %v3905, %v3901
      %v3908 = vsel %vm3907, 1, 0
      %v3909 = vadd.s32 %v3905, %v3901
      %v3910 = vadd.s32 %v3906, %v3908
      %v3911 = vadd.s32 %v3910, %v3900
      %v3912 = vadd.s32 %v3911, %v3902
      %v3913 = vshrl.u32 %v3912, 4
      %v3914 = vmul.u32 %v3913, 18
      %v3915 = vsub.s32 %v3891, %v3914
      %v3916 = vsub.s32 0, %v3915
      %v3917 = vsel %vm3889, %v3916, %v3915
      %vm3918 = vcmp.lt.s32.totalorder %v2930, 0
      %v3919 = vsub.s32 0, %v2930
      %v3920 = vsel %vm3918, %v3919, %v2930
      %v3921 = vand.u32 %v3920, 65535
      %v3922 = vshrl.u32 %v3920, 16
      %v3924 = vmul.u32 %v3921, 14564
      %v3925 = vmul.u32 %v3921, 58254
      %v3926 = vmul.u32 %v3922, 14564
      %v3927 = vmul.u32 %v3922, 58254
      %v3928 = vshll.u32 %v3925, 16
      %v3929 = vshrl.u32 %v3925, 16
      %v3930 = vshll.u32 %v3926, 16
      %v3931 = vshrl.u32 %v3926, 16
      %vm3932 = vc.u32 %v3924, %v3928
      %v3933 = vsel %vm3932, 1, 0
      %v3934 = vadd.s32 %v3924, %v3928
      %v3935 = vadd.s32 %v3927, %v3933
      %vm3936 = vc.u32 %v3934, %v3930
      %v3937 = vsel %vm3936, 1, 0
      %v3938 = vadd.s32 %v3934, %v3930
      %v3939 = vadd.s32 %v3935, %v3937
      %v3940 = vadd.s32 %v3939, %v3929
      %v3941 = vadd.s32 %v3940, %v3931
      %v3942 = vshrl.u32 %v3941, 4
      %v3943 = vmul.u32 %v3942, 18
      %v3944 = vsub.s32 %v3920, %v3943
      %v3945 = vsub.s32 0, %v3944
      %v3946 = vsel %vm3918, %v3945, %v3944
      %vm3947 = vcmp.lt.s32.totalorder %v2931, 0
      %v3948 = vsub.s32 0, %v2931
      %v3949 = vsel %vm3947, %v3948, %v2931
      %v3950 = vand.u32 %v3949, 65535
      %v3951 = vshrl.u32 %v3949, 16
      %v3953 = vmul.u32 %v3950, 14564
      %v3954 = vmul.u32 %v3950, 58254
      %v3955 = vmul.u32 %v3951, 14564
      %v3956 = vmul.u32 %v3951, 58254
      %v3957 = vshll.u32 %v3954, 16
      %v3958 = vshrl.u32 %v3954, 16
      %v3959 = vshll.u32 %v3955, 16
      %v3960 = vshrl.u32 %v3955, 16
      %vm3961 = vc.u32 %v3953, %v3957
      %v3962 = vsel %vm3961, 1, 0
      %v3963 = vadd.s32 %v3953, %v3957
      %v3964 = vadd.s32 %v3956, %v3962
      %vm3965 = vc.u32 %v3963, %v3959
      %v3966 = vsel %vm3965, 1, 0
      %v3967 = vadd.s32 %v3963, %v3959
      %v3968 = vadd.s32 %v3964, %v3966
      %v3969 = vadd.s32 %v3968, %v3958
      %v3970 = vadd.s32 %v3969, %v3960
      %v3971 = vshrl.u32 %v3970, 4
      %v3972 = vmul.u32 %v3971, 18
      %v3973 = vsub.s32 %v3949, %v3972
      %v3974 = vsub.s32 0, %v3973
      %v3975 = vsel %vm3947, %v3974, %v3973
      %vm3976 = vcmp.ne.s32.totalorder %v2960, 0
      %vm3977 = vcmp.ne.s32.totalorder %v2989, 0
      %vm3978 = vcmp.ne.s32.totalorder %v3018, 0
      %vm3979 = vcmp.ne.s32.totalorder %v3047, 0
      %vm3980 = vcmp.ne.s32.totalorder %v3076, 0
      %vm3981 = vcmp.ne.s32.totalorder %v3105, 0
      %vm3982 = vcmp.ne.s32.totalorder %v3134, 0
      %vm3983 = vcmp.ne.s32.totalorder %v3163, 0
      %vm3984 = vcmp.ne.s32.totalorder %v3192, 0
      %vm3985 = vcmp.ne.s32.totalorder %v3221, 0
      %vm3986 = vcmp.ne.s32.totalorder %v3250, 0
      %vm3987 = vcmp.ne.s32.totalorder %v3279, 0
      %vm3988 = vcmp.ne.s32.totalorder %v3308, 0
      %vm3989 = vcmp.ne.s32.totalorder %v3337, 0
      %vm3990 = vcmp.ne.s32.totalorder %v3366, 0
      %vm3991 = vcmp.ne.s32.totalorder %v3395, 0
      %vm3992 = vcmp.ne.s32.totalorder %v3424, 0
      %vm3993 = vcmp.ne.s32.totalorder %v3453, 0
      %vm3994 = vcmp.ne.s32.totalorder %v3482, 0
      %vm3995 = vcmp.ne.s32.totalorder %v3511, 0
      %vm3996 = vcmp.ne.s32.totalorder %v3540, 0
      %vm3997 = vcmp.ne.s32.totalorder %v3569, 0
      %vm3998 = vcmp.ne.s32.totalorder %v3598, 0
      %vm3999 = vcmp.ne.s32.totalorder %v3627, 0
      %vm4000 = vcmp.ne.s32.totalorder %v3656, 0
      %vm4001 = vcmp.ne.s32.totalorder %v3685, 0
      %vm4002 = vcmp.ne.s32.totalorder %v3714, 0
      %vm4003 = vcmp.ne.s32.totalorder %v3743, 0
      %vm4004 = vcmp.ne.s32.totalorder %v3772, 0
      %vm4005 = vcmp.ne.s32.totalorder %v3801, 0
      %vm4006 = vcmp.ne.s32.totalorder %v3830, 0
      %vm4007 = vcmp.ne.s32.totalorder %v3859, 0
      %vm4008 = vcmp.ne.s32.totalorder %v3888, 0
      %vm4009 = vcmp.ne.s32.totalorder %v3917, 0
      %vm4010 = vcmp.ne.s32.totalorder %v3946, 0
      %vm4011 = vcmp.ne.s32.totalorder %v3975, 0
      %vm4012 = vcmp.lt.s32.totalorder %v2960, 0
      %vm4013 = vcmp.lt.s32.totalorder %v2989, 0
      %vm4014 = vcmp.lt.s32.totalorder %v3018, 0
      %vm4015 = vcmp.lt.s32.totalorder %v3047, 0
      %vm4016 = vcmp.lt.s32.totalorder %v3076, 0
      %vm4017 = vcmp.lt.s32.totalorder %v3105, 0
      %vm4018 = vcmp.lt.s32.totalorder %v3134, 0
      %vm4019 = vcmp.lt.s32.totalorder %v3163, 0
      %vm4020 = vcmp.lt.s32.totalorder %v3192, 0
      %vm4021 = vcmp.lt.s32.totalorder %v3221, 0
      %vm4022 = vcmp.lt.s32.totalorder %v3250, 0
      %vm4023 = vcmp.lt.s32.totalorder %v3279, 0
      %vm4024 = vcmp.lt.s32.totalorder %v3308, 0
      %vm4025 = vcmp.lt.s32.totalorder %v3337, 0
      %vm4026 = vcmp.lt.s32.totalorder %v3366, 0
      %vm4027 = vcmp.lt.s32.totalorder %v3395, 0
      %vm4028 = vcmp.lt.s32.totalorder %v3424, 0
      %vm4029 = vcmp.lt.s32.totalorder %v3453, 0
      %vm4030 = vcmp.lt.s32.totalorder %v3482, 0
      %vm4031 = vcmp.lt.s32.totalorder %v3511, 0
      %vm4032 = vcmp.lt.s32.totalorder %v3540, 0
      %vm4033 = vcmp.lt.s32.totalorder %v3569, 0
      %vm4034 = vcmp.lt.s32.totalorder %v3598, 0
      %vm4035 = vcmp.lt.s32.totalorder %v3627, 0
      %vm4036 = vcmp.lt.s32.totalorder %v3656, 0
      %vm4037 = vcmp.lt.s32.totalorder %v3685, 0
      %vm4038 = vcmp.lt.s32.totalorder %v3714, 0
      %vm4039 = vcmp.lt.s32.totalorder %v3743, 0
      %vm4040 = vcmp.lt.s32.totalorder %v3772, 0
      %vm4041 = vcmp.lt.s32.totalorder %v3801, 0
      %vm4042 = vcmp.lt.s32.totalorder %v3830, 0
      %vm4043 = vcmp.lt.s32.totalorder %v3859, 0
      %vm4044 = vcmp.lt.s32.totalorder %v3888, 0
      %vm4045 = vcmp.lt.s32.totalorder %v3917, 0
      %vm4046 = vcmp.lt.s32.totalorder %v3946, 0
      %vm4047 = vcmp.lt.s32.totalorder %v3975, 0
      %vm4048 = vmand %vm4012, %vm3976
      %vm4049 = vmand %vm4013, %vm3977
      %vm4050 = vmand %vm4014, %vm3978
      %vm4051 = vmand %vm4015, %vm3979
      %vm4052 = vmand %vm4016, %vm3980
      %vm4053 = vmand %vm4017, %vm3981
      %vm4054 = vmand %vm4018, %vm3982
      %vm4055 = vmand %vm4019, %vm3983
      %vm4056 = vmand %vm4020, %vm3984
      %vm4057 = vmand %vm4021, %vm3985
      %vm4058 = vmand %vm4022, %vm3986
      %vm4059 = vmand %vm4023, %vm3987
      %vm4060 = vmand %vm4024, %vm3988
      %vm4061 = vmand %vm4025, %vm3989
      %vm4062 = vmand %vm4026, %vm3990
      %vm4063 = vmand %vm4027, %vm3991
      %vm4064 = vmand %vm4028, %vm3992
      %vm4065 = vmand %vm4029, %vm3993
      %vm4066 = vmand %vm4030, %vm3994
      %vm4067 = vmand %vm4031, %vm3995
      %vm4068 = vmand %vm4032, %vm3996
      %vm4069 = vmand %vm4033, %vm3997
      %vm4070 = vmand %vm4034, %vm3998
      %vm4071 = vmand %vm4035, %vm3999
      %vm4072 = vmand %vm4036, %vm4000
      %vm4073 = vmand %vm4037, %vm4001
      %vm4074 = vmand %vm4038, %vm4002
      %vm4075 = vmand %vm4039, %vm4003
      %vm4076 = vmand %vm4040, %vm4004
      %vm4077 = vmand %vm4041, %vm4005
      %vm4078 = vmand %vm4042, %vm4006
      %vm4079 = vmand %vm4043, %vm4007
      %vm4080 = vmand %vm4044, %vm4008
      %vm4081 = vmand %vm4045, %vm4009
      %vm4082 = vmand %vm4046, %vm4010
      %vm4083 = vmand %vm4047, %vm4011
      %v4084 = vadd.s32 %v2960, 18
      %v4085 = vadd.s32 %v2989, 18
      %v4086 = vadd.s32 %v3018, 18
      %v4087 = vadd.s32 %v3047, 18
      %v4088 = vadd.s32 %v3076, 18
      %v4089 = vadd.s32 %v3105, 18
      %v4090 = vadd.s32 %v3134, 18
      %v4091 = vadd.s32 %v3163, 18
      %v4092 = vadd.s32 %v3192, 18
      %v4093 = vadd.s32 %v3221, 18
      %v4094 = vadd.s32 %v3250, 18
      %v4095 = vadd.s32 %v3279, 18
      %v4096 = vadd.s32 %v3308, 18
      %v4097 = vadd.s32 %v3337, 18
      %v4098 = vadd.s32 %v3366, 18
      %v4099 = vadd.s32 %v3395, 18
      %v4100 = vadd.s32 %v3424, 18
      %v4101 = vadd.s32 %v3453, 18
      %v4102 = vadd.s32 %v3482, 18
      %v4103 = vadd.s32 %v3511, 18
      %v4104 = vadd.s32 %v3540, 18
      %v4105 = vadd.s32 %v3569, 18
      %v4106 = vadd.s32 %v3598, 18
      %v4107 = vadd.s32 %v3627, 18
      %v4108 = vadd.s32 %v3656, 18
      %v4109 = vadd.s32 %v3685, 18
      %v4110 = vadd.s32 %v3714, 18
      %v4111 = vadd.s32 %v3743, 18
      %v4112 = vadd.s32 %v3772, 18
      %v4113 = vadd.s32 %v3801, 18
      %v4114 = vadd.s32 %v3830, 18
      %v4115 = vadd.s32 %v3859, 18
      %v4116 = vadd.s32 %v3888, 18
      %v4117 = vadd.s32 %v3917, 18
      %v4118 = vadd.s32 %v3946, 18
      %v4119 = vadd.s32 %v3975, 18
      %v4120 = vsel %vm4048, %v4084, %v2960
      %v4121 = vsel %vm4049, %v4085, %v2989
      %v4122 = vsel %vm4050, %v4086, %v3018
      %v4123 = vsel %vm4051, %v4087, %v3047
      %v4124 = vsel %vm4052, %v4088, %v3076
      %v4125 = vsel %vm4053, %v4089, %v3105
      %v4126 = vsel %vm4054, %v4090, %v3134
      %v4127 = vsel %vm4055, %v4091, %v3163
      %v4128 = vsel %vm4056, %v4092, %v3192
      %v4129 = vsel %vm4057, %v4093, %v3221
      %v4130 = vsel %vm4058, %v4094, %v3250
      %v4131 = vsel %vm4059, %v4095, %v3279
      %v4132 = vsel %vm4060, %v4096, %v3308
      %v4133 = vsel %vm4061, %v4097, %v3337
      %v4134 = vsel %vm4062, %v4098, %v3366
      %v4135 = vsel %vm4063, %v4099, %v3395
      %v4136 = vsel %vm4064, %v4100, %v3424
      %v4137 = vsel %vm4065, %v4101, %v3453
      %v4138 = vsel %vm4066, %v4102, %v3482
      %v4139 = vsel %vm4067, %v4103, %v3511
      %v4140 = vsel %vm4068, %v4104, %v3540
      %v4141 = vsel %vm4069, %v4105, %v3569
      %v4142 = vsel %vm4070, %v4106, %v3598
      %v4143 = vsel %vm4071, %v4107, %v3627
      %v4144 = vsel %vm4072, %v4108, %v3656
      %v4145 = vsel %vm4073, %v4109, %v3685
      %v4146 = vsel %vm4074, %v4110, %v3714
      %v4147 = vsel %vm4075, %v4111, %v3743
      %v4148 = vsel %vm4076, %v4112, %v3772
      %v4149 = vsel %vm4077, %v4113, %v3801
      %v4150 = vsel %vm4078, %v4114, %v3830
      %v4151 = vsel %vm4079, %v4115, %v3859
      %v4152 = vsel %vm4080, %v4116, %v3888
      %v4153 = vsel %vm4081, %v4117, %v3917
      %v4154 = vsel %vm4082, %v4118, %v3946
      %v4155 = vsel %vm4083, %v4119, %v3975
      %vm4156 = vcmp.lt.s32.totalorder %v4120, 16
      %vm4157 = vcmp.lt.s32.totalorder %v4121, 16
      %vm4158 = vcmp.lt.s32.totalorder %v4122, 16
      %vm4159 = vcmp.lt.s32.totalorder %v4123, 16
      %vm4160 = vcmp.lt.s32.totalorder %v4124, 16
      %vm4161 = vcmp.lt.s32.totalorder %v4125, 16
      %vm4162 = vcmp.lt.s32.totalorder %v4126, 16
      %vm4163 = vcmp.lt.s32.totalorder %v4127, 16
      %vm4164 = vcmp.lt.s32.totalorder %v4128, 16
      %vm4165 = vcmp.lt.s32.totalorder %v4129, 16
      %vm4166 = vcmp.lt.s32.totalorder %v4130, 16
      %vm4167 = vcmp.lt.s32.totalorder %v4131, 16
      %vm4168 = vcmp.lt.s32.totalorder %v4132, 16
      %vm4169 = vcmp.lt.s32.totalorder %v4133, 16
      %vm4170 = vcmp.lt.s32.totalorder %v4134, 16
      %vm4171 = vcmp.lt.s32.totalorder %v4135, 16
      %vm4172 = vcmp.lt.s32.totalorder %v4136, 16
      %vm4173 = vcmp.lt.s32.totalorder %v4137, 16
      %vm4174 = vcmp.lt.s32.totalorder %v4138, 16
      %vm4175 = vcmp.lt.s32.totalorder %v4139, 16
      %vm4176 = vcmp.lt.s32.totalorder %v4140, 16
      %vm4177 = vcmp.lt.s32.totalorder %v4141, 16
      %vm4178 = vcmp.lt.s32.totalorder %v4142, 16
      %vm4179 = vcmp.lt.s32.totalorder %v4143, 16
      %vm4180 = vcmp.lt.s32.totalorder %v4144, 16
      %vm4181 = vcmp.lt.s32.totalorder %v4145, 16
      %vm4182 = vcmp.lt.s32.totalorder %v4146, 16
      %vm4183 = vcmp.lt.s32.totalorder %v4147, 16
      %vm4184 = vcmp.lt.s32.totalorder %v4148, 16
      %vm4185 = vcmp.lt.s32.totalorder %v4149, 16
      %vm4186 = vcmp.lt.s32.totalorder %v4150, 16
      %vm4187 = vcmp.lt.s32.totalorder %v4151, 16
      %vm4188 = vcmp.lt.s32.totalorder %v4152, 16
      %vm4189 = vcmp.lt.s32.totalorder %v4153, 16
      %vm4190 = vcmp.lt.s32.totalorder %v4154, 16
      %vm4191 = vcmp.lt.s32.totalorder %v4155, 16
      %v4192 = vsel %vm4156, 1, 0
      %v4193 = vsel %vm4157, 1, 0
      %v4194 = vsel %vm4158, 1, 0
      %v4195 = vsel %vm4159, 1, 0
      %v4196 = vsel %vm4160, 1, 0
      %v4197 = vsel %vm4161, 1, 0
      %v4198 = vsel %vm4162, 1, 0
      %v4199 = vsel %vm4163, 1, 0
      %v4200 = vsel %vm4164, 1, 0
      %v4201 = vsel %vm4165, 1, 0
      %v4202 = vsel %vm4166, 1, 0
      %v4203 = vsel %vm4167, 1, 0
      %v4204 = vsel %vm4168, 1, 0
      %v4205 = vsel %vm4169, 1, 0
      %v4206 = vsel %vm4170, 1, 0
      %v4207 = vsel %vm4171, 1, 0
      %v4208 = vsel %vm4172, 1, 0
      %v4209 = vsel %vm4173, 1, 0
      %v4210 = vsel %vm4174, 1, 0
      %v4211 = vsel %vm4175, 1, 0
      %v4212 = vsel %vm4176, 1, 0
      %v4213 = vsel %vm4177, 1, 0
      %v4214 = vsel %vm4178, 1, 0
      %v4215 = vsel %vm4179, 1, 0
      %v4216 = vsel %vm4180, 1, 0
      %v4217 = vsel %vm4181, 1, 0
      %v4218 = vsel %vm4182, 1, 0
      %v4219 = vsel %vm4183, 1, 0
      %v4220 = vsel %vm4184, 1, 0
      %v4221 = vsel %vm4185, 1, 0
      %v4222 = vsel %vm4186, 1, 0
      %v4223 = vsel %vm4187, 1, 0
      %v4224 = vsel %vm4188, 1, 0
      %v4225 = vsel %vm4189, 1, 0
      %v4226 = vsel %vm4190, 1, 0
      %v4227 = vsel %vm4191, 1, 0
      %vm4228 = vcmp.eq.s32.totalorder %v4192, 1
      %vm4229 = vcmp.eq.s32.totalorder %v4193, 1
      %vm4230 = vcmp.eq.s32.totalorder %v4194, 1
      %vm4231 = vcmp.eq.s32.totalorder %v4195, 1
      %vm4232 = vcmp.eq.s32.totalorder %v4196, 1
      %vm4233 = vcmp.eq.s32.totalorder %v4197, 1
      %vm4234 = vcmp.eq.s32.totalorder %v4198, 1
      %vm4235 = vcmp.eq.s32.totalorder %v4199, 1
      %vm4236 = vcmp.eq.s32.totalorder %v4200, 1
      %vm4237 = vcmp.eq.s32.totalorder %v4201, 1
      %vm4238 = vcmp.eq.s32.totalorder %v4202, 1
      %vm4239 = vcmp.eq.s32.totalorder %v4203, 1
      %vm4240 = vcmp.eq.s32.totalorder %v4204, 1
      %vm4241 = vcmp.eq.s32.totalorder %v4205, 1
      %vm4242 = vcmp.eq.s32.totalorder %v4206, 1
      %vm4243 = vcmp.eq.s32.totalorder %v4207, 1
      %vm4244 = vcmp.eq.s32.totalorder %v4208, 1
      %vm4245 = vcmp.eq.s32.totalorder %v4209, 1
      %vm4246 = vcmp.eq.s32.totalorder %v4210, 1
      %vm4247 = vcmp.eq.s32.totalorder %v4211, 1
      %vm4248 = vcmp.eq.s32.totalorder %v4212, 1
      %vm4249 = vcmp.eq.s32.totalorder %v4213, 1
      %vm4250 = vcmp.eq.s32.totalorder %v4214, 1
      %vm4251 = vcmp.eq.s32.totalorder %v4215, 1
      %vm4252 = vcmp.eq.s32.totalorder %v4216, 1
      %vm4253 = vcmp.eq.s32.totalorder %v4217, 1
      %vm4254 = vcmp.eq.s32.totalorder %v4218, 1
      %vm4255 = vcmp.eq.s32.totalorder %v4219, 1
      %vm4256 = vcmp.eq.s32.totalorder %v4220, 1
      %vm4257 = vcmp.eq.s32.totalorder %v4221, 1
      %vm4258 = vcmp.eq.s32.totalorder %v4222, 1
      %vm4259 = vcmp.eq.s32.totalorder %v4223, 1
      %vm4260 = vcmp.eq.s32.totalorder %v4224, 1
      %vm4261 = vcmp.eq.s32.totalorder %v4225, 1
      %vm4262 = vcmp.eq.s32.totalorder %v4226, 1
      %vm4263 = vcmp.eq.s32.totalorder %v4227, 1
      %v4264 = vsel %vm4228, %v2859, 0.0
      %v4265 = vsel %vm4229, %v2860, 0.0
      %v4266 = vsel %vm4230, %v2861, 0.0
      %v4267 = vsel %vm4231, %v2862, 0.0
      %v4268 = vsel %vm4232, %v2863, 0.0
      %v4269 = vsel %vm4233, %v2864, 0.0
      %v4270 = vsel %vm4234, %v2865, 0.0
      %v4271 = vsel %vm4235, %v2866, 0.0
      %v4272 = vsel %vm4236, %v2867, 0.0
      %v4273 = vsel %vm4237, %v2868, 0.0
      %v4274 = vsel %vm4238, %v2869, 0.0
      %v4275 = vsel %vm4239, %v2870, 0.0
      %v4276 = vsel %vm4240, %v2871, 0.0
      %v4277 = vsel %vm4241, %v2872, 0.0
      %v4278 = vsel %vm4242, %v2873, 0.0
      %v4279 = vsel %vm4243, %v2874, 0.0
      %v4280 = vsel %vm4244, %v2875, 0.0
      %v4281 = vsel %vm4245, %v2876, 0.0
      %v4282 = vsel %vm4246, %v2877, 0.0
      %v4283 = vsel %vm4247, %v2878, 0.0
      %v4284 = vsel %vm4248, %v2879, 0.0
      %v4285 = vsel %vm4249, %v2880, 0.0
      %v4286 = vsel %vm4250, %v2881, 0.0
      %v4287 = vsel %vm4251, %v2882, 0.0
      %v4288 = vsel %vm4252, %v2883, 0.0
      %v4289 = vsel %vm4253, %v2884, 0.0
      %v4290 = vsel %vm4254, %v2885, 0.0
      %v4291 = vsel %vm4255, %v2886, 0.0
      %v4292 = vsel %vm4256, %v2887, 0.0
      %v4293 = vsel %vm4257, %v2888, 0.0
      %v4294 = vsel %vm4258, %v2889, 0.0
      %v4295 = vsel %vm4259, %v2890, 0.0
      %v4296 = vsel %vm4260, %v2891, 0.0
      %v4297 = vsel %vm4261, %v2892, 0.0
      %v4298 = vsel %vm4262, %v2893, 0.0
      %v4299 = vsel %vm4263, %v2894, 0.0
      %v4300 = vadd.f32 %v4264, %v4265
      %v4301 = vadd.f32 %v4300, %v4266
      %v4302 = vadd.f32 %v4301, %v4267
      %v4303 = vadd.f32 %v4302, %v4268
      %v4304 = vadd.f32 %v4303, %v4269
      %v4305 = vadd.f32 %v4304, %v4270
      %v4306 = vadd.f32 %v4305, %v4271
      %v4307 = vadd.f32 %v4306, %v4272
      %v4308 = vadd.f32 %v4307, %v4273
      %v4309 = vadd.f32 %v4308, %v4274
      %v4310 = vadd.f32 %v4309, %v4275
      %v4311 = vadd.f32 %v4310, %v4276
      %v4312 = vadd.f32 %v4311, %v4277
      %v4313 = vadd.f32 %v4312, %v4278
      %v4314 = vadd.f32 %v4313, %v4279
      %v4315 = vadd.f32 %v4314, %v4280
      %v4316 = vadd.f32 %v4315, %v4281
      %v4317 = vadd.f32 %v4316, %v4282
      %v4318 = vadd.f32 %v4317, %v4283
      %v4319 = vadd.f32 %v4318, %v4284
      %v4320 = vadd.f32 %v4319, %v4285
      %v4321 = vadd.f32 %v4320, %v4286
      %v4322 = vadd.f32 %v4321, %v4287
      %v4323 = vadd.f32 %v4322, %v4288
      %v4324 = vadd.f32 %v4323, %v4289
      %v4325 = vadd.f32 %v4324, %v4290
      %v4326 = vadd.f32 %v4325, %v4291
      %v4327 = vadd.f32 %v4326, %v4292
      %v4328 = vadd.f32 %v4327, %v4293
      %v4329 = vadd.f32 %v4328, %v4294
      %v4330 = vadd.f32 %v4329, %v4295
      %v4331 = vadd.f32 %v4330, %v4296
      %v4332 = vadd.f32 %v4331, %v4297
      %v4333 = vadd.f32 %v4332, %v4298
      %v4334 = vadd.f32 %v4333, %v4299
      %v4335 = vrot.slane %v4334, 4
      %v4336 = vadd.f32 %v4334, %v4335
      %v4337 = vrot.slane %v4336, 2
      %v4338 = vadd.f32 %v4336, %v4337
      %v4339 = vrot.slane %v4338, 1
      %v4340 = vadd.f32 %v4338, %v4339
      %4341 = vst [vmem:[%s172] sm:$0x1] %v4340
      %v4342 = vmul.f32 %v4264, %v4264
      %v4343 = vmul.f32 %v4265, %v4265
      %v4344 = vmul.f32 %v4266, %v4266
      %v4345 = vmul.f32 %v4267, %v4267
      %v4346 = vmul.f32 %v4268, %v4268
      %v4347 = vmul.f32 %v4269, %v4269
      %v4348 = vmul.f32 %v4270, %v4270
      %v4349 = vmul.f32 %v4271, %v4271
      %v4350 = vmul.f32 %v4272, %v4272
      %v4351 = vmul.f32 %v4273, %v4273
      %v4352 = vmul.f32 %v4274, %v4274
      %v4353 = vmul.f32 %v4275, %v4275
      %v4354 = vmul.f32 %v4276, %v4276
      %v4355 = vmul.f32 %v4277, %v4277
      %v4356 = vmul.f32 %v4278, %v4278
      %v4357 = vmul.f32 %v4279, %v4279
      %v4358 = vmul.f32 %v4280, %v4280
      %v4359 = vmul.f32 %v4281, %v4281
      %v4360 = vmul.f32 %v4282, %v4282
      %v4361 = vmul.f32 %v4283, %v4283
      %v4362 = vmul.f32 %v4284, %v4284
      %v4363 = vmul.f32 %v4285, %v4285
      %v4364 = vmul.f32 %v4286, %v4286
      %v4365 = vmul.f32 %v4287, %v4287
      %v4366 = vmul.f32 %v4288, %v4288
      %v4367 = vmul.f32 %v4289, %v4289
      %v4368 = vmul.f32 %v4290, %v4290
      %v4369 = vmul.f32 %v4291, %v4291
      %v4370 = vmul.f32 %v4292, %v4292
      %v4371 = vmul.f32 %v4293, %v4293
      %v4372 = vmul.f32 %v4294, %v4294
      %v4373 = vmul.f32 %v4295, %v4295
      %v4374 = vmul.f32 %v4296, %v4296
      %v4375 = vmul.f32 %v4297, %v4297
      %v4376 = vmul.f32 %v4298, %v4298
      %v4377 = vmul.f32 %v4299, %v4299
      %v4378 = vadd.f32 %v4342, %v4343
      %v4379 = vadd.f32 %v4378, %v4344
      %v4380 = vadd.f32 %v4379, %v4345
      %v4381 = vadd.f32 %v4380, %v4346
      %v4382 = vadd.f32 %v4381, %v4347
      %v4383 = vadd.f32 %v4382, %v4348
      %v4384 = vadd.f32 %v4383, %v4349
      %v4385 = vadd.f32 %v4384, %v4350
      %v4386 = vadd.f32 %v4385, %v4351
      %v4387 = vadd.f32 %v4386, %v4352
      %v4388 = vadd.f32 %v4387, %v4353
      %v4389 = vadd.f32 %v4388, %v4354
      %v4390 = vadd.f32 %v4389, %v4355
      %v4391 = vadd.f32 %v4390, %v4356
      %v4392 = vadd.f32 %v4391, %v4357
      %v4393 = vadd.f32 %v4392, %v4358
      %v4394 = vadd.f32 %v4393, %v4359
      %v4395 = vadd.f32 %v4394, %v4360
      %v4396 = vadd.f32 %v4395, %v4361
      %v4397 = vadd.f32 %v4396, %v4362
      %v4398 = vadd.f32 %v4397, %v4363
      %v4399 = vadd.f32 %v4398, %v4364
      %v4400 = vadd.f32 %v4399, %v4365
      %v4401 = vadd.f32 %v4400, %v4366
      %v4402 = vadd.f32 %v4401, %v4367
      %v4403 = vadd.f32 %v4402, %v4368
      %v4404 = vadd.f32 %v4403, %v4369
      %v4405 = vadd.f32 %v4404, %v4370
      %v4406 = vadd.f32 %v4405, %v4371
      %v4407 = vadd.f32 %v4406, %v4372
      %v4408 = vadd.f32 %v4407, %v4373
      %v4409 = vadd.f32 %v4408, %v4374
      %v4410 = vadd.f32 %v4409, %v4375
      %v4411 = vadd.f32 %v4410, %v4376
      %v4412 = vadd.f32 %v4411, %v4377
      %v4413 = vrot.slane %v4412, 4
      %v4414 = vadd.f32 %v4412, %v4413
      %v4415 = vrot.slane %v4414, 2
      %v4416 = vadd.f32 %v4414, %v4415
      %v4417 = vrot.slane %v4416, 1
      %v4418 = vadd.f32 %v4416, %v4417
      %4419 = vst [vmem:[%s175] sm:$0x1] %v4418
      %p4420 = scmp.lt.s32.totalorder %s15, 1
      %s4421 = scalar_select %p4420, %s15, 1
      %s4422 = scalar_lea.vmem %s2, %s4421
      %p4423 = scmp.lt.s32.totalorder %s15, 1
      %s4424 = scalar_select %p4423, %s15, 1
      %s4425 = scalar_lea.vmem %s3, %s4424
      // Predicated region
      $region29: #{convbn_forward.2} parent=27 // pred_check
        %p4426 = pneg %p80
      $region30: #{convbn_forward.2} parent=27 // pred_check_branch
        %4428 = sbr.rel (%p4426) target = $region32
      $region31: #{convbn_forward.2} parent=27 // pred_region
        _
      $region32: #{convbn_forward.2} parent=27 // pred_fallthru
        _
      // Predicated region
      $region33: #{convbn_forward.2} parent=27 // pred_check
        %p4429 = pneg %p106
      $region34: #{convbn_forward.2} parent=27 // pred_check_branch
        %4431 = sbr.rel (%p4429) target = $region36
      $region35: #{convbn_forward.2} parent=27 // pred_region
        _
      $region36: #{convbn_forward.2} parent=27 // pred_fallthru
        _
    $region28: #{convbn_forward.2} parent=5 // pred_fallthru
      _
    %p4432 = scmp.le.s32.totalorder 2, %s10
    // Predicated region
    $region37: #{convbn_forward.2} parent=5 // pred_check
      %p4433 = pneg %p4432
    $region38: #{convbn_forward.2} parent=5 // pred_check_branch
      %4435 = sbr.rel (%p4433) target = $region40
    $region39: #{convbn_forward.2} parent=5 // pred_region
      %s4436 = ssub.s32 %s10, 2
      // Predicated region
      $region41: #{convbn_forward.2} parent=39 // pred_check
        %p4437 = pneg %p86
      $region42: #{convbn_forward.2} parent=39 // pred_check_branch
        %4439 = sbr.rel (%p4437) target = $region44
      $region43: #{convbn_forward.2} parent=39 // pred_region
        %p4440 = scmp.lt.s32.totalorder %s16, 1
        %s4441 = scalar_select %p4440, %s16, 1
        %s4442 = scalar_lea.vmem %s2, %s4441
      $region44: #{convbn_forward.2} parent=39 // pred_fallthru
        _
      // Predicated region
      $region45: #{convbn_forward.2} parent=39 // pred_check
        %p4443 = pneg %p112
      $region46: #{convbn_forward.2} parent=39 // pred_check_branch
        %4445 = sbr.rel (%p4443) target = $region48
      $region47: #{convbn_forward.2} parent=39 // pred_region
        %p4446 = scmp.lt.s32.totalorder %s16, 1
        %s4447 = scalar_select %p4446, %s16, 1
        %s4448 = scalar_lea.vmem %s3, %s4447
      $region48: #{convbn_forward.2} parent=39 // pred_fallthru
        _
    $region40: #{convbn_forward.2} parent=5 // pred_fallthru
      _
  $region6: #{convbn_forward.2} parent=0 // loop_footer
    %s14 = sadd.s32 1, %s10
  $region7: #{convbn_forward.2} parent=0 // loop_footer_branch
    %9 = sbr.rel target = $region3
  $region8: #{convbn_forward.2} parent=0 // loop_exit
    _

</llo_original>
